<compile_context>
chip_gen: v5e
topology: v5e:2x2
jax: 0.10.0
libtpu: 0.0.40
codegen_flags: <defaults>
</compile_context>

<pallas_src>
import math
from functools import partial

import jax
import jax.numpy as jnp
from jax.experimental import pallas as pl
from jax.experimental.pallas import tpu as pltpu


# ----------------------------------------------------------------------------
# VMEM budget (per-generation) and tiling helpers
# ----------------------------------------------------------------------------
_VMEM_BUDGET = None


def _vmem_budget_bytes():
    """~75% of physical VMEM, capped at 100 MiB (v5e/v6e: ~96 MiB, v7x: ~48 MiB)."""
    global _VMEM_BUDGET
    if _VMEM_BUDGET is None:
        cap = 0
        try:
            cap = int(getattr(pltpu.get_tpu_info(), "vmem_capacity_bytes", 0) or 0)
        except Exception:
            cap = 0
        if cap <= 0:
            cap = 64 << 20  # conservative fallback (safe on every generation)
        _VMEM_BUDGET = min((cap * 3) // 4, 100 << 20)
    return _VMEM_BUDGET


def _pick_row_tile(M, row_bytes, fixed_bytes, budget, cap=1024):
    """Largest row tile (multiple of 8, <= cap) fitting the VMEM budget; prefers >=2 grid
    steps so both v7x TensorCores are used.  Caller pads M up to a multiple of the tile."""
    if M < 8:
        return M
    tm = min(cap, (M // 8) * 8)
    if M >= 16:
        tm = min(tm, max(8, ((M // 2) // 8) * 8))
    while tm > 8 and fixed_bytes + tm * row_bytes > budget:
        tm -= 8
    return max(8, tm)


def _pick_col_tile(N, K, w_itemsize, budget):
    """Output-column tile: full N when the weight block fits, else a 256/128-multiple
    divisor of N (keeps the 256-wide MXU on v6e/v7x fed)."""
    cap = budget // 3
    if N <= 512 or 2 * K * N * w_itemsize <= cap or N % 128 != 0:
        return N
    for step in (256, 128):
        t = (N // step) * step
        while t >= step:
            if N % t == 0 and 2 * K * t * w_itemsize <= cap:
                return t
            t -= step
    return N


def _pick_seq_tile(S, cap):
    """Sequence tile dividing S (multiple of 8 unless S itself is small)."""
    if S <= cap:
        return S
    t = cap - cap % 8
    while t >= 8:
        if S % t == 0:
            return t
        t -= 8
    return S


def _pick_group_tile(G, TQ, TK, Dh, budget):
    """Leading (batched head-group) tile for the flash SDPA kernel, sized from VMEM."""
    per_g = (2 * 2 * (TQ * Dh + 2 * TK * Dh + TQ * Dh)   # double-buffered bf16 q/k/v/o blocks
             + 4 * (TQ * Dh + 2 * TQ)                    # f32 acc + m + l scratch
             + 8 * TQ * TK)                              # f32 score / p temporaries
    gb = max(1, budget // (2 * per_g))                   # 2x headroom for vregs / compiler temps
    if G >= 2:
        gb = min(gb, (G + 1) // 2)                       # >=2 grid steps (v7x megacore)
    return max(1, min(gb, G))


# ----------------------------------------------------------------------------
# Fused (optional LayerNorm) + Linear (+ReLU) (+residual) Pallas kernel
# ----------------------------------------------------------------------------
def _fused_ln_linear_kernel(*refs, eps, do_ln, apply_relu, has_residual):
    idx = 0
    x_ref = refs[idx]; idx += 1
    if do_ln:
        g_ref, beta_ref = refs[idx], refs[idx + 1]; idx += 2
    w_ref, bias_ref = refs[idx], refs[idx + 1]; idx += 2
    if has_residual:
        res_ref = refs[idx]; idx += 1
    o_ref = refs[idx]

    x = x_ref[...].astype(jnp.float32)
    if do_ln:
        mu = jnp.mean(x, axis=-1, keepdims=True)
        var = jnp.mean(jnp.square(x - mu), axis=-1, keepdims=True)
        x = (x - mu) * jax.lax.rsqrt(var + eps)
        x = x * g_ref[...] + beta_ref[...]

    w = w_ref[...]
    if w.dtype != jnp.bfloat16:          # weights are pre-cast to bf16 at param build time
        w = w.astype(jnp.bfloat16)
    y = jnp.dot(x.astype(jnp.bfloat16), w, preferred_element_type=jnp.float32) + bias_ref[...]
    if apply_relu:
        y = jnp.maximum(y, 0.0)
    if has_residual:
        y = y + res_ref[...].astype(jnp.float32)
    o_ref[...] = y.astype(o_ref.dtype)


def pallas_fused_linear(x, w, b, *, ln=None, eps=1e-5, relu=False, residual=None,
                        out_dtype=jnp.float32):
    """y = [LN(x)] @ w + b [+ReLU] [+residual].  x: (M, K), w: (K, N) bf16, b: (N,)."""
    M, K = x.shape
    N = w.shape[1]
    budget = _vmem_budget_bytes()

    TN = _pick_col_tile(N, K, jnp.dtype(w.dtype).itemsize, budget)
    out_b = jnp.dtype(out_dtype).itemsize
    res_b = jnp.dtype(residual.dtype).itemsize if residual is not None else 0
    row_bytes = 2 * (K * jnp.dtype(x.dtype).itemsize + TN * out_b + TN * res_b)
    fixed = 2 * (K * TN * jnp.dtype(w.dtype).itemsize + TN * 4) + (4 * K * 4 if ln else 0)
    TM = _pick_row_tile(M, row_bytes, fixed, budget)

    Mp = -(-M // TM) * TM
    if Mp != M:                                   # pad ragged rows instead of a giant block
        x = jnp.pad(x, ((0, Mp - M), (0, 0)))
        if residual is not None:
            residual = jnp.pad(residual, ((0, Mp - M), (0, 0)))

    args = [x]
    in_specs = [pl.BlockSpec((TM, K), lambda i, j: (i, 0))]
    if ln is not None:
        gamma, beta = ln
        args += [gamma.reshape(1, K).astype(jnp.float32),
                 beta.reshape(1, K).astype(jnp.float32)]
        in_specs += [pl.BlockSpec((1, K), lambda i, j: (0, 0)),
                     pl.BlockSpec((1, K), lambda i, j: (0, 0))]
    args += [w, b.reshape(1, N).astype(jnp.float32)]
    in_specs += [pl.BlockSpec((K, TN), lambda i, j: (0, j)),
                 pl.BlockSpec((1, TN), lambda i, j: (0, j))]
    if residual is not None:
        args.append(residual)
        in_specs.append(pl.BlockSpec((TM, TN), lambda i, j: (i, j)))

    kernel = partial(_fused_ln_linear_kernel, eps=eps, do_ln=ln is not None,
                     apply_relu=relu, has_residual=residual is not None)
    out = pl.pallas_call(
        kernel,
        out_shape=jax.ShapeDtypeStruct((Mp, N), out_dtype),
        grid=(Mp // TM, N // TN),
        in_specs=in_specs,
        out_specs=pl.BlockSpec((TM, TN), lambda i, j: (i, j)),
        compiler_params=pltpu.CompilerParams(
            dimension_semantics=("parallel", "parallel"),
            vmem_limit_bytes=budget),
    )(*args)
    return out[:M] if Mp != M else out


# ----------------------------------------------------------------------------
# Flash-style batched SDPA kernel (online softmax, KV-tiled, bf16 MXU path)
# ----------------------------------------------------------------------------
def _flash_sdpa_kernel(q_ref, k_ref, v_ref, o_ref, m_sc, l_sc, acc_sc, *, causal):
    qi = pl.program_id(1)
    ki = pl.program_id(2)
    n_k = pl.num_programs(2)
    TQ = q_ref.shape[1]
    TK = k_ref.shape[1]

    @pl.when(ki == 0)
    def _():
        m_sc[...] = jnp.full(m_sc.shape, -jnp.inf, jnp.float32)
        l_sc[...] = jnp.zeros(l_sc.shape, jnp.float32)
        acc_sc[...] = jnp.zeros(acc_sc.shape, jnp.float32)

    def compute():
        # q already carries the 1/sqrt(Dh) scale (folded into the Q projection weights).
        s = jnp.einsum('gqd,gkd->gqk', q_ref[...], k_ref[...],
                       preferred_element_type=jnp.float32)        # bf16 MXU, f32 accumulate
        if causal:
            row = qi * TQ + jax.lax.broadcasted_iota(jnp.int32, (TQ, TK), 0)
            col = ki * TK + jax.lax.broadcasted_iota(jnp.int32, (TQ, TK), 1)
            s = jnp.where((col <= row)[None, :, :], s, -1e30)
        m_prev = m_sc[...]
        m_new = jnp.maximum(m_prev, jnp.max(s, axis=-1, keepdims=True))
        alpha = jnp.exp(m_prev - m_new)
        p = jnp.exp(s - m_new)
        l_sc[...] = alpha * l_sc[...] + jnp.sum(p, axis=-1, keepdims=True)
        acc_sc[...] = alpha * acc_sc[...] + jnp.einsum(
            'gqk,gkd->gqd', p.astype(jnp.bfloat16), v_ref[...],
            preferred_element_type=jnp.float32)
        m_sc[...] = m_new

    if causal:
        @pl.when(ki * TK <= qi * TQ + (TQ - 1))   # skip KV tiles fully above the diagonal
        def _():
            compute()
    else:
        compute()

    @pl.when(ki == n_k - 1)
    def _():
        o_ref[...] = (acc_sc[...] * pl.reciprocal(l_sc[...], approx=True)).astype(o_ref.dtype)


def pallas_sdpa(q, k, v, causal):
    """Flash SDPA; independent problem per leading index.  q: (G, S, Dh), k/v: (G, Sk, Dh)."""
    q = q.astype(jnp.bfloat16)
    k = k.astype(jnp.bfloat16)
    v = v.astype(jnp.bfloat16)
    G, S, Dh = q.shape
    Sk = k.shape[1]
    budget = _vmem_budget_bytes()

    TQ = _pick_seq_tile(S, 256)
    TK = _pick_seq_tile(Sk, 512)
    GB = _pick_group_tile(G, TQ, TK, Dh, budget)
    Gp = -(-G // GB) * GB
    if Gp != G:
        pad = Gp - G
        q = jnp.pad(q, ((0, pad), (0, 0), (0, 0)))
        k = jnp.pad(k, ((0, pad), (0, 0), (0, 0)))
        v = jnp.pad(v, ((0, pad), (0, 0), (0, 0)))

    out = pl.pallas_call(
        partial(_flash_sdpa_kernel, causal=causal),
        out_shape=jax.ShapeDtypeStruct((Gp, S, Dh), jnp.bfloat16),
        grid=(Gp // GB, S // TQ, Sk // TK),
        in_specs=[pl.BlockSpec((GB, TQ, Dh), lambda i, qi, ki: (i, qi, 0)),
                  pl.BlockSpec((GB, TK, Dh), lambda i, qi, ki: (i, ki, 0)),
                  pl.BlockSpec((GB, TK, Dh), lambda i, qi, ki: (i, ki, 0))],
        out_specs=pl.BlockSpec((GB, TQ, Dh), lambda i, qi, ki: (i, qi, 0)),
        scratch_shapes=[pltpu.VMEM((GB, TQ, 1), jnp.float32),    # m
                        pltpu.VMEM((GB, TQ, 1), jnp.float32),    # l
                        pltpu.VMEM((GB, TQ, Dh), jnp.float32)],  # acc
        compiler_params=pltpu.CompilerParams(
            dimension_semantics=("parallel", "parallel", "arbitrary"),
            vmem_limit_bytes=budget),
    )(q, k, v)
    return out[:G] if Gp != G else out


# ----------------------------------------------------------------------------
# Dilated attention (glue around the flash SDPA kernel)
# ----------------------------------------------------------------------------
def dilated_attention(q, k, v, segment_lengths, dilation_rates, is_causal):
    # q: (B, N, H, Dh); k, v: (B, Nk, H, Dh).  1/num_groups is folded into out_proj weights.
    B, N, H, Dh = q.shape
    Nk = k.shape[1]
    # TODO(synk): cross-attention with N != Nk would need per-tensor segment counts and a
    # rectangular causal mask; encoder/decoder lengths are equal in this model.
    assert N == Nk, "dilated_attention assumes matching q / kv sequence lengths"

    num_groups = len(dilation_rates)
    group_sizes = [H // num_groups] * num_groups
    for i in range(H % num_groups):
        group_sizes[i] += 1
    h_off = [0]
    for g in group_sizes:
        h_off.append(h_off[-1] + g)

    # TODO(synk): the dilated gather/scatter stays as XLA strided-slice glue; a fully fused
    # version would read each dilated group straight from (B,N,H,Dh) via PrefetchScalarGridSpec
    # and present a lane-dense (>=128 wide) output slab.
    out = jnp.zeros(q.shape, dtype=q.dtype)
    for i, (g, r, s) in enumerate(zip(group_sizes, dilation_rates, segment_lengths)):
        if g == 0:
            continue
        offset = i % r
        hmin = h_off[i]
        n_seg = N // s

        def take(t):
            t = t.reshape(B, n_seg, s, H, Dh)
            t = t[:, :, offset::r, hmin:hmin + g, :]       # (B, n_seg, s_dil, g, Dh)
            t = jnp.transpose(t, (0, 1, 3, 2, 4))          # (B, n_seg, g, s_dil, Dh)
            return t.reshape(B * n_seg * g, -1, Dh)

        qg, kg, vg = take(q), take(k), take(v)
        xo = pallas_sdpa(qg, kg, vg, causal=is_causal)     # (B*n_seg*g, s_dil, Dh)
        s_dil = qg.shape[1]
        xg = jnp.transpose(xo.reshape(B, n_seg, g, s_dil, Dh), (0, 1, 3, 2, 4))
        out_seg = out.reshape(B, n_seg, s, H, Dh)
        # head ranges are disjoint across groups -> plain .set (no scatter-add)
        out_seg = out_seg.at[:, :, offset::r, hmin:hmin + g, :].set(xg.astype(out.dtype))
        out = out_seg.reshape(B, N, H, Dh)
    return out


# ----------------------------------------------------------------------------
# Attention blocks (LN + QKV fused; sub-LN + out-proj + residual fused)
# ----------------------------------------------------------------------------
def mha_self_block(x, p, ln_g, ln_b, cfg, is_causal):
    B, N, D = x.shape
    H, Dh, eps = cfg["nhead"], D // cfg["nhead"], cfg["layer_norm_eps"]
    x2 = x.reshape(B * N, D)
    qkv = pallas_fused_linear(x2, p["qkv_w"], p["qkv_b"], ln=(ln_g, ln_b), eps=eps,
                              out_dtype=jnp.bfloat16)
    q, k, v = jnp.split(qkv, 3, axis=-1)
    q = q.reshape(B, N, H, Dh)
    k = k.reshape(B, N, H, Dh)
    v = v.reshape(B, N, H, Dh)
    a = dilated_attention(q, k, v, cfg["segment_lengths"], cfg["dilation_rates"], is_causal)
    out = pallas_fused_linear(a.reshape(B * N, D), p["out_w"], p["out_b"],
                              ln=(p["norm_g"], p["norm_b"]), eps=eps, residual=x2,
                              out_dtype=jnp.float32)
    return out.reshape(B, N, D)


def mha_cross_block(x, enc_out, enc_ln, p, ln_g, ln_b, cfg, is_causal):
    # NOTE: the reference forward passes memory_is_causal=is_causal, so the cross-attention
    # keeps the causal mask (per the module's "applies to both encoder and decoder" note).
    B, N, D = x.shape
    Bk, Nk, _ = enc_out.shape
    H, Dh, eps = cfg["nhead"], D // cfg["nhead"], cfg["layer_norm_eps"]
    x2 = x.reshape(B * N, D)
    q = pallas_fused_linear(x2, p["q_w"], p["q_b"], ln=(ln_g, ln_b), eps=eps,
                            out_dtype=jnp.bfloat16)
    # encoder final LayerNorm is fused into the K/V projection of the raw encoder output
    kv = pallas_fused_linear(enc_out.reshape(Bk * Nk, D), p["kv_w"], p["kv_b"],
                             ln=enc_ln, eps=eps, out_dtype=jnp.bfloat16)
    k, v = jnp.split(kv, 2, axis=-1)
    q = q.reshape(B, N, H, Dh)
    k = k.reshape(Bk, Nk, H, Dh)
    v = v.reshape(Bk, Nk, H, Dh)
    a = dilated_attention(q, k, v, cfg["segment_lengths"], cfg["dilation_rates"], is_causal)
    out = pallas_fused_linear(a.reshape(B * N, D), p["out_w"], p["out_b"],
                              ln=(p["norm_g"], p["norm_b"]), eps=eps, residual=x2,
                              out_dtype=jnp.float32)
    return out.reshape(B, N, D)


def ffn_block(x, p, norm_pre, norm_mid, eps):
    B, N, D = x.shape
    x2 = x.reshape(B * N, D)
    h = pallas_fused_linear(x2, p["lin1_w"], p["lin1_b"],
                            ln=(p[norm_pre + "_g"], p[norm_pre + "_b"]), eps=eps,
                            relu=True, out_dtype=jnp.bfloat16)
    h = pallas_fused_linear(h, p["lin2_w"], p["lin2_b"],
                            ln=(p[norm_mid + "_g"], p[norm_mid + "_b"]), eps=eps,
                            residual=x2, out_dtype=jnp.float32)
    return h.reshape(B, N, D)


# ----------------------------------------------------------------------------
# Data embedding: Conv1d(kernel=3, circular pad, no bias) + sinusoidal PE
# ----------------------------------------------------------------------------
def data_embedding(x, conv_w_mat, pe):
    B, L, C = x.shape
    d_model = conv_w_mat.shape[1]
    idx = (jnp.arange(L)[:, None] + jnp.arange(-1, 2)[None, :]) % L   # circular, padding=1
    x_unf = x[:, idx, :].reshape(B * L, 3 * C)                        # (B*L, 3*C)
    y = pallas_fused_linear(x_unf, conv_w_mat, jnp.zeros((d_model,), jnp.float32),
                            out_dtype=jnp.float32)
    return y.reshape(B, L, d_model) + pe[None, :L, :]


def sinusoidal_pe(max_len, d_model):
    position = jnp.arange(max_len, dtype=jnp.float32)[:, None]
    div_term = jnp.exp(jnp.arange(0, d_model, 2, dtype=jnp.float32)
                       * (-math.log(10000.0) / d_model))
    pe = jnp.zeros((max_len, d_model), jnp.float32)
    pe = pe.at[:, 0::2].set(jnp.sin(position * div_term))
    pe = pe.at[:, 1::2].set(jnp.cos(position * div_term))
    return pe


# ----------------------------------------------------------------------------
# Full forward
# ----------------------------------------------------------------------------
def longnet_ts_forward(params, x, dec_inp, cfg, is_causal=True):
    eps = cfg["layer_norm_eps"]
    x_emb = data_embedding(x, params["embed_conv_w"], params["pe"])
    d_emb = data_embedding(dec_inp, params["embed_conv_w"], params["pe"])

    for p in params["encoder_layers"]:
        x_emb = mha_self_block(x_emb, p["self_attn"], p["norm1_g"], p["norm1_b"], cfg, is_causal)
        x_emb = ffn_block(x_emb, p, "norm2", "norm3", eps)

    enc_ln = (params["enc_norm_g"], params["enc_norm_b"])  # fused into cross-attn K/V proj

    for p in params["decoder_layers"]:
        d_emb = mha_self_block(d_emb, p["self_attn"], p["norm1_g"], p["norm1_b"], cfg, is_causal)
        d_emb = mha_cross_block(d_emb, x_emb, enc_ln, p["cross_attn"],
                                p["norm2_g"], p["norm2_b"], cfg, is_causal)
        d_emb = ffn_block(d_emb, p, "norm3", "norm4", eps)

    B, M, D = d_emb.shape
    y = pallas_fused_linear(d_emb.reshape(-1, D), params["out_w"], params["out_b"],
                            ln=(params["dec_norm_g"], params["dec_norm_b"]), eps=eps,
                            out_dtype=jnp.float32)
    y = y.reshape(B, M, cfg["num_features"])
    return y[:, -cfg["pred_len"]:, :]


# ----------------------------------------------------------------------------
# Deterministic parameter init (xavier-normal style, gains per LongNet/MAGNETO)
# Weights are stored in bf16 (MXU datapath); biases / LN params stay f32.
# The 1/sqrt(Dh) softmax scale is folded into Q projections and the 1/num_groups
# group average is folded into the attention out_proj weights (both exact folds).
# ----------------------------------------------------------------------------
def _xavier_normal(key, shape, gain=1.0):
    fan_in, fan_out = shape
    std = gain * math.sqrt(2.0 / (fan_in + fan_out))
    return std * jax.random.normal(key, shape, dtype=jnp.float32)


def init_params(key, cfg):
    d, ff, C = cfg["d_model"], cfg["dim_feedforward"], cfg["num_features"]
    Dh = d // cfg["nhead"]
    n_enc, n_dec = cfg["num_encoder_layers"], cfg["num_decoder_layers"]
    enc_gamma = (math.log(3 * n_dec) * math.log(2 * n_enc) / 3) ** 0.5
    dec_gamma = math.log(3 * n_dec) ** 0.5
    q_scale = 1.0 / math.sqrt(Dh)
    inv_groups = 1.0 / len(cfg["dilation_rates"])

    keys = iter(jax.random.split(key, 256))
    nk = lambda: next(keys)
    bf = lambda a: a.astype(jnp.bfloat16)

    def init_mha(gamma, cross=False):
        q_w = _xavier_normal(nk(), (d, d)) * q_scale            # fold softmax scale (bias is 0)
        k_w = _xavier_normal(nk(), (d, d))
        v_w = _xavier_normal(nk(), (d, d), gain=gamma)
        out_w = _xavier_normal(nk(), (d, d), gain=gamma) * inv_groups  # fold 1/num_groups
        common = dict(norm_g=jnp.ones(d), norm_b=jnp.zeros(d),
                      out_w=bf(out_w), out_b=jnp.zeros(d))
        if cross:
            return dict(q_w=bf(q_w), q_b=jnp.zeros(d),
                        kv_w=bf(jnp.concatenate([k_w, v_w], axis=1)), kv_b=jnp.zeros(2 * d),
                        **common)
        return dict(qkv_w=bf(jnp.concatenate([q_w, k_w, v_w], axis=1)),
                    qkv_b=jnp.zeros(3 * d), **common)

    def init_enc_layer():
        return dict(
            norm1_g=jnp.ones(d), norm1_b=jnp.zeros(d),
            self_attn=init_mha(enc_gamma),
            norm2_g=jnp.ones(d), norm2_b=jnp.zeros(d),
            lin1_w=bf(_xavier_normal(nk(), (d, ff), gain=enc_gamma)), lin1_b=jnp.zeros(ff),
            norm3_g=jnp.ones(ff), norm3_b=jnp.zeros(ff),
            lin2_w=bf(_xavier_normal(nk(), (ff, d), gain=enc_gamma)), lin2_b=jnp.zeros(d),
        )

    def init_dec_layer():
        return dict(
            norm1_g=jnp.ones(d), norm1_b=jnp.zeros(d),
            self_attn=init_mha(dec_gamma),
            norm2_g=jnp.ones(d), norm2_b=jnp.zeros(d),
            cross_attn=init_mha(dec_gamma, cross=True),
            norm3_g=jnp.ones(d), norm3_b=jnp.zeros(d),
            lin1_w=bf(_xavier_normal(nk(), (d, ff), gain=dec_gamma)), lin1_b=jnp.zeros(ff),
            norm4_g=jnp.ones(ff), norm4_b=jnp.zeros(ff),
            lin2_w=bf(_xavier_normal(nk(), (ff, d), gain=dec_gamma)), lin2_b=jnp.zeros(d),
        )

    # PyTorch Conv1d weight layout is (out=d_model, in=C, k=3); fold to (3*C, d_model).
    conv_w = 0.1 * jax.random.normal(nk(), (d, C, 3), jnp.float32)
    conv_w_mat = bf(jnp.transpose(conv_w, (2, 1, 0)).reshape(3 * C, d))

    return dict(
        embed_conv_w=conv_w_mat,
        pe=sinusoidal_pe(cfg["max_len"], d),
        encoder_layers=[init_enc_layer() for _ in range(n_enc)],
        enc_norm_g=jnp.ones(d), enc_norm_b=jnp.zeros(d),
        decoder_layers=[init_dec_layer() for _ in range(n_dec)],
        dec_norm_g=jnp.ones(d), dec_norm_b=jnp.zeros(d),
        out_w=bf(_xavier_normal(nk(), (d, C))), out_b=jnp.zeros(C),
    )


# ----------------------------------------------------------------------------
if __name__ == "__main__":
    cfg = dict(
        num_features=4,
        d_model=32,
        nhead=4,
        num_encoder_layers=2,
        num_decoder_layers=2,
        dim_feedforward=64,
        segment_lengths=(4, 8),   # seq_len must be divisible by every segment length
        dilation_rates=(1, 2),
        layer_norm_eps=1e-5,
        pred_len=8,
        max_len=64,
    )
    B, L = 2, 16
    key = jax.random.PRNGKey(0)
    k_params, k_x, k_dec = jax.random.split(key, 3)

    params = init_params(k_params, cfg)
    x = jax.random.normal(k_x, (B, L, cfg["num_features"]), jnp.float32)
    dec_inp = jax.random.normal(k_dec, (B, L, cfg["num_features"]), jnp.float32)

    fwd = jax.jit(partial(longnet_ts_forward, cfg=cfg, is_causal=True))
    out = jax.block_until_ready(fwd(params, x, dec_inp))

    assert out.shape == (B, cfg["pred_len"], cfg["num_features"]), out.shape
    assert bool(jnp.all(jnp.isfinite(out)))
    print("KERNEL_OK")
</pallas_src>

<mosaic_0001>
module attributes {stable_mosaic.version = 11 : i64} {
  func.func @_fused_ln_linear_kernel(%arg0: i32, %arg1: i32, %arg2: memref<16x32xf32, #tpu.memory_space<vmem>>, %arg3: memref<1x32xf32, #tpu.memory_space<vmem>>, %arg4: memref<1x32xf32, #tpu.memory_space<vmem>>, %arg5: memref<32x96xbf16, #tpu.memory_space<vmem>>, %arg6: memref<1x96xf32, #tpu.memory_space<vmem>>, %arg7: memref<16x96xbf16, #tpu.memory_space<vmem>>) attributes {dimension_semantics = [#tpu.dimension_semantics<parallel>, #tpu.dimension_semantics<parallel>], iteration_bounds = array<i64: 2, 1>, scalar_prefetch = 0 : i64, scratch_operands = 0 : i64, tpu.core_type = #tpu.core_type<tc>, window_params = [{transform_indices = @transform_0, window_bounds = array<i64: 16, 32>}, {pipeline_mode = #tpu.pipeline_mode<synchronous>, transform_indices = @transform_1, window_bounds = array<i64: 1, 32>}, {pipeline_mode = #tpu.pipeline_mode<synchronous>, transform_indices = @transform_2, window_bounds = array<i64: 1, 32>}, {transform_indices = @transform_3, window_bounds = array<i64: 32, 96>}, {transform_indices = @transform_4, window_bounds = array<i64: 1, 96>}, {transform_indices = @transform_5, window_bounds = array<i64: 16, 96>}]} {
    %c0 = arith.constant 0 : index
    %c0_0 = arith.constant 0 : index
    %0 = vector.load %arg2[%c0, %c0_0] : memref<16x32xf32, #tpu.memory_space<vmem>>, vector<16x32xf32>
    %cst = arith.constant dense<0.000000e+00> : vector<16xf32>
    %1 = vector.multi_reduction <add>, %0, %cst [1] : vector<16x32xf32> to vector<16xf32>
    %2 = vector.shape_cast %1 : vector<16xf32> to vector<16x1xf32>
    %cst_1 = arith.constant 3.200000e+01 : f32
    %3 = vector.broadcast %cst_1 : f32 to vector<16x1xf32>
    %4 = arith.divf %2, %3 : vector<16x1xf32>
    %5 = vector.broadcast %4 : vector<16x1xf32> to vector<16x32xf32>
    %6 = arith.subf %0, %5 : vector<16x32xf32>
    %7 = arith.mulf %6, %6 : vector<16x32xf32>
    %cst_2 = arith.constant dense<0.000000e+00> : vector<16xf32>
    %8 = vector.multi_reduction <add>, %7, %cst_2 [1] : vector<16x32xf32> to vector<16xf32>
    %9 = vector.shape_cast %8 : vector<16xf32> to vector<16x1xf32>
    %cst_3 = arith.constant 3.200000e+01 : f32
    %10 = vector.broadcast %cst_3 : f32 to vector<16x1xf32>
    %11 = arith.divf %9, %10 : vector<16x1xf32>
    %12 = vector.broadcast %4 : vector<16x1xf32> to vector<16x32xf32>
    %13 = arith.subf %0, %12 : vector<16x32xf32>
    %cst_4 = arith.constant 9.99999974E-6 : f32
    %14 = vector.broadcast %cst_4 : f32 to vector<16x1xf32>
    %15 = arith.addf %11, %14 : vector<16x1xf32>
    %16 = math.rsqrt %15 : vector<16x1xf32>
    %17 = vector.broadcast %16 : vector<16x1xf32> to vector<16x32xf32>
    %18 = arith.mulf %13, %17 : vector<16x32xf32>
    %c0_5 = arith.constant 0 : index
    %c0_6 = arith.constant 0 : index
    %19 = vector.load %arg3[%c0_5, %c0_6] : memref<1x32xf32, #tpu.memory_space<vmem>>, vector<1x32xf32>
    %20 = vector.broadcast %19 : vector<1x32xf32> to vector<16x32xf32>
    %21 = arith.mulf %18, %20 : vector<16x32xf32>
    %c0_7 = arith.constant 0 : index
    %c0_8 = arith.constant 0 : index
    %22 = vector.load %arg4[%c0_7, %c0_8] : memref<1x32xf32, #tpu.memory_space<vmem>>, vector<1x32xf32>
    %23 = vector.broadcast %22 : vector<1x32xf32> to vector<16x32xf32>
    %24 = arith.addf %21, %23 : vector<16x32xf32>
    %c0_9 = arith.constant 0 : index
    %c0_10 = arith.constant 0 : index
    %25 = vector.load %arg5[%c0_9, %c0_10] : memref<32x96xbf16, #tpu.memory_space<vmem>>, vector<32x96xbf16>
    %26 = arith.truncf %24 : vector<16x32xf32> to vector<16x32xbf16>
    %cst_11 = arith.constant dense<0.000000e+00> : vector<16x96xf32>
    %27 = tpu.matmul %26, %25, %cst_11 {dimension_numbers = #tpu.dot_dimension_numbers<[1], [0], [0], [1], [0, 0, 1, 1], [], []>} : vector<16x32xbf16>, vector<32x96xbf16>, vector<16x96xf32> -> vector<16x96xf32>
    %c0_12 = arith.constant 0 : index
    %c0_13 = arith.constant 0 : index
    %28 = vector.load %arg6[%c0_12, %c0_13] : memref<1x96xf32, #tpu.memory_space<vmem>>, vector<1x96xf32>
    %29 = vector.broadcast %28 : vector<1x96xf32> to vector<16x96xf32>
    %30 = arith.addf %27, %29 : vector<16x96xf32>
    %31 = arith.truncf %30 : vector<16x96xf32> to vector<16x96xbf16>
    %c0_14 = arith.constant 0 : index
    %c0_15 = arith.constant 0 : index
    %32 = vector.load %arg7[%c0_14, %c0_15] : memref<16x96xbf16, #tpu.memory_space<vmem>>, vector<16x96xbf16>
    tpu.vector_store %arg7[%c0_14, %c0_15], %31 {strides = array<i32>} : memref<16x96xbf16, #tpu.memory_space<vmem>>, vector<16x96xbf16>,
    return
  }
  func.func @transform_0(%arg0: i32, %arg1: i32) -> (i32, i32) {
    %c0_i32 = arith.constant 0 : i32
    %c0_i32_0 = arith.constant 0 : i32
    return %arg0, %c0_i32 : i32, i32
  }
  func.func @transform_1(%arg0: i32, %arg1: i32) -> (i32, i32) {
    %c0_i32 = arith.constant 0 : i32
    %c0_i32_0 = arith.constant 0 : i32
    %c0_i32_1 = arith.constant 0 : i32
    return %c0_i32, %c0_i32_0 : i32, i32
  }
  func.func @transform_2(%arg0: i32, %arg1: i32) -> (i32, i32) {
    %c0_i32 = arith.constant 0 : i32
    %c0_i32_0 = arith.constant 0 : i32
    %c0_i32_1 = arith.constant 0 : i32
    return %c0_i32, %c0_i32_0 : i32, i32
  }
  func.func @transform_3(%arg0: i32, %arg1: i32) -> (i32, i32) {
    %c0_i32 = arith.constant 0 : i32
    %c0_i32_0 = arith.constant 0 : i32
    return %c0_i32, %arg1 : i32, i32
  }
  func.func @transform_4(%arg0: i32, %arg1: i32) -> (i32, i32) {
    %c0_i32 = arith.constant 0 : i32
    %c0_i32_0 = arith.constant 0 : i32
    return %c0_i32, %arg1 : i32, i32
  }
  func.func @transform_5(%arg0: i32, %arg1: i32) -> (i32, i32) {
    %c0_i32 = arith.constant 0 : i32
    return %arg0, %arg1 : i32, i32
  }
}

module attributes {stable_mosaic.version = 11 : i64} {
  func.func @_fused_ln_linear_kernel(%arg0: i32, %arg1: i32, %arg2: memref<16x12xf32, #tpu.memory_space<vmem>>, %arg3: memref<12x32xbf16, #tpu.memory_space<vmem>>, %arg4: memref<1x32xf32, #tpu.memory_space<vmem>>, %arg5: memref<16x32xf32, #tpu.memory_space<vmem>>) attributes {dimension_semantics = [#tpu.dimension_semantics<parallel>, #tpu.dimension_semantics<parallel>], iteration_bounds = array<i64: 2, 1>, scalar_prefetch = 0 : i64, scratch_operands = 0 : i64, tpu.core_type = #tpu.core_type<tc>, window_params = [{transform_indices = @transform_0, window_bounds = array<i64: 16, 12>}, {transform_indices = @transform_1, window_bounds = array<i64: 12, 32>}, {transform_indices = @transform_2, window_bounds = array<i64: 1, 32>}, {transform_indices = @transform_3, window_bounds = array<i64: 16, 32>}]} {
    %c0 = arith.constant 0 : index
    %c0_0 = arith.constant 0 : index
    %0 = vector.load %arg2[%c0, %c0_0] : memref<16x12xf32, #tpu.memory_space<vmem>>, vector<16x12xf32>
    %c0_1 = arith.constant 0 : index
    %c0_2 = arith.constant 0 : index
    %1 = vector.load %arg3[%c0_1, %c0_2] : memref<12x32xbf16, #tpu.memory_space<vmem>>, vector<12x32xbf16>
    %2 = arith.truncf %0 : vector<16x12xf32> to vector<16x12xbf16>
    %cst = arith.constant dense<0.000000e+00> : vector<16x32xf32>
    %3 = tpu.matmul %2, %1, %cst {dimension_numbers = #tpu.dot_dimension_numbers<[1], [0], [0], [1], [0, 0, 1, 1], [], []>} : vector<16x12xbf16>, vector<12x32xbf16>, vector<16x32xf32> -> vector<16x32xf32>
    %c0_3 = arith.constant 0 : index
    %c0_4 = arith.constant 0 : index
    %4 = vector.load %arg4[%c0_3, %c0_4] : memref<1x32xf32, #tpu.memory_space<vmem>>, vector<1x32xf32>
    %5 = vector.broadcast %4 : vector<1x32xf32> to vector<16x32xf32>
    %6 = arith.addf %3, %5 : vector<16x32xf32>
    %c0_5 = arith.constant 0 : index
    %c0_6 = arith.constant 0 : index
    %7 = vector.load %arg5[%c0_5, %c0_6] : memref<16x32xf32, #tpu.memory_space<vmem>>, vector<16x32xf32>
    tpu.vector_store %arg5[%c0_5, %c0_6], %6 {strides = array<i32>} : memref<16x32xf32, #tpu.memory_space<vmem>>, vector<16x32xf32>,
    return
  }
  func.func @transform_0(%arg0: i32, %arg1: i32) -> (i32, i32) {
    %c0_i32 = arith.constant 0 : i32
    %c0_i32_0 = arith.constant 0 : i32
    return %arg0, %c0_i32 : i32, i32
  }
  func.func @transform_1(%arg0: i32, %arg1: i32) -> (i32, i32) {
    %c0_i32 = arith.constant 0 : i32
    %c0_i32_0 = arith.constant 0 : i32
    return %c0_i32, %arg1 : i32, i32
  }
  func.func @transform_2(%arg0: i32, %arg1: i32) -> (i32, i32) {
    %c0_i32 = arith.constant 0 : i32
    %c0_i32_0 = arith.constant 0 : i32
    return %c0_i32, %arg1 : i32, i32
  }
  func.func @transform_3(%arg0: i32, %arg1: i32) -> (i32, i32) {
    %c0_i32 = arith.constant 0 : i32
    return %arg0, %arg1 : i32, i32
  }
}

module attributes {stable_mosaic.version = 11 : i64} {
  func.func @_flash_sdpa_kernel(%arg0: i32, %arg1: i32, %arg2: i32, %arg3: memref<4x4x8xbf16, #tpu.memory_space<vmem>>, %arg4: memref<4x4x8xbf16, #tpu.memory_space<vmem>>, %arg5: memref<4x4x8xbf16, #tpu.memory_space<vmem>>, %arg6: memref<4x4x8xbf16, #tpu.memory_space<vmem>>, %arg7: memref<4x4x1xf32, #tpu.memory_space<vmem>>, %arg8: memref<4x4x1xf32, #tpu.memory_space<vmem>>, %arg9: memref<4x4x8xf32, #tpu.memory_space<vmem>>) attributes {dimension_semantics = [#tpu.dimension_semantics<parallel>, #tpu.dimension_semantics<parallel>, #tpu.dimension_semantics<arbitrary>], iteration_bounds = array<i64: 2, 1, 1>, scalar_prefetch = 0 : i64, scratch_operands = 3 : i64, tpu.core_type = #tpu.core_type<tc>, window_params = [{transform_indices = @transform_0, window_bounds = array<i64: 4, 4, 8>}, {transform_indices = @transform_1, window_bounds = array<i64: 4, 4, 8>}, {transform_indices = @transform_2, window_bounds = array<i64: 4, 4, 8>}, {transform_indices = @transform_3, window_bounds = array<i64: 4, 4, 8>}]} {
    %c0_i32 = arith.constant 0 : i32
    %0 = arith.cmpi eq, %arg2, %c0_i32 : i32
    %1 = arith.extui %0 : i1 to i32
    %c0_i32_0 = arith.constant 0 : i32
    %2 = arith.cmpi ne, %1, %c0_i32_0 : i32
    scf.if %2 {
      %cst = arith.constant 0xFF800000 : f32
      %12 = vector.broadcast %cst : f32 to vector<4x4x1xf32>
      %c0 = arith.constant 0 : index
      %c0_5 = arith.constant 0 : index
      %c0_6 = arith.constant 0 : index
      %13 = vector.load %arg7[%c0, %c0_5, %c0_6] : memref<4x4x1xf32, #tpu.memory_space<vmem>>, vector<4x4x1xf32>
      tpu.vector_store %arg7[%c0, %c0_5, %c0_6], %12 {strides = array<i32>} : memref<4x4x1xf32, #tpu.memory_space<vmem>>, vector<4x4x1xf32>,
      %cst_7 = arith.constant 0.000000e+00 : f32
      %14 = vector.broadcast %cst_7 : f32 to vector<4x4x1xf32>
      %c0_8 = arith.constant 0 : index
      %c0_9 = arith.constant 0 : index
      %c0_10 = arith.constant 0 : index
      %15 = vector.load %arg8[%c0_8, %c0_9, %c0_10] : memref<4x4x1xf32, #tpu.memory_space<vmem>>, vector<4x4x1xf32>
      tpu.vector_store %arg8[%c0_8, %c0_9, %c0_10], %14 {strides = array<i32>} : memref<4x4x1xf32, #tpu.memory_space<vmem>>, vector<4x4x1xf32>,
      %cst_11 = arith.constant 0.000000e+00 : f32
      %16 = vector.broadcast %cst_11 : f32 to vector<4x4x8xf32>
      %c0_12 = arith.constant 0 : index
      %c0_13 = arith.constant 0 : index
      %c0_14 = arith.constant 0 : index
      %17 = vector.load %arg9[%c0_12, %c0_13, %c0_14] : memref<4x4x8xf32, #tpu.memory_space<vmem>>, vector<4x4x8xf32>
      tpu.vector_store %arg9[%c0_12, %c0_13, %c0_14], %16 {strides = array<i32>} : memref<4x4x8xf32, #tpu.memory_space<vmem>>, vector<4x4x8xf32>,
    } else {
    }
    %c4_i32 = arith.constant 4 : i32
    %3 = arith.muli %arg2, %c4_i32 : i32
    %c4_i32_1 = arith.constant 4 : i32
    %4 = arith.muli %arg1, %c4_i32_1 : i32
    %c3_i32 = arith.constant 3 : i32
    %5 = arith.addi %4, %c3_i32 : i32
    %6 = arith.cmpi sle, %3, %5 : i32
    %7 = arith.extui %6 : i1 to i32
    %c0_i32_2 = arith.constant 0 : i32
    %8 = arith.cmpi ne, %7, %c0_i32_2 : i32
    scf.if %8 {
      %c0 = arith.constant 0 : index
      %c0_5 = arith.constant 0 : index
      %c0_6 = arith.constant 0 : index
      %12 = vector.load %arg3[%c0, %c0_5, %c0_6] : memref<4x4x8xbf16, #tpu.memory_space<vmem>>, vector<4x4x8xbf16>
      %c0_7 = arith.constant 0 : index
      %c0_8 = arith.constant 0 : index
      %c0_9 = arith.constant 0 : index
      %13 = vector.load %arg4[%c0_7, %c0_8, %c0_9] : memref<4x4x8xbf16, #tpu.memory_space<vmem>>, vector<4x4x8xbf16>
      "tpu.trace_start"() <{level = 10 : i32, message = "gqd,gkd->gqk"}> : () -> ()
      %cst = arith.constant dense<0.000000e+00> : vector<4x4x4xf32>
      %14 = tpu.matmul %12, %13, %cst {dimension_numbers = #tpu.dot_dimension_numbers<[2], [2], [1], [1], [0, 0, 0, 1, 1, 1], [0], [0]>} : vector<4x4x8xbf16>, vector<4x4x8xbf16>, vector<4x4x4xf32> -> vector<4x4x4xf32>
      "tpu.trace_stop"() : () -> ()
      %c4_i32_10 = arith.constant 4 : i32
      %15 = arith.muli %arg1, %c4_i32_10 : i32
      %16 = tpu.iota {dimensions = array<i32: 0>} : vector<4x4xi32>
      %17 = vector.broadcast %15 : i32 to vector<4x4xi32>
      %18 = arith.addi %17, %16 : vector<4x4xi32>
      %c4_i32_11 = arith.constant 4 : i32
      %19 = arith.muli %arg2, %c4_i32_11 : i32
      %20 = tpu.iota {dimensions = array<i32: 1>} : vector<4x4xi32>
      %21 = vector.broadcast %19 : i32 to vector<4x4xi32>
      %22 = arith.addi %21, %20 : vector<4x4xi32>
      %23 = arith.cmpi sle, %22, %18 : vector<4x4xi32>
      %24 = vector.shape_cast %23 : vector<4x4xi1> to vector<1x4x4xi1>
      %cst_12 = arith.constant -1.000000e+30 : f32
      %25 = vector.shape_cast %24 : vector<1x4x4xi1> to vector<1x4x4xi1>
      %26 = vector.broadcast %25 : vector<1x4x4xi1> to vector<4x4x4xi1>
      %27 = vector.broadcast %cst_12 : f32 to vector<4x4x4xf32>
      %28 = arith.select %26, %14, %27 : vector<4x4x4xi1>, vector<4x4x4xf32>
      %c0_13 = arith.constant 0 : index
      %c0_14 = arith.constant 0 : index
      %c0_15 = arith.constant 0 : index
      %29 = vector.load %arg7[%c0_13, %c0_14, %c0_15] : memref<4x4x1xf32, #tpu.memory_space<vmem>>, vector<4x4x1xf32>
      %cst_16 = arith.constant dense<0xFF800000> : vector<4x4xf32>
      %30 = vector.multi_reduction <maximumf>, %28, %cst_16 [2] : vector<4x4x4xf32> to vector<4x4xf32>
      %31 = vector.shape_cast %30 : vector<4x4xf32> to vector<4x4x1xf32>
      %32 = arith.maximumf %29, %31 : vector<4x4x1xf32>
      %33 = arith.subf %29, %32 : vector<4x4x1xf32>
      %34 = math.exp %33 : vector<4x4x1xf32>
      %35 = vector.broadcast %32 : vector<4x4x1xf32> to vector<4x4x4xf32>
      %36 = arith.subf %28, %35 : vector<4x4x4xf32>
      %37 = math.exp %36 : vector<4x4x4xf32>
      %c0_17 = arith.constant 0 : index
      %c0_18 = arith.constant 0 : index
      %c0_19 = arith.constant 0 : index
      %38 = vector.load %arg8[%c0_17, %c0_18, %c0_19] : memref<4x4x1xf32, #tpu.memory_space<vmem>>, vector<4x4x1xf32>
      %39 = arith.mulf %34, %38 : vector<4x4x1xf32>
      %cst_20 = arith.constant dense<0.000000e+00> : vector<4x4xf32>
      %40 = vector.multi_reduction <add>, %37, %cst_20 [2] : vector<4x4x4xf32> to vector<4x4xf32>
      %41 = vector.shape_cast %40 : vector<4x4xf32> to vector<4x4x1xf32>
      %42 = arith.addf %39, %41 : vector<4x4x1xf32>
      %c0_21 = arith.constant 0 : index
      %c0_22 = arith.constant 0 : index
      %c0_23 = arith.constant 0 : index
      %43 = vector.load %arg8[%c0_21, %c0_22, %c0_23] : memref<4x4x1xf32, #tpu.memory_space<vmem>>, vector<4x4x1xf32>
      tpu.vector_store %arg8[%c0_21, %c0_22, %c0_23], %42 {strides = array<i32>} : memref<4x4x1xf32, #tpu.memory_space<vmem>>, vector<4x4x1xf32>,
      %c0_24 = arith.constant 0 : index
      %c0_25 = arith.constant 0 : index
      %c0_26 = arith.constant 0 : index
      %44 = vector.load %arg9[%c0_24, %c0_25, %c0_26] : memref<4x4x8xf32, #tpu.memory_space<vmem>>, vector<4x4x8xf32>
      %45 = vector.broadcast %34 : vector<4x4x1xf32> to vector<4x4x8xf32>
      %46 = arith.mulf %45, %44 : vector<4x4x8xf32>
      %47 = arith.truncf %37 : vector<4x4x4xf32> to vector<4x4x4xbf16>
      %c0_27 = arith.constant 0 : index
      %c0_28 = arith.constant 0 : index
      %c0_29 = arith.constant 0 : index
      %48 = vector.load %arg5[%c0_27, %c0_28, %c0_29] : memref<4x4x8xbf16, #tpu.memory_space<vmem>>, vector<4x4x8xbf16>
      "tpu.trace_start"() <{level = 10 : i32, message = "gqk,gkd->gqd"}> : () -> ()
      %cst_30 = arith.constant dense<0.000000e+00> : vector<4x4x8xf32>
      %49 = tpu.matmul %47, %48, %cst_30 {dimension_numbers = #tpu.dot_dimension_numbers<[2], [1], [1], [2], [0, 0, 0, 1, 1, 2], [0], [0]>} : vector<4x4x4xbf16>, vector<4x4x8xbf16>, vector<4x4x8xf32> -> vector<4x4x8xf32>
      "tpu.trace_stop"() : () -> ()
      %50 = arith.addf %46, %49 : vector<4x4x8xf32>
      %c0_31 = arith.constant 0 : index
      %c0_32 = arith.constant 0 : index
      %c0_33 = arith.constant 0 : index
      %51 = vector.load %arg9[%c0_31, %c0_32, %c0_33] : memref<4x4x8xf32, #tpu.memory_space<vmem>>, vector<4x4x8xf32>
      tpu.vector_store %arg9[%c0_31, %c0_32, %c0_33], %50 {strides = array<i32>} : memref<4x4x8xf32, #tpu.memory_space<vmem>>, vector<4x4x8xf32>,
      %c0_34 = arith.constant 0 : index
      %c0_35 = arith.constant 0 : index
      %c0_36 = arith.constant 0 : index
      %52 = vector.load %arg7[%c0_34, %c0_35, %c0_36] : memref<4x4x1xf32, #tpu.memory_space<vmem>>, vector<4x4x1xf32>
      tpu.vector_store %arg7[%c0_34, %c0_35, %c0_36], %32 {strides = array<i32>} : memref<4x4x1xf32, #tpu.memory_space<vmem>>, vector<4x4x1xf32>,
    } else {
    }
    %c0_i32_3 = arith.constant 0 : i32
    %9 = arith.cmpi eq, %arg2, %c0_i32_3 : i32
    %10 = arith.extui %9 : i1 to i32
    %c0_i32_4 = arith.constant 0 : i32
    %11 = arith.cmpi ne, %10, %c0_i32_4 : i32
    scf.if %11 {
      %c0 = arith.constant 0 : index
      %c0_5 = arith.constant 0 : index
      %c0_6 = arith.constant 0 : index
      %12 = vector.load %arg9[%c0, %c0_5, %c0_6] : memref<4x4x8xf32, #tpu.memory_space<vmem>>, vector<4x4x8xf32>
      %c0_7 = arith.constant 0 : index
      %c0_8 = arith.constant 0 : index
      %c0_9 = arith.constant 0 : index
      %13 = vector.load %arg8[%c0_7, %c0_8, %c0_9] : memref<4x4x1xf32, #tpu.memory_space<vmem>>, vector<4x4x1xf32>
      %14 = tpu.reciprocal %13 {approx = true} : vector<4x4x1xf32> -> vector<4x4x1xf32>
      %15 = vector.broadcast %14 : vector<4x4x1xf32> to vector<4x4x8xf32>
      %16 = arith.mulf %12, %15 : vector<4x4x8xf32>
      %17 = arith.truncf %16 : vector<4x4x8xf32> to vector<4x4x8xbf16>
      %c0_10 = arith.constant 0 : index
      %c0_11 = arith.constant 0 : index
      %c0_12 = arith.constant 0 : index
      %18 = vector.load %arg6[%c0_10, %c0_11, %c0_12] : memref<4x4x8xbf16, #tpu.memory_space<vmem>>, vector<4x4x8xbf16>
      tpu.vector_store %arg6[%c0_10, %c0_11, %c0_12], %17 {strides = array<i32>} : memref<4x4x8xbf16, #tpu.memory_space<vmem>>, vector<4x4x8xbf16>,
    } else {
    }
    return
  }
  func.func @transform_0(%arg0: i32, %arg1: i32, %arg2: i32) -> (i32, i32, i32) {
    %c0_i32 = arith.constant 0 : i32
    %c0_i32_0 = arith.constant 0 : i32
    return %arg0, %arg1, %c0_i32 : i32, i32, i32
  }
  func.func @transform_1(%arg0: i32, %arg1: i32, %arg2: i32) -> (i32, i32, i32) {
    %c0_i32 = arith.constant 0 : i32
    %c0_i32_0 = arith.constant 0 : i32
    return %arg0, %arg2, %c0_i32 : i32, i32, i32
  }
  func.func @transform_2(%arg0: i32, %arg1: i32, %arg2: i32) -> (i32, i32, i32) {
    %c0_i32 = arith.constant 0 : i32
    %c0_i32_0 = arith.constant 0 : i32
    return %arg0, %arg2, %c0_i32 : i32, i32, i32
  }
  func.func @transform_3(%arg0: i32, %arg1: i32, %arg2: i32) -> (i32, i32, i32) {
    %c0_i32 = arith.constant 0 : i32
    %c0_i32_0 = arith.constant 0 : i32
    return %arg0, %arg1, %c0_i32 : i32, i32, i32
  }
}

module attributes {stable_mosaic.version = 11 : i64} {
  func.func @_flash_sdpa_kernel(%arg0: i32, %arg1: i32, %arg2: i32, %arg3: memref<8x4x8xbf16, #tpu.memory_space<vmem>>, %arg4: memref<8x4x8xbf16, #tpu.memory_space<vmem>>, %arg5: memref<8x4x8xbf16, #tpu.memory_space<vmem>>, %arg6: memref<8x4x8xbf16, #tpu.memory_space<vmem>>, %arg7: memref<8x4x1xf32, #tpu.memory_space<vmem>>, %arg8: memref<8x4x1xf32, #tpu.memory_space<vmem>>, %arg9: memref<8x4x8xf32, #tpu.memory_space<vmem>>) attributes {dimension_semantics = [#tpu.dimension_semantics<parallel>, #tpu.dimension_semantics<parallel>, #tpu.dimension_semantics<arbitrary>], iteration_bounds = array<i64: 2, 1, 1>, scalar_prefetch = 0 : i64, scratch_operands = 3 : i64, tpu.core_type = #tpu.core_type<tc>, window_params = [{transform_indices = @transform_0, window_bounds = array<i64: 8, 4, 8>}, {transform_indices = @transform_1, window_bounds = array<i64: 8, 4, 8>}, {transform_indices = @transform_2, window_bounds = array<i64: 8, 4, 8>}, {transform_indices = @transform_3, window_bounds = array<i64: 8, 4, 8>}]} {
    %c0_i32 = arith.constant 0 : i32
    %0 = arith.cmpi eq, %arg2, %c0_i32 : i32
    %1 = arith.extui %0 : i1 to i32
    %c0_i32_0 = arith.constant 0 : i32
    %2 = arith.cmpi ne, %1, %c0_i32_0 : i32
    scf.if %2 {
      %cst = arith.constant 0xFF800000 : f32
      %12 = vector.broadcast %cst : f32 to vector<8x4x1xf32>
      %c0 = arith.constant 0 : index
      %c0_5 = arith.constant 0 : index
      %c0_6 = arith.constant 0 : index
      %13 = vector.load %arg7[%c0, %c0_5, %c0_6] : memref<8x4x1xf32, #tpu.memory_space<vmem>>, vector<8x4x1xf32>
      tpu.vector_store %arg7[%c0, %c0_5, %c0_6], %12 {strides = array<i32>} : memref<8x4x1xf32, #tpu.memory_space<vmem>>, vector<8x4x1xf32>,
      %cst_7 = arith.constant 0.000000e+00 : f32
      %14 = vector.broadcast %cst_7 : f32 to vector<8x4x1xf32>
      %c0_8 = arith.constant 0 : index
      %c0_9 = arith.constant 0 : index
      %c0_10 = arith.constant 0 : index
      %15 = vector.load %arg8[%c0_8, %c0_9, %c0_10] : memref<8x4x1xf32, #tpu.memory_space<vmem>>, vector<8x4x1xf32>
      tpu.vector_store %arg8[%c0_8, %c0_9, %c0_10], %14 {strides = array<i32>} : memref<8x4x1xf32, #tpu.memory_space<vmem>>, vector<8x4x1xf32>,
      %cst_11 = arith.constant 0.000000e+00 : f32
      %16 = vector.broadcast %cst_11 : f32 to vector<8x4x8xf32>
      %c0_12 = arith.constant 0 : index
      %c0_13 = arith.constant 0 : index
      %c0_14 = arith.constant 0 : index
      %17 = vector.load %arg9[%c0_12, %c0_13, %c0_14] : memref<8x4x8xf32, #tpu.memory_space<vmem>>, vector<8x4x8xf32>
      tpu.vector_store %arg9[%c0_12, %c0_13, %c0_14], %16 {strides = array<i32>} : memref<8x4x8xf32, #tpu.memory_space<vmem>>, vector<8x4x8xf32>,
    } else {
    }
    %c4_i32 = arith.constant 4 : i32
    %3 = arith.muli %arg2, %c4_i32 : i32
    %c4_i32_1 = arith.constant 4 : i32
    %4 = arith.muli %arg1, %c4_i32_1 : i32
    %c3_i32 = arith.constant 3 : i32
    %5 = arith.addi %4, %c3_i32 : i32
    %6 = arith.cmpi sle, %3, %5 : i32
    %7 = arith.extui %6 : i1 to i32
    %c0_i32_2 = arith.constant 0 : i32
    %8 = arith.cmpi ne, %7, %c0_i32_2 : i32
    scf.if %8 {
      %c0 = arith.constant 0 : index
      %c0_5 = arith.constant 0 : index
      %c0_6 = arith.constant 0 : index
      %12 = vector.load %arg3[%c0, %c0_5, %c0_6] : memref<8x4x8xbf16, #tpu.memory_space<vmem>>, vector<8x4x8xbf16>
      %c0_7 = arith.constant 0 : index
      %c0_8 = arith.constant 0 : index
      %c0_9 = arith.constant 0 : index
      %13 = vector.load %arg4[%c0_7, %c0_8, %c0_9] : memref<8x4x8xbf16, #tpu.memory_space<vmem>>, vector<8x4x8xbf16>
      "tpu.trace_start"() <{level = 10 : i32, message = "gqd,gkd->gqk"}> : () -> ()
      %cst = arith.constant dense<0.000000e+00> : vector<8x4x4xf32>
      %14 = tpu.matmul %12, %13, %cst {dimension_numbers = #tpu.dot_dimension_numbers<[2], [2], [1], [1], [0, 0, 0, 1, 1, 1], [0], [0]>} : vector<8x4x8xbf16>, vector<8x4x8xbf16>, vector<8x4x4xf32> -> vector<8x4x4xf32>
      "tpu.trace_stop"() : () -> ()
      %c4_i32_10 = arith.constant 4 : i32
      %15 = arith.muli %arg1, %c4_i32_10 : i32
      %16 = tpu.iota {dimensions = array<i32: 0>} : vector<4x4xi32>
      %17 = vector.broadcast %15 : i32 to vector<4x4xi32>
      %18 = arith.addi %17, %16 : vector<4x4xi32>
      %c4_i32_11 = arith.constant 4 : i32
      %19 = arith.muli %arg2, %c4_i32_11 : i32
      %20 = tpu.iota {dimensions = array<i32: 1>} : vector<4x4xi32>
      %21 = vector.broadcast %19 : i32 to vector<4x4xi32>
      %22 = arith.addi %21, %20 : vector<4x4xi32>
      %23 = arith.cmpi sle, %22, %18 : vector<4x4xi32>
      %24 = vector.shape_cast %23 : vector<4x4xi1> to vector<1x4x4xi1>
      %cst_12 = arith.constant -1.000000e+30 : f32
      %25 = vector.shape_cast %24 : vector<1x4x4xi1> to vector<1x4x4xi1>
      %26 = vector.broadcast %25 : vector<1x4x4xi1> to vector<8x4x4xi1>
      %27 = vector.broadcast %cst_12 : f32 to vector<8x4x4xf32>
      %28 = arith.select %26, %14, %27 : vector<8x4x4xi1>, vector<8x4x4xf32>
      %c0_13 = arith.constant 0 : index
      %c0_14 = arith.constant 0 : index
      %c0_15 = arith.constant 0 : index
      %29 = vector.load %arg7[%c0_13, %c0_14, %c0_15] : memref<8x4x1xf32, #tpu.memory_space<vmem>>, vector<8x4x1xf32>
      %cst_16 = arith.constant dense<0xFF800000> : vector<8x4xf32>
      %30 = vector.multi_reduction <maximumf>, %28, %cst_16 [2] : vector<8x4x4xf32> to vector<8x4xf32>
      %31 = vector.shape_cast %30 : vector<8x4xf32> to vector<8x4x1xf32>
      %32 = arith.maximumf %29, %31 : vector<8x4x1xf32>
      %33 = arith.subf %29, %32 : vector<8x4x1xf32>
      %34 = math.exp %33 : vector<8x4x1xf32>
      %35 = vector.broadcast %32 : vector<8x4x1xf32> to vector<8x4x4xf32>
      %36 = arith.subf %28, %35 : vector<8x4x4xf32>
      %37 = math.exp %36 : vector<8x4x4xf32>
      %c0_17 = arith.constant 0 : index
      %c0_18 = arith.constant 0 : index
      %c0_19 = arith.constant 0 : index
      %38 = vector.load %arg8[%c0_17, %c0_18, %c0_19] : memref<8x4x1xf32, #tpu.memory_space<vmem>>, vector<8x4x1xf32>
      %39 = arith.mulf %34, %38 : vector<8x4x1xf32>
      %cst_20 = arith.constant dense<0.000000e+00> : vector<8x4xf32>
      %40 = vector.multi_reduction <add>, %37, %cst_20 [2] : vector<8x4x4xf32> to vector<8x4xf32>
      %41 = vector.shape_cast %40 : vector<8x4xf32> to vector<8x4x1xf32>
      %42 = arith.addf %39, %41 : vector<8x4x1xf32>
      %c0_21 = arith.constant 0 : index
      %c0_22 = arith.constant 0 : index
      %c0_23 = arith.constant 0 : index
      %43 = vector.load %arg8[%c0_21, %c0_22, %c0_23] : memref<8x4x1xf32, #tpu.memory_space<vmem>>, vector<8x4x1xf32>
      tpu.vector_store %arg8[%c0_21, %c0_22, %c0_23], %42 {strides = array<i32>} : memref<8x4x1xf32, #tpu.memory_space<vmem>>, vector<8x4x1xf32>,
      %c0_24 = arith.constant 0 : index
      %c0_25 = arith.constant 0 : index
      %c0_26 = arith.constant 0 : index
      %44 = vector.load %arg9[%c0_24, %c0_25, %c0_26] : memref<8x4x8xf32, #tpu.memory_space<vmem>>, vector<8x4x8xf32>
      %45 = vector.broadcast %34 : vector<8x4x1xf32> to vector<8x4x8xf32>
      %46 = arith.mulf %45, %44 : vector<8x4x8xf32>
      %47 = arith.truncf %37 : vector<8x4x4xf32> to vector<8x4x4xbf16>
      %c0_27 = arith.constant 0 : index
      %c0_28 = arith.constant 0 : index
      %c0_29 = arith.constant 0 : index
      %48 = vector.load %arg5[%c0_27, %c0_28, %c0_29] : memref<8x4x8xbf16, #tpu.memory_space<vmem>>, vector<8x4x8xbf16>
      "tpu.trace_start"() <{level = 10 : i32, message = "gqk,gkd->gqd"}> : () -> ()
      %cst_30 = arith.constant dense<0.000000e+00> : vector<8x4x8xf32>
      %49 = tpu.matmul %47, %48, %cst_30 {dimension_numbers = #tpu.dot_dimension_numbers<[2], [1], [1], [2], [0, 0, 0, 1, 1, 2], [0], [0]>} : vector<8x4x4xbf16>, vector<8x4x8xbf16>, vector<8x4x8xf32> -> vector<8x4x8xf32>
      "tpu.trace_stop"() : () -> ()
      %50 = arith.addf %46, %49 : vector<8x4x8xf32>
      %c0_31 = arith.constant 0 : index
      %c0_32 = arith.constant 0 : index
      %c0_33 = arith.constant 0 : index
      %51 = vector.load %arg9[%c0_31, %c0_32, %c0_33] : memref<8x4x8xf32, #tpu.memory_space<vmem>>, vector<8x4x8xf32>
      tpu.vector_store %arg9[%c0_31, %c0_32, %c0_33], %50 {strides = array<i32>} : memref<8x4x8xf32, #tpu.memory_space<vmem>>, vector<8x4x8xf32>,
      %c0_34 = arith.constant 0 : index
      %c0_35 = arith.constant 0 : index
      %c0_36 = arith.constant 0 : index
      %52 = vector.load %arg7[%c0_34, %c0_35, %c0_36] : memref<8x4x1xf32, #tpu.memory_space<vmem>>, vector<8x4x1xf32>
      tpu.vector_store %arg7[%c0_34, %c0_35, %c0_36], %32 {strides = array<i32>} : memref<8x4x1xf32, #tpu.memory_space<vmem>>, vector<8x4x1xf32>,
    } else {
    }
    %c0_i32_3 = arith.constant 0 : i32
    %9 = arith.cmpi eq, %arg2, %c0_i32_3 : i32
    %10 = arith.extui %9 : i1 to i32
    %c0_i32_4 = arith.constant 0 : i32
    %11 = arith.cmpi ne, %10, %c0_i32_4 : i32
    scf.if %11 {
      %c0 = arith.constant 0 : index
      %c0_5 = arith.constant 0 : index
      %c0_6 = arith.constant 0 : index
      %12 = vector.load %arg9[%c0, %c0_5, %c0_6] : memref<8x4x8xf32, #tpu.memory_space<vmem>>, vector<8x4x8xf32>
      %c0_7 = arith.constant 0 : index
      %c0_8 = arith.constant 0 : index
      %c0_9 = arith.constant 0 : index
      %13 = vector.load %arg8[%c0_7, %c0_8, %c0_9] : memref<8x4x1xf32, #tpu.memory_space<vmem>>, vector<8x4x1xf32>
      %14 = tpu.reciprocal %13 {approx = true} : vector<8x4x1xf32> -> vector<8x4x1xf32>
      %15 = vector.broadcast %14 : vector<8x4x1xf32> to vector<8x4x8xf32>
      %16 = arith.mulf %12, %15 : vector<8x4x8xf32>
      %17 = arith.truncf %16 : vector<8x4x8xf32> to vector<8x4x8xbf16>
      %c0_10 = arith.constant 0 : index
      %c0_11 = arith.constant 0 : index
      %c0_12 = arith.constant 0 : index
      %18 = vector.load %arg6[%c0_10, %c0_11, %c0_12] : memref<8x4x8xbf16, #tpu.memory_space<vmem>>, vector<8x4x8xbf16>
      tpu.vector_store %arg6[%c0_10, %c0_11, %c0_12], %17 {strides = array<i32>} : memref<8x4x8xbf16, #tpu.memory_space<vmem>>, vector<8x4x8xbf16>,
    } else {
    }
    return
  }
  func.func @transform_0(%arg0: i32, %arg1: i32, %arg2: i32) -> (i32, i32, i32) {
    %c0_i32 = arith.constant 0 : i32
    %c0_i32_0 = arith.constant 0 : i32
    return %arg0, %arg1, %c0_i32 : i32, i32, i32
  }
  func.func @transform_1(%arg0: i32, %arg1: i32, %arg2: i32) -> (i32, i32, i32) {
    %c0_i32 = arith.constant 0 : i32
    %c0_i32_0 = arith.constant 0 : i32
    return %arg0, %arg2, %c0_i32 : i32, i32, i32
  }
  func.func @transform_2(%arg0: i32, %arg1: i32, %arg2: i32) -> (i32, i32, i32) {
    %c0_i32 = arith.constant 0 : i32
    %c0_i32_0 = arith.constant 0 : i32
    return %arg0, %arg2, %c0_i32 : i32, i32, i32
  }
  func.func @transform_3(%arg0: i32, %arg1: i32, %arg2: i32) -> (i32, i32, i32) {
    %c0_i32 = arith.constant 0 : i32
    %c0_i32_0 = arith.constant 0 : i32
    return %arg0, %arg1, %c0_i32 : i32, i32, i32
  }
}

module attributes {stable_mosaic.version = 11 : i64} {
  func.func @_fused_ln_linear_kernel(%arg0: i32, %arg1: i32, %arg2: memref<16x32xbf16, #tpu.memory_space<vmem>>, %arg3: memref<1x32xf32, #tpu.memory_space<vmem>>, %arg4: memref<1x32xf32, #tpu.memory_space<vmem>>, %arg5: memref<32x32xbf16, #tpu.memory_space<vmem>>, %arg6: memref<1x32xf32, #tpu.memory_space<vmem>>, %arg7: memref<16x32xf32, #tpu.memory_space<vmem>>, %arg8: memref<16x32xf32, #tpu.memory_space<vmem>>) attributes {dimension_semantics = [#tpu.dimension_semantics<parallel>, #tpu.dimension_semantics<parallel>], iteration_bounds = array<i64: 2, 1>, scalar_prefetch = 0 : i64, scratch_operands = 0 : i64, tpu.core_type = #tpu.core_type<tc>, window_params = [{transform_indices = @transform_0, window_bounds = array<i64: 16, 32>}, {pipeline_mode = #tpu.pipeline_mode<synchronous>, transform_indices = @transform_1, window_bounds = array<i64: 1, 32>}, {pipeline_mode = #tpu.pipeline_mode<synchronous>, transform_indices = @transform_2, window_bounds = array<i64: 1, 32>}, {transform_indices = @transform_3, window_bounds = array<i64: 32, 32>}, {transform_indices = @transform_4, window_bounds = array<i64: 1, 32>}, {transform_indices = @transform_5, window_bounds = array<i64: 16, 32>}, {transform_indices = @transform_6, window_bounds = array<i64: 16, 32>}]} {
    %c0 = arith.constant 0 : index
    %c0_0 = arith.constant 0 : index
    %0 = vector.load %arg2[%c0, %c0_0] : memref<16x32xbf16, #tpu.memory_space<vmem>>, vector<16x32xbf16>
    %1 = arith.extf %0 : vector<16x32xbf16> to vector<16x32xf32>
    %cst = arith.constant dense<0.000000e+00> : vector<16xf32>
    %2 = vector.multi_reduction <add>, %1, %cst [1] : vector<16x32xf32> to vector<16xf32>
    %3 = vector.shape_cast %2 : vector<16xf32> to vector<16x1xf32>
    %cst_1 = arith.constant 3.200000e+01 : f32
    %4 = vector.broadcast %cst_1 : f32 to vector<16x1xf32>
    %5 = arith.divf %3, %4 : vector<16x1xf32>
    %6 = vector.broadcast %5 : vector<16x1xf32> to vector<16x32xf32>
    %7 = arith.subf %1, %6 : vector<16x32xf32>
    %8 = arith.mulf %7, %7 : vector<16x32xf32>
    %cst_2 = arith.constant dense<0.000000e+00> : vector<16xf32>
    %9 = vector.multi_reduction <add>, %8, %cst_2 [1] : vector<16x32xf32> to vector<16xf32>
    %10 = vector.shape_cast %9 : vector<16xf32> to vector<16x1xf32>
    %cst_3 = arith.constant 3.200000e+01 : f32
    %11 = vector.broadcast %cst_3 : f32 to vector<16x1xf32>
    %12 = arith.divf %10, %11 : vector<16x1xf32>
    %13 = vector.broadcast %5 : vector<16x1xf32> to vector<16x32xf32>
    %14 = arith.subf %1, %13 : vector<16x32xf32>
    %cst_4 = arith.constant 9.99999974E-6 : f32
    %15 = vector.broadcast %cst_4 : f32 to vector<16x1xf32>
    %16 = arith.addf %12, %15 : vector<16x1xf32>
    %17 = math.rsqrt %16 : vector<16x1xf32>
    %18 = vector.broadcast %17 : vector<16x1xf32> to vector<16x32xf32>
    %19 = arith.mulf %14, %18 : vector<16x32xf32>
    %c0_5 = arith.constant 0 : index
    %c0_6 = arith.constant 0 : index
    %20 = vector.load %arg3[%c0_5, %c0_6] : memref<1x32xf32, #tpu.memory_space<vmem>>, vector<1x32xf32>
    %21 = vector.broadcast %20 : vector<1x32xf32> to vector<16x32xf32>
    %22 = arith.mulf %19, %21 : vector<16x32xf32>
    %c0_7 = arith.constant 0 : index
    %c0_8 = arith.constant 0 : index
    %23 = vector.load %arg4[%c0_7, %c0_8] : memref<1x32xf32, #tpu.memory_space<vmem>>, vector<1x32xf32>
    %24 = vector.broadcast %23 : vector<1x32xf32> to vector<16x32xf32>
    %25 = arith.addf %22, %24 : vector<16x32xf32>
    %c0_9 = arith.constant 0 : index
    %c0_10 = arith.constant 0 : index
    %26 = vector.load %arg5[%c0_9, %c0_10] : memref<32x32xbf16, #tpu.memory_space<vmem>>, vector<32x32xbf16>
    %27 = arith.truncf %25 : vector<16x32xf32> to vector<16x32xbf16>
    %cst_11 = arith.constant dense<0.000000e+00> : vector<16x32xf32>
    %28 = tpu.matmul %27, %26, %cst_11 {dimension_numbers = #tpu.dot_dimension_numbers<[1], [0], [0], [1], [0, 0, 1, 1], [], []>} : vector<16x32xbf16>, vector<32x32xbf16>, vector<16x32xf32> -> vector<16x32xf32>
    %c0_12 = arith.constant 0 : index
    %c0_13 = arith.constant 0 : index
    %29 = vector.load %arg6[%c0_12, %c0_13] : memref<1x32xf32, #tpu.memory_space<vmem>>, vector<1x32xf32>
    %30 = vector.broadcast %29 : vector<1x32xf32> to vector<16x32xf32>
    %31 = arith.addf %28, %30 : vector<16x32xf32>
    %c0_14 = arith.constant 0 : index
    %c0_15 = arith.constant 0 : index
    %32 = vector.load %arg7[%c0_14, %c0_15] : memref<16x32xf32, #tpu.memory_space<vmem>>, vector<16x32xf32>
    %33 = arith.addf %31, %32 : vector<16x32xf32>
    %c0_16 = arith.constant 0 : index
    %c0_17 = arith.constant 0 : index
    %34 = vector.load %arg8[%c0_16, %c0_17] : memref<16x32xf32, #tpu.memory_space<vmem>>, vector<16x32xf32>
    tpu.vector_store %arg8[%c0_16, %c0_17], %33 {strides = array<i32>} : memref<16x32xf32, #tpu.memory_space<vmem>>, vector<16x32xf32>,
    return
  }
  func.func @transform_0(%arg0: i32, %arg1: i32) -> (i32, i32) {
    %c0_i32 = arith.constant 0 : i32
    %c0_i32_0 = arith.constant 0 : i32
    return %arg0, %c0_i32 : i32, i32
  }
  func.func @transform_1(%arg0: i32, %arg1: i32) -> (i32, i32) {
    %c0_i32 = arith.constant 0 : i32
    %c0_i32_0 = arith.constant 0 : i32
    %c0_i32_1 = arith.constant 0 : i32
    return %c0_i32, %c0_i32_0 : i32, i32
  }
  func.func @transform_2(%arg0: i32, %arg1: i32) -> (i32, i32) {
    %c0_i32 = arith.constant 0 : i32
    %c0_i32_0 = arith.constant 0 : i32
    %c0_i32_1 = arith.constant 0 : i32
    return %c0_i32, %c0_i32_0 : i32, i32
  }
  func.func @transform_3(%arg0: i32, %arg1: i32) -> (i32, i32) {
    %c0_i32 = arith.constant 0 : i32
    %c0_i32_0 = arith.constant 0 : i32
    return %c0_i32, %arg1 : i32, i32
  }
  func.func @transform_4(%arg0: i32, %arg1: i32) -> (i32, i32) {
    %c0_i32 = arith.constant 0 : i32
    %c0_i32_0 = arith.constant 0 : i32
    return %c0_i32, %arg1 : i32, i32
  }
  func.func @transform_5(%arg0: i32, %arg1: i32) -> (i32, i32) {
    %c0_i32 = arith.constant 0 : i32
    return %arg0, %arg1 : i32, i32
  }
  func.func @transform_6(%arg0: i32, %arg1: i32) -> (i32, i32) {
    %c0_i32 = arith.constant 0 : i32
    return %arg0, %arg1 : i32, i32
  }
}

module attributes {stable_mosaic.version = 11 : i64} {
  func.func @_fused_ln_linear_kernel(%arg0: i32, %arg1: i32, %arg2: memref<16x32xf32, #tpu.memory_space<vmem>>, %arg3: memref<1x32xf32, #tpu.memory_space<vmem>>, %arg4: memref<1x32xf32, #tpu.memory_space<vmem>>, %arg5: memref<32x64xbf16, #tpu.memory_space<vmem>>, %arg6: memref<1x64xf32, #tpu.memory_space<vmem>>, %arg7: memref<16x64xbf16, #tpu.memory_space<vmem>>) attributes {dimension_semantics = [#tpu.dimension_semantics<parallel>, #tpu.dimension_semantics<parallel>], iteration_bounds = array<i64: 2, 1>, scalar_prefetch = 0 : i64, scratch_operands = 0 : i64, tpu.core_type = #tpu.core_type<tc>, window_params = [{transform_indices = @transform_0, window_bounds = array<i64: 16, 32>}, {pipeline_mode = #tpu.pipeline_mode<synchronous>, transform_indices = @transform_1, window_bounds = array<i64: 1, 32>}, {pipeline_mode = #tpu.pipeline_mode<synchronous>, transform_indices = @transform_2, window_bounds = array<i64: 1, 32>}, {transform_indices = @transform_3, window_bounds = array<i64: 32, 64>}, {transform_indices = @transform_4, window_bounds = array<i64: 1, 64>}, {transform_indices = @transform_5, window_bounds = array<i64: 16, 64>}]} {
    %c0 = arith.constant 0 : index
    %c0_0 = arith.constant 0 : index
    %0 = vector.load %arg2[%c0, %c0_0] : memref<16x32xf32, #tpu.memory_space<vmem>>, vector<16x32xf32>
    %cst = arith.constant dense<0.000000e+00> : vector<16xf32>
    %1 = vector.multi_reduction <add>, %0, %cst [1] : vector<16x32xf32> to vector<16xf32>
    %2 = vector.shape_cast %1 : vector<16xf32> to vector<16x1xf32>
    %cst_1 = arith.constant 3.200000e+01 : f32
    %3 = vector.broadcast %cst_1 : f32 to vector<16x1xf32>
    %4 = arith.divf %2, %3 : vector<16x1xf32>
    %5 = vector.broadcast %4 : vector<16x1xf32> to vector<16x32xf32>
    %6 = arith.subf %0, %5 : vector<16x32xf32>
    %7 = arith.mulf %6, %6 : vector<16x32xf32>
    %cst_2 = arith.constant dense<0.000000e+00> : vector<16xf32>
    %8 = vector.multi_reduction <add>, %7, %cst_2 [1] : vector<16x32xf32> to vector<16xf32>
    %9 = vector.shape_cast %8 : vector<16xf32> to vector<16x1xf32>
    %cst_3 = arith.constant 3.200000e+01 : f32
    %10 = vector.broadcast %cst_3 : f32 to vector<16x1xf32>
    %11 = arith.divf %9, %10 : vector<16x1xf32>
    %12 = vector.broadcast %4 : vector<16x1xf32> to vector<16x32xf32>
    %13 = arith.subf %0, %12 : vector<16x32xf32>
    %cst_4 = arith.constant 9.99999974E-6 : f32
    %14 = vector.broadcast %cst_4 : f32 to vector<16x1xf32>
    %15 = arith.addf %11, %14 : vector<16x1xf32>
    %16 = math.rsqrt %15 : vector<16x1xf32>
    %17 = vector.broadcast %16 : vector<16x1xf32> to vector<16x32xf32>
    %18 = arith.mulf %13, %17 : vector<16x32xf32>
    %c0_5 = arith.constant 0 : index
    %c0_6 = arith.constant 0 : index
    %19 = vector.load %arg3[%c0_5, %c0_6] : memref<1x32xf32, #tpu.memory_space<vmem>>, vector<1x32xf32>
    %20 = vector.broadcast %19 : vector<1x32xf32> to vector<16x32xf32>
    %21 = arith.mulf %18, %20 : vector<16x32xf32>
    %c0_7 = arith.constant 0 : index
    %c0_8 = arith.constant 0 : index
    %22 = vector.load %arg4[%c0_7, %c0_8] : memref<1x32xf32, #tpu.memory_space<vmem>>, vector<1x32xf32>
    %23 = vector.broadcast %22 : vector<1x32xf32> to vector<16x32xf32>
    %24 = arith.addf %21, %23 : vector<16x32xf32>
    %c0_9 = arith.constant 0 : index
    %c0_10 = arith.constant 0 : index
    %25 = vector.load %arg5[%c0_9, %c0_10] : memref<32x64xbf16, #tpu.memory_space<vmem>>, vector<32x64xbf16>
    %26 = arith.truncf %24 : vector<16x32xf32> to vector<16x32xbf16>
    %cst_11 = arith.constant dense<0.000000e+00> : vector<16x64xf32>
    %27 = tpu.matmul %26, %25, %cst_11 {dimension_numbers = #tpu.dot_dimension_numbers<[1], [0], [0], [1], [0, 0, 1, 1], [], []>} : vector<16x32xbf16>, vector<32x64xbf16>, vector<16x64xf32> -> vector<16x64xf32>
    %c0_12 = arith.constant 0 : index
    %c0_13 = arith.constant 0 : index
    %28 = vector.load %arg6[%c0_12, %c0_13] : memref<1x64xf32, #tpu.memory_space<vmem>>, vector<1x64xf32>
    %29 = vector.broadcast %28 : vector<1x64xf32> to vector<16x64xf32>
    %30 = arith.addf %27, %29 : vector<16x64xf32>
    %cst_14 = arith.constant 0.000000e+00 : f32
    %31 = vector.broadcast %cst_14 : f32 to vector<16x64xf32>
    %32 = arith.maximumf %30, %31 : vector<16x64xf32>
    %33 = arith.truncf %32 : vector<16x64xf32> to vector<16x64xbf16>
    %c0_15 = arith.constant 0 : index
    %c0_16 = arith.constant 0 : index
    %34 = vector.load %arg7[%c0_15, %c0_16] : memref<16x64xbf16, #tpu.memory_space<vmem>>, vector<16x64xbf16>
    tpu.vector_store %arg7[%c0_15, %c0_16], %33 {strides = array<i32>} : memref<16x64xbf16, #tpu.memory_space<vmem>>, vector<16x64xbf16>,
    return
  }
  func.func @transform_0(%arg0: i32, %arg1: i32) -> (i32, i32) {
    %c0_i32 = arith.constant 0 : i32
    %c0_i32_0 = arith.constant 0 : i32
    return %arg0, %c0_i32 : i32, i32
  }
  func.func @transform_1(%arg0: i32, %arg1: i32) -> (i32, i32) {
    %c0_i32 = arith.constant 0 : i32
    %c0_i32_0 = arith.constant 0 : i32
    %c0_i32_1 = arith.constant 0 : i32
    return %c0_i32, %c0_i32_0 : i32, i32
  }
  func.func @transform_2(%arg0: i32, %arg1: i32) -> (i32, i32) {
    %c0_i32 = arith.constant 0 : i32
    %c0_i32_0 = arith.constant 0 : i32
    %c0_i32_1 = arith.constant 0 : i32
    return %c0_i32, %c0_i32_0 : i32, i32
  }
  func.func @transform_3(%arg0: i32, %arg1: i32) -> (i32, i32) {
    %c0_i32 = arith.constant 0 : i32
    %c0_i32_0 = arith.constant 0 : i32
    return %c0_i32, %arg1 : i32, i32
  }
  func.func @transform_4(%arg0: i32, %arg1: i32) -> (i32, i32) {
    %c0_i32 = arith.constant 0 : i32
    %c0_i32_0 = arith.constant 0 : i32
    return %c0_i32, %arg1 : i32, i32
  }
  func.func @transform_5(%arg0: i32, %arg1: i32) -> (i32, i32) {
    %c0_i32 = arith.constant 0 : i32
    return %arg0, %arg1 : i32, i32
  }
}

module attributes {stable_mosaic.version = 11 : i64} {
  func.func @_fused_ln_linear_kernel(%arg0: i32, %arg1: i32, %arg2: memref<16x32xf32, #tpu.memory_space<vmem>>, %arg3: memref<1x32xf32, #tpu.memory_space<vmem>>, %arg4: memref<1x32xf32, #tpu.memory_space<vmem>>, %arg5: memref<32x64xbf16, #tpu.memory_space<vmem>>, %arg6: memref<1x64xf32, #tpu.memory_space<vmem>>, %arg7: memref<16x64xbf16, #tpu.memory_space<vmem>>) attributes {dimension_semantics = [#tpu.dimension_semantics<parallel>, #tpu.dimension_semantics<parallel>], iteration_bounds = array<i64: 2, 1>, scalar_prefetch = 0 : i64, scratch_operands = 0 : i64, tpu.core_type = #tpu.core_type<tc>, window_params = [{transform_indices = @transform_0, window_bounds = array<i64: 16, 32>}, {pipeline_mode = #tpu.pipeline_mode<synchronous>, transform_indices = @transform_1, window_bounds = array<i64: 1, 32>}, {pipeline_mode = #tpu.pipeline_mode<synchronous>, transform_indices = @transform_2, window_bounds = array<i64: 1, 32>}, {transform_indices = @transform_3, window_bounds = array<i64: 32, 64>}, {transform_indices = @transform_4, window_bounds = array<i64: 1, 64>}, {transform_indices = @transform_5, window_bounds = array<i64: 16, 64>}]} {
    %c0 = arith.constant 0 : index
    %c0_0 = arith.constant 0 : index
    %0 = vector.load %arg2[%c0, %c0_0] : memref<16x32xf32, #tpu.memory_space<vmem>>, vector<16x32xf32>
    %cst = arith.constant dense<0.000000e+00> : vector<16xf32>
    %1 = vector.multi_reduction <add>, %0, %cst [1] : vector<16x32xf32> to vector<16xf32>
    %2 = vector.shape_cast %1 : vector<16xf32> to vector<16x1xf32>
    %cst_1 = arith.constant 3.200000e+01 : f32
    %3 = vector.broadcast %cst_1 : f32 to vector<16x1xf32>
    %4 = arith.divf %2, %3 : vector<16x1xf32>
    %5 = vector.broadcast %4 : vector<16x1xf32> to vector<16x32xf32>
    %6 = arith.subf %0, %5 : vector<16x32xf32>
    %7 = arith.mulf %6, %6 : vector<16x32xf32>
    %cst_2 = arith.constant dense<0.000000e+00> : vector<16xf32>
    %8 = vector.multi_reduction <add>, %7, %cst_2 [1] : vector<16x32xf32> to vector<16xf32>
    %9 = vector.shape_cast %8 : vector<16xf32> to vector<16x1xf32>
    %cst_3 = arith.constant 3.200000e+01 : f32
    %10 = vector.broadcast %cst_3 : f32 to vector<16x1xf32>
    %11 = arith.divf %9, %10 : vector<16x1xf32>
    %12 = vector.broadcast %4 : vector<16x1xf32> to vector<16x32xf32>
    %13 = arith.subf %0, %12 : vector<16x32xf32>
    %cst_4 = arith.constant 9.99999974E-6 : f32
    %14 = vector.broadcast %cst_4 : f32 to vector<16x1xf32>
    %15 = arith.addf %11, %14 : vector<16x1xf32>
    %16 = math.rsqrt %15 : vector<16x1xf32>
    %17 = vector.broadcast %16 : vector<16x1xf32> to vector<16x32xf32>
    %18 = arith.mulf %13, %17 : vector<16x32xf32>
    %c0_5 = arith.constant 0 : index
    %c0_6 = arith.constant 0 : index
    %19 = vector.load %arg3[%c0_5, %c0_6] : memref<1x32xf32, #tpu.memory_space<vmem>>, vector<1x32xf32>
    %20 = vector.broadcast %19 : vector<1x32xf32> to vector<16x32xf32>
    %21 = arith.mulf %18, %20 : vector<16x32xf32>
    %c0_7 = arith.constant 0 : index
    %c0_8 = arith.constant 0 : index
    %22 = vector.load %arg4[%c0_7, %c0_8] : memref<1x32xf32, #tpu.memory_space<vmem>>, vector<1x32xf32>
    %23 = vector.broadcast %22 : vector<1x32xf32> to vector<16x32xf32>
    %24 = arith.addf %21, %23 : vector<16x32xf32>
    %c0_9 = arith.constant 0 : index
    %c0_10 = arith.constant 0 : index
    %25 = vector.load %arg5[%c0_9, %c0_10] : memref<32x64xbf16, #tpu.memory_space<vmem>>, vector<32x64xbf16>
    %26 = arith.truncf %24 : vector<16x32xf32> to vector<16x32xbf16>
    %cst_11 = arith.constant dense<0.000000e+00> : vector<16x64xf32>
    %27 = tpu.matmul %26, %25, %cst_11 {dimension_numbers = #tpu.dot_dimension_numbers<[1], [0], [0], [1], [0, 0, 1, 1], [], []>} : vector<16x32xbf16>, vector<32x64xbf16>, vector<16x64xf32> -> vector<16x64xf32>
    %c0_12 = arith.constant 0 : index
    %c0_13 = arith.constant 0 : index
    %28 = vector.load %arg6[%c0_12, %c0_13] : memref<1x64xf32, #tpu.memory_space<vmem>>, vector<1x64xf32>
    %29 = vector.broadcast %28 : vector<1x64xf32> to vector<16x64xf32>
    %30 = arith.addf %27, %29 : vector<16x64xf32>
    %31 = arith.truncf %30 : vector<16x64xf32> to vector<16x64xbf16>
    %c0_14 = arith.constant 0 : index
    %c0_15 = arith.constant 0 : index
    %32 = vector.load %arg7[%c0_14, %c0_15] : memref<16x64xbf16, #tpu.memory_space<vmem>>, vector<16x64xbf16>
    tpu.vector_store %arg7[%c0_14, %c0_15], %31 {strides = array<i32>} : memref<16x64xbf16, #tpu.memory_space<vmem>>, vector<16x64xbf16>,
    return
  }
  func.func @transform_0(%arg0: i32, %arg1: i32) -> (i32, i32) {
    %c0_i32 = arith.constant 0 : i32
    %c0_i32_0 = arith.constant 0 : i32
    return %arg0, %c0_i32 : i32, i32
  }
  func.func @transform_1(%arg0: i32, %arg1: i32) -> (i32, i32) {
    %c0_i32 = arith.constant 0 : i32
    %c0_i32_0 = arith.constant 0 : i32
    %c0_i32_1 = arith.constant 0 : i32
    return %c0_i32, %c0_i32_0 : i32, i32
  }
  func.func @transform_2(%arg0: i32, %arg1: i32) -> (i32, i32) {
    %c0_i32 = arith.constant 0 : i32
    %c0_i32_0 = arith.constant 0 : i32
    %c0_i32_1 = arith.constant 0 : i32
    return %c0_i32, %c0_i32_0 : i32, i32
  }
  func.func @transform_3(%arg0: i32, %arg1: i32) -> (i32, i32) {
    %c0_i32 = arith.constant 0 : i32
    %c0_i32_0 = arith.constant 0 : i32
    return %c0_i32, %arg1 : i32, i32
  }
  func.func @transform_4(%arg0: i32, %arg1: i32) -> (i32, i32) {
    %c0_i32 = arith.constant 0 : i32
    %c0_i32_0 = arith.constant 0 : i32
    return %c0_i32, %arg1 : i32, i32
  }
  func.func @transform_5(%arg0: i32, %arg1: i32) -> (i32, i32) {
    %c0_i32 = arith.constant 0 : i32
    return %arg0, %arg1 : i32, i32
  }
}

module attributes {stable_mosaic.version = 11 : i64} {
  func.func @_fused_ln_linear_kernel(%arg0: i32, %arg1: i32, %arg2: memref<16x64xbf16, #tpu.memory_space<vmem>>, %arg3: memref<1x64xf32, #tpu.memory_space<vmem>>, %arg4: memref<1x64xf32, #tpu.memory_space<vmem>>, %arg5: memref<64x32xbf16, #tpu.memory_space<vmem>>, %arg6: memref<1x32xf32, #tpu.memory_space<vmem>>, %arg7: memref<16x32xf32, #tpu.memory_space<vmem>>, %arg8: memref<16x32xf32, #tpu.memory_space<vmem>>) attributes {dimension_semantics = [#tpu.dimension_semantics<parallel>, #tpu.dimension_semantics<parallel>], iteration_bounds = array<i64: 2, 1>, scalar_prefetch = 0 : i64, scratch_operands = 0 : i64, tpu.core_type = #tpu.core_type<tc>, window_params = [{transform_indices = @transform_0, window_bounds = array<i64: 16, 64>}, {pipeline_mode = #tpu.pipeline_mode<synchronous>, transform_indices = @transform_1, window_bounds = array<i64: 1, 64>}, {pipeline_mode = #tpu.pipeline_mode<synchronous>, transform_indices = @transform_2, window_bounds = array<i64: 1, 64>}, {transform_indices = @transform_3, window_bounds = array<i64: 64, 32>}, {transform_indices = @transform_4, window_bounds = array<i64: 1, 32>}, {transform_indices = @transform_5, window_bounds = array<i64: 16, 32>}, {transform_indices = @transform_6, window_bounds = array<i64: 16, 32>}]} {
    %c0 = arith.constant 0 : index
    %c0_0 = arith.constant 0 : index
    %0 = vector.load %arg2[%c0, %c0_0] : memref<16x64xbf16, #tpu.memory_space<vmem>>, vector<16x64xbf16>
    %1 = arith.extf %0 : vector<16x64xbf16> to vector<16x64xf32>
    %cst = arith.constant dense<0.000000e+00> : vector<16xf32>
    %2 = vector.multi_reduction <add>, %1, %cst [1] : vector<16x64xf32> to vector<16xf32>
    %3 = vector.shape_cast %2 : vector<16xf32> to vector<16x1xf32>
    %cst_1 = arith.constant 6.400000e+01 : f32
    %4 = vector.broadcast %cst_1 : f32 to vector<16x1xf32>
    %5 = arith.divf %3, %4 : vector<16x1xf32>
    %6 = vector.broadcast %5 : vector<16x1xf32> to vector<16x64xf32>
    %7 = arith.subf %1, %6 : vector<16x64xf32>
    %8 = arith.mulf %7, %7 : vector<16x64xf32>
    %cst_2 = arith.constant dense<0.000000e+00> : vector<16xf32>
    %9 = vector.multi_reduction <add>, %8, %cst_2 [1] : vector<16x64xf32> to vector<16xf32>
    %10 = vector.shape_cast %9 : vector<16xf32> to vector<16x1xf32>
    %cst_3 = arith.constant 6.400000e+01 : f32
    %11 = vector.broadcast %cst_3 : f32 to vector<16x1xf32>
    %12 = arith.divf %10, %11 : vector<16x1xf32>
    %13 = vector.broadcast %5 : vector<16x1xf32> to vector<16x64xf32>
    %14 = arith.subf %1, %13 : vector<16x64xf32>
    %cst_4 = arith.constant 9.99999974E-6 : f32
    %15 = vector.broadcast %cst_4 : f32 to vector<16x1xf32>
    %16 = arith.addf %12, %15 : vector<16x1xf32>
    %17 = math.rsqrt %16 : vector<16x1xf32>
    %18 = vector.broadcast %17 : vector<16x1xf32> to vector<16x64xf32>
    %19 = arith.mulf %14, %18 : vector<16x64xf32>
    %c0_5 = arith.constant 0 : index
    %c0_6 = arith.constant 0 : index
    %20 = vector.load %arg3[%c0_5, %c0_6] : memref<1x64xf32, #tpu.memory_space<vmem>>, vector<1x64xf32>
    %21 = vector.broadcast %20 : vector<1x64xf32> to vector<16x64xf32>
    %22 = arith.mulf %19, %21 : vector<16x64xf32>
    %c0_7 = arith.constant 0 : index
    %c0_8 = arith.constant 0 : index
    %23 = vector.load %arg4[%c0_7, %c0_8] : memref<1x64xf32, #tpu.memory_space<vmem>>, vector<1x64xf32>
    %24 = vector.broadcast %23 : vector<1x64xf32> to vector<16x64xf32>
    %25 = arith.addf %22, %24 : vector<16x64xf32>
    %c0_9 = arith.constant 0 : index
    %c0_10 = arith.constant 0 : index
    %26 = vector.load %arg5[%c0_9, %c0_10] : memref<64x32xbf16, #tpu.memory_space<vmem>>, vector<64x32xbf16>
    %27 = arith.truncf %25 : vector<16x64xf32> to vector<16x64xbf16>
    %cst_11 = arith.constant dense<0.000000e+00> : vector<16x32xf32>
    %28 = tpu.matmul %27, %26, %cst_11 {dimension_numbers = #tpu.dot_dimension_numbers<[1], [0], [0], [1], [0, 0, 1, 1], [], []>} : vector<16x64xbf16>, vector<64x32xbf16>, vector<16x32xf32> -> vector<16x32xf32>
    %c0_12 = arith.constant 0 : index
    %c0_13 = arith.constant 0 : index
    %29 = vector.load %arg6[%c0_12, %c0_13] : memref<1x32xf32, #tpu.memory_space<vmem>>, vector<1x32xf32>
    %30 = vector.broadcast %29 : vector<1x32xf32> to vector<16x32xf32>
    %31 = arith.addf %28, %30 : vector<16x32xf32>
    %c0_14 = arith.constant 0 : index
    %c0_15 = arith.constant 0 : index
    %32 = vector.load %arg7[%c0_14, %c0_15] : memref<16x32xf32, #tpu.memory_space<vmem>>, vector<16x32xf32>
    %33 = arith.addf %31, %32 : vector<16x32xf32>
    %c0_16 = arith.constant 0 : index
    %c0_17 = arith.constant 0 : index
    %34 = vector.load %arg8[%c0_16, %c0_17] : memref<16x32xf32, #tpu.memory_space<vmem>>, vector<16x32xf32>
    tpu.vector_store %arg8[%c0_16, %c0_17], %33 {strides = array<i32>} : memref<16x32xf32, #tpu.memory_space<vmem>>, vector<16x32xf32>,
    return
  }
  func.func @transform_0(%arg0: i32, %arg1: i32) -> (i32, i32) {
    %c0_i32 = arith.constant 0 : i32
    %c0_i32_0 = arith.constant 0 : i32
    return %arg0, %c0_i32 : i32, i32
  }
  func.func @transform_1(%arg0: i32, %arg1: i32) -> (i32, i32) {
    %c0_i32 = arith.constant 0 : i32
    %c0_i32_0 = arith.constant 0 : i32
    %c0_i32_1 = arith.constant 0 : i32
    return %c0_i32, %c0_i32_0 : i32, i32
  }
  func.func @transform_2(%arg0: i32, %arg1: i32) -> (i32, i32) {
    %c0_i32 = arith.constant 0 : i32
    %c0_i32_0 = arith.constant 0 : i32
    %c0_i32_1 = arith.constant 0 : i32
    return %c0_i32, %c0_i32_0 : i32, i32
  }
  func.func @transform_3(%arg0: i32, %arg1: i32) -> (i32, i32) {
    %c0_i32 = arith.constant 0 : i32
    %c0_i32_0 = arith.constant 0 : i32
    return %c0_i32, %arg1 : i32, i32
  }
  func.func @transform_4(%arg0: i32, %arg1: i32) -> (i32, i32) {
    %c0_i32 = arith.constant 0 : i32
    %c0_i32_0 = arith.constant 0 : i32
    return %c0_i32, %arg1 : i32, i32
  }
  func.func @transform_5(%arg0: i32, %arg1: i32) -> (i32, i32) {
    %c0_i32 = arith.constant 0 : i32
    return %arg0, %arg1 : i32, i32
  }
  func.func @transform_6(%arg0: i32, %arg1: i32) -> (i32, i32) {
    %c0_i32 = arith.constant 0 : i32
    return %arg0, %arg1 : i32, i32
  }
}

module attributes {stable_mosaic.version = 11 : i64} {
  func.func @_fused_ln_linear_kernel(%arg0: i32, %arg1: i32, %arg2: memref<16x32xf32, #tpu.memory_space<vmem>>, %arg3: memref<1x32xf32, #tpu.memory_space<vmem>>, %arg4: memref<1x32xf32, #tpu.memory_space<vmem>>, %arg5: memref<32x32xbf16, #tpu.memory_space<vmem>>, %arg6: memref<1x32xf32, #tpu.memory_space<vmem>>, %arg7: memref<16x32xbf16, #tpu.memory_space<vmem>>) attributes {dimension_semantics = [#tpu.dimension_semantics<parallel>, #tpu.dimension_semantics<parallel>], iteration_bounds = array<i64: 2, 1>, scalar_prefetch = 0 : i64, scratch_operands = 0 : i64, tpu.core_type = #tpu.core_type<tc>, window_params = [{transform_indices = @transform_0, window_bounds = array<i64: 16, 32>}, {pipeline_mode = #tpu.pipeline_mode<synchronous>, transform_indices = @transform_1, window_bounds = array<i64: 1, 32>}, {pipeline_mode = #tpu.pipeline_mode<synchronous>, transform_indices = @transform_2, window_bounds = array<i64: 1, 32>}, {transform_indices = @transform_3, window_bounds = array<i64: 32, 32>}, {transform_indices = @transform_4, window_bounds = array<i64: 1, 32>}, {transform_indices = @transform_5, window_bounds = array<i64: 16, 32>}]} {
    %c0 = arith.constant 0 : index
    %c0_0 = arith.constant 0 : index
    %0 = vector.load %arg2[%c0, %c0_0] : memref<16x32xf32, #tpu.memory_space<vmem>>, vector<16x32xf32>
    %cst = arith.constant dense<0.000000e+00> : vector<16xf32>
    %1 = vector.multi_reduction <add>, %0, %cst [1] : vector<16x32xf32> to vector<16xf32>
    %2 = vector.shape_cast %1 : vector<16xf32> to vector<16x1xf32>
    %cst_1 = arith.constant 3.200000e+01 : f32
    %3 = vector.broadcast %cst_1 : f32 to vector<16x1xf32>
    %4 = arith.divf %2, %3 : vector<16x1xf32>
    %5 = vector.broadcast %4 : vector<16x1xf32> to vector<16x32xf32>
    %6 = arith.subf %0, %5 : vector<16x32xf32>
    %7 = arith.mulf %6, %6 : vector<16x32xf32>
    %cst_2 = arith.constant dense<0.000000e+00> : vector<16xf32>
    %8 = vector.multi_reduction <add>, %7, %cst_2 [1] : vector<16x32xf32> to vector<16xf32>
    %9 = vector.shape_cast %8 : vector<16xf32> to vector<16x1xf32>
    %cst_3 = arith.constant 3.200000e+01 : f32
    %10 = vector.broadcast %cst_3 : f32 to vector<16x1xf32>
    %11 = arith.divf %9, %10 : vector<16x1xf32>
    %12 = vector.broadcast %4 : vector<16x1xf32> to vector<16x32xf32>
    %13 = arith.subf %0, %12 : vector<16x32xf32>
    %cst_4 = arith.constant 9.99999974E-6 : f32
    %14 = vector.broadcast %cst_4 : f32 to vector<16x1xf32>
    %15 = arith.addf %11, %14 : vector<16x1xf32>
    %16 = math.rsqrt %15 : vector<16x1xf32>
    %17 = vector.broadcast %16 : vector<16x1xf32> to vector<16x32xf32>
    %18 = arith.mulf %13, %17 : vector<16x32xf32>
    %c0_5 = arith.constant 0 : index
    %c0_6 = arith.constant 0 : index
    %19 = vector.load %arg3[%c0_5, %c0_6] : memref<1x32xf32, #tpu.memory_space<vmem>>, vector<1x32xf32>
    %20 = vector.broadcast %19 : vector<1x32xf32> to vector<16x32xf32>
    %21 = arith.mulf %18, %20 : vector<16x32xf32>
    %c0_7 = arith.constant 0 : index
    %c0_8 = arith.constant 0 : index
    %22 = vector.load %arg4[%c0_7, %c0_8] : memref<1x32xf32, #tpu.memory_space<vmem>>, vector<1x32xf32>
    %23 = vector.broadcast %22 : vector<1x32xf32> to vector<16x32xf32>
    %24 = arith.addf %21, %23 : vector<16x32xf32>
    %c0_9 = arith.constant 0 : index
    %c0_10 = arith.constant 0 : index
    %25 = vector.load %arg5[%c0_9, %c0_10] : memref<32x32xbf16, #tpu.memory_space<vmem>>, vector<32x32xbf16>
    %26 = arith.truncf %24 : vector<16x32xf32> to vector<16x32xbf16>
    %cst_11 = arith.constant dense<0.000000e+00> : vector<16x32xf32>
    %27 = tpu.matmul %26, %25, %cst_11 {dimension_numbers = #tpu.dot_dimension_numbers<[1], [0], [0], [1], [0, 0, 1, 1], [], []>} : vector<16x32xbf16>, vector<32x32xbf16>, vector<16x32xf32> -> vector<16x32xf32>
    %c0_12 = arith.constant 0 : index
    %c0_13 = arith.constant 0 : index
    %28 = vector.load %arg6[%c0_12, %c0_13] : memref<1x32xf32, #tpu.memory_space<vmem>>, vector<1x32xf32>
    %29 = vector.broadcast %28 : vector<1x32xf32> to vector<16x32xf32>
    %30 = arith.addf %27, %29 : vector<16x32xf32>
    %31 = arith.truncf %30 : vector<16x32xf32> to vector<16x32xbf16>
    %c0_14 = arith.constant 0 : index
    %c0_15 = arith.constant 0 : index
    %32 = vector.load %arg7[%c0_14, %c0_15] : memref<16x32xbf16, #tpu.memory_space<vmem>>, vector<16x32xbf16>
    tpu.vector_store %arg7[%c0_14, %c0_15], %31 {strides = array<i32>} : memref<16x32xbf16, #tpu.memory_space<vmem>>, vector<16x32xbf16>,
    return
  }
  func.func @transform_0(%arg0: i32, %arg1: i32) -> (i32, i32) {
    %c0_i32 = arith.constant 0 : i32
    %c0_i32_0 = arith.constant 0 : i32
    return %arg0, %c0_i32 : i32, i32
  }
  func.func @transform_1(%arg0: i32, %arg1: i32) -> (i32, i32) {
    %c0_i32 = arith.constant 0 : i32
    %c0_i32_0 = arith.constant 0 : i32
    %c0_i32_1 = arith.constant 0 : i32
    return %c0_i32, %c0_i32_0 : i32, i32
  }
  func.func @transform_2(%arg0: i32, %arg1: i32) -> (i32, i32) {
    %c0_i32 = arith.constant 0 : i32
    %c0_i32_0 = arith.constant 0 : i32
    %c0_i32_1 = arith.constant 0 : i32
    return %c0_i32, %c0_i32_0 : i32, i32
  }
  func.func @transform_3(%arg0: i32, %arg1: i32) -> (i32, i32) {
    %c0_i32 = arith.constant 0 : i32
    %c0_i32_0 = arith.constant 0 : i32
    return %c0_i32, %arg1 : i32, i32
  }
  func.func @transform_4(%arg0: i32, %arg1: i32) -> (i32, i32) {
    %c0_i32 = arith.constant 0 : i32
    %c0_i32_0 = arith.constant 0 : i32
    return %c0_i32, %arg1 : i32, i32
  }
  func.func @transform_5(%arg0: i32, %arg1: i32) -> (i32, i32) {
    %c0_i32 = arith.constant 0 : i32
    return %arg0, %arg1 : i32, i32
  }
}

module attributes {stable_mosaic.version = 11 : i64} {
  func.func @_fused_ln_linear_kernel(%arg0: i32, %arg1: i32, %arg2: memref<16x32xf32, #tpu.memory_space<vmem>>, %arg3: memref<1x32xf32, #tpu.memory_space<vmem>>, %arg4: memref<1x32xf32, #tpu.memory_space<vmem>>, %arg5: memref<32x4xbf16, #tpu.memory_space<vmem>>, %arg6: memref<1x4xf32, #tpu.memory_space<vmem>>, %arg7: memref<16x4xf32, #tpu.memory_space<vmem>>) attributes {dimension_semantics = [#tpu.dimension_semantics<parallel>, #tpu.dimension_semantics<parallel>], iteration_bounds = array<i64: 2, 1>, scalar_prefetch = 0 : i64, scratch_operands = 0 : i64, tpu.core_type = #tpu.core_type<tc>, window_params = [{transform_indices = @transform_0, window_bounds = array<i64: 16, 32>}, {pipeline_mode = #tpu.pipeline_mode<synchronous>, transform_indices = @transform_1, window_bounds = array<i64: 1, 32>}, {pipeline_mode = #tpu.pipeline_mode<synchronous>, transform_indices = @transform_2, window_bounds = array<i64: 1, 32>}, {transform_indices = @transform_3, window_bounds = array<i64: 32, 4>}, {transform_indices = @transform_4, window_bounds = array<i64: 1, 4>}, {transform_indices = @transform_5, window_bounds = array<i64: 16, 4>}]} {
    %c0 = arith.constant 0 : index
    %c0_0 = arith.constant 0 : index
    %0 = vector.load %arg2[%c0, %c0_0] : memref<16x32xf32, #tpu.memory_space<vmem>>, vector<16x32xf32>
    %cst = arith.constant dense<0.000000e+00> : vector<16xf32>
    %1 = vector.multi_reduction <add>, %0, %cst [1] : vector<16x32xf32> to vector<16xf32>
    %2 = vector.shape_cast %1 : vector<16xf32> to vector<16x1xf32>
    %cst_1 = arith.constant 3.200000e+01 : f32
    %3 = vector.broadcast %cst_1 : f32 to vector<16x1xf32>
    %4 = arith.divf %2, %3 : vector<16x1xf32>
    %5 = vector.broadcast %4 : vector<16x1xf32> to vector<16x32xf32>
    %6 = arith.subf %0, %5 : vector<16x32xf32>
    %7 = arith.mulf %6, %6 : vector<16x32xf32>
    %cst_2 = arith.constant dense<0.000000e+00> : vector<16xf32>
    %8 = vector.multi_reduction <add>, %7, %cst_2 [1] : vector<16x32xf32> to vector<16xf32>
    %9 = vector.shape_cast %8 : vector<16xf32> to vector<16x1xf32>
    %cst_3 = arith.constant 3.200000e+01 : f32
    %10 = vector.broadcast %cst_3 : f32 to vector<16x1xf32>
    %11 = arith.divf %9, %10 : vector<16x1xf32>
    %12 = vector.broadcast %4 : vector<16x1xf32> to vector<16x32xf32>
    %13 = arith.subf %0, %12 : vector<16x32xf32>
    %cst_4 = arith.constant 9.99999974E-6 : f32
    %14 = vector.broadcast %cst_4 : f32 to vector<16x1xf32>
    %15 = arith.addf %11, %14 : vector<16x1xf32>
    %16 = math.rsqrt %15 : vector<16x1xf32>
    %17 = vector.broadcast %16 : vector<16x1xf32> to vector<16x32xf32>
    %18 = arith.mulf %13, %17 : vector<16x32xf32>
    %c0_5 = arith.constant 0 : index
    %c0_6 = arith.constant 0 : index
    %19 = vector.load %arg3[%c0_5, %c0_6] : memref<1x32xf32, #tpu.memory_space<vmem>>, vector<1x32xf32>
    %20 = vector.broadcast %19 : vector<1x32xf32> to vector<16x32xf32>
    %21 = arith.mulf %18, %20 : vector<16x32xf32>
    %c0_7 = arith.constant 0 : index
    %c0_8 = arith.constant 0 : index
    %22 = vector.load %arg4[%c0_7, %c0_8] : memref<1x32xf32, #tpu.memory_space<vmem>>, vector<1x32xf32>
    %23 = vector.broadcast %22 : vector<1x32xf32> to vector<16x32xf32>
    %24 = arith.addf %21, %23 : vector<16x32xf32>
    %c0_9 = arith.constant 0 : index
    %c0_10 = arith.constant 0 : index
    %25 = vector.load %arg5[%c0_9, %c0_10] : memref<32x4xbf16, #tpu.memory_space<vmem>>, vector<32x4xbf16>
    %26 = arith.truncf %24 : vector<16x32xf32> to vector<16x32xbf16>
    %cst_11 = arith.constant dense<0.000000e+00> : vector<16x4xf32>
    %27 = tpu.matmul %26, %25, %cst_11 {dimension_numbers = #tpu.dot_dimension_numbers<[1], [0], [0], [1], [0, 0, 1, 1], [], []>} : vector<16x32xbf16>, vector<32x4xbf16>, vector<16x4xf32> -> vector<16x4xf32>
    %c0_12 = arith.constant 0 : index
    %c0_13 = arith.constant 0 : index
    %28 = vector.load %arg6[%c0_12, %c0_13] : memref<1x4xf32, #tpu.memory_space<vmem>>, vector<1x4xf32>
    %29 = vector.broadcast %28 : vector<1x4xf32> to vector<16x4xf32>
    %30 = arith.addf %27, %29 : vector<16x4xf32>
    %c0_14 = arith.constant 0 : index
    %c0_15 = arith.constant 0 : index
    %31 = vector.load %arg7[%c0_14, %c0_15] : memref<16x4xf32, #tpu.memory_space<vmem>>, vector<16x4xf32>
    tpu.vector_store %arg7[%c0_14, %c0_15], %30 {strides = array<i32>} : memref<16x4xf32, #tpu.memory_space<vmem>>, vector<16x4xf32>,
    return
  }
  func.func @transform_0(%arg0: i32, %arg1: i32) -> (i32, i32) {
    %c0_i32 = arith.constant 0 : i32
    %c0_i32_0 = arith.constant 0 : i32
    return %arg0, %c0_i32 : i32, i32
  }
  func.func @transform_1(%arg0: i32, %arg1: i32) -> (i32, i32) {
    %c0_i32 = arith.constant 0 : i32
    %c0_i32_0 = arith.constant 0 : i32
    %c0_i32_1 = arith.constant 0 : i32
    return %c0_i32, %c0_i32_0 : i32, i32
  }
  func.func @transform_2(%arg0: i32, %arg1: i32) -> (i32, i32) {
    %c0_i32 = arith.constant 0 : i32
    %c0_i32_0 = arith.constant 0 : i32
    %c0_i32_1 = arith.constant 0 : i32
    return %c0_i32, %c0_i32_0 : i32, i32
  }
  func.func @transform_3(%arg0: i32, %arg1: i32) -> (i32, i32) {
    %c0_i32 = arith.constant 0 : i32
    %c0_i32_0 = arith.constant 0 : i32
    return %c0_i32, %arg1 : i32, i32
  }
  func.func @transform_4(%arg0: i32, %arg1: i32) -> (i32, i32) {
    %c0_i32 = arith.constant 0 : i32
    %c0_i32_0 = arith.constant 0 : i32
    return %c0_i32, %arg1 : i32, i32
  }
  func.func @transform_5(%arg0: i32, %arg1: i32) -> (i32, i32) {
    %c0_i32 = arith.constant 0 : i32
    return %arg0, %arg1 : i32, i32
  }
}

</mosaic_0001>

<llo_original>
// kernel: longnet_ts_forward.37
$region0: #{longnet_ts_forward.37}
  #allocation0 [shape = 'u32[]', space=smem, size = 0x4, offset = 0x4, fixed_abs, tag = 'smem constant byte address 0x4 - core index']
  #allocation1 [shape = 'u32[72,128]{1,0:T(1,128)}', space=vmem, size = 0x9000, scoped, tag = 'internal scratch']
  %s0 = inlined_call_operand.vmem [shape: f32[32,12], index: 0, kind: input, shape index: {}]
  %s1 = inlined_call_operand.vmem [shape: bf16[12,32], index: 1, kind: input, shape index: {}]
  %s2 = inlined_call_operand.vmem [shape: f32[1,32], index: 2, kind: input, shape index: {}]
  %s3 = inlined_call_operand.vmem [shape: f32[32,32], index: 3, kind: output, shape index: {}]
  %s4 = sld [smem:[#allocation0]]
  $region45: #{longnet_ts_forward.37} parent=0
    _
  %s6 = ssub.s32 1, %s4
  %s7 = scalar_select 0, %s6, %s4
  loop: start=0, step=1, limit=4
  $region2: #{longnet_ts_forward.37} parent=0 // loop_pre_header
    _
  $region3: #{longnet_ts_forward.37} parent=0 // loop_header
    %s9 = sphi 0, %s13
    %p10 = scmp.ge.s32.totalorder %s9, 4
    %s16 = sphi 0, %s28
    %s17 = sphi 0, %s24
    %s18 = sphi 0, %s16
    %s19 = sphi 0, %s17
    %s20 = sphi 0, %s18
    %s21 = sphi 0, %s19
    %s31 = sphi 0, %s33
    %s34 = sphi 0, %s31
    %s35 = sphi 0, %s34
    %s51 = sphi 0, %s35
    %s57 = sphi 0, %s59
    %s60 = sphi 0, %s57
    %s61 = sphi 0, %s60
    %s77 = sphi 0, %s61
    %s83 = sphi 0, %s85
    %s86 = sphi 0, %s83
    %s87 = sphi 0, %s86
    %s103 = sphi 0, %s87
    %s111 = sphi 0, %s113
    %s114 = sphi 0, %s111
    %s115 = sphi 0, %s114
    %s131 = sphi 0, %s115
  $region4: #{longnet_ts_forward.37} parent=0 // loop_header_branch
    %12 = sbr.rel (%p10) target = $region8
  $region5: #{longnet_ts_forward.37} parent=0 // loop_body
    %s14 = ssub.s32 %s9, 1
    %s15 = ssub.s32 %s9, 2
    %s22 = sadd.s32 1, %s17
    %p23 = scmp.ge.s32.totalorder %s22, 1
    %s24 = scalar_select %p23, 0, %s22
    %s25 = sadd.s32 1, %s16
    %s26 = scalar_select %p23, %s25, %s16
    %p27 = scmp.ge.s32.totalorder %s26, 2
    %s28 = scalar_select %p27, 0, %s26
    %s29 = ssub.s32 %s16, %s28
    %p30 = scmp.eq.s32.totalorder %s29, 0
    %s32 = sadd.s32 %s31, 1
    %s33 = scalar_select %p30, %s31, %s32
    %p36 = pneg %p30
    %p37 = scmp.eq.s32.totalorder %s9, 1
    %p38 = por %p36, %p37
    %p39 = scmp.ne.s32.totalorder %s31, %s34
    %p40 = scmp.eq.s32.totalorder %s9, 0
    %p41 = por %p39, %p40
    %p42 = scmp.ne.s32.totalorder %s31, %s34
    %p43 = scmp.eq.s32.totalorder %s14, 1
    %p44 = por %p42, %p43
    %p45 = scmp.ne.s32.totalorder %s34, %s35
    %p46 = scmp.eq.s32.totalorder %s14, 0
    %p47 = por %p45, %p46
    %p48 = scmp.ne.s32.totalorder %s34, %s35
    %p49 = scmp.eq.s32.totalorder %s15, 1
    %p50 = por %p48, %p49
    %p52 = scmp.ne.s32.totalorder %s35, %s51
    %p53 = scmp.eq.s32.totalorder %s15, 0
    %p54 = por %p52, %p53
    %s55 = ssub.s32 %s17, %s24
    %p56 = scmp.eq.s32.totalorder %s55, 0
    %s58 = sadd.s32 %s57, 1
    %s59 = scalar_select %p56, %s57, %s58
    %p62 = pneg %p56
    %p63 = scmp.eq.s32.totalorder %s9, 1
    %p64 = por %p62, %p63
    %p65 = scmp.ne.s32.totalorder %s57, %s60
    %p66 = scmp.eq.s32.totalorder %s9, 0
    %p67 = por %p65, %p66
    %p68 = scmp.ne.s32.totalorder %s57, %s60
    %p69 = scmp.eq.s32.totalorder %s14, 1
    %p70 = por %p68, %p69
    %p71 = scmp.ne.s32.totalorder %s60, %s61
    %p72 = scmp.eq.s32.totalorder %s14, 0
    %p73 = por %p71, %p72
    %p74 = scmp.ne.s32.totalorder %s60, %s61
    %p75 = scmp.eq.s32.totalorder %s15, 1
    %p76 = por %p74, %p75
    %p78 = scmp.ne.s32.totalorder %s61, %s77
    %p79 = scmp.eq.s32.totalorder %s15, 0
    %p80 = por %p78, %p79
    %s81 = ssub.s32 %s17, %s24
    %p82 = scmp.eq.s32.totalorder %s81, 0
    %s84 = sadd.s32 %s83, 1
    %s85 = scalar_select %p82, %s83, %s84
    %p88 = pneg %p82
    %p89 = scmp.eq.s32.totalorder %s9, 1
    %p90 = por %p88, %p89
    %p91 = scmp.ne.s32.totalorder %s83, %s86
    %p92 = scmp.eq.s32.totalorder %s9, 0
    %p93 = por %p91, %p92
    %p94 = scmp.ne.s32.totalorder %s83, %s86
    %p95 = scmp.eq.s32.totalorder %s14, 1
    %p96 = por %p94, %p95
    %p97 = scmp.ne.s32.totalorder %s86, %s87
    %p98 = scmp.eq.s32.totalorder %s14, 0
    %p99 = por %p97, %p98
    %p100 = scmp.ne.s32.totalorder %s86, %s87
    %p101 = scmp.eq.s32.totalorder %s15, 1
    %p102 = por %p100, %p101
    %p104 = scmp.ne.s32.totalorder %s87, %s103
    %p105 = scmp.eq.s32.totalorder %s15, 0
    %p106 = por %p104, %p105
    %s107 = ssub.s32 %s16, %s28
    %s108 = ssub.s32 %s17, %s24
    %s109 = sor.u32 %s107, %s108
    %p110 = scmp.eq.s32.totalorder %s109, 0
    %s112 = sadd.s32 %s111, 1
    %s113 = scalar_select %p110, %s111, %s112
    %p116 = pneg %p110
    %p117 = scmp.eq.s32.totalorder %s9, 1
    %p118 = por %p116, %p117
    %p119 = scmp.ne.s32.totalorder %s111, %s114
    %p120 = scmp.eq.s32.totalorder %s9, 0
    %p121 = por %p119, %p120
    %p122 = scmp.ne.s32.totalorder %s111, %s114
    %p123 = scmp.eq.s32.totalorder %s14, 1
    %p124 = por %p122, %p123
    %p125 = scmp.ne.s32.totalorder %s114, %s115
    %p126 = scmp.eq.s32.totalorder %s14, 0
    %p127 = por %p125, %p126
    %p128 = scmp.ne.s32.totalorder %s114, %s115
    %p129 = scmp.eq.s32.totalorder %s15, 1
    %p130 = por %p128, %p129
    %p132 = scmp.ne.s32.totalorder %s115, %s131
    %p133 = scmp.eq.s32.totalorder %s15, 0
    %p134 = por %p132, %p133
    %p135 = scmp.le.s32.totalorder 1, %s9
    %p136 = scmp.lt.s32.totalorder %s9, 3
    %p137 = pnand %p135, %p136
    %p138 = pneg %p137
    // Predicated region
    $region9: #{longnet_ts_forward.37} parent=5 // pred_check
      _
    $region10: #{longnet_ts_forward.37} parent=5 // pred_check_branch
      %140 = sbr.rel (%p137) target = $region12
    $region11: #{longnet_ts_forward.37} parent=5 // pred_region
      %s141 = ssub.s32 %s9, 1
      // Predicated region
      $region13: #{longnet_ts_forward.37} parent=11 // pred_check
        %p142 = pneg %p73
      $region14: #{longnet_ts_forward.37} parent=11 // pred_check_branch
        %144 = sbr.rel (%p142) target = $region16
      $region15: #{longnet_ts_forward.37} parent=11 // pred_region
        %p145 = scmp.lt.s32.totalorder %s19, 0
        %s146 = scalar_select %p145, %s19, 0
        %s147 = smul.addr %s146, 4
        %s148 = scalar_lea.vmem %s1, %s147
      $region16: #{longnet_ts_forward.37} parent=11 // pred_fallthru
        _
      // Predicated region
      $region17: #{longnet_ts_forward.37} parent=11 // pred_check
        %p149 = pneg %p99
      $region18: #{longnet_ts_forward.37} parent=11 // pred_check_branch
        %151 = sbr.rel (%p149) target = $region20
      $region19: #{longnet_ts_forward.37} parent=11 // pred_region
        %p152 = scmp.lt.s32.totalorder %s19, 0
        %s153 = scalar_select %p152, %s19, 0
        %s154 = scalar_lea.vmem %s2, %s153
      $region20: #{longnet_ts_forward.37} parent=11 // pred_fallthru
        _
    $region12: #{longnet_ts_forward.37} parent=5 // pred_fallthru
      _
    %p155 = scmp.lt.s32.totalorder %s9, 2
    // Predicated region
    $region21: #{longnet_ts_forward.37} parent=5 // pred_check
      %p156 = pneg %p155
    $region22: #{longnet_ts_forward.37} parent=5 // pred_check_branch
      %158 = sbr.rel (%p156) target = $region24
    $region23: #{longnet_ts_forward.37} parent=5 // pred_region
      // Predicated region
      $region25: #{longnet_ts_forward.37} parent=23 // pred_check
        %p159 = pneg %p41
      $region26: #{longnet_ts_forward.37} parent=23 // pred_check_branch
        %161 = sbr.rel (%p159) target = $region28
      $region27: #{longnet_ts_forward.37} parent=23 // pred_region
        %s162 = smul.u32 2, %s16
        %p163 = scmp.lt.s32.totalorder %s162, 3
        %s164 = scalar_select %p163, %s162, 3
        %s165 = smul.addr %s164, 8
        %s166 = scalar_lea.vmem %s0, %s165
        %s167 = smul.u32 2, %s16
      $region28: #{longnet_ts_forward.37} parent=23 // pred_fallthru
        _
    $region24: #{longnet_ts_forward.37} parent=5 // pred_fallthru
      _
    %p168 = scmp.le.s32.totalorder 1, %s9
    %p169 = scmp.lt.s32.totalorder %s9, 3
    %p170 = pnand %p168, %p169
    %p171 = pneg %p170
    // Predicated region
    $region29: #{longnet_ts_forward.37} parent=5 // pred_check
      _
    $region30: #{longnet_ts_forward.37} parent=5 // pred_check_branch
      %173 = sbr.rel (%p170) target = $region32
    $region31: #{longnet_ts_forward.37} parent=5 // pred_region
      %s174 = ssub.s32 %s9, 1
      %s175 = smul.u32 2, %s18
      %p176 = scmp.lt.s32.totalorder %s175, 3
      %s177 = scalar_select %p176, %s175, 3
      %s178 = smul.addr %s177, 8
      %s179 = scalar_lea.vmem %s0, %s178
      %p180 = pneg %p47
      %p181 = pneg %p44
      %p182 = scmp.lt.s32.totalorder %s19, 0
      %s183 = scalar_select %p182, %s19, 0
      %s184 = smul.addr %s183, 4
      %s185 = scalar_lea.vmem %s1, %s184
      %p186 = pneg %p73
      %p187 = pneg %p70
      %p188 = scmp.lt.s32.totalorder %s19, 0
      %s189 = scalar_select %p188, %s19, 0
      %s190 = scalar_lea.vmem %s2, %s189
      %p191 = pneg %p99
      %p192 = pneg %p96
      %p193 = pneg %p127
      %p194 = pneg %p124
      %s195 = smul.u32 2, %s18
      %p196 = scmp.lt.s32.totalorder %s195, 3
      %s197 = scalar_select %p196, %s195, 3
      %p198 = scmp.lt.s32.totalorder %s19, 0
      %s199 = scalar_select %p198, %s19, 0
      %s200 = sadd.s32 %s199, %s197
      %s201 = smul.addr %s200, 8
      %s202 = scalar_lea.vmem %s3, %s201
      %s203 = smul.u32 2, %s18
      %p204 = scmp.lt.s32.totalorder %s203, 3
      %s205 = scalar_select %p204, %s203, 3
      %s206 = smul.addr %s205, 8
      %s207 = scalar_lea.vmem %s0, %s206
      %s208 = smul.u32 2, %s18
      %p209 = scmp.lt.s32.totalorder %s19, 0
      %s210 = scalar_select %p209, %s19, 0
      %s211 = smul.addr %s210, 4
      %s212 = scalar_lea.vmem %s1, %s211
      %p213 = scmp.lt.s32.totalorder %s19, 0
      %s214 = scalar_select %p213, %s19, 0
      %s215 = scalar_lea.vmem %s2, %s214
      %s216 = smul.u32 2, %s18
      %p217 = scmp.lt.s32.totalorder %s216, 3
      %s218 = scalar_select %p217, %s216, 3
      %p219 = scmp.lt.s32.totalorder %s19, 0
      %s220 = scalar_select %p219, %s19, 0
      %s221 = sadd.s32 %s220, %s218
      %s222 = smul.addr %s221, 8
      %s223 = scalar_lea.vmem %s3, %s222
      %s224 = smul.u32 2, %s18
      %v226 = vld [vmem:[%s207] sm:$0xff]
      %v227 = vld [vmem:[%s207 + $0x8] sm:$0xff]
      %v228 = vld [vmem:[%s212] sm:$0xf]
      %v229 = vld [vmem:[%s212 + $0x4] sm:$0x3]
      %v230 = vpack.c.bf16 %v227, %v226
      %v231 = vld [vmem:[%s215] sm:$0x1]
      %v233 = vperm.slane %v231, 0
      %v237 = vunpack.c.l.b16 %v228
      %v238 = vunpack.c.l.b16 %v229
      %v239 = vpack.c.b16 %v238, %v237
      %vm240 = vcmask 97280
      %v242 = vsel %vm240, %v230, 0
      %vm244 = vcmask 1045504
      %v246 = vsel %vm244, %v239, 0
      %248 = vmatpush.bf16.msra.mxu0 0
      %249 = vmatpush.bf16.msra.mxu0 0
      %250 = vmatpush.bf16.msra.mxu0 0
      %251 = vmatpush.bf16.msra.mxu0 0
      %252 = vmatpush.bf16.msra.mxu0 0
      %253 = vmatpush.bf16.msra.mxu0 0
      %254 = vmatpush.bf16.msra.mxu0 0
      %255 = vmatpush.bf16.msra.mxu0 %v246
      %256 = vmatmul.bf16.gmra.mxu0 %v242
      %v257 = vpop.f32.mrf.mxu0
      %v258 = vadd.f32 %v233, %v257
      %v259 = vpop.f32.mrf.mxu0
      %v260 = vadd.f32 %v233, %v259
      %261 = vdwg.mxu0
      %vm262 = vcmask 261120
      %263 = vst.msk [vmem:[%s223] sm:$0xff] %vm262, %v258
      %264 = vst.msk [vmem:[%s223 + $0x8] sm:$0xff] %vm262, %v260
      %s265 = smul.u32 2, %s18
      %p266 = scmp.lt.s32.totalorder %s265, 3
      %s267 = scalar_select %p266, %s265, 3
      %p268 = scmp.lt.s32.totalorder %s19, 0
      %s269 = scalar_select %p268, %s19, 0
      %s270 = sadd.s32 %s269, %s267
      %s271 = smul.addr %s270, 8
      %s272 = scalar_lea.vmem %s3, %s271
      // Predicated region
      $region33: #{longnet_ts_forward.37} parent=31 // pred_check
        %p273 = pneg %p124
      $region34: #{longnet_ts_forward.37} parent=31 // pred_check_branch
        %275 = sbr.rel (%p273) target = $region36
      $region35: #{longnet_ts_forward.37} parent=31 // pred_region
        %s276 = smul.u32 2, %s18
      $region36: #{longnet_ts_forward.37} parent=31 // pred_fallthru
        _
    $region32: #{longnet_ts_forward.37} parent=5 // pred_fallthru
      _
    %p277 = scmp.le.s32.totalorder 2, %s9
    // Predicated region
    $region37: #{longnet_ts_forward.37} parent=5 // pred_check
      %p278 = pneg %p277
    $region38: #{longnet_ts_forward.37} parent=5 // pred_check_branch
      %280 = sbr.rel (%p278) target = $region40
    $region39: #{longnet_ts_forward.37} parent=5 // pred_region
      %s281 = ssub.s32 %s9, 2
      // Predicated region
      $region41: #{longnet_ts_forward.37} parent=39 // pred_check
        %p282 = pneg %p130
      $region42: #{longnet_ts_forward.37} parent=39 // pred_check_branch
        %284 = sbr.rel (%p282) target = $region44
      $region43: #{longnet_ts_forward.37} parent=39 // pred_region
        %s285 = smul.u32 2, %s20
        %p286 = scmp.lt.s32.totalorder %s285, 3
        %s287 = scalar_select %p286, %s285, 3
        %p288 = scmp.lt.s32.totalorder %s21, 0
        %s289 = scalar_select %p288, %s21, 0
        %s290 = sadd.s32 %s289, %s287
        %s291 = smul.addr %s290, 8
        %s292 = scalar_lea.vmem %s3, %s291
      $region44: #{longnet_ts_forward.37} parent=39 // pred_fallthru
        _
    $region40: #{longnet_ts_forward.37} parent=5 // pred_fallthru
      _
  $region6: #{longnet_ts_forward.37} parent=0 // loop_footer
    %s13 = sadd.s32 1, %s9
  $region7: #{longnet_ts_forward.37} parent=0 // loop_footer_branch
    %8 = sbr.rel target = $region3
  $region8: #{longnet_ts_forward.37} parent=0 // loop_exit
    _

// kernel: longnet_ts_forward.39
$region0: #{longnet_ts_forward.39}
  #allocation0 [shape = 'u32[]', space=smem, size = 0x4, offset = 0x4, fixed_abs, tag = 'smem constant byte address 0x4 - core index']
  #allocation1 [shape = 'u32[72,128]{1,0:T(1,128)}', space=vmem, size = 0x9000, scoped, tag = 'internal scratch']
  %s0 = inlined_call_operand.vmem [shape: f32[32,32], index: 0, kind: input, shape index: {}]
  %s1 = inlined_call_operand.vmem [shape: f32[1,32], index: 1, kind: input, shape index: {}]
  %s2 = inlined_call_operand.vmem [shape: f32[1,32], index: 2, kind: input, shape index: {}]
  %s3 = inlined_call_operand.vmem [shape: bf16[32,96], index: 3, kind: input, shape index: {}]
  %s4 = inlined_call_operand.vmem [shape: f32[1,96], index: 4, kind: input, shape index: {}]
  %s5 = inlined_call_operand.vmem [shape: bf16[32,96], index: 5, kind: output, shape index: {}]
  %s6 = sld [smem:[#allocation0]]
  $region53: #{longnet_ts_forward.39} parent=0
    _
  %s8 = ssub.s32 1, %s6
  %s9 = scalar_select 0, %s8, %s6
  loop: start=0, step=1, limit=4
  $region2: #{longnet_ts_forward.39} parent=0 // loop_pre_header
    _
  $region3: #{longnet_ts_forward.39} parent=0 // loop_header
    %s11 = sphi 0, %s15
    %p12 = scmp.ge.s32.totalorder %s11, 4
    %s18 = sphi 0, %s30
    %s19 = sphi 0, %s26
    %s20 = sphi 0, %s18
    %s21 = sphi 0, %s19
    %s22 = sphi 0, %s20
    %s23 = sphi 0, %s21
    %s33 = sphi 0, %s35
    %s36 = sphi 0, %s33
    %s37 = sphi 0, %s36
    %s53 = sphi 0, %s37
    %s57 = sphi 0, %s57
    %s59 = sphi 0, %s57
    %s60 = sphi 0, %s59
    %s74 = sphi 0, %s60
    %s78 = sphi 0, %s78
    %s80 = sphi 0, %s78
    %s81 = sphi 0, %s80
    %s95 = sphi 0, %s81
    %s101 = sphi 0, %s103
    %s104 = sphi 0, %s101
    %s105 = sphi 0, %s104
    %s121 = sphi 0, %s105
    %s127 = sphi 0, %s129
    %s130 = sphi 0, %s127
    %s131 = sphi 0, %s130
    %s147 = sphi 0, %s131
    %s155 = sphi 0, %s157
    %s158 = sphi 0, %s155
    %s159 = sphi 0, %s158
    %s175 = sphi 0, %s159
  $region4: #{longnet_ts_forward.39} parent=0 // loop_header_branch
    %14 = sbr.rel (%p12) target = $region8
  $region5: #{longnet_ts_forward.39} parent=0 // loop_body
    %s16 = ssub.s32 %s11, 1
    %s17 = ssub.s32 %s11, 2
    %s24 = sadd.s32 1, %s19
    %p25 = scmp.ge.s32.totalorder %s24, 1
    %s26 = scalar_select %p25, 0, %s24
    %s27 = sadd.s32 1, %s18
    %s28 = scalar_select %p25, %s27, %s18
    %p29 = scmp.ge.s32.totalorder %s28, 2
    %s30 = scalar_select %p29, 0, %s28
    %s31 = ssub.s32 %s18, %s30
    %p32 = scmp.eq.s32.totalorder %s31, 0
    %s34 = sadd.s32 %s33, 1
    %s35 = scalar_select %p32, %s33, %s34
    %p38 = pneg %p32
    %p39 = scmp.eq.s32.totalorder %s11, 1
    %p40 = por %p38, %p39
    %p41 = scmp.ne.s32.totalorder %s33, %s36
    %p42 = scmp.eq.s32.totalorder %s11, 0
    %p43 = por %p41, %p42
    %p44 = scmp.ne.s32.totalorder %s33, %s36
    %p45 = scmp.eq.s32.totalorder %s16, 1
    %p46 = por %p44, %p45
    %p47 = scmp.ne.s32.totalorder %s36, %s37
    %p48 = scmp.eq.s32.totalorder %s16, 0
    %p49 = por %p47, %p48
    %p50 = scmp.ne.s32.totalorder %s36, %s37
    %p51 = scmp.eq.s32.totalorder %s17, 1
    %p52 = por %p50, %p51
    %p54 = scmp.ne.s32.totalorder %s37, %s53
    %p55 = scmp.eq.s32.totalorder %s17, 0
    %p56 = por %p54, %p55
    %s58 = sadd.s32 %s57, 1
    %p61 = scmp.eq.s32.totalorder %s11, 1
    %p62 = scmp.ne.s32.totalorder %s57, %s59
    %p63 = scmp.eq.s32.totalorder %s11, 0
    %p64 = por %p62, %p63
    %p65 = scmp.ne.s32.totalorder %s57, %s59
    %p66 = scmp.eq.s32.totalorder %s16, 1
    %p67 = por %p65, %p66
    %p68 = scmp.ne.s32.totalorder %s59, %s60
    %p69 = scmp.eq.s32.totalorder %s16, 0
    %p70 = por %p68, %p69
    %p71 = scmp.ne.s32.totalorder %s59, %s60
    %p72 = scmp.eq.s32.totalorder %s17, 1
    %p73 = por %p71, %p72
    %p75 = scmp.ne.s32.totalorder %s60, %s74
    %p76 = scmp.eq.s32.totalorder %s17, 0
    %p77 = por %p75, %p76
    %s79 = sadd.s32 %s78, 1
    %p82 = scmp.eq.s32.totalorder %s11, 1
    %p83 = scmp.ne.s32.totalorder %s78, %s80
    %p84 = scmp.eq.s32.totalorder %s11, 0
    %p85 = por %p83, %p84
    %p86 = scmp.ne.s32.totalorder %s78, %s80
    %p87 = scmp.eq.s32.totalorder %s16, 1
    %p88 = por %p86, %p87
    %p89 = scmp.ne.s32.totalorder %s80, %s81
    %p90 = scmp.eq.s32.totalorder %s16, 0
    %p91 = por %p89, %p90
    %p92 = scmp.ne.s32.totalorder %s80, %s81
    %p93 = scmp.eq.s32.totalorder %s17, 1
    %p94 = por %p92, %p93
    %p96 = scmp.ne.s32.totalorder %s81, %s95
    %p97 = scmp.eq.s32.totalorder %s17, 0
    %p98 = por %p96, %p97
    %s99 = ssub.s32 %s19, %s26
    %p100 = scmp.eq.s32.totalorder %s99, 0
    %s102 = sadd.s32 %s101, 1
    %s103 = scalar_select %p100, %s101, %s102
    %p106 = pneg %p100
    %p107 = scmp.eq.s32.totalorder %s11, 1
    %p108 = por %p106, %p107
    %p109 = scmp.ne.s32.totalorder %s101, %s104
    %p110 = scmp.eq.s32.totalorder %s11, 0
    %p111 = por %p109, %p110
    %p112 = scmp.ne.s32.totalorder %s101, %s104
    %p113 = scmp.eq.s32.totalorder %s16, 1
    %p114 = por %p112, %p113
    %p115 = scmp.ne.s32.totalorder %s104, %s105
    %p116 = scmp.eq.s32.totalorder %s16, 0
    %p117 = por %p115, %p116
    %p118 = scmp.ne.s32.totalorder %s104, %s105
    %p119 = scmp.eq.s32.totalorder %s17, 1
    %p120 = por %p118, %p119
    %p122 = scmp.ne.s32.totalorder %s105, %s121
    %p123 = scmp.eq.s32.totalorder %s17, 0
    %p124 = por %p122, %p123
    %s125 = ssub.s32 %s19, %s26
    %p126 = scmp.eq.s32.totalorder %s125, 0
    %s128 = sadd.s32 %s127, 1
    %s129 = scalar_select %p126, %s127, %s128
    %p132 = pneg %p126
    %p133 = scmp.eq.s32.totalorder %s11, 1
    %p134 = por %p132, %p133
    %p135 = scmp.ne.s32.totalorder %s127, %s130
    %p136 = scmp.eq.s32.totalorder %s11, 0
    %p137 = por %p135, %p136
    %p138 = scmp.ne.s32.totalorder %s127, %s130
    %p139 = scmp.eq.s32.totalorder %s16, 1
    %p140 = por %p138, %p139
    %p141 = scmp.ne.s32.totalorder %s130, %s131
    %p142 = scmp.eq.s32.totalorder %s16, 0
    %p143 = por %p141, %p142
    %p144 = scmp.ne.s32.totalorder %s130, %s131
    %p145 = scmp.eq.s32.totalorder %s17, 1
    %p146 = por %p144, %p145
    %p148 = scmp.ne.s32.totalorder %s131, %s147
    %p149 = scmp.eq.s32.totalorder %s17, 0
    %p150 = por %p148, %p149
    %s151 = ssub.s32 %s18, %s30
    %s152 = ssub.s32 %s19, %s26
    %s153 = sor.u32 %s151, %s152
    %p154 = scmp.eq.s32.totalorder %s153, 0
    %s156 = sadd.s32 %s155, 1
    %s157 = scalar_select %p154, %s155, %s156
    %p160 = pneg %p154
    %p161 = scmp.eq.s32.totalorder %s11, 1
    %p162 = por %p160, %p161
    %p163 = scmp.ne.s32.totalorder %s155, %s158
    %p164 = scmp.eq.s32.totalorder %s11, 0
    %p165 = por %p163, %p164
    %p166 = scmp.ne.s32.totalorder %s155, %s158
    %p167 = scmp.eq.s32.totalorder %s16, 1
    %p168 = por %p166, %p167
    %p169 = scmp.ne.s32.totalorder %s158, %s159
    %p170 = scmp.eq.s32.totalorder %s16, 0
    %p171 = por %p169, %p170
    %p172 = scmp.ne.s32.totalorder %s158, %s159
    %p173 = scmp.eq.s32.totalorder %s17, 1
    %p174 = por %p172, %p173
    %p176 = scmp.ne.s32.totalorder %s159, %s175
    %p177 = scmp.eq.s32.totalorder %s17, 0
    %p178 = por %p176, %p177
    %p179 = scmp.le.s32.totalorder 1, %s11
    %p180 = scmp.lt.s32.totalorder %s11, 3
    %p181 = pnand %p179, %p180
    %p182 = pneg %p181
    // Predicated region
    $region9: #{longnet_ts_forward.39} parent=5 // pred_check
      _
    $region10: #{longnet_ts_forward.39} parent=5 // pred_check_branch
      %184 = sbr.rel (%p181) target = $region12
    $region11: #{longnet_ts_forward.39} parent=5 // pred_region
      %s185 = ssub.s32 %s11, 1
      // Predicated region
      $region13: #{longnet_ts_forward.39} parent=11 // pred_check
        %p186 = pneg %p70
      $region14: #{longnet_ts_forward.39} parent=11 // pred_check_branch
        %188 = sbr.rel (%p186) target = $region16
      $region15: #{longnet_ts_forward.39} parent=11 // pred_region
        _
      $region16: #{longnet_ts_forward.39} parent=11 // pred_fallthru
        _
      // Predicated region
      $region17: #{longnet_ts_forward.39} parent=11 // pred_check
        %p189 = pneg %p91
      $region18: #{longnet_ts_forward.39} parent=11 // pred_check_branch
        %191 = sbr.rel (%p189) target = $region20
      $region19: #{longnet_ts_forward.39} parent=11 // pred_region
        _
      $region20: #{longnet_ts_forward.39} parent=11 // pred_fallthru
        _
      // Predicated region
      $region21: #{longnet_ts_forward.39} parent=11 // pred_check
        %p192 = pneg %p117
      $region22: #{longnet_ts_forward.39} parent=11 // pred_check_branch
        %194 = sbr.rel (%p192) target = $region24
      $region23: #{longnet_ts_forward.39} parent=11 // pred_region
        %p195 = scmp.lt.s32.totalorder %s21, 0
        %s196 = scalar_select %p195, %s21, 0
        %s197 = smul.addr %s196, 4
        %s198 = scalar_lea.vmem %s3, %s197
      $region24: #{longnet_ts_forward.39} parent=11 // pred_fallthru
        _
      // Predicated region
      $region25: #{longnet_ts_forward.39} parent=11 // pred_check
        %p199 = pneg %p143
      $region26: #{longnet_ts_forward.39} parent=11 // pred_check_branch
        %201 = sbr.rel (%p199) target = $region28
      $region27: #{longnet_ts_forward.39} parent=11 // pred_region
        %p202 = scmp.lt.s32.totalorder %s21, 0
        %s203 = scalar_select %p202, %s21, 0
        %s204 = scalar_lea.vmem %s4, %s203
      $region28: #{longnet_ts_forward.39} parent=11 // pred_fallthru
        _
    $region12: #{longnet_ts_forward.39} parent=5 // pred_fallthru
      _
    %p205 = scmp.lt.s32.totalorder %s11, 2
    // Predicated region
    $region29: #{longnet_ts_forward.39} parent=5 // pred_check
      %p206 = pneg %p205
    $region30: #{longnet_ts_forward.39} parent=5 // pred_check_branch
      %208 = sbr.rel (%p206) target = $region32
    $region31: #{longnet_ts_forward.39} parent=5 // pred_region
      // Predicated region
      $region33: #{longnet_ts_forward.39} parent=31 // pred_check
        %p209 = pneg %p43
      $region34: #{longnet_ts_forward.39} parent=31 // pred_check_branch
        %211 = sbr.rel (%p209) target = $region36
      $region35: #{longnet_ts_forward.39} parent=31 // pred_region
        %s212 = smul.u32 2, %s18
        %p213 = scmp.lt.s32.totalorder %s212, 3
        %s214 = scalar_select %p213, %s212, 3
        %s215 = smul.addr %s214, 8
        %s216 = scalar_lea.vmem %s0, %s215
        %s217 = smul.u32 2, %s18
      $region36: #{longnet_ts_forward.39} parent=31 // pred_fallthru
        _
    $region32: #{longnet_ts_forward.39} parent=5 // pred_fallthru
      _
    %p218 = scmp.le.s32.totalorder 1, %s11
    %p219 = scmp.lt.s32.totalorder %s11, 3
    %p220 = pnand %p218, %p219
    %p221 = pneg %p220
    // Predicated region
    $region37: #{longnet_ts_forward.39} parent=5 // pred_check
      _
    $region38: #{longnet_ts_forward.39} parent=5 // pred_check_branch
      %223 = sbr.rel (%p220) target = $region40
    $region39: #{longnet_ts_forward.39} parent=5 // pred_region
      %s224 = ssub.s32 %s11, 1
      %s225 = smul.u32 2, %s20
      %p226 = scmp.lt.s32.totalorder %s225, 3
      %s227 = scalar_select %p226, %s225, 3
      %s228 = smul.addr %s227, 8
      %s229 = scalar_lea.vmem %s0, %s228
      %p230 = pneg %p49
      %p231 = pneg %p46
      %p232 = pneg %p70
      %p233 = pneg %p67
      %p234 = pneg %p91
      %p235 = pneg %p88
      %p236 = scmp.lt.s32.totalorder %s21, 0
      %s237 = scalar_select %p236, %s21, 0
      %s238 = smul.addr %s237, 4
      %s239 = scalar_lea.vmem %s3, %s238
      %p240 = pneg %p117
      %p241 = pneg %p114
      %p242 = scmp.lt.s32.totalorder %s21, 0
      %s243 = scalar_select %p242, %s21, 0
      %s244 = scalar_lea.vmem %s4, %s243
      %p245 = pneg %p143
      %p246 = pneg %p140
      %p247 = pneg %p171
      %p248 = pneg %p168
      %s249 = smul.u32 2, %s20
      %p250 = scmp.lt.s32.totalorder %s249, 3
      %s251 = scalar_select %p250, %s249, 3
      %p252 = scmp.lt.s32.totalorder %s21, 0
      %s253 = scalar_select %p252, %s21, 0
      %s254 = sadd.s32 %s253, %s251
      %s255 = smul.addr %s254, 4
      %s256 = scalar_lea.vmem %s5, %s255
      %s257 = smul.u32 2, %s20
      %p258 = scmp.lt.s32.totalorder %s257, 3
      %s259 = scalar_select %p258, %s257, 3
      %s260 = smul.addr %s259, 8
      %s261 = scalar_lea.vmem %s0, %s260
      %s262 = smul.u32 2, %s20
      %p263 = scmp.lt.s32.totalorder %s21, 0
      %s264 = scalar_select %p263, %s21, 0
      %s265 = smul.addr %s264, 4
      %s266 = scalar_lea.vmem %s3, %s265
      %p267 = scmp.lt.s32.totalorder %s21, 0
      %s268 = scalar_select %p267, %s21, 0
      %s269 = scalar_lea.vmem %s4, %s268
      %s270 = smul.u32 2, %s20
      %p271 = scmp.lt.s32.totalorder %s270, 3
      %s272 = scalar_select %p271, %s270, 3
      %p273 = scmp.lt.s32.totalorder %s21, 0
      %s274 = scalar_select %p273, %s21, 0
      %s275 = sadd.s32 %s274, %s272
      %s276 = smul.addr %s275, 4
      %s277 = scalar_lea.vmem %s5, %s276
      %s278 = smul.u32 2, %s20
      %v280 = vld [vmem:[%s261] sm:$0xff]
      %v281 = vld [vmem:[%s261 + $0x8] sm:$0xff]
      %vm282 = vcmask 261120
      %v283 = vsel %vm282, %v280, 0.0
      %284 = vadd.xlane.f32.xlu0 %v283
      %v285 = vpop.xlane.xlu0 %284
      %v286 = vsel %vm282, %v281, 0.0
      %287 = vadd.xlane.f32.xlu0 %v286
      %v288 = vpop.xlane.xlu0 %287
      %v289 = vrcp.pop 32.0
      %v290 = vmul.f32 32.0, %v289
      %v291 = vsub.f32 1.0, %v290
      %v292 = vmul.f32 %v289, %v291
      %v293 = vadd.f32 %v289, %v292
      %vm294 = vweird.f32 %v289
      %v295 = vsel %vm294, %v289, %v293
      %v296 = vmul.f32 %v285, %v295
      %v297 = vmul.f32 %v288, %v295
      %v298 = vsub.f32 %v280, %v296
      %v299 = vsub.f32 %v281, %v297
      %v300 = vmul.f32 %v298, %v298
      %v301 = vmul.f32 %v299, %v299
      %v302 = vsel %vm282, %v300, 0.0
      %303 = vadd.xlane.f32.xlu0 %v302
      %v304 = vpop.xlane.xlu0 %303
      %v305 = vsel %vm282, %v301, 0.0
      %306 = vadd.xlane.f32.xlu0 %v305
      %v307 = vpop.xlane.xlu0 %306
      %v308 = vmul.f32 %v304, %v295
      %v309 = vmul.f32 %v307, %v295
      %v310 = vadd.f32 %v308, 1e-05
      %v311 = vadd.f32 %v309, 1e-05
      %v312 = vrsqrt.pop %v310
      %v313 = vmul.f32 %v312, %v310
      %v314 = vmul.f32 %v313, %v312
      %v315 = vmul.f32 0.5, %v314
      %v316 = vsub.f32 1.5, %v315
      %v317 = vmul.f32 %v312, %v316
      %vm318 = vweird.f32 %v310
      %vm319 = vweird.f32 %v312
      %vm320 = vmor %vm318, %vm319
      %v321 = vsel %vm320, %v312, %v317
      %v322 = vrsqrt.pop %v311
      %v323 = vmul.f32 %v322, %v311
      %v324 = vmul.f32 %v323, %v322
      %v325 = vmul.f32 0.5, %v324
      %v326 = vsub.f32 1.5, %v325
      %v327 = vmul.f32 %v322, %v326
      %vm328 = vweird.f32 %v311
      %vm329 = vweird.f32 %v322
      %vm330 = vmor %vm328, %vm329
      %v331 = vsel %vm330, %v322, %v327
      %v332 = vmul.f32 %v298, %v321
      %v333 = vmul.f32 %v299, %v331
      %v334 = vld [vmem:[%s1] sm:$0x1]
      %v336 = vperm.slane %v334, 0
      %v338 = vmul.f32 %v332, %v336
      %v339 = vmul.f32 %v333, %v336
      %v340 = vld [vmem:[%s2] sm:$0x1]
      %v342 = vperm.slane %v340, 0
      %v344 = vadd.f32 %v338, %v342
      %v345 = vadd.f32 %v339, %v342
      %v346 = vld [vmem:[%s266] sm:$0xf]
      %v347 = vld [vmem:[%s266 + $0x4] sm:$0xf]
      %v348 = vld [vmem:[%s266 + $0x8] sm:$0xf]
      %v349 = vld [vmem:[%s266 + $0xc] sm:$0xf]
      %v350 = vpack.c.bf16 %v345, %v344
      %v351 = vld [vmem:[%s269] sm:$0x1]
      %v353 = vperm.slane %v351, 0
      %v359 = vunpack.c.l.b16 %v346
      %v360 = vunpack.c.l.b16 %v347
      %v361 = vunpack.c.l.b16 %v348
      %v362 = vunpack.c.l.b16 %v349
      %v363 = vpack.c.b16 %v360, %v359
      %v364 = vpack.c.b16 %v362, %v361
      %v368 = vsel %vm282, %v350, 0
      %370 = vmatpush.bf16.msra.mxu0 0
      %371 = vmatpush.bf16.msra.mxu0 0
      %372 = vmatpush.bf16.msra.mxu0 0
      %373 = vmatpush.bf16.msra.mxu0 0
      %374 = vmatpush.bf16.msra.mxu0 0
      %375 = vmatpush.bf16.msra.mxu0 0
      %376 = vmatpush.bf16.msra.mxu0 %v364
      %377 = vmatpush.bf16.msra.mxu0 %v363
      %378 = vmatmul.bf16.gmra.mxu0 %v368
      %v379 = vpop.f32.mrf.mxu0
      %v380 = vadd.f32 %v353, %v379
      %v381 = vpop.f32.mrf.mxu0
      %v382 = vadd.f32 %v353, %v381
      %383 = vdwg.mxu0
      %v384 = vpack.c.bf16 %v380, %v380
      %v385 = vpack.c.bf16 %v382, %v382
      %vm386 = vcmask 781312
      %387 = vst.msk [vmem:[%s277] sm:$0xf] %vm386, %v384
      %388 = vst.msk [vmem:[%s277 + $0x4] sm:$0xf] %vm386, %v385
      %s389 = smul.u32 2, %s20
      %p390 = scmp.lt.s32.totalorder %s389, 3
      %s391 = scalar_select %p390, %s389, 3
      %p392 = scmp.lt.s32.totalorder %s21, 0
      %s393 = scalar_select %p392, %s21, 0
      %s394 = sadd.s32 %s393, %s391
      %s395 = smul.addr %s394, 4
      %s396 = scalar_lea.vmem %s5, %s395
      // Predicated region
      $region41: #{longnet_ts_forward.39} parent=39 // pred_check
        %p397 = pneg %p168
      $region42: #{longnet_ts_forward.39} parent=39 // pred_check_branch
        %399 = sbr.rel (%p397) target = $region44
      $region43: #{longnet_ts_forward.39} parent=39 // pred_region
        %s400 = smul.u32 2, %s20
      $region44: #{longnet_ts_forward.39} parent=39 // pred_fallthru
        _
    $region40: #{longnet_ts_forward.39} parent=5 // pred_fallthru
      _
    %p401 = scmp.le.s32.totalorder 2, %s11
    // Predicated region
    $region45: #{longnet_ts_forward.39} parent=5 // pred_check
      %p402 = pneg %p401
    $region46: #{longnet_ts_forward.39} parent=5 // pred_check_branch
      %404 = sbr.rel (%p402) target = $region48
    $region47: #{longnet_ts_forward.39} parent=5 // pred_region
      %s405 = ssub.s32 %s11, 2
      // Predicated region
      $region49: #{longnet_ts_forward.39} parent=47 // pred_check
        %p406 = pneg %p174
      $region50: #{longnet_ts_forward.39} parent=47 // pred_check_branch
        %408 = sbr.rel (%p406) target = $region52
      $region51: #{longnet_ts_forward.39} parent=47 // pred_region
        %s409 = smul.u32 2, %s22
        %p410 = scmp.lt.s32.totalorder %s409, 3
        %s411 = scalar_select %p410, %s409, 3
        %p412 = scmp.lt.s32.totalorder %s23, 0
        %s413 = scalar_select %p412, %s23, 0
        %s414 = sadd.s32 %s413, %s411
        %s415 = smul.addr %s414, 4
        %s416 = scalar_lea.vmem %s5, %s415
      $region52: #{longnet_ts_forward.39} parent=47 // pred_fallthru
        _
    $region48: #{longnet_ts_forward.39} parent=5 // pred_fallthru
      _
  $region6: #{longnet_ts_forward.39} parent=0 // loop_footer
    %s15 = sadd.s32 1, %s11
  $region7: #{longnet_ts_forward.39} parent=0 // loop_footer_branch
    %10 = sbr.rel target = $region3
  $region8: #{longnet_ts_forward.39} parent=0 // loop_exit
    _

// kernel: longnet_ts_forward.41
$region0: #{longnet_ts_forward.41}
  #allocation0 [shape = 'u32[]', space=smem, size = 0x4, offset = 0x4, fixed_abs, tag = 'smem constant byte address 0x4 - core index']
  #allocation1 [shape = 'u32[72,128]{1,0:T(1,128)}', space=vmem, size = 0x9000, scoped, tag = 'internal scratch']
  #allocation2 [shape = 'f32[4,4,1]{2,1,0:T(4,128)}', space=vmem, size = 0x2000, scoped, tag = 'scratch operand']
  #allocation3 [shape = 'f32[4,4,1]{2,1,0:T(4,128)}', space=vmem, size = 0x2000, scoped, tag = 'scratch operand']
  #allocation4 [shape = 'f32[4,4,8]{2,1,0:T(4,128)}', space=vmem, size = 0x2000, scoped, tag = 'scratch operand']
  %s0 = inlined_call_operand.vmem [shape: bf16[8,4,8], index: 0, kind: input, shape index: {}]
  %s1 = inlined_call_operand.vmem [shape: bf16[8,4,8], index: 1, kind: input, shape index: {}]
  %s2 = inlined_call_operand.vmem [shape: bf16[8,4,8], index: 2, kind: input, shape index: {}]
  %s3 = inlined_call_operand.vmem [shape: bf16[8,4,8], index: 3, kind: output, shape index: {}]
  %s4 = sld [smem:[#allocation0]]
  $region57: #{longnet_ts_forward.41} parent=0
    _
  %s6 = ssub.s32 1, %s4
  %s7 = scalar_select 0, %s6, %s4
  loop: start=0, step=1, limit=4
  $region2: #{longnet_ts_forward.41} parent=0 // loop_pre_header
    _
  $region3: #{longnet_ts_forward.41} parent=0 // loop_header
    %s9 = sphi 0, %s13
    %p10 = scmp.ge.s32.totalorder %s9, 4
    %s16 = sphi 0, %s35
    %s17 = sphi 0, %s31
    %s18 = sphi 0, %s27
    %s19 = sphi 0, %s16
    %s20 = sphi 0, %s17
    %s21 = sphi 0, %s18
    %s22 = sphi 0, %s19
    %s23 = sphi 0, %s20
    %s24 = sphi 0, %s21
    %s40 = sphi 0, %s42
    %s43 = sphi 0, %s40
    %s44 = sphi 0, %s43
    %s60 = sphi 0, %s44
    %s68 = sphi 0, %s70
    %s71 = sphi 0, %s68
    %s72 = sphi 0, %s71
    %s88 = sphi 0, %s72
    %s96 = sphi 0, %s98
    %s99 = sphi 0, %s96
    %s100 = sphi 0, %s99
    %s116 = sphi 0, %s100
    %s124 = sphi 0, %s126
    %s127 = sphi 0, %s124
    %s128 = sphi 0, %s127
    %s144 = sphi 0, %s128
  $region4: #{longnet_ts_forward.41} parent=0 // loop_header_branch
    %12 = sbr.rel (%p10) target = $region8
  $region5: #{longnet_ts_forward.41} parent=0 // loop_body
    %s14 = ssub.s32 %s9, 1
    %s15 = ssub.s32 %s9, 2
    %s25 = sadd.s32 1, %s18
    %p26 = scmp.ge.s32.totalorder %s25, 1
    %s27 = scalar_select %p26, 0, %s25
    %s28 = sadd.s32 1, %s17
    %s29 = scalar_select %p26, %s28, %s17
    %p30 = scmp.ge.s32.totalorder %s29, 1
    %s31 = scalar_select %p30, 0, %s29
    %s32 = sadd.s32 1, %s16
    %s33 = scalar_select %p30, %s32, %s16
    %p34 = scmp.ge.s32.totalorder %s33, 2
    %s35 = scalar_select %p34, 0, %s33
    %s36 = ssub.s32 %s16, %s35
    %s37 = ssub.s32 %s17, %s31
    %s38 = sor.u32 %s36, %s37
    %p39 = scmp.eq.s32.totalorder %s38, 0
    %s41 = sadd.s32 %s40, 1
    %s42 = scalar_select %p39, %s40, %s41
    %p45 = pneg %p39
    %p46 = scmp.eq.s32.totalorder %s9, 1
    %p47 = por %p45, %p46
    %p48 = scmp.ne.s32.totalorder %s40, %s43
    %p49 = scmp.eq.s32.totalorder %s9, 0
    %p50 = por %p48, %p49
    %p51 = scmp.ne.s32.totalorder %s40, %s43
    %p52 = scmp.eq.s32.totalorder %s14, 1
    %p53 = por %p51, %p52
    %p54 = scmp.ne.s32.totalorder %s43, %s44
    %p55 = scmp.eq.s32.totalorder %s14, 0
    %p56 = por %p54, %p55
    %p57 = scmp.ne.s32.totalorder %s43, %s44
    %p58 = scmp.eq.s32.totalorder %s15, 1
    %p59 = por %p57, %p58
    %p61 = scmp.ne.s32.totalorder %s44, %s60
    %p62 = scmp.eq.s32.totalorder %s15, 0
    %p63 = por %p61, %p62
    %s64 = ssub.s32 %s16, %s35
    %s65 = ssub.s32 %s18, %s27
    %s66 = sor.u32 %s64, %s65
    %p67 = scmp.eq.s32.totalorder %s66, 0
    %s69 = sadd.s32 %s68, 1
    %s70 = scalar_select %p67, %s68, %s69
    %p73 = pneg %p67
    %p74 = scmp.eq.s32.totalorder %s9, 1
    %p75 = por %p73, %p74
    %p76 = scmp.ne.s32.totalorder %s68, %s71
    %p77 = scmp.eq.s32.totalorder %s9, 0
    %p78 = por %p76, %p77
    %p79 = scmp.ne.s32.totalorder %s68, %s71
    %p80 = scmp.eq.s32.totalorder %s14, 1
    %p81 = por %p79, %p80
    %p82 = scmp.ne.s32.totalorder %s71, %s72
    %p83 = scmp.eq.s32.totalorder %s14, 0
    %p84 = por %p82, %p83
    %p85 = scmp.ne.s32.totalorder %s71, %s72
    %p86 = scmp.eq.s32.totalorder %s15, 1
    %p87 = por %p85, %p86
    %p89 = scmp.ne.s32.totalorder %s72, %s88
    %p90 = scmp.eq.s32.totalorder %s15, 0
    %p91 = por %p89, %p90
    %s92 = ssub.s32 %s16, %s35
    %s93 = ssub.s32 %s18, %s27
    %s94 = sor.u32 %s92, %s93
    %p95 = scmp.eq.s32.totalorder %s94, 0
    %s97 = sadd.s32 %s96, 1
    %s98 = scalar_select %p95, %s96, %s97
    %p101 = pneg %p95
    %p102 = scmp.eq.s32.totalorder %s9, 1
    %p103 = por %p101, %p102
    %p104 = scmp.ne.s32.totalorder %s96, %s99
    %p105 = scmp.eq.s32.totalorder %s9, 0
    %p106 = por %p104, %p105
    %p107 = scmp.ne.s32.totalorder %s96, %s99
    %p108 = scmp.eq.s32.totalorder %s14, 1
    %p109 = por %p107, %p108
    %p110 = scmp.ne.s32.totalorder %s99, %s100
    %p111 = scmp.eq.s32.totalorder %s14, 0
    %p112 = por %p110, %p111
    %p113 = scmp.ne.s32.totalorder %s99, %s100
    %p114 = scmp.eq.s32.totalorder %s15, 1
    %p115 = por %p113, %p114
    %p117 = scmp.ne.s32.totalorder %s100, %s116
    %p118 = scmp.eq.s32.totalorder %s15, 0
    %p119 = por %p117, %p118
    %s120 = ssub.s32 %s16, %s35
    %s121 = ssub.s32 %s17, %s31
    %s122 = sor.u32 %s120, %s121
    %p123 = scmp.eq.s32.totalorder %s122, 0
    %s125 = sadd.s32 %s124, 1
    %s126 = scalar_select %p123, %s124, %s125
    %p129 = pneg %p123
    %p130 = scmp.eq.s32.totalorder %s9, 1
    %p131 = por %p129, %p130
    %p132 = scmp.ne.s32.totalorder %s124, %s127
    %p133 = scmp.eq.s32.totalorder %s9, 0
    %p134 = por %p132, %p133
    %p135 = scmp.ne.s32.totalorder %s124, %s127
    %p136 = scmp.eq.s32.totalorder %s14, 1
    %p137 = por %p135, %p136
    %p138 = scmp.ne.s32.totalorder %s127, %s128
    %p139 = scmp.eq.s32.totalorder %s14, 0
    %p140 = por %p138, %p139
    %p141 = scmp.ne.s32.totalorder %s127, %s128
    %p142 = scmp.eq.s32.totalorder %s15, 1
    %p143 = por %p141, %p142
    %p145 = scmp.ne.s32.totalorder %s128, %s144
    %p146 = scmp.eq.s32.totalorder %s15, 0
    %p147 = por %p145, %p146
    %p148 = scmp.le.s32.totalorder 1, %s9
    %p149 = scmp.lt.s32.totalorder %s9, 3
    %p150 = pnand %p148, %p149
    %p151 = pneg %p150
    // Predicated region
    $region9: #{longnet_ts_forward.41} parent=5 // pred_check
      _
    $region10: #{longnet_ts_forward.41} parent=5 // pred_check_branch
      %153 = sbr.rel (%p150) target = $region12
    $region11: #{longnet_ts_forward.41} parent=5 // pred_region
      %s154 = ssub.s32 %s9, 1
    $region12: #{longnet_ts_forward.41} parent=5 // pred_fallthru
      _
    %p155 = scmp.lt.s32.totalorder %s9, 2
    // Predicated region
    $region13: #{longnet_ts_forward.41} parent=5 // pred_check
      %p156 = pneg %p155
    $region14: #{longnet_ts_forward.41} parent=5 // pred_check_branch
      %158 = sbr.rel (%p156) target = $region16
    $region15: #{longnet_ts_forward.41} parent=5 // pred_region
      // Predicated region
      $region17: #{longnet_ts_forward.41} parent=15 // pred_check
        %p159 = pneg %p50
      $region18: #{longnet_ts_forward.41} parent=15 // pred_check_branch
        %161 = sbr.rel (%p159) target = $region20
      $region19: #{longnet_ts_forward.41} parent=15 // pred_region
        %s162 = smul.u32 4, %s16
        %p163 = scmp.lt.s32.totalorder %s162, 7
        %s164 = scalar_select %p163, %s162, 7
        %p165 = scmp.lt.s32.totalorder %s17, 0
        %s166 = scalar_select %p165, %s17, 0
        %s167 = sadd.s32 %s166, %s164
        %s168 = smul.addr %s167, 2
        %s169 = scalar_lea.vmem %s0, %s168
        %s170 = smul.u32 4, %s16
      $region20: #{longnet_ts_forward.41} parent=15 // pred_fallthru
        _
      // Predicated region
      $region21: #{longnet_ts_forward.41} parent=15 // pred_check
        %p171 = pneg %p78
      $region22: #{longnet_ts_forward.41} parent=15 // pred_check_branch
        %173 = sbr.rel (%p171) target = $region24
      $region23: #{longnet_ts_forward.41} parent=15 // pred_region
        %s174 = smul.u32 4, %s16
        %p175 = scmp.lt.s32.totalorder %s174, 7
        %s176 = scalar_select %p175, %s174, 7
        %p177 = scmp.lt.s32.totalorder %s18, 0
        %s178 = scalar_select %p177, %s18, 0
        %s179 = sadd.s32 %s178, %s176
        %s180 = smul.addr %s179, 2
        %s181 = scalar_lea.vmem %s1, %s180
        %s182 = smul.u32 4, %s16
      $region24: #{longnet_ts_forward.41} parent=15 // pred_fallthru
        _
      // Predicated region
      $region25: #{longnet_ts_forward.41} parent=15 // pred_check
        %p183 = pneg %p106
      $region26: #{longnet_ts_forward.41} parent=15 // pred_check_branch
        %185 = sbr.rel (%p183) target = $region28
      $region27: #{longnet_ts_forward.41} parent=15 // pred_region
        %s186 = smul.u32 4, %s16
        %p187 = scmp.lt.s32.totalorder %s186, 7
        %s188 = scalar_select %p187, %s186, 7
        %p189 = scmp.lt.s32.totalorder %s18, 0
        %s190 = scalar_select %p189, %s18, 0
        %s191 = sadd.s32 %s190, %s188
        %s192 = smul.addr %s191, 2
        %s193 = scalar_lea.vmem %s2, %s192
        %s194 = smul.u32 4, %s16
      $region28: #{longnet_ts_forward.41} parent=15 // pred_fallthru
        _
    $region16: #{longnet_ts_forward.41} parent=5 // pred_fallthru
      _
    %p195 = scmp.le.s32.totalorder 1, %s9
    %p196 = scmp.lt.s32.totalorder %s9, 3
    %p197 = pnand %p195, %p196
    %p198 = pneg %p197
    // Predicated region
    $region29: #{longnet_ts_forward.41} parent=5 // pred_check
      _
    $region30: #{longnet_ts_forward.41} parent=5 // pred_check_branch
      %200 = sbr.rel (%p197) target = $region32
    $region31: #{longnet_ts_forward.41} parent=5 // pred_region
      %s201 = ssub.s32 %s9, 1
      %s202 = smul.u32 4, %s19
      %p203 = scmp.lt.s32.totalorder %s202, 7
      %s204 = scalar_select %p203, %s202, 7
      %p205 = scmp.lt.s32.totalorder %s20, 0
      %s206 = scalar_select %p205, %s20, 0
      %s207 = sadd.s32 %s206, %s204
      %s208 = smul.addr %s207, 2
      %s209 = scalar_lea.vmem %s0, %s208
      %p210 = pneg %p56
      %p211 = pneg %p53
      %s212 = smul.u32 4, %s19
      %p213 = scmp.lt.s32.totalorder %s212, 7
      %s214 = scalar_select %p213, %s212, 7
      %p215 = scmp.lt.s32.totalorder %s21, 0
      %s216 = scalar_select %p215, %s21, 0
      %s217 = sadd.s32 %s216, %s214
      %s218 = smul.addr %s217, 2
      %s219 = scalar_lea.vmem %s1, %s218
      %p220 = pneg %p84
      %p221 = pneg %p81
      %s222 = smul.u32 4, %s19
      %p223 = scmp.lt.s32.totalorder %s222, 7
      %s224 = scalar_select %p223, %s222, 7
      %p225 = scmp.lt.s32.totalorder %s21, 0
      %s226 = scalar_select %p225, %s21, 0
      %s227 = sadd.s32 %s226, %s224
      %s228 = smul.addr %s227, 2
      %s229 = scalar_lea.vmem %s2, %s228
      %p230 = pneg %p112
      %p231 = pneg %p109
      %p232 = pneg %p140
      %p233 = pneg %p137
      %s234 = smul.u32 4, %s19
      %p235 = scmp.lt.s32.totalorder %s234, 7
      %s236 = scalar_select %p235, %s234, 7
      %p237 = scmp.lt.s32.totalorder %s20, 0
      %s238 = scalar_select %p237, %s20, 0
      %s239 = sadd.s32 %s238, %s236
      %s240 = smul.addr %s239, 2
      %s241 = scalar_lea.vmem %s3, %s240
      %s242 = smul.u32 4, %s19
      %p243 = scmp.lt.s32.totalorder %s242, 7
      %s244 = scalar_select %p243, %s242, 7
      %p245 = scmp.lt.s32.totalorder %s20, 0
      %s246 = scalar_select %p245, %s20, 0
      %s247 = sadd.s32 %s246, %s244
      %s248 = smul.addr %s247, 2
      %s249 = scalar_lea.vmem %s0, %s248
      %s250 = smul.u32 4, %s19
      %s251 = smul.u32 4, %s19
      %p252 = scmp.lt.s32.totalorder %s251, 7
      %s253 = scalar_select %p252, %s251, 7
      %p254 = scmp.lt.s32.totalorder %s21, 0
      %s255 = scalar_select %p254, %s21, 0
      %s256 = sadd.s32 %s255, %s253
      %s257 = smul.addr %s256, 2
      %s258 = scalar_lea.vmem %s1, %s257
      %s259 = smul.u32 4, %s19
      %s260 = smul.u32 4, %s19
      %p261 = scmp.lt.s32.totalorder %s260, 7
      %s262 = scalar_select %p261, %s260, 7
      %p263 = scmp.lt.s32.totalorder %s21, 0
      %s264 = scalar_select %p263, %s21, 0
      %s265 = sadd.s32 %s264, %s262
      %s266 = smul.addr %s265, 2
      %s267 = scalar_lea.vmem %s2, %s266
      %s268 = smul.u32 4, %s19
      %s269 = smul.u32 4, %s19
      %p270 = scmp.lt.s32.totalorder %s269, 7
      %s271 = scalar_select %p270, %s269, 7
      %p272 = scmp.lt.s32.totalorder %s20, 0
      %s273 = scalar_select %p272, %s20, 0
      %s274 = sadd.s32 %s273, %s271
      %s275 = smul.addr %s274, 2
      %s276 = scalar_lea.vmem %s3, %s275
      %s277 = smul.u32 4, %s19
      %p279 = scmp.eq.s32.totalorder %s21, 0
      // Predicated region
      $region33: #{longnet_ts_forward.41} parent=31 // pred_check
        %p280 = pneg %p279
      $region34: #{longnet_ts_forward.41} parent=31 // pred_check_branch
        %282 = sbr.rel (%p280) target = $region36
      $region35: #{longnet_ts_forward.41} parent=31 // pred_region
        %vm283 = vcmask 3072
        %284 = vst.msk [vmem:[#allocation2] sm:$0xf] %vm283, -inf
        %285 = vst.msk [vmem:[#allocation2 + $0x4] sm:$0xf] %vm283, -inf
        %286 = vst.msk [vmem:[#allocation2 + $0x8] sm:$0xf] %vm283, -inf
        %287 = vst.msk [vmem:[#allocation2 + $0xc] sm:$0xf] %vm283, -inf
        %288 = vst.msk [vmem:[#allocation3] sm:$0xf] %vm283, 0.0
        %289 = vst.msk [vmem:[#allocation3 + $0x4] sm:$0xf] %vm283, 0.0
        %290 = vst.msk [vmem:[#allocation3 + $0x8] sm:$0xf] %vm283, 0.0
        %291 = vst.msk [vmem:[#allocation3 + $0xc] sm:$0xf] %vm283, 0.0
        %vm292 = vcmask 60416
        %293 = vst.msk [vmem:[#allocation4] sm:$0xf] %vm292, 0.0
        %294 = vst.msk [vmem:[#allocation4 + $0x4] sm:$0xf] %vm292, 0.0
        %295 = vst.msk [vmem:[#allocation4 + $0x8] sm:$0xf] %vm292, 0.0
        %296 = vst.msk [vmem:[#allocation4 + $0xc] sm:$0xf] %vm292, 0.0
      $region36: #{longnet_ts_forward.41} parent=31 // pred_fallthru
        _
      %s297 = smul.u32 %s21, 4
      %s298 = smul.u32 %s20, 4
      %s299 = sadd.s32 %s298, 3
      %p300 = scmp.le.s32.totalorder %s297, %s299
      // Predicated region
      $region37: #{longnet_ts_forward.41} parent=31 // pred_check
        %p301 = pneg %p300
      $region38: #{longnet_ts_forward.41} parent=31 // pred_check_branch
        %303 = sbr.rel (%p301) target = $region40
      $region39: #{longnet_ts_forward.41} parent=31 // pred_region
        %v304 = vld [vmem:[%s249] sm:$0x3]
        %v305 = vld [vmem:[%s249 + $0x2] sm:$0x3]
        %v306 = vld [vmem:[%s249 + $0x4] sm:$0x3]
        %v307 = vld [vmem:[%s249 + $0x6] sm:$0x3]
        %v308 = vld [vmem:[%s258] sm:$0x3]
        %v309 = vld [vmem:[%s258 + $0x2] sm:$0x3]
        %v310 = vld [vmem:[%s258 + $0x4] sm:$0x3]
        %v311 = vld [vmem:[%s258 + $0x6] sm:$0x3]
        %vm312 = vcmask 64512
        %v314 = vsel %vm312, %v304, 0
        %v317 = vsel %vm312, %v308, 0
        %319 = vmatpush.bf16.xpose.msra.mxu0 0
        %320 = vmatpush.bf16.xpose.msra.mxu0 0
        %321 = vmatpush.bf16.xpose.msra.mxu0 0
        %322 = vmatpush.bf16.xpose.msra.mxu0 0
        %323 = vmatpush.bf16.xpose.msra.mxu0 0
        %324 = vmatpush.bf16.xpose.msra.mxu0 0
        %325 = vmatpush.bf16.xpose.msra.mxu0 0
        %326 = vmatpush.bf16.xpose.msra.mxu0 %v317
        %327 = vmatmul.bf16.gmra.mxu0 %v314
        %v328 = vpop.f32.mrf.mxu0
        %v329 = vadd.f32 0.0, %v328
        %v330 = vpop.f32.mrf.mxu0
        %331 = vdwg.mxu0
        %v333 = vsel %vm312, %v305, 0
        %v336 = vsel %vm312, %v309, 0
        %338 = vmatpush.bf16.xpose.msra.mxu0 0
        %339 = vmatpush.bf16.xpose.msra.mxu0 0
        %340 = vmatpush.bf16.xpose.msra.mxu0 0
        %341 = vmatpush.bf16.xpose.msra.mxu0 0
        %342 = vmatpush.bf16.xpose.msra.mxu0 0
        %343 = vmatpush.bf16.xpose.msra.mxu0 0
        %344 = vmatpush.bf16.xpose.msra.mxu0 0
        %345 = vmatpush.bf16.xpose.msra.mxu0 %v336
        %346 = vmatmul.bf16.gmra.mxu0 %v333
        %v347 = vpop.f32.mrf.mxu0
        %v348 = vadd.f32 0.0, %v347
        %v349 = vpop.f32.mrf.mxu0
        %350 = vdwg.mxu0
        %v352 = vsel %vm312, %v306, 0
        %v355 = vsel %vm312, %v310, 0
        %357 = vmatpush.bf16.xpose.msra.mxu0 0
        %358 = vmatpush.bf16.xpose.msra.mxu0 0
        %359 = vmatpush.bf16.xpose.msra.mxu0 0
        %360 = vmatpush.bf16.xpose.msra.mxu0 0
        %361 = vmatpush.bf16.xpose.msra.mxu0 0
        %362 = vmatpush.bf16.xpose.msra.mxu0 0
        %363 = vmatpush.bf16.xpose.msra.mxu0 0
        %364 = vmatpush.bf16.xpose.msra.mxu0 %v355
        %365 = vmatmul.bf16.gmra.mxu0 %v352
        %v366 = vpop.f32.mrf.mxu0
        %v367 = vadd.f32 0.0, %v366
        %v368 = vpop.f32.mrf.mxu0
        %369 = vdwg.mxu0
        %v371 = vsel %vm312, %v307, 0
        %v374 = vsel %vm312, %v311, 0
        %376 = vmatpush.bf16.xpose.msra.mxu0 0
        %377 = vmatpush.bf16.xpose.msra.mxu0 0
        %378 = vmatpush.bf16.xpose.msra.mxu0 0
        %379 = vmatpush.bf16.xpose.msra.mxu0 0
        %380 = vmatpush.bf16.xpose.msra.mxu0 0
        %381 = vmatpush.bf16.xpose.msra.mxu0 0
        %382 = vmatpush.bf16.xpose.msra.mxu0 0
        %383 = vmatpush.bf16.xpose.msra.mxu0 %v374
        %384 = vmatmul.bf16.gmra.mxu0 %v371
        %v385 = vpop.f32.mrf.mxu0
        %v386 = vadd.f32 0.0, %v385
        %v387 = vpop.f32.mrf.mxu0
        %388 = vdwg.mxu0
        %v389 = vlaneseq
        %v390 = vshrl.u32 %v389, 7
        %v391 = vstv %s298
        %v392 = vadd.s32 %v391, %v390
        %v393 = vlaneseq
        %v394 = vand.u32 %v393, 127
        %v395 = vstv %s297
        %v396 = vadd.s32 %v395, %v394
        %vm397 = vcmp.le.s32.totalorder %v396, %v392
        %v398 = vsel %vm397, 1, 0
        %vm399 = vcmp.eq.s32.totalorder %v398, 1
        %v400 = vsel %vm399, %v329, -1e+30
        %v401 = vsel %vm399, %v348, -1e+30
        %v402 = vsel %vm399, %v367, -1e+30
        %v403 = vsel %vm399, %v386, -1e+30
        %v404 = vld [vmem:[#allocation2] sm:$0xf]
        %v405 = vld [vmem:[#allocation2 + $0x4] sm:$0xf]
        %v406 = vld [vmem:[#allocation2 + $0x8] sm:$0xf]
        %v407 = vld [vmem:[#allocation2 + $0xc] sm:$0xf]
        %vm408 = vcmask 27648
        %v409 = vsel %vm408, %v400, -inf
        %410 = vmax.xlane.f32.xlu0 %v409
        %v411 = vpop.xlane.xlu0 %410
        %v412 = vsel %vm408, %v401, -inf
        %413 = vmax.xlane.f32.xlu0 %v412
        %v414 = vpop.xlane.xlu0 %413
        %v415 = vsel %vm408, %v402, -inf
        %416 = vmax.xlane.f32.xlu0 %v415
        %v417 = vpop.xlane.xlu0 %416
        %v418 = vsel %vm408, %v403, -inf
        %419 = vmax.xlane.f32.xlu0 %v418
        %v420 = vpop.xlane.xlu0 %419
        %v421 = vmax.f32 %v404, %v411
        %v422 = vmax.f32 %v405, %v414
        %v423 = vmax.f32 %v406, %v417
        %v424 = vmax.f32 %v407, %v420
        %v425 = vsub.f32 %v404, %v421
        %v426 = vsub.f32 %v405, %v422
        %v427 = vsub.f32 %v406, %v423
        %v428 = vsub.f32 %v407, %v424
        %v429 = vmul.f32 %v425, 1.442695
        %v430 = vpow.pop %v429
        %v431 = vmul.f32 %v426, 1.442695
        %v432 = vpow.pop %v431
        %v433 = vmul.f32 %v427, 1.442695
        %v434 = vpow.pop %v433
        %v435 = vmul.f32 %v428, 1.442695
        %v436 = vpow.pop %v435
        %438 = vset.pattern.permute.xlu0 0
        %439 = vperm.xlu0 %438, %v421
        %v440 = vpop.permute.xlu0 %439
        %443 = vset.pattern.permute.xlu0 0
        %444 = vperm.xlu0 %443, %v422
        %v445 = vpop.permute.xlu0 %444
        %448 = vset.pattern.permute.xlu0 0
        %449 = vperm.xlu0 %448, %v423
        %v450 = vpop.permute.xlu0 %449
        %453 = vset.pattern.permute.xlu0 0
        %454 = vperm.xlu0 %453, %v424
        %v455 = vpop.permute.xlu0 %454
        %v457 = vsub.f32 %v400, %v440
        %v458 = vsub.f32 %v401, %v445
        %v459 = vsub.f32 %v402, %v450
        %v460 = vsub.f32 %v403, %v455
        %v461 = vmul.f32 %v457, 1.442695
        %v462 = vpow.pop %v461
        %v463 = vmul.f32 %v458, 1.442695
        %v464 = vpow.pop %v463
        %v465 = vmul.f32 %v459, 1.442695
        %v466 = vpow.pop %v465
        %v467 = vmul.f32 %v460, 1.442695
        %v468 = vpow.pop %v467
        %v469 = vld [vmem:[#allocation3] sm:$0xf]
        %v470 = vld [vmem:[#allocation3 + $0x4] sm:$0xf]
        %v471 = vld [vmem:[#allocation3 + $0x8] sm:$0xf]
        %v472 = vld [vmem:[#allocation3 + $0xc] sm:$0xf]
        %v473 = vmul.f32 %v430, %v469
        %v474 = vmul.f32 %v432, %v470
        %v475 = vmul.f32 %v434, %v471
        %v476 = vmul.f32 %v436, %v472
        %v477 = vsel %vm408, %v462, 0.0
        %478 = vadd.xlane.f32.xlu0 %v477
        %v479 = vpop.xlane.xlu0 %478
        %v480 = vsel %vm408, %v464, 0.0
        %481 = vadd.xlane.f32.xlu0 %v480
        %v482 = vpop.xlane.xlu0 %481
        %v483 = vsel %vm408, %v466, 0.0
        %484 = vadd.xlane.f32.xlu0 %v483
        %v485 = vpop.xlane.xlu0 %484
        %v486 = vsel %vm408, %v468, 0.0
        %487 = vadd.xlane.f32.xlu0 %v486
        %v488 = vpop.xlane.xlu0 %487
        %v489 = vadd.f32 %v473, %v479
        %v490 = vadd.f32 %v474, %v482
        %v491 = vadd.f32 %v475, %v485
        %v492 = vadd.f32 %v476, %v488
        %vm493 = vcmask 3072
        %494 = vst.msk [vmem:[#allocation3] sm:$0xf] %vm493, %v489
        %495 = vst.msk [vmem:[#allocation3 + $0x4] sm:$0xf] %vm493, %v490
        %496 = vst.msk [vmem:[#allocation3 + $0x8] sm:$0xf] %vm493, %v491
        %497 = vst.msk [vmem:[#allocation3 + $0xc] sm:$0xf] %vm493, %v492
        %v498 = vld [vmem:[#allocation4] sm:$0xf]
        %v499 = vld [vmem:[#allocation4 + $0x4] sm:$0xf]
        %v500 = vld [vmem:[#allocation4 + $0x8] sm:$0xf]
        %v501 = vld [vmem:[#allocation4 + $0xc] sm:$0xf]
        %503 = vset.pattern.permute.xlu0 0
        %504 = vperm.xlu0 %503, %v430
        %v505 = vpop.permute.xlu0 %504
        %508 = vset.pattern.permute.xlu0 0
        %509 = vperm.xlu0 %508, %v432
        %v510 = vpop.permute.xlu0 %509
        %513 = vset.pattern.permute.xlu0 0
        %514 = vperm.xlu0 %513, %v434
        %v515 = vpop.permute.xlu0 %514
        %518 = vset.pattern.permute.xlu0 0
        %519 = vperm.xlu0 %518, %v436
        %v520 = vpop.permute.xlu0 %519
        %v522 = vmul.f32 %v505, %v498
        %v523 = vmul.f32 %v510, %v499
        %v524 = vmul.f32 %v515, %v500
        %v525 = vmul.f32 %v520, %v501
        %v526 = vpack.c.bf16 %v462, %v462
        %v527 = vpack.c.bf16 %v464, %v464
        %v528 = vpack.c.bf16 %v466, %v466
        %v529 = vpack.c.bf16 %v468, %v468
        %v530 = vld [vmem:[%s267] sm:$0x3]
        %v531 = vld [vmem:[%s267 + $0x2] sm:$0x3]
        %v532 = vld [vmem:[%s267 + $0x4] sm:$0x3]
        %v533 = vld [vmem:[%s267 + $0x6] sm:$0x3]
        %vm534 = vcmask 31744
        %v536 = vsel %vm534, %v526, 0
        %vm538 = vcmask 1041408
        %v540 = vsel %vm538, %v530, 0
        %542 = vmatpush.bf16.msra.mxu0 0
        %543 = vmatpush.bf16.msra.mxu0 0
        %544 = vmatpush.bf16.msra.mxu0 0
        %545 = vmatpush.bf16.msra.mxu0 0
        %546 = vmatpush.bf16.msra.mxu0 0
        %547 = vmatpush.bf16.msra.mxu0 0
        %548 = vmatpush.bf16.msra.mxu0 0
        %549 = vmatpush.bf16.msra.mxu0 %v540
        %550 = vmatmul.bf16.gmra.mxu0 %v536
        %v551 = vpop.f32.mrf.mxu0
        %v552 = vadd.f32 0.0, %v551
        %v553 = vpop.f32.mrf.mxu0
        %554 = vdwg.mxu0
        %v556 = vsel %vm534, %v527, 0
        %v559 = vsel %vm538, %v531, 0
        %561 = vmatpush.bf16.msra.mxu0 0
        %562 = vmatpush.bf16.msra.mxu0 0
        %563 = vmatpush.bf16.msra.mxu0 0
        %564 = vmatpush.bf16.msra.mxu0 0
        %565 = vmatpush.bf16.msra.mxu0 0
        %566 = vmatpush.bf16.msra.mxu0 0
        %567 = vmatpush.bf16.msra.mxu0 0
        %568 = vmatpush.bf16.msra.mxu0 %v559
        %569 = vmatmul.bf16.gmra.mxu0 %v556
        %v570 = vpop.f32.mrf.mxu0
        %v571 = vadd.f32 0.0, %v570
        %v572 = vpop.f32.mrf.mxu0
        %573 = vdwg.mxu0
        %v575 = vsel %vm534, %v528, 0
        %v578 = vsel %vm538, %v532, 0
        %580 = vmatpush.bf16.msra.mxu0 0
        %581 = vmatpush.bf16.msra.mxu0 0
        %582 = vmatpush.bf16.msra.mxu0 0
        %583 = vmatpush.bf16.msra.mxu0 0
        %584 = vmatpush.bf16.msra.mxu0 0
        %585 = vmatpush.bf16.msra.mxu0 0
        %586 = vmatpush.bf16.msra.mxu0 0
        %587 = vmatpush.bf16.msra.mxu0 %v578
        %588 = vmatmul.bf16.gmra.mxu0 %v575
        %v589 = vpop.f32.mrf.mxu0
        %v590 = vadd.f32 0.0, %v589
        %v591 = vpop.f32.mrf.mxu0
        %592 = vdwg.mxu0
        %v594 = vsel %vm534, %v529, 0
        %v597 = vsel %vm538, %v533, 0
        %599 = vmatpush.bf16.msra.mxu0 0
        %600 = vmatpush.bf16.msra.mxu0 0
        %601 = vmatpush.bf16.msra.mxu0 0
        %602 = vmatpush.bf16.msra.mxu0 0
        %603 = vmatpush.bf16.msra.mxu0 0
        %604 = vmatpush.bf16.msra.mxu0 0
        %605 = vmatpush.bf16.msra.mxu0 0
        %606 = vmatpush.bf16.msra.mxu0 %v597
        %607 = vmatmul.bf16.gmra.mxu0 %v594
        %v608 = vpop.f32.mrf.mxu0
        %v609 = vadd.f32 0.0, %v608
        %v610 = vpop.f32.mrf.mxu0
        %611 = vdwg.mxu0
        %v612 = vadd.f32 %v522, %v552
        %v613 = vadd.f32 %v523, %v571
        %v614 = vadd.f32 %v524, %v590
        %v615 = vadd.f32 %v525, %v609
        %vm616 = vcmask 60416
        %617 = vst.msk [vmem:[#allocation4] sm:$0xf] %vm616, %v612
        %618 = vst.msk [vmem:[#allocation4 + $0x4] sm:$0xf] %vm616, %v613
        %619 = vst.msk [vmem:[#allocation4 + $0x8] sm:$0xf] %vm616, %v614
        %620 = vst.msk [vmem:[#allocation4 + $0xc] sm:$0xf] %vm616, %v615
        %621 = vst.msk [vmem:[#allocation2] sm:$0xf] %vm493, %v421
        %622 = vst.msk [vmem:[#allocation2 + $0x4] sm:$0xf] %vm493, %v422
        %623 = vst.msk [vmem:[#allocation2 + $0x8] sm:$0xf] %vm493, %v423
        %624 = vst.msk [vmem:[#allocation2 + $0xc] sm:$0xf] %vm493, %v424
      $region40: #{longnet_ts_forward.41} parent=31 // pred_fallthru
        _
      // Predicated region
      $region41: #{longnet_ts_forward.41} parent=31 // pred_check
        %p625 = pneg %p279
      $region42: #{longnet_ts_forward.41} parent=31 // pred_check_branch
        %627 = sbr.rel (%p625) target = $region44
      $region43: #{longnet_ts_forward.41} parent=31 // pred_region
        %v628 = vld [vmem:[#allocation4] sm:$0xf]
        %v629 = vld [vmem:[#allocation4 + $0x4] sm:$0xf]
        %v630 = vld [vmem:[#allocation4 + $0x8] sm:$0xf]
        %v631 = vld [vmem:[#allocation4 + $0xc] sm:$0xf]
        %v632 = vld [vmem:[#allocation3] sm:$0xf]
        %v633 = vld [vmem:[#allocation3 + $0x4] sm:$0xf]
        %v634 = vld [vmem:[#allocation3 + $0x8] sm:$0xf]
        %v635 = vld [vmem:[#allocation3 + $0xc] sm:$0xf]
        %v636 = vrcp.pop %v632
        %v637 = vrcp.pop %v633
        %v638 = vrcp.pop %v634
        %v639 = vrcp.pop %v635
        %641 = vset.pattern.permute.xlu0 0
        %642 = vperm.xlu0 %641, %v636
        %v643 = vpop.permute.xlu0 %642
        %646 = vset.pattern.permute.xlu0 0
        %647 = vperm.xlu0 %646, %v637
        %v648 = vpop.permute.xlu0 %647
        %651 = vset.pattern.permute.xlu0 0
        %652 = vperm.xlu0 %651, %v638
        %v653 = vpop.permute.xlu0 %652
        %656 = vset.pattern.permute.xlu0 0
        %657 = vperm.xlu0 %656, %v639
        %v658 = vpop.permute.xlu0 %657
        %v660 = vmul.f32 %v628, %v643
        %v661 = vmul.f32 %v629, %v648
        %v662 = vmul.f32 %v630, %v653
        %v663 = vmul.f32 %v631, %v658
        %v664 = vpack.c.bf16 %v660, %v660
        %v665 = vpack.c.bf16 %v661, %v661
        %v666 = vpack.c.bf16 %v662, %v662
        %v667 = vpack.c.bf16 %v663, %v663
        %vm668 = vcmask 58368
        %669 = vst.msk [vmem:[%s276] sm:$0x3] %vm668, %v664
        %670 = vst.msk [vmem:[%s276 + $0x2] sm:$0x3] %vm668, %v665
        %671 = vst.msk [vmem:[%s276 + $0x4] sm:$0x3] %vm668, %v666
        %672 = vst.msk [vmem:[%s276 + $0x6] sm:$0x3] %vm668, %v667
      $region44: #{longnet_ts_forward.41} parent=31 // pred_fallthru
        _
      %s673 = smul.u32 4, %s19
      %p674 = scmp.lt.s32.totalorder %s673, 7
      %s675 = scalar_select %p674, %s673, 7
      %p676 = scmp.lt.s32.totalorder %s20, 0
      %s677 = scalar_select %p676, %s20, 0
      %s678 = sadd.s32 %s677, %s675
      %s679 = smul.addr %s678, 2
      %s680 = scalar_lea.vmem %s3, %s679
      // Predicated region
      $region45: #{longnet_ts_forward.41} parent=31 // pred_check
        %p681 = pneg %p137
      $region46: #{longnet_ts_forward.41} parent=31 // pred_check_branch
        %683 = sbr.rel (%p681) target = $region48
      $region47: #{longnet_ts_forward.41} parent=31 // pred_region
        %s684 = smul.u32 4, %s19
      $region48: #{longnet_ts_forward.41} parent=31 // pred_fallthru
        _
    $region32: #{longnet_ts_forward.41} parent=5 // pred_fallthru
      _
    %p685 = scmp.le.s32.totalorder 2, %s9
    // Predicated region
    $region49: #{longnet_ts_forward.41} parent=5 // pred_check
      %p686 = pneg %p685
    $region50: #{longnet_ts_forward.41} parent=5 // pred_check_branch
      %688 = sbr.rel (%p686) target = $region52
    $region51: #{longnet_ts_forward.41} parent=5 // pred_region
      %s689 = ssub.s32 %s9, 2
      // Predicated region
      $region53: #{longnet_ts_forward.41} parent=51 // pred_check
        %p690 = pneg %p143
      $region54: #{longnet_ts_forward.41} parent=51 // pred_check_branch
        %692 = sbr.rel (%p690) target = $region56
      $region55: #{longnet_ts_forward.41} parent=51 // pred_region
        %s693 = smul.u32 4, %s22
        %p694 = scmp.lt.s32.totalorder %s693, 7
        %s695 = scalar_select %p694, %s693, 7
        %p696 = scmp.lt.s32.totalorder %s23, 0
        %s697 = scalar_select %p696, %s23, 0
        %s698 = sadd.s32 %s697, %s695
        %s699 = smul.addr %s698, 2
        %s700 = scalar_lea.vmem %s3, %s699
      $region56: #{longnet_ts_forward.41} parent=51 // pred_fallthru
        _
    $region52: #{longnet_ts_forward.41} parent=5 // pred_fallthru
      _
  $region6: #{longnet_ts_forward.41} parent=0 // loop_footer
    %s13 = sadd.s32 1, %s9
  $region7: #{longnet_ts_forward.41} parent=0 // loop_footer_branch
    %8 = sbr.rel target = $region3
  $region8: #{longnet_ts_forward.41} parent=0 // loop_exit
    _

// kernel: longnet_ts_forward.40
$region0: #{longnet_ts_forward.40}
  #allocation0 [shape = 'u32[]', space=smem, size = 0x4, offset = 0x4, fixed_abs, tag = 'smem constant byte address 0x4 - core index']
  #allocation1 [shape = 'u32[72,128]{1,0:T(1,128)}', space=vmem, size = 0x9000, scoped, tag = 'internal scratch']
  #allocation2 [shape = 'f32[8,4,1]{2,1,0:T(4,128)}', space=vmem, size = 0x4000, scoped, tag = 'scratch operand']
  #allocation3 [shape = 'f32[8,4,1]{2,1,0:T(4,128)}', space=vmem, size = 0x4000, scoped, tag = 'scratch operand']
  #allocation4 [shape = 'f32[8,4,8]{2,1,0:T(4,128)}', space=vmem, size = 0x4000, scoped, tag = 'scratch operand']
  %s0 = inlined_call_operand.vmem [shape: bf16[16,4,8], index: 0, kind: input, shape index: {}]
  %s1 = inlined_call_operand.vmem [shape: bf16[16,4,8], index: 1, kind: input, shape index: {}]
  %s2 = inlined_call_operand.vmem [shape: bf16[16,4,8], index: 2, kind: input, shape index: {}]
  %s3 = inlined_call_operand.vmem [shape: bf16[16,4,8], index: 3, kind: output, shape index: {}]
  %s4 = sld [smem:[#allocation0]]
  $region57: #{longnet_ts_forward.40} parent=0
    _
  %s6 = ssub.s32 1, %s4
  %s7 = scalar_select 0, %s6, %s4
  loop: start=0, step=1, limit=4
  $region2: #{longnet_ts_forward.40} parent=0 // loop_pre_header
    _
  $region3: #{longnet_ts_forward.40} parent=0 // loop_header
    %s9 = sphi 0, %s13
    %p10 = scmp.ge.s32.totalorder %s9, 4
    %s16 = sphi 0, %s35
    %s17 = sphi 0, %s31
    %s18 = sphi 0, %s27
    %s19 = sphi 0, %s16
    %s20 = sphi 0, %s17
    %s21 = sphi 0, %s18
    %s22 = sphi 0, %s19
    %s23 = sphi 0, %s20
    %s24 = sphi 0, %s21
    %s40 = sphi 0, %s42
    %s43 = sphi 0, %s40
    %s44 = sphi 0, %s43
    %s60 = sphi 0, %s44
    %s68 = sphi 0, %s70
    %s71 = sphi 0, %s68
    %s72 = sphi 0, %s71
    %s88 = sphi 0, %s72
    %s96 = sphi 0, %s98
    %s99 = sphi 0, %s96
    %s100 = sphi 0, %s99
    %s116 = sphi 0, %s100
    %s124 = sphi 0, %s126
    %s127 = sphi 0, %s124
    %s128 = sphi 0, %s127
    %s144 = sphi 0, %s128
  $region4: #{longnet_ts_forward.40} parent=0 // loop_header_branch
    %12 = sbr.rel (%p10) target = $region8
  $region5: #{longnet_ts_forward.40} parent=0 // loop_body
    %s14 = ssub.s32 %s9, 1
    %s15 = ssub.s32 %s9, 2
    %s25 = sadd.s32 1, %s18
    %p26 = scmp.ge.s32.totalorder %s25, 1
    %s27 = scalar_select %p26, 0, %s25
    %s28 = sadd.s32 1, %s17
    %s29 = scalar_select %p26, %s28, %s17
    %p30 = scmp.ge.s32.totalorder %s29, 1
    %s31 = scalar_select %p30, 0, %s29
    %s32 = sadd.s32 1, %s16
    %s33 = scalar_select %p30, %s32, %s16
    %p34 = scmp.ge.s32.totalorder %s33, 2
    %s35 = scalar_select %p34, 0, %s33
    %s36 = ssub.s32 %s16, %s35
    %s37 = ssub.s32 %s17, %s31
    %s38 = sor.u32 %s36, %s37
    %p39 = scmp.eq.s32.totalorder %s38, 0
    %s41 = sadd.s32 %s40, 1
    %s42 = scalar_select %p39, %s40, %s41
    %p45 = pneg %p39
    %p46 = scmp.eq.s32.totalorder %s9, 1
    %p47 = por %p45, %p46
    %p48 = scmp.ne.s32.totalorder %s40, %s43
    %p49 = scmp.eq.s32.totalorder %s9, 0
    %p50 = por %p48, %p49
    %p51 = scmp.ne.s32.totalorder %s40, %s43
    %p52 = scmp.eq.s32.totalorder %s14, 1
    %p53 = por %p51, %p52
    %p54 = scmp.ne.s32.totalorder %s43, %s44
    %p55 = scmp.eq.s32.totalorder %s14, 0
    %p56 = por %p54, %p55
    %p57 = scmp.ne.s32.totalorder %s43, %s44
    %p58 = scmp.eq.s32.totalorder %s15, 1
    %p59 = por %p57, %p58
    %p61 = scmp.ne.s32.totalorder %s44, %s60
    %p62 = scmp.eq.s32.totalorder %s15, 0
    %p63 = por %p61, %p62
    %s64 = ssub.s32 %s16, %s35
    %s65 = ssub.s32 %s18, %s27
    %s66 = sor.u32 %s64, %s65
    %p67 = scmp.eq.s32.totalorder %s66, 0
    %s69 = sadd.s32 %s68, 1
    %s70 = scalar_select %p67, %s68, %s69
    %p73 = pneg %p67
    %p74 = scmp.eq.s32.totalorder %s9, 1
    %p75 = por %p73, %p74
    %p76 = scmp.ne.s32.totalorder %s68, %s71
    %p77 = scmp.eq.s32.totalorder %s9, 0
    %p78 = por %p76, %p77
    %p79 = scmp.ne.s32.totalorder %s68, %s71
    %p80 = scmp.eq.s32.totalorder %s14, 1
    %p81 = por %p79, %p80
    %p82 = scmp.ne.s32.totalorder %s71, %s72
    %p83 = scmp.eq.s32.totalorder %s14, 0
    %p84 = por %p82, %p83
    %p85 = scmp.ne.s32.totalorder %s71, %s72
    %p86 = scmp.eq.s32.totalorder %s15, 1
    %p87 = por %p85, %p86
    %p89 = scmp.ne.s32.totalorder %s72, %s88
    %p90 = scmp.eq.s32.totalorder %s15, 0
    %p91 = por %p89, %p90
    %s92 = ssub.s32 %s16, %s35
    %s93 = ssub.s32 %s18, %s27
    %s94 = sor.u32 %s92, %s93
    %p95 = scmp.eq.s32.totalorder %s94, 0
    %s97 = sadd.s32 %s96, 1
    %s98 = scalar_select %p95, %s96, %s97
    %p101 = pneg %p95
    %p102 = scmp.eq.s32.totalorder %s9, 1
    %p103 = por %p101, %p102
    %p104 = scmp.ne.s32.totalorder %s96, %s99
    %p105 = scmp.eq.s32.totalorder %s9, 0
    %p106 = por %p104, %p105
    %p107 = scmp.ne.s32.totalorder %s96, %s99
    %p108 = scmp.eq.s32.totalorder %s14, 1
    %p109 = por %p107, %p108
    %p110 = scmp.ne.s32.totalorder %s99, %s100
    %p111 = scmp.eq.s32.totalorder %s14, 0
    %p112 = por %p110, %p111
    %p113 = scmp.ne.s32.totalorder %s99, %s100
    %p114 = scmp.eq.s32.totalorder %s15, 1
    %p115 = por %p113, %p114
    %p117 = scmp.ne.s32.totalorder %s100, %s116
    %p118 = scmp.eq.s32.totalorder %s15, 0
    %p119 = por %p117, %p118
    %s120 = ssub.s32 %s16, %s35
    %s121 = ssub.s32 %s17, %s31
    %s122 = sor.u32 %s120, %s121
    %p123 = scmp.eq.s32.totalorder %s122, 0
    %s125 = sadd.s32 %s124, 1
    %s126 = scalar_select %p123, %s124, %s125
    %p129 = pneg %p123
    %p130 = scmp.eq.s32.totalorder %s9, 1
    %p131 = por %p129, %p130
    %p132 = scmp.ne.s32.totalorder %s124, %s127
    %p133 = scmp.eq.s32.totalorder %s9, 0
    %p134 = por %p132, %p133
    %p135 = scmp.ne.s32.totalorder %s124, %s127
    %p136 = scmp.eq.s32.totalorder %s14, 1
    %p137 = por %p135, %p136
    %p138 = scmp.ne.s32.totalorder %s127, %s128
    %p139 = scmp.eq.s32.totalorder %s14, 0
    %p140 = por %p138, %p139
    %p141 = scmp.ne.s32.totalorder %s127, %s128
    %p142 = scmp.eq.s32.totalorder %s15, 1
    %p143 = por %p141, %p142
    %p145 = scmp.ne.s32.totalorder %s128, %s144
    %p146 = scmp.eq.s32.totalorder %s15, 0
    %p147 = por %p145, %p146
    %p148 = scmp.le.s32.totalorder 1, %s9
    %p149 = scmp.lt.s32.totalorder %s9, 3
    %p150 = pnand %p148, %p149
    %p151 = pneg %p150
    // Predicated region
    $region9: #{longnet_ts_forward.40} parent=5 // pred_check
      _
    $region10: #{longnet_ts_forward.40} parent=5 // pred_check_branch
      %153 = sbr.rel (%p150) target = $region12
    $region11: #{longnet_ts_forward.40} parent=5 // pred_region
      %s154 = ssub.s32 %s9, 1
    $region12: #{longnet_ts_forward.40} parent=5 // pred_fallthru
      _
    %p155 = scmp.lt.s32.totalorder %s9, 2
    // Predicated region
    $region13: #{longnet_ts_forward.40} parent=5 // pred_check
      %p156 = pneg %p155
    $region14: #{longnet_ts_forward.40} parent=5 // pred_check_branch
      %158 = sbr.rel (%p156) target = $region16
    $region15: #{longnet_ts_forward.40} parent=5 // pred_region
      // Predicated region
      $region17: #{longnet_ts_forward.40} parent=15 // pred_check
        %p159 = pneg %p50
      $region18: #{longnet_ts_forward.40} parent=15 // pred_check_branch
        %161 = sbr.rel (%p159) target = $region20
      $region19: #{longnet_ts_forward.40} parent=15 // pred_region
        %s162 = smul.u32 8, %s16
        %p163 = scmp.lt.s32.totalorder %s162, 15
        %s164 = scalar_select %p163, %s162, 15
        %p165 = scmp.lt.s32.totalorder %s17, 0
        %s166 = scalar_select %p165, %s17, 0
        %s167 = sadd.s32 %s166, %s164
        %s168 = smul.addr %s167, 2
        %s169 = scalar_lea.vmem %s0, %s168
        %s170 = smul.u32 8, %s16
      $region20: #{longnet_ts_forward.40} parent=15 // pred_fallthru
        _
      // Predicated region
      $region21: #{longnet_ts_forward.40} parent=15 // pred_check
        %p171 = pneg %p78
      $region22: #{longnet_ts_forward.40} parent=15 // pred_check_branch
        %173 = sbr.rel (%p171) target = $region24
      $region23: #{longnet_ts_forward.40} parent=15 // pred_region
        %s174 = smul.u32 8, %s16
        %p175 = scmp.lt.s32.totalorder %s174, 15
        %s176 = scalar_select %p175, %s174, 15
        %p177 = scmp.lt.s32.totalorder %s18, 0
        %s178 = scalar_select %p177, %s18, 0
        %s179 = sadd.s32 %s178, %s176
        %s180 = smul.addr %s179, 2
        %s181 = scalar_lea.vmem %s1, %s180
        %s182 = smul.u32 8, %s16
      $region24: #{longnet_ts_forward.40} parent=15 // pred_fallthru
        _
      // Predicated region
      $region25: #{longnet_ts_forward.40} parent=15 // pred_check
        %p183 = pneg %p106
      $region26: #{longnet_ts_forward.40} parent=15 // pred_check_branch
        %185 = sbr.rel (%p183) target = $region28
      $region27: #{longnet_ts_forward.40} parent=15 // pred_region
        %s186 = smul.u32 8, %s16
        %p187 = scmp.lt.s32.totalorder %s186, 15
        %s188 = scalar_select %p187, %s186, 15
        %p189 = scmp.lt.s32.totalorder %s18, 0
        %s190 = scalar_select %p189, %s18, 0
        %s191 = sadd.s32 %s190, %s188
        %s192 = smul.addr %s191, 2
        %s193 = scalar_lea.vmem %s2, %s192
        %s194 = smul.u32 8, %s16
      $region28: #{longnet_ts_forward.40} parent=15 // pred_fallthru
        _
    $region16: #{longnet_ts_forward.40} parent=5 // pred_fallthru
      _
    %p195 = scmp.le.s32.totalorder 1, %s9
    %p196 = scmp.lt.s32.totalorder %s9, 3
    %p197 = pnand %p195, %p196
    %p198 = pneg %p197
    // Predicated region
    $region29: #{longnet_ts_forward.40} parent=5 // pred_check
      _
    $region30: #{longnet_ts_forward.40} parent=5 // pred_check_branch
      %200 = sbr.rel (%p197) target = $region32
    $region31: #{longnet_ts_forward.40} parent=5 // pred_region
      %s201 = ssub.s32 %s9, 1
      %s202 = smul.u32 8, %s19
      %p203 = scmp.lt.s32.totalorder %s202, 15
      %s204 = scalar_select %p203, %s202, 15
      %p205 = scmp.lt.s32.totalorder %s20, 0
      %s206 = scalar_select %p205, %s20, 0
      %s207 = sadd.s32 %s206, %s204
      %s208 = smul.addr %s207, 2
      %s209 = scalar_lea.vmem %s0, %s208
      %p210 = pneg %p56
      %p211 = pneg %p53
      %s212 = smul.u32 8, %s19
      %p213 = scmp.lt.s32.totalorder %s212, 15
      %s214 = scalar_select %p213, %s212, 15
      %p215 = scmp.lt.s32.totalorder %s21, 0
      %s216 = scalar_select %p215, %s21, 0
      %s217 = sadd.s32 %s216, %s214
      %s218 = smul.addr %s217, 2
      %s219 = scalar_lea.vmem %s1, %s218
      %p220 = pneg %p84
      %p221 = pneg %p81
      %s222 = smul.u32 8, %s19
      %p223 = scmp.lt.s32.totalorder %s222, 15
      %s224 = scalar_select %p223, %s222, 15
      %p225 = scmp.lt.s32.totalorder %s21, 0
      %s226 = scalar_select %p225, %s21, 0
      %s227 = sadd.s32 %s226, %s224
      %s228 = smul.addr %s227, 2
      %s229 = scalar_lea.vmem %s2, %s228
      %p230 = pneg %p112
      %p231 = pneg %p109
      %p232 = pneg %p140
      %p233 = pneg %p137
      %s234 = smul.u32 8, %s19
      %p235 = scmp.lt.s32.totalorder %s234, 15
      %s236 = scalar_select %p235, %s234, 15
      %p237 = scmp.lt.s32.totalorder %s20, 0
      %s238 = scalar_select %p237, %s20, 0
      %s239 = sadd.s32 %s238, %s236
      %s240 = smul.addr %s239, 2
      %s241 = scalar_lea.vmem %s3, %s240
      %s242 = smul.u32 8, %s19
      %p243 = scmp.lt.s32.totalorder %s242, 15
      %s244 = scalar_select %p243, %s242, 15
      %p245 = scmp.lt.s32.totalorder %s20, 0
      %s246 = scalar_select %p245, %s20, 0
      %s247 = sadd.s32 %s246, %s244
      %s248 = smul.addr %s247, 2
      %s249 = scalar_lea.vmem %s0, %s248
      %s250 = smul.u32 8, %s19
      %s251 = smul.u32 8, %s19
      %p252 = scmp.lt.s32.totalorder %s251, 15
      %s253 = scalar_select %p252, %s251, 15
      %p254 = scmp.lt.s32.totalorder %s21, 0
      %s255 = scalar_select %p254, %s21, 0
      %s256 = sadd.s32 %s255, %s253
      %s257 = smul.addr %s256, 2
      %s258 = scalar_lea.vmem %s1, %s257
      %s259 = smul.u32 8, %s19
      %s260 = smul.u32 8, %s19
      %p261 = scmp.lt.s32.totalorder %s260, 15
      %s262 = scalar_select %p261, %s260, 15
      %p263 = scmp.lt.s32.totalorder %s21, 0
      %s264 = scalar_select %p263, %s21, 0
      %s265 = sadd.s32 %s264, %s262
      %s266 = smul.addr %s265, 2
      %s267 = scalar_lea.vmem %s2, %s266
      %s268 = smul.u32 8, %s19
      %s269 = smul.u32 8, %s19
      %p270 = scmp.lt.s32.totalorder %s269, 15
      %s271 = scalar_select %p270, %s269, 15
      %p272 = scmp.lt.s32.totalorder %s20, 0
      %s273 = scalar_select %p272, %s20, 0
      %s274 = sadd.s32 %s273, %s271
      %s275 = smul.addr %s274, 2
      %s276 = scalar_lea.vmem %s3, %s275
      %s277 = smul.u32 8, %s19
      %p279 = scmp.eq.s32.totalorder %s21, 0
      // Predicated region
      $region33: #{longnet_ts_forward.40} parent=31 // pred_check
        %p280 = pneg %p279
      $region34: #{longnet_ts_forward.40} parent=31 // pred_check_branch
        %282 = sbr.rel (%p280) target = $region36
      $region35: #{longnet_ts_forward.40} parent=31 // pred_region
        %vm283 = vcmask 3072
        %284 = vst.msk [vmem:[#allocation2] sm:$0xf] %vm283, -inf
        %285 = vst.msk [vmem:[#allocation2 + $0x4] sm:$0xf] %vm283, -inf
        %286 = vst.msk [vmem:[#allocation2 + $0x8] sm:$0xf] %vm283, -inf
        %287 = vst.msk [vmem:[#allocation2 + $0xc] sm:$0xf] %vm283, -inf
        %288 = vst.msk [vmem:[#allocation2 + $0x10] sm:$0xf] %vm283, -inf
        %289 = vst.msk [vmem:[#allocation2 + $0x14] sm:$0xf] %vm283, -inf
        %290 = vst.msk [vmem:[#allocation2 + $0x18] sm:$0xf] %vm283, -inf
        %291 = vst.msk [vmem:[#allocation2 + $0x1c] sm:$0xf] %vm283, -inf
        %292 = vst.msk [vmem:[#allocation3] sm:$0xf] %vm283, 0.0
        %293 = vst.msk [vmem:[#allocation3 + $0x4] sm:$0xf] %vm283, 0.0
        %294 = vst.msk [vmem:[#allocation3 + $0x8] sm:$0xf] %vm283, 0.0
        %295 = vst.msk [vmem:[#allocation3 + $0xc] sm:$0xf] %vm283, 0.0
        %296 = vst.msk [vmem:[#allocation3 + $0x10] sm:$0xf] %vm283, 0.0
        %297 = vst.msk [vmem:[#allocation3 + $0x14] sm:$0xf] %vm283, 0.0
        %298 = vst.msk [vmem:[#allocation3 + $0x18] sm:$0xf] %vm283, 0.0
        %299 = vst.msk [vmem:[#allocation3 + $0x1c] sm:$0xf] %vm283, 0.0
        %vm300 = vcmask 60416
        %301 = vst.msk [vmem:[#allocation4] sm:$0xf] %vm300, 0.0
        %302 = vst.msk [vmem:[#allocation4 + $0x4] sm:$0xf] %vm300, 0.0
        %303 = vst.msk [vmem:[#allocation4 + $0x8] sm:$0xf] %vm300, 0.0
        %304 = vst.msk [vmem:[#allocation4 + $0xc] sm:$0xf] %vm300, 0.0
        %305 = vst.msk [vmem:[#allocation4 + $0x10] sm:$0xf] %vm300, 0.0
        %306 = vst.msk [vmem:[#allocation4 + $0x14] sm:$0xf] %vm300, 0.0
        %307 = vst.msk [vmem:[#allocation4 + $0x18] sm:$0xf] %vm300, 0.0
        %308 = vst.msk [vmem:[#allocation4 + $0x1c] sm:$0xf] %vm300, 0.0
      $region36: #{longnet_ts_forward.40} parent=31 // pred_fallthru
        _
      %s309 = smul.u32 %s21, 4
      %s310 = smul.u32 %s20, 4
      %s311 = sadd.s32 %s310, 3
      %p312 = scmp.le.s32.totalorder %s309, %s311
      // Predicated region
      $region37: #{longnet_ts_forward.40} parent=31 // pred_check
        %p313 = pneg %p312
      $region38: #{longnet_ts_forward.40} parent=31 // pred_check_branch
        %315 = sbr.rel (%p313) target = $region40
      $region39: #{longnet_ts_forward.40} parent=31 // pred_region
        %v316 = vld [vmem:[%s249] sm:$0x3]
        %v317 = vld [vmem:[%s249 + $0x2] sm:$0x3]
        %v318 = vld [vmem:[%s249 + $0x4] sm:$0x3]
        %v319 = vld [vmem:[%s249 + $0x6] sm:$0x3]
        %v320 = vld [vmem:[%s249 + $0x8] sm:$0x3]
        %v321 = vld [vmem:[%s249 + $0xa] sm:$0x3]
        %v322 = vld [vmem:[%s249 + $0xc] sm:$0x3]
        %v323 = vld [vmem:[%s249 + $0xe] sm:$0x3]
        %v324 = vld [vmem:[%s258] sm:$0x3]
        %v325 = vld [vmem:[%s258 + $0x2] sm:$0x3]
        %v326 = vld [vmem:[%s258 + $0x4] sm:$0x3]
        %v327 = vld [vmem:[%s258 + $0x6] sm:$0x3]
        %v328 = vld [vmem:[%s258 + $0x8] sm:$0x3]
        %v329 = vld [vmem:[%s258 + $0xa] sm:$0x3]
        %v330 = vld [vmem:[%s258 + $0xc] sm:$0x3]
        %v331 = vld [vmem:[%s258 + $0xe] sm:$0x3]
        %vm332 = vcmask 64512
        %v334 = vsel %vm332, %v316, 0
        %v337 = vsel %vm332, %v324, 0
        %339 = vmatpush.bf16.xpose.msra.mxu0 0
        %340 = vmatpush.bf16.xpose.msra.mxu0 0
        %341 = vmatpush.bf16.xpose.msra.mxu0 0
        %342 = vmatpush.bf16.xpose.msra.mxu0 0
        %343 = vmatpush.bf16.xpose.msra.mxu0 0
        %344 = vmatpush.bf16.xpose.msra.mxu0 0
        %345 = vmatpush.bf16.xpose.msra.mxu0 0
        %346 = vmatpush.bf16.xpose.msra.mxu0 %v337
        %347 = vmatmul.bf16.gmra.mxu0 %v334
        %v348 = vpop.f32.mrf.mxu0
        %v349 = vadd.f32 0.0, %v348
        %v350 = vpop.f32.mrf.mxu0
        %351 = vdwg.mxu0
        %v353 = vsel %vm332, %v317, 0
        %v356 = vsel %vm332, %v325, 0
        %358 = vmatpush.bf16.xpose.msra.mxu0 0
        %359 = vmatpush.bf16.xpose.msra.mxu0 0
        %360 = vmatpush.bf16.xpose.msra.mxu0 0
        %361 = vmatpush.bf16.xpose.msra.mxu0 0
        %362 = vmatpush.bf16.xpose.msra.mxu0 0
        %363 = vmatpush.bf16.xpose.msra.mxu0 0
        %364 = vmatpush.bf16.xpose.msra.mxu0 0
        %365 = vmatpush.bf16.xpose.msra.mxu0 %v356
        %366 = vmatmul.bf16.gmra.mxu0 %v353
        %v367 = vpop.f32.mrf.mxu0
        %v368 = vadd.f32 0.0, %v367
        %v369 = vpop.f32.mrf.mxu0
        %370 = vdwg.mxu0
        %v372 = vsel %vm332, %v318, 0
        %v375 = vsel %vm332, %v326, 0
        %377 = vmatpush.bf16.xpose.msra.mxu0 0
        %378 = vmatpush.bf16.xpose.msra.mxu0 0
        %379 = vmatpush.bf16.xpose.msra.mxu0 0
        %380 = vmatpush.bf16.xpose.msra.mxu0 0
        %381 = vmatpush.bf16.xpose.msra.mxu0 0
        %382 = vmatpush.bf16.xpose.msra.mxu0 0
        %383 = vmatpush.bf16.xpose.msra.mxu0 0
        %384 = vmatpush.bf16.xpose.msra.mxu0 %v375
        %385 = vmatmul.bf16.gmra.mxu0 %v372
        %v386 = vpop.f32.mrf.mxu0
        %v387 = vadd.f32 0.0, %v386
        %v388 = vpop.f32.mrf.mxu0
        %389 = vdwg.mxu0
        %v391 = vsel %vm332, %v319, 0
        %v394 = vsel %vm332, %v327, 0
        %396 = vmatpush.bf16.xpose.msra.mxu0 0
        %397 = vmatpush.bf16.xpose.msra.mxu0 0
        %398 = vmatpush.bf16.xpose.msra.mxu0 0
        %399 = vmatpush.bf16.xpose.msra.mxu0 0
        %400 = vmatpush.bf16.xpose.msra.mxu0 0
        %401 = vmatpush.bf16.xpose.msra.mxu0 0
        %402 = vmatpush.bf16.xpose.msra.mxu0 0
        %403 = vmatpush.bf16.xpose.msra.mxu0 %v394
        %404 = vmatmul.bf16.gmra.mxu0 %v391
        %v405 = vpop.f32.mrf.mxu0
        %v406 = vadd.f32 0.0, %v405
        %v407 = vpop.f32.mrf.mxu0
        %408 = vdwg.mxu0
        %v410 = vsel %vm332, %v320, 0
        %v413 = vsel %vm332, %v328, 0
        %415 = vmatpush.bf16.xpose.msra.mxu0 0
        %416 = vmatpush.bf16.xpose.msra.mxu0 0
        %417 = vmatpush.bf16.xpose.msra.mxu0 0
        %418 = vmatpush.bf16.xpose.msra.mxu0 0
        %419 = vmatpush.bf16.xpose.msra.mxu0 0
        %420 = vmatpush.bf16.xpose.msra.mxu0 0
        %421 = vmatpush.bf16.xpose.msra.mxu0 0
        %422 = vmatpush.bf16.xpose.msra.mxu0 %v413
        %423 = vmatmul.bf16.gmra.mxu0 %v410
        %v424 = vpop.f32.mrf.mxu0
        %v425 = vadd.f32 0.0, %v424
        %v426 = vpop.f32.mrf.mxu0
        %427 = vdwg.mxu0
        %v429 = vsel %vm332, %v321, 0
        %v432 = vsel %vm332, %v329, 0
        %434 = vmatpush.bf16.xpose.msra.mxu0 0
        %435 = vmatpush.bf16.xpose.msra.mxu0 0
        %436 = vmatpush.bf16.xpose.msra.mxu0 0
        %437 = vmatpush.bf16.xpose.msra.mxu0 0
        %438 = vmatpush.bf16.xpose.msra.mxu0 0
        %439 = vmatpush.bf16.xpose.msra.mxu0 0
        %440 = vmatpush.bf16.xpose.msra.mxu0 0
        %441 = vmatpush.bf16.xpose.msra.mxu0 %v432
        %442 = vmatmul.bf16.gmra.mxu0 %v429
        %v443 = vpop.f32.mrf.mxu0
        %v444 = vadd.f32 0.0, %v443
        %v445 = vpop.f32.mrf.mxu0
        %446 = vdwg.mxu0
        %v448 = vsel %vm332, %v322, 0
        %v451 = vsel %vm332, %v330, 0
        %453 = vmatpush.bf16.xpose.msra.mxu0 0
        %454 = vmatpush.bf16.xpose.msra.mxu0 0
        %455 = vmatpush.bf16.xpose.msra.mxu0 0
        %456 = vmatpush.bf16.xpose.msra.mxu0 0
        %457 = vmatpush.bf16.xpose.msra.mxu0 0
        %458 = vmatpush.bf16.xpose.msra.mxu0 0
        %459 = vmatpush.bf16.xpose.msra.mxu0 0
        %460 = vmatpush.bf16.xpose.msra.mxu0 %v451
        %461 = vmatmul.bf16.gmra.mxu0 %v448
        %v462 = vpop.f32.mrf.mxu0
        %v463 = vadd.f32 0.0, %v462
        %v464 = vpop.f32.mrf.mxu0
        %465 = vdwg.mxu0
        %v467 = vsel %vm332, %v323, 0
        %v470 = vsel %vm332, %v331, 0
        %472 = vmatpush.bf16.xpose.msra.mxu0 0
        %473 = vmatpush.bf16.xpose.msra.mxu0 0
        %474 = vmatpush.bf16.xpose.msra.mxu0 0
        %475 = vmatpush.bf16.xpose.msra.mxu0 0
        %476 = vmatpush.bf16.xpose.msra.mxu0 0
        %477 = vmatpush.bf16.xpose.msra.mxu0 0
        %478 = vmatpush.bf16.xpose.msra.mxu0 0
        %479 = vmatpush.bf16.xpose.msra.mxu0 %v470
        %480 = vmatmul.bf16.gmra.mxu0 %v467
        %v481 = vpop.f32.mrf.mxu0
        %v482 = vadd.f32 0.0, %v481
        %v483 = vpop.f32.mrf.mxu0
        %484 = vdwg.mxu0
        %v485 = vlaneseq
        %v486 = vshrl.u32 %v485, 7
        %v487 = vstv %s310
        %v488 = vadd.s32 %v487, %v486
        %v489 = vlaneseq
        %v490 = vand.u32 %v489, 127
        %v491 = vstv %s309
        %v492 = vadd.s32 %v491, %v490
        %vm493 = vcmp.le.s32.totalorder %v492, %v488
        %v494 = vsel %vm493, 1, 0
        %vm495 = vcmp.eq.s32.totalorder %v494, 1
        %v496 = vsel %vm495, %v349, -1e+30
        %v497 = vsel %vm495, %v368, -1e+30
        %v498 = vsel %vm495, %v387, -1e+30
        %v499 = vsel %vm495, %v406, -1e+30
        %v500 = vsel %vm495, %v425, -1e+30
        %v501 = vsel %vm495, %v444, -1e+30
        %v502 = vsel %vm495, %v463, -1e+30
        %v503 = vsel %vm495, %v482, -1e+30
        %v504 = vld [vmem:[#allocation2] sm:$0xf]
        %v505 = vld [vmem:[#allocation2 + $0x4] sm:$0xf]
        %v506 = vld [vmem:[#allocation2 + $0x8] sm:$0xf]
        %v507 = vld [vmem:[#allocation2 + $0xc] sm:$0xf]
        %v508 = vld [vmem:[#allocation2 + $0x10] sm:$0xf]
        %v509 = vld [vmem:[#allocation2 + $0x14] sm:$0xf]
        %v510 = vld [vmem:[#allocation2 + $0x18] sm:$0xf]
        %v511 = vld [vmem:[#allocation2 + $0x1c] sm:$0xf]
        %vm512 = vcmask 27648
        %v513 = vsel %vm512, %v496, -inf
        %514 = vmax.xlane.f32.xlu0 %v513
        %v515 = vpop.xlane.xlu0 %514
        %v516 = vsel %vm512, %v497, -inf
        %517 = vmax.xlane.f32.xlu0 %v516
        %v518 = vpop.xlane.xlu0 %517
        %v519 = vsel %vm512, %v498, -inf
        %520 = vmax.xlane.f32.xlu0 %v519
        %v521 = vpop.xlane.xlu0 %520
        %v522 = vsel %vm512, %v499, -inf
        %523 = vmax.xlane.f32.xlu0 %v522
        %v524 = vpop.xlane.xlu0 %523
        %v525 = vsel %vm512, %v500, -inf
        %526 = vmax.xlane.f32.xlu0 %v525
        %v527 = vpop.xlane.xlu0 %526
        %v528 = vsel %vm512, %v501, -inf
        %529 = vmax.xlane.f32.xlu0 %v528
        %v530 = vpop.xlane.xlu0 %529
        %v531 = vsel %vm512, %v502, -inf
        %532 = vmax.xlane.f32.xlu0 %v531
        %v533 = vpop.xlane.xlu0 %532
        %v534 = vsel %vm512, %v503, -inf
        %535 = vmax.xlane.f32.xlu0 %v534
        %v536 = vpop.xlane.xlu0 %535
        %v537 = vmax.f32 %v504, %v515
        %v538 = vmax.f32 %v505, %v518
        %v539 = vmax.f32 %v506, %v521
        %v540 = vmax.f32 %v507, %v524
        %v541 = vmax.f32 %v508, %v527
        %v542 = vmax.f32 %v509, %v530
        %v543 = vmax.f32 %v510, %v533
        %v544 = vmax.f32 %v511, %v536
        %v545 = vsub.f32 %v504, %v537
        %v546 = vsub.f32 %v505, %v538
        %v547 = vsub.f32 %v506, %v539
        %v548 = vsub.f32 %v507, %v540
        %v549 = vsub.f32 %v508, %v541
        %v550 = vsub.f32 %v509, %v542
        %v551 = vsub.f32 %v510, %v543
        %v552 = vsub.f32 %v511, %v544
        %v553 = vmul.f32 %v545, 1.442695
        %v554 = vpow.pop %v553
        %v555 = vmul.f32 %v546, 1.442695
        %v556 = vpow.pop %v555
        %v557 = vmul.f32 %v547, 1.442695
        %v558 = vpow.pop %v557
        %v559 = vmul.f32 %v548, 1.442695
        %v560 = vpow.pop %v559
        %v561 = vmul.f32 %v549, 1.442695
        %v562 = vpow.pop %v561
        %v563 = vmul.f32 %v550, 1.442695
        %v564 = vpow.pop %v563
        %v565 = vmul.f32 %v551, 1.442695
        %v566 = vpow.pop %v565
        %v567 = vmul.f32 %v552, 1.442695
        %v568 = vpow.pop %v567
        %570 = vset.pattern.permute.xlu0 0
        %571 = vperm.xlu0 %570, %v537
        %v572 = vpop.permute.xlu0 %571
        %575 = vset.pattern.permute.xlu0 0
        %576 = vperm.xlu0 %575, %v538
        %v577 = vpop.permute.xlu0 %576
        %580 = vset.pattern.permute.xlu0 0
        %581 = vperm.xlu0 %580, %v539
        %v582 = vpop.permute.xlu0 %581
        %585 = vset.pattern.permute.xlu0 0
        %586 = vperm.xlu0 %585, %v540
        %v587 = vpop.permute.xlu0 %586
        %590 = vset.pattern.permute.xlu0 0
        %591 = vperm.xlu0 %590, %v541
        %v592 = vpop.permute.xlu0 %591
        %595 = vset.pattern.permute.xlu0 0
        %596 = vperm.xlu0 %595, %v542
        %v597 = vpop.permute.xlu0 %596
        %600 = vset.pattern.permute.xlu0 0
        %601 = vperm.xlu0 %600, %v543
        %v602 = vpop.permute.xlu0 %601
        %605 = vset.pattern.permute.xlu0 0
        %606 = vperm.xlu0 %605, %v544
        %v607 = vpop.permute.xlu0 %606
        %v609 = vsub.f32 %v496, %v572
        %v610 = vsub.f32 %v497, %v577
        %v611 = vsub.f32 %v498, %v582
        %v612 = vsub.f32 %v499, %v587
        %v613 = vsub.f32 %v500, %v592
        %v614 = vsub.f32 %v501, %v597
        %v615 = vsub.f32 %v502, %v602
        %v616 = vsub.f32 %v503, %v607
        %v617 = vmul.f32 %v609, 1.442695
        %v618 = vpow.pop %v617
        %v619 = vmul.f32 %v610, 1.442695
        %v620 = vpow.pop %v619
        %v621 = vmul.f32 %v611, 1.442695
        %v622 = vpow.pop %v621
        %v623 = vmul.f32 %v612, 1.442695
        %v624 = vpow.pop %v623
        %v625 = vmul.f32 %v613, 1.442695
        %v626 = vpow.pop %v625
        %v627 = vmul.f32 %v614, 1.442695
        %v628 = vpow.pop %v627
        %v629 = vmul.f32 %v615, 1.442695
        %v630 = vpow.pop %v629
        %v631 = vmul.f32 %v616, 1.442695
        %v632 = vpow.pop %v631
        %v633 = vld [vmem:[#allocation3] sm:$0xf]
        %v634 = vld [vmem:[#allocation3 + $0x4] sm:$0xf]
        %v635 = vld [vmem:[#allocation3 + $0x8] sm:$0xf]
        %v636 = vld [vmem:[#allocation3 + $0xc] sm:$0xf]
        %v637 = vld [vmem:[#allocation3 + $0x10] sm:$0xf]
        %v638 = vld [vmem:[#allocation3 + $0x14] sm:$0xf]
        %v639 = vld [vmem:[#allocation3 + $0x18] sm:$0xf]
        %v640 = vld [vmem:[#allocation3 + $0x1c] sm:$0xf]
        %v641 = vmul.f32 %v554, %v633
        %v642 = vmul.f32 %v556, %v634
        %v643 = vmul.f32 %v558, %v635
        %v644 = vmul.f32 %v560, %v636
        %v645 = vmul.f32 %v562, %v637
        %v646 = vmul.f32 %v564, %v638
        %v647 = vmul.f32 %v566, %v639
        %v648 = vmul.f32 %v568, %v640
        %v649 = vsel %vm512, %v618, 0.0
        %650 = vadd.xlane.f32.xlu0 %v649
        %v651 = vpop.xlane.xlu0 %650
        %v652 = vsel %vm512, %v620, 0.0
        %653 = vadd.xlane.f32.xlu0 %v652
        %v654 = vpop.xlane.xlu0 %653
        %v655 = vsel %vm512, %v622, 0.0
        %656 = vadd.xlane.f32.xlu0 %v655
        %v657 = vpop.xlane.xlu0 %656
        %v658 = vsel %vm512, %v624, 0.0
        %659 = vadd.xlane.f32.xlu0 %v658
        %v660 = vpop.xlane.xlu0 %659
        %v661 = vsel %vm512, %v626, 0.0
        %662 = vadd.xlane.f32.xlu0 %v661
        %v663 = vpop.xlane.xlu0 %662
        %v664 = vsel %vm512, %v628, 0.0
        %665 = vadd.xlane.f32.xlu0 %v664
        %v666 = vpop.xlane.xlu0 %665
        %v667 = vsel %vm512, %v630, 0.0
        %668 = vadd.xlane.f32.xlu0 %v667
        %v669 = vpop.xlane.xlu0 %668
        %v670 = vsel %vm512, %v632, 0.0
        %671 = vadd.xlane.f32.xlu0 %v670
        %v672 = vpop.xlane.xlu0 %671
        %v673 = vadd.f32 %v641, %v651
        %v674 = vadd.f32 %v642, %v654
        %v675 = vadd.f32 %v643, %v657
        %v676 = vadd.f32 %v644, %v660
        %v677 = vadd.f32 %v645, %v663
        %v678 = vadd.f32 %v646, %v666
        %v679 = vadd.f32 %v647, %v669
        %v680 = vadd.f32 %v648, %v672
        %vm681 = vcmask 3072
        %682 = vst.msk [vmem:[#allocation3] sm:$0xf] %vm681, %v673
        %683 = vst.msk [vmem:[#allocation3 + $0x4] sm:$0xf] %vm681, %v674
        %684 = vst.msk [vmem:[#allocation3 + $0x8] sm:$0xf] %vm681, %v675
        %685 = vst.msk [vmem:[#allocation3 + $0xc] sm:$0xf] %vm681, %v676
        %686 = vst.msk [vmem:[#allocation3 + $0x10] sm:$0xf] %vm681, %v677
        %687 = vst.msk [vmem:[#allocation3 + $0x14] sm:$0xf] %vm681, %v678
        %688 = vst.msk [vmem:[#allocation3 + $0x18] sm:$0xf] %vm681, %v679
        %689 = vst.msk [vmem:[#allocation3 + $0x1c] sm:$0xf] %vm681, %v680
        %v690 = vld [vmem:[#allocation4] sm:$0xf]
        %v691 = vld [vmem:[#allocation4 + $0x4] sm:$0xf]
        %v692 = vld [vmem:[#allocation4 + $0x8] sm:$0xf]
        %v693 = vld [vmem:[#allocation4 + $0xc] sm:$0xf]
        %v694 = vld [vmem:[#allocation4 + $0x10] sm:$0xf]
        %v695 = vld [vmem:[#allocation4 + $0x14] sm:$0xf]
        %v696 = vld [vmem:[#allocation4 + $0x18] sm:$0xf]
        %v697 = vld [vmem:[#allocation4 + $0x1c] sm:$0xf]
        %699 = vset.pattern.permute.xlu0 0
        %700 = vperm.xlu0 %699, %v554
        %v701 = vpop.permute.xlu0 %700
        %704 = vset.pattern.permute.xlu0 0
        %705 = vperm.xlu0 %704, %v556
        %v706 = vpop.permute.xlu0 %705
        %709 = vset.pattern.permute.xlu0 0
        %710 = vperm.xlu0 %709, %v558
        %v711 = vpop.permute.xlu0 %710
        %714 = vset.pattern.permute.xlu0 0
        %715 = vperm.xlu0 %714, %v560
        %v716 = vpop.permute.xlu0 %715
        %719 = vset.pattern.permute.xlu0 0
        %720 = vperm.xlu0 %719, %v562
        %v721 = vpop.permute.xlu0 %720
        %724 = vset.pattern.permute.xlu0 0
        %725 = vperm.xlu0 %724, %v564
        %v726 = vpop.permute.xlu0 %725
        %729 = vset.pattern.permute.xlu0 0
        %730 = vperm.xlu0 %729, %v566
        %v731 = vpop.permute.xlu0 %730
        %734 = vset.pattern.permute.xlu0 0
        %735 = vperm.xlu0 %734, %v568
        %v736 = vpop.permute.xlu0 %735
        %v738 = vmul.f32 %v701, %v690
        %v739 = vmul.f32 %v706, %v691
        %v740 = vmul.f32 %v711, %v692
        %v741 = vmul.f32 %v716, %v693
        %v742 = vmul.f32 %v721, %v694
        %v743 = vmul.f32 %v726, %v695
        %v744 = vmul.f32 %v731, %v696
        %v745 = vmul.f32 %v736, %v697
        %v746 = vpack.c.bf16 %v618, %v618
        %v747 = vpack.c.bf16 %v620, %v620
        %v748 = vpack.c.bf16 %v622, %v622
        %v749 = vpack.c.bf16 %v624, %v624
        %v750 = vpack.c.bf16 %v626, %v626
        %v751 = vpack.c.bf16 %v628, %v628
        %v752 = vpack.c.bf16 %v630, %v630
        %v753 = vpack.c.bf16 %v632, %v632
        %v754 = vld [vmem:[%s267] sm:$0x3]
        %v755 = vld [vmem:[%s267 + $0x2] sm:$0x3]
        %v756 = vld [vmem:[%s267 + $0x4] sm:$0x3]
        %v757 = vld [vmem:[%s267 + $0x6] sm:$0x3]
        %v758 = vld [vmem:[%s267 + $0x8] sm:$0x3]
        %v759 = vld [vmem:[%s267 + $0xa] sm:$0x3]
        %v760 = vld [vmem:[%s267 + $0xc] sm:$0x3]
        %v761 = vld [vmem:[%s267 + $0xe] sm:$0x3]
        %vm762 = vcmask 31744
        %v764 = vsel %vm762, %v746, 0
        %vm766 = vcmask 1041408
        %v768 = vsel %vm766, %v754, 0
        %770 = vmatpush.bf16.msra.mxu0 0
        %771 = vmatpush.bf16.msra.mxu0 0
        %772 = vmatpush.bf16.msra.mxu0 0
        %773 = vmatpush.bf16.msra.mxu0 0
        %774 = vmatpush.bf16.msra.mxu0 0
        %775 = vmatpush.bf16.msra.mxu0 0
        %776 = vmatpush.bf16.msra.mxu0 0
        %777 = vmatpush.bf16.msra.mxu0 %v768
        %778 = vmatmul.bf16.gmra.mxu0 %v764
        %v779 = vpop.f32.mrf.mxu0
        %v780 = vadd.f32 0.0, %v779
        %v781 = vpop.f32.mrf.mxu0
        %782 = vdwg.mxu0
        %v784 = vsel %vm762, %v747, 0
        %v787 = vsel %vm766, %v755, 0
        %789 = vmatpush.bf16.msra.mxu0 0
        %790 = vmatpush.bf16.msra.mxu0 0
        %791 = vmatpush.bf16.msra.mxu0 0
        %792 = vmatpush.bf16.msra.mxu0 0
        %793 = vmatpush.bf16.msra.mxu0 0
        %794 = vmatpush.bf16.msra.mxu0 0
        %795 = vmatpush.bf16.msra.mxu0 0
        %796 = vmatpush.bf16.msra.mxu0 %v787
        %797 = vmatmul.bf16.gmra.mxu0 %v784
        %v798 = vpop.f32.mrf.mxu0
        %v799 = vadd.f32 0.0, %v798
        %v800 = vpop.f32.mrf.mxu0
        %801 = vdwg.mxu0
        %v803 = vsel %vm762, %v748, 0
        %v806 = vsel %vm766, %v756, 0
        %808 = vmatpush.bf16.msra.mxu0 0
        %809 = vmatpush.bf16.msra.mxu0 0
        %810 = vmatpush.bf16.msra.mxu0 0
        %811 = vmatpush.bf16.msra.mxu0 0
        %812 = vmatpush.bf16.msra.mxu0 0
        %813 = vmatpush.bf16.msra.mxu0 0
        %814 = vmatpush.bf16.msra.mxu0 0
        %815 = vmatpush.bf16.msra.mxu0 %v806
        %816 = vmatmul.bf16.gmra.mxu0 %v803
        %v817 = vpop.f32.mrf.mxu0
        %v818 = vadd.f32 0.0, %v817
        %v819 = vpop.f32.mrf.mxu0
        %820 = vdwg.mxu0
        %v822 = vsel %vm762, %v749, 0
        %v825 = vsel %vm766, %v757, 0
        %827 = vmatpush.bf16.msra.mxu0 0
        %828 = vmatpush.bf16.msra.mxu0 0
        %829 = vmatpush.bf16.msra.mxu0 0
        %830 = vmatpush.bf16.msra.mxu0 0
        %831 = vmatpush.bf16.msra.mxu0 0
        %832 = vmatpush.bf16.msra.mxu0 0
        %833 = vmatpush.bf16.msra.mxu0 0
        %834 = vmatpush.bf16.msra.mxu0 %v825
        %835 = vmatmul.bf16.gmra.mxu0 %v822
        %v836 = vpop.f32.mrf.mxu0
        %v837 = vadd.f32 0.0, %v836
        %v838 = vpop.f32.mrf.mxu0
        %839 = vdwg.mxu0
        %v841 = vsel %vm762, %v750, 0
        %v844 = vsel %vm766, %v758, 0
        %846 = vmatpush.bf16.msra.mxu0 0
        %847 = vmatpush.bf16.msra.mxu0 0
        %848 = vmatpush.bf16.msra.mxu0 0
        %849 = vmatpush.bf16.msra.mxu0 0
        %850 = vmatpush.bf16.msra.mxu0 0
        %851 = vmatpush.bf16.msra.mxu0 0
        %852 = vmatpush.bf16.msra.mxu0 0
        %853 = vmatpush.bf16.msra.mxu0 %v844
        %854 = vmatmul.bf16.gmra.mxu0 %v841
        %v855 = vpop.f32.mrf.mxu0
        %v856 = vadd.f32 0.0, %v855
        %v857 = vpop.f32.mrf.mxu0
        %858 = vdwg.mxu0
        %v860 = vsel %vm762, %v751, 0
        %v863 = vsel %vm766, %v759, 0
        %865 = vmatpush.bf16.msra.mxu0 0
        %866 = vmatpush.bf16.msra.mxu0 0
        %867 = vmatpush.bf16.msra.mxu0 0
        %868 = vmatpush.bf16.msra.mxu0 0
        %869 = vmatpush.bf16.msra.mxu0 0
        %870 = vmatpush.bf16.msra.mxu0 0
        %871 = vmatpush.bf16.msra.mxu0 0
        %872 = vmatpush.bf16.msra.mxu0 %v863
        %873 = vmatmul.bf16.gmra.mxu0 %v860
        %v874 = vpop.f32.mrf.mxu0
        %v875 = vadd.f32 0.0, %v874
        %v876 = vpop.f32.mrf.mxu0
        %877 = vdwg.mxu0
        %v879 = vsel %vm762, %v752, 0
        %v882 = vsel %vm766, %v760, 0
        %884 = vmatpush.bf16.msra.mxu0 0
        %885 = vmatpush.bf16.msra.mxu0 0
        %886 = vmatpush.bf16.msra.mxu0 0
        %887 = vmatpush.bf16.msra.mxu0 0
        %888 = vmatpush.bf16.msra.mxu0 0
        %889 = vmatpush.bf16.msra.mxu0 0
        %890 = vmatpush.bf16.msra.mxu0 0
        %891 = vmatpush.bf16.msra.mxu0 %v882
        %892 = vmatmul.bf16.gmra.mxu0 %v879
        %v893 = vpop.f32.mrf.mxu0
        %v894 = vadd.f32 0.0, %v893
        %v895 = vpop.f32.mrf.mxu0
        %896 = vdwg.mxu0
        %v898 = vsel %vm762, %v753, 0
        %v901 = vsel %vm766, %v761, 0
        %903 = vmatpush.bf16.msra.mxu0 0
        %904 = vmatpush.bf16.msra.mxu0 0
        %905 = vmatpush.bf16.msra.mxu0 0
        %906 = vmatpush.bf16.msra.mxu0 0
        %907 = vmatpush.bf16.msra.mxu0 0
        %908 = vmatpush.bf16.msra.mxu0 0
        %909 = vmatpush.bf16.msra.mxu0 0
        %910 = vmatpush.bf16.msra.mxu0 %v901
        %911 = vmatmul.bf16.gmra.mxu0 %v898
        %v912 = vpop.f32.mrf.mxu0
        %v913 = vadd.f32 0.0, %v912
        %v914 = vpop.f32.mrf.mxu0
        %915 = vdwg.mxu0
        %v916 = vadd.f32 %v738, %v780
        %v917 = vadd.f32 %v739, %v799
        %v918 = vadd.f32 %v740, %v818
        %v919 = vadd.f32 %v741, %v837
        %v920 = vadd.f32 %v742, %v856
        %v921 = vadd.f32 %v743, %v875
        %v922 = vadd.f32 %v744, %v894
        %v923 = vadd.f32 %v745, %v913
        %vm924 = vcmask 60416
        %925 = vst.msk [vmem:[#allocation4] sm:$0xf] %vm924, %v916
        %926 = vst.msk [vmem:[#allocation4 + $0x4] sm:$0xf] %vm924, %v917
        %927 = vst.msk [vmem:[#allocation4 + $0x8] sm:$0xf] %vm924, %v918
        %928 = vst.msk [vmem:[#allocation4 + $0xc] sm:$0xf] %vm924, %v919
        %929 = vst.msk [vmem:[#allocation4 + $0x10] sm:$0xf] %vm924, %v920
        %930 = vst.msk [vmem:[#allocation4 + $0x14] sm:$0xf] %vm924, %v921
        %931 = vst.msk [vmem:[#allocation4 + $0x18] sm:$0xf] %vm924, %v922
        %932 = vst.msk [vmem:[#allocation4 + $0x1c] sm:$0xf] %vm924, %v923
        %933 = vst.msk [vmem:[#allocation2] sm:$0xf] %vm681, %v537
        %934 = vst.msk [vmem:[#allocation2 + $0x4] sm:$0xf] %vm681, %v538
        %935 = vst.msk [vmem:[#allocation2 + $0x8] sm:$0xf] %vm681, %v539
        %936 = vst.msk [vmem:[#allocation2 + $0xc] sm:$0xf] %vm681, %v540
        %937 = vst.msk [vmem:[#allocation2 + $0x10] sm:$0xf] %vm681, %v541
        %938 = vst.msk [vmem:[#allocation2 + $0x14] sm:$0xf] %vm681, %v542
        %939 = vst.msk [vmem:[#allocation2 + $0x18] sm:$0xf] %vm681, %v543
        %940 = vst.msk [vmem:[#allocation2 + $0x1c] sm:$0xf] %vm681, %v544
      $region40: #{longnet_ts_forward.40} parent=31 // pred_fallthru
        _
      // Predicated region
      $region41: #{longnet_ts_forward.40} parent=31 // pred_check
        %p941 = pneg %p279
      $region42: #{longnet_ts_forward.40} parent=31 // pred_check_branch
        %943 = sbr.rel (%p941) target = $region44
      $region43: #{longnet_ts_forward.40} parent=31 // pred_region
        %v944 = vld [vmem:[#allocation4] sm:$0xf]
        %v945 = vld [vmem:[#allocation4 + $0x4] sm:$0xf]
        %v946 = vld [vmem:[#allocation4 + $0x8] sm:$0xf]
        %v947 = vld [vmem:[#allocation4 + $0xc] sm:$0xf]
        %v948 = vld [vmem:[#allocation4 + $0x10] sm:$0xf]
        %v949 = vld [vmem:[#allocation4 + $0x14] sm:$0xf]
        %v950 = vld [vmem:[#allocation4 + $0x18] sm:$0xf]
        %v951 = vld [vmem:[#allocation4 + $0x1c] sm:$0xf]
        %v952 = vld [vmem:[#allocation3] sm:$0xf]
        %v953 = vld [vmem:[#allocation3 + $0x4] sm:$0xf]
        %v954 = vld [vmem:[#allocation3 + $0x8] sm:$0xf]
        %v955 = vld [vmem:[#allocation3 + $0xc] sm:$0xf]
        %v956 = vld [vmem:[#allocation3 + $0x10] sm:$0xf]
        %v957 = vld [vmem:[#allocation3 + $0x14] sm:$0xf]
        %v958 = vld [vmem:[#allocation3 + $0x18] sm:$0xf]
        %v959 = vld [vmem:[#allocation3 + $0x1c] sm:$0xf]
        %v960 = vrcp.pop %v952
        %v961 = vrcp.pop %v953
        %v962 = vrcp.pop %v954
        %v963 = vrcp.pop %v955
        %v964 = vrcp.pop %v956
        %v965 = vrcp.pop %v957
        %v966 = vrcp.pop %v958
        %v967 = vrcp.pop %v959
        %969 = vset.pattern.permute.xlu0 0
        %970 = vperm.xlu0 %969, %v960
        %v971 = vpop.permute.xlu0 %970
        %974 = vset.pattern.permute.xlu0 0
        %975 = vperm.xlu0 %974, %v961
        %v976 = vpop.permute.xlu0 %975
        %979 = vset.pattern.permute.xlu0 0
        %980 = vperm.xlu0 %979, %v962
        %v981 = vpop.permute.xlu0 %980
        %984 = vset.pattern.permute.xlu0 0
        %985 = vperm.xlu0 %984, %v963
        %v986 = vpop.permute.xlu0 %985
        %989 = vset.pattern.permute.xlu0 0
        %990 = vperm.xlu0 %989, %v964
        %v991 = vpop.permute.xlu0 %990
        %994 = vset.pattern.permute.xlu0 0
        %995 = vperm.xlu0 %994, %v965
        %v996 = vpop.permute.xlu0 %995
        %999 = vset.pattern.permute.xlu0 0
        %1000 = vperm.xlu0 %999, %v966
        %v1001 = vpop.permute.xlu0 %1000
        %1004 = vset.pattern.permute.xlu0 0
        %1005 = vperm.xlu0 %1004, %v967
        %v1006 = vpop.permute.xlu0 %1005
        %v1008 = vmul.f32 %v944, %v971
        %v1009 = vmul.f32 %v945, %v976
        %v1010 = vmul.f32 %v946, %v981
        %v1011 = vmul.f32 %v947, %v986
        %v1012 = vmul.f32 %v948, %v991
        %v1013 = vmul.f32 %v949, %v996
        %v1014 = vmul.f32 %v950, %v1001
        %v1015 = vmul.f32 %v951, %v1006
        %v1016 = vpack.c.bf16 %v1008, %v1008
        %v1017 = vpack.c.bf16 %v1009, %v1009
        %v1018 = vpack.c.bf16 %v1010, %v1010
        %v1019 = vpack.c.bf16 %v1011, %v1011
        %v1020 = vpack.c.bf16 %v1012, %v1012
        %v1021 = vpack.c.bf16 %v1013, %v1013
        %v1022 = vpack.c.bf16 %v1014, %v1014
        %v1023 = vpack.c.bf16 %v1015, %v1015
        %vm1024 = vcmask 58368
        %1025 = vst.msk [vmem:[%s276] sm:$0x3] %vm1024, %v1016
        %1026 = vst.msk [vmem:[%s276 + $0x2] sm:$0x3] %vm1024, %v1017
        %1027 = vst.msk [vmem:[%s276 + $0x4] sm:$0x3] %vm1024, %v1018
        %1028 = vst.msk [vmem:[%s276 + $0x6] sm:$0x3] %vm1024, %v1019
        %1029 = vst.msk [vmem:[%s276 + $0x8] sm:$0x3] %vm1024, %v1020
        %1030 = vst.msk [vmem:[%s276 + $0xa] sm:$0x3] %vm1024, %v1021
        %1031 = vst.msk [vmem:[%s276 + $0xc] sm:$0x3] %vm1024, %v1022
        %1032 = vst.msk [vmem:[%s276 + $0xe] sm:$0x3] %vm1024, %v1023
      $region44: #{longnet_ts_forward.40} parent=31 // pred_fallthru
        _
      %s1033 = smul.u32 8, %s19
      %p1034 = scmp.lt.s32.totalorder %s1033, 15
      %s1035 = scalar_select %p1034, %s1033, 15
      %p1036 = scmp.lt.s32.totalorder %s20, 0
      %s1037 = scalar_select %p1036, %s20, 0
      %s1038 = sadd.s32 %s1037, %s1035
      %s1039 = smul.addr %s1038, 2
      %s1040 = scalar_lea.vmem %s3, %s1039
      // Predicated region
      $region45: #{longnet_ts_forward.40} parent=31 // pred_check
        %p1041 = pneg %p137
      $region46: #{longnet_ts_forward.40} parent=31 // pred_check_branch
        %1043 = sbr.rel (%p1041) target = $region48
      $region47: #{longnet_ts_forward.40} parent=31 // pred_region
        %s1044 = smul.u32 8, %s19
      $region48: #{longnet_ts_forward.40} parent=31 // pred_fallthru
        _
    $region32: #{longnet_ts_forward.40} parent=5 // pred_fallthru
      _
    %p1045 = scmp.le.s32.totalorder 2, %s9
    // Predicated region
    $region49: #{longnet_ts_forward.40} parent=5 // pred_check
      %p1046 = pneg %p1045
    $region50: #{longnet_ts_forward.40} parent=5 // pred_check_branch
      %1048 = sbr.rel (%p1046) target = $region52
    $region51: #{longnet_ts_forward.40} parent=5 // pred_region
      %s1049 = ssub.s32 %s9, 2
      // Predicated region
      $region53: #{longnet_ts_forward.40} parent=51 // pred_check
        %p1050 = pneg %p143
      $region54: #{longnet_ts_forward.40} parent=51 // pred_check_branch
        %1052 = sbr.rel (%p1050) target = $region56
      $region55: #{longnet_ts_forward.40} parent=51 // pred_region
        %s1053 = smul.u32 8, %s22
        %p1054 = scmp.lt.s32.totalorder %s1053, 15
        %s1055 = scalar_select %p1054, %s1053, 15
        %p1056 = scmp.lt.s32.totalorder %s23, 0
        %s1057 = scalar_select %p1056, %s23, 0
        %s1058 = sadd.s32 %s1057, %s1055
        %s1059 = smul.addr %s1058, 2
        %s1060 = scalar_lea.vmem %s3, %s1059
      $region56: #{longnet_ts_forward.40} parent=51 // pred_fallthru
        _
    $region52: #{longnet_ts_forward.40} parent=5 // pred_fallthru
      _
  $region6: #{longnet_ts_forward.40} parent=0 // loop_footer
    %s13 = sadd.s32 1, %s9
  $region7: #{longnet_ts_forward.40} parent=0 // loop_footer_branch
    %8 = sbr.rel target = $region3
  $region8: #{longnet_ts_forward.40} parent=0 // loop_exit
    _

// kernel: longnet_ts_forward.56
$region0: #{longnet_ts_forward.56}
  #allocation0 [shape = 'u32[]', space=smem, size = 0x4, offset = 0x4, fixed_abs, tag = 'smem constant byte address 0x4 - core index']
  #allocation1 [shape = 'u32[72,128]{1,0:T(1,128)}', space=vmem, size = 0x9000, scoped, tag = 'internal scratch']
  %s0 = inlined_call_operand.vmem [shape: f32[32,32], index: 0, kind: input, shape index: {}]
  %s1 = inlined_call_operand.vmem [shape: f32[1,32], index: 1, kind: input, shape index: {}]
  %s2 = inlined_call_operand.vmem [shape: f32[1,32], index: 2, kind: input, shape index: {}]
  %s3 = inlined_call_operand.vmem [shape: bf16[32,64], index: 3, kind: input, shape index: {}]
  %s4 = inlined_call_operand.vmem [shape: f32[1,64], index: 4, kind: input, shape index: {}]
  %s5 = inlined_call_operand.vmem [shape: bf16[32,64], index: 5, kind: output, shape index: {}]
  %s6 = sld [smem:[#allocation0]]
  $region53: #{longnet_ts_forward.56} parent=0
    _
  %s8 = ssub.s32 1, %s6
  %s9 = scalar_select 0, %s8, %s6
  loop: start=0, step=1, limit=4
  $region2: #{longnet_ts_forward.56} parent=0 // loop_pre_header
    _
  $region3: #{longnet_ts_forward.56} parent=0 // loop_header
    %s11 = sphi 0, %s15
    %p12 = scmp.ge.s32.totalorder %s11, 4
    %s18 = sphi 0, %s30
    %s19 = sphi 0, %s26
    %s20 = sphi 0, %s18
    %s21 = sphi 0, %s19
    %s22 = sphi 0, %s20
    %s23 = sphi 0, %s21
    %s33 = sphi 0, %s35
    %s36 = sphi 0, %s33
    %s37 = sphi 0, %s36
    %s53 = sphi 0, %s37
    %s57 = sphi 0, %s57
    %s59 = sphi 0, %s57
    %s60 = sphi 0, %s59
    %s74 = sphi 0, %s60
    %s78 = sphi 0, %s78
    %s80 = sphi 0, %s78
    %s81 = sphi 0, %s80
    %s95 = sphi 0, %s81
    %s101 = sphi 0, %s103
    %s104 = sphi 0, %s101
    %s105 = sphi 0, %s104
    %s121 = sphi 0, %s105
    %s127 = sphi 0, %s129
    %s130 = sphi 0, %s127
    %s131 = sphi 0, %s130
    %s147 = sphi 0, %s131
    %s155 = sphi 0, %s157
    %s158 = sphi 0, %s155
    %s159 = sphi 0, %s158
    %s175 = sphi 0, %s159
  $region4: #{longnet_ts_forward.56} parent=0 // loop_header_branch
    %14 = sbr.rel (%p12) target = $region8
  $region5: #{longnet_ts_forward.56} parent=0 // loop_body
    %s16 = ssub.s32 %s11, 1
    %s17 = ssub.s32 %s11, 2
    %s24 = sadd.s32 1, %s19
    %p25 = scmp.ge.s32.totalorder %s24, 1
    %s26 = scalar_select %p25, 0, %s24
    %s27 = sadd.s32 1, %s18
    %s28 = scalar_select %p25, %s27, %s18
    %p29 = scmp.ge.s32.totalorder %s28, 2
    %s30 = scalar_select %p29, 0, %s28
    %s31 = ssub.s32 %s18, %s30
    %p32 = scmp.eq.s32.totalorder %s31, 0
    %s34 = sadd.s32 %s33, 1
    %s35 = scalar_select %p32, %s33, %s34
    %p38 = pneg %p32
    %p39 = scmp.eq.s32.totalorder %s11, 1
    %p40 = por %p38, %p39
    %p41 = scmp.ne.s32.totalorder %s33, %s36
    %p42 = scmp.eq.s32.totalorder %s11, 0
    %p43 = por %p41, %p42
    %p44 = scmp.ne.s32.totalorder %s33, %s36
    %p45 = scmp.eq.s32.totalorder %s16, 1
    %p46 = por %p44, %p45
    %p47 = scmp.ne.s32.totalorder %s36, %s37
    %p48 = scmp.eq.s32.totalorder %s16, 0
    %p49 = por %p47, %p48
    %p50 = scmp.ne.s32.totalorder %s36, %s37
    %p51 = scmp.eq.s32.totalorder %s17, 1
    %p52 = por %p50, %p51
    %p54 = scmp.ne.s32.totalorder %s37, %s53
    %p55 = scmp.eq.s32.totalorder %s17, 0
    %p56 = por %p54, %p55
    %s58 = sadd.s32 %s57, 1
    %p61 = scmp.eq.s32.totalorder %s11, 1
    %p62 = scmp.ne.s32.totalorder %s57, %s59
    %p63 = scmp.eq.s32.totalorder %s11, 0
    %p64 = por %p62, %p63
    %p65 = scmp.ne.s32.totalorder %s57, %s59
    %p66 = scmp.eq.s32.totalorder %s16, 1
    %p67 = por %p65, %p66
    %p68 = scmp.ne.s32.totalorder %s59, %s60
    %p69 = scmp.eq.s32.totalorder %s16, 0
    %p70 = por %p68, %p69
    %p71 = scmp.ne.s32.totalorder %s59, %s60
    %p72 = scmp.eq.s32.totalorder %s17, 1
    %p73 = por %p71, %p72
    %p75 = scmp.ne.s32.totalorder %s60, %s74
    %p76 = scmp.eq.s32.totalorder %s17, 0
    %p77 = por %p75, %p76
    %s79 = sadd.s32 %s78, 1
    %p82 = scmp.eq.s32.totalorder %s11, 1
    %p83 = scmp.ne.s32.totalorder %s78, %s80
    %p84 = scmp.eq.s32.totalorder %s11, 0
    %p85 = por %p83, %p84
    %p86 = scmp.ne.s32.totalorder %s78, %s80
    %p87 = scmp.eq.s32.totalorder %s16, 1
    %p88 = por %p86, %p87
    %p89 = scmp.ne.s32.totalorder %s80, %s81
    %p90 = scmp.eq.s32.totalorder %s16, 0
    %p91 = por %p89, %p90
    %p92 = scmp.ne.s32.totalorder %s80, %s81
    %p93 = scmp.eq.s32.totalorder %s17, 1
    %p94 = por %p92, %p93
    %p96 = scmp.ne.s32.totalorder %s81, %s95
    %p97 = scmp.eq.s32.totalorder %s17, 0
    %p98 = por %p96, %p97
    %s99 = ssub.s32 %s19, %s26
    %p100 = scmp.eq.s32.totalorder %s99, 0
    %s102 = sadd.s32 %s101, 1
    %s103 = scalar_select %p100, %s101, %s102
    %p106 = pneg %p100
    %p107 = scmp.eq.s32.totalorder %s11, 1
    %p108 = por %p106, %p107
    %p109 = scmp.ne.s32.totalorder %s101, %s104
    %p110 = scmp.eq.s32.totalorder %s11, 0
    %p111 = por %p109, %p110
    %p112 = scmp.ne.s32.totalorder %s101, %s104
    %p113 = scmp.eq.s32.totalorder %s16, 1
    %p114 = por %p112, %p113
    %p115 = scmp.ne.s32.totalorder %s104, %s105
    %p116 = scmp.eq.s32.totalorder %s16, 0
    %p117 = por %p115, %p116
    %p118 = scmp.ne.s32.totalorder %s104, %s105
    %p119 = scmp.eq.s32.totalorder %s17, 1
    %p120 = por %p118, %p119
    %p122 = scmp.ne.s32.totalorder %s105, %s121
    %p123 = scmp.eq.s32.totalorder %s17, 0
    %p124 = por %p122, %p123
    %s125 = ssub.s32 %s19, %s26
    %p126 = scmp.eq.s32.totalorder %s125, 0
    %s128 = sadd.s32 %s127, 1
    %s129 = scalar_select %p126, %s127, %s128
    %p132 = pneg %p126
    %p133 = scmp.eq.s32.totalorder %s11, 1
    %p134 = por %p132, %p133
    %p135 = scmp.ne.s32.totalorder %s127, %s130
    %p136 = scmp.eq.s32.totalorder %s11, 0
    %p137 = por %p135, %p136
    %p138 = scmp.ne.s32.totalorder %s127, %s130
    %p139 = scmp.eq.s32.totalorder %s16, 1
    %p140 = por %p138, %p139
    %p141 = scmp.ne.s32.totalorder %s130, %s131
    %p142 = scmp.eq.s32.totalorder %s16, 0
    %p143 = por %p141, %p142
    %p144 = scmp.ne.s32.totalorder %s130, %s131
    %p145 = scmp.eq.s32.totalorder %s17, 1
    %p146 = por %p144, %p145
    %p148 = scmp.ne.s32.totalorder %s131, %s147
    %p149 = scmp.eq.s32.totalorder %s17, 0
    %p150 = por %p148, %p149
    %s151 = ssub.s32 %s18, %s30
    %s152 = ssub.s32 %s19, %s26
    %s153 = sor.u32 %s151, %s152
    %p154 = scmp.eq.s32.totalorder %s153, 0
    %s156 = sadd.s32 %s155, 1
    %s157 = scalar_select %p154, %s155, %s156
    %p160 = pneg %p154
    %p161 = scmp.eq.s32.totalorder %s11, 1
    %p162 = por %p160, %p161
    %p163 = scmp.ne.s32.totalorder %s155, %s158
    %p164 = scmp.eq.s32.totalorder %s11, 0
    %p165 = por %p163, %p164
    %p166 = scmp.ne.s32.totalorder %s155, %s158
    %p167 = scmp.eq.s32.totalorder %s16, 1
    %p168 = por %p166, %p167
    %p169 = scmp.ne.s32.totalorder %s158, %s159
    %p170 = scmp.eq.s32.totalorder %s16, 0
    %p171 = por %p169, %p170
    %p172 = scmp.ne.s32.totalorder %s158, %s159
    %p173 = scmp.eq.s32.totalorder %s17, 1
    %p174 = por %p172, %p173
    %p176 = scmp.ne.s32.totalorder %s159, %s175
    %p177 = scmp.eq.s32.totalorder %s17, 0
    %p178 = por %p176, %p177
    %p179 = scmp.le.s32.totalorder 1, %s11
    %p180 = scmp.lt.s32.totalorder %s11, 3
    %p181 = pnand %p179, %p180
    %p182 = pneg %p181
    // Predicated region
    $region9: #{longnet_ts_forward.56} parent=5 // pred_check
      _
    $region10: #{longnet_ts_forward.56} parent=5 // pred_check_branch
      %184 = sbr.rel (%p181) target = $region12
    $region11: #{longnet_ts_forward.56} parent=5 // pred_region
      %s185 = ssub.s32 %s11, 1
      // Predicated region
      $region13: #{longnet_ts_forward.56} parent=11 // pred_check
        %p186 = pneg %p70
      $region14: #{longnet_ts_forward.56} parent=11 // pred_check_branch
        %188 = sbr.rel (%p186) target = $region16
      $region15: #{longnet_ts_forward.56} parent=11 // pred_region
        _
      $region16: #{longnet_ts_forward.56} parent=11 // pred_fallthru
        _
      // Predicated region
      $region17: #{longnet_ts_forward.56} parent=11 // pred_check
        %p189 = pneg %p91
      $region18: #{longnet_ts_forward.56} parent=11 // pred_check_branch
        %191 = sbr.rel (%p189) target = $region20
      $region19: #{longnet_ts_forward.56} parent=11 // pred_region
        _
      $region20: #{longnet_ts_forward.56} parent=11 // pred_fallthru
        _
      // Predicated region
      $region21: #{longnet_ts_forward.56} parent=11 // pred_check
        %p192 = pneg %p117
      $region22: #{longnet_ts_forward.56} parent=11 // pred_check_branch
        %194 = sbr.rel (%p192) target = $region24
      $region23: #{longnet_ts_forward.56} parent=11 // pred_region
        %p195 = scmp.lt.s32.totalorder %s21, 0
        %s196 = scalar_select %p195, %s21, 0
        %s197 = smul.addr %s196, 4
        %s198 = scalar_lea.vmem %s3, %s197
      $region24: #{longnet_ts_forward.56} parent=11 // pred_fallthru
        _
      // Predicated region
      $region25: #{longnet_ts_forward.56} parent=11 // pred_check
        %p199 = pneg %p143
      $region26: #{longnet_ts_forward.56} parent=11 // pred_check_branch
        %201 = sbr.rel (%p199) target = $region28
      $region27: #{longnet_ts_forward.56} parent=11 // pred_region
        %p202 = scmp.lt.s32.totalorder %s21, 0
        %s203 = scalar_select %p202, %s21, 0
        %s204 = scalar_lea.vmem %s4, %s203
      $region28: #{longnet_ts_forward.56} parent=11 // pred_fallthru
        _
    $region12: #{longnet_ts_forward.56} parent=5 // pred_fallthru
      _
    %p205 = scmp.lt.s32.totalorder %s11, 2
    // Predicated region
    $region29: #{longnet_ts_forward.56} parent=5 // pred_check
      %p206 = pneg %p205
    $region30: #{longnet_ts_forward.56} parent=5 // pred_check_branch
      %208 = sbr.rel (%p206) target = $region32
    $region31: #{longnet_ts_forward.56} parent=5 // pred_region
      // Predicated region
      $region33: #{longnet_ts_forward.56} parent=31 // pred_check
        %p209 = pneg %p43
      $region34: #{longnet_ts_forward.56} parent=31 // pred_check_branch
        %211 = sbr.rel (%p209) target = $region36
      $region35: #{longnet_ts_forward.56} parent=31 // pred_region
        %s212 = smul.u32 2, %s18
        %p213 = scmp.lt.s32.totalorder %s212, 3
        %s214 = scalar_select %p213, %s212, 3
        %s215 = smul.addr %s214, 8
        %s216 = scalar_lea.vmem %s0, %s215
        %s217 = smul.u32 2, %s18
      $region36: #{longnet_ts_forward.56} parent=31 // pred_fallthru
        _
    $region32: #{longnet_ts_forward.56} parent=5 // pred_fallthru
      _
    %p218 = scmp.le.s32.totalorder 1, %s11
    %p219 = scmp.lt.s32.totalorder %s11, 3
    %p220 = pnand %p218, %p219
    %p221 = pneg %p220
    // Predicated region
    $region37: #{longnet_ts_forward.56} parent=5 // pred_check
      _
    $region38: #{longnet_ts_forward.56} parent=5 // pred_check_branch
      %223 = sbr.rel (%p220) target = $region40
    $region39: #{longnet_ts_forward.56} parent=5 // pred_region
      %s224 = ssub.s32 %s11, 1
      %s225 = smul.u32 2, %s20
      %p226 = scmp.lt.s32.totalorder %s225, 3
      %s227 = scalar_select %p226, %s225, 3
      %s228 = smul.addr %s227, 8
      %s229 = scalar_lea.vmem %s0, %s228
      %p230 = pneg %p49
      %p231 = pneg %p46
      %p232 = pneg %p70
      %p233 = pneg %p67
      %p234 = pneg %p91
      %p235 = pneg %p88
      %p236 = scmp.lt.s32.totalorder %s21, 0
      %s237 = scalar_select %p236, %s21, 0
      %s238 = smul.addr %s237, 4
      %s239 = scalar_lea.vmem %s3, %s238
      %p240 = pneg %p117
      %p241 = pneg %p114
      %p242 = scmp.lt.s32.totalorder %s21, 0
      %s243 = scalar_select %p242, %s21, 0
      %s244 = scalar_lea.vmem %s4, %s243
      %p245 = pneg %p143
      %p246 = pneg %p140
      %p247 = pneg %p171
      %p248 = pneg %p168
      %s249 = smul.u32 2, %s20
      %p250 = scmp.lt.s32.totalorder %s249, 3
      %s251 = scalar_select %p250, %s249, 3
      %p252 = scmp.lt.s32.totalorder %s21, 0
      %s253 = scalar_select %p252, %s21, 0
      %s254 = sadd.s32 %s253, %s251
      %s255 = smul.addr %s254, 4
      %s256 = scalar_lea.vmem %s5, %s255
      %s257 = smul.u32 2, %s20
      %p258 = scmp.lt.s32.totalorder %s257, 3
      %s259 = scalar_select %p258, %s257, 3
      %s260 = smul.addr %s259, 8
      %s261 = scalar_lea.vmem %s0, %s260
      %s262 = smul.u32 2, %s20
      %p263 = scmp.lt.s32.totalorder %s21, 0
      %s264 = scalar_select %p263, %s21, 0
      %s265 = smul.addr %s264, 4
      %s266 = scalar_lea.vmem %s3, %s265
      %p267 = scmp.lt.s32.totalorder %s21, 0
      %s268 = scalar_select %p267, %s21, 0
      %s269 = scalar_lea.vmem %s4, %s268
      %s270 = smul.u32 2, %s20
      %p271 = scmp.lt.s32.totalorder %s270, 3
      %s272 = scalar_select %p271, %s270, 3
      %p273 = scmp.lt.s32.totalorder %s21, 0
      %s274 = scalar_select %p273, %s21, 0
      %s275 = sadd.s32 %s274, %s272
      %s276 = smul.addr %s275, 4
      %s277 = scalar_lea.vmem %s5, %s276
      %s278 = smul.u32 2, %s20
      %v280 = vld [vmem:[%s261] sm:$0xff]
      %v281 = vld [vmem:[%s261 + $0x8] sm:$0xff]
      %vm282 = vcmask 261120
      %v283 = vsel %vm282, %v280, 0.0
      %284 = vadd.xlane.f32.xlu0 %v283
      %v285 = vpop.xlane.xlu0 %284
      %v286 = vsel %vm282, %v281, 0.0
      %287 = vadd.xlane.f32.xlu0 %v286
      %v288 = vpop.xlane.xlu0 %287
      %v289 = vrcp.pop 32.0
      %v290 = vmul.f32 32.0, %v289
      %v291 = vsub.f32 1.0, %v290
      %v292 = vmul.f32 %v289, %v291
      %v293 = vadd.f32 %v289, %v292
      %vm294 = vweird.f32 %v289
      %v295 = vsel %vm294, %v289, %v293
      %v296 = vmul.f32 %v285, %v295
      %v297 = vmul.f32 %v288, %v295
      %v298 = vsub.f32 %v280, %v296
      %v299 = vsub.f32 %v281, %v297
      %v300 = vmul.f32 %v298, %v298
      %v301 = vmul.f32 %v299, %v299
      %v302 = vsel %vm282, %v300, 0.0
      %303 = vadd.xlane.f32.xlu0 %v302
      %v304 = vpop.xlane.xlu0 %303
      %v305 = vsel %vm282, %v301, 0.0
      %306 = vadd.xlane.f32.xlu0 %v305
      %v307 = vpop.xlane.xlu0 %306
      %v308 = vmul.f32 %v304, %v295
      %v309 = vmul.f32 %v307, %v295
      %v310 = vadd.f32 %v308, 1e-05
      %v311 = vadd.f32 %v309, 1e-05
      %v312 = vrsqrt.pop %v310
      %v313 = vmul.f32 %v312, %v310
      %v314 = vmul.f32 %v313, %v312
      %v315 = vmul.f32 0.5, %v314
      %v316 = vsub.f32 1.5, %v315
      %v317 = vmul.f32 %v312, %v316
      %vm318 = vweird.f32 %v310
      %vm319 = vweird.f32 %v312
      %vm320 = vmor %vm318, %vm319
      %v321 = vsel %vm320, %v312, %v317
      %v322 = vrsqrt.pop %v311
      %v323 = vmul.f32 %v322, %v311
      %v324 = vmul.f32 %v323, %v322
      %v325 = vmul.f32 0.5, %v324
      %v326 = vsub.f32 1.5, %v325
      %v327 = vmul.f32 %v322, %v326
      %vm328 = vweird.f32 %v311
      %vm329 = vweird.f32 %v322
      %vm330 = vmor %vm328, %vm329
      %v331 = vsel %vm330, %v322, %v327
      %v332 = vmul.f32 %v298, %v321
      %v333 = vmul.f32 %v299, %v331
      %v334 = vld [vmem:[%s1] sm:$0x1]
      %v336 = vperm.slane %v334, 0
      %v338 = vmul.f32 %v332, %v336
      %v339 = vmul.f32 %v333, %v336
      %v340 = vld [vmem:[%s2] sm:$0x1]
      %v342 = vperm.slane %v340, 0
      %v344 = vadd.f32 %v338, %v342
      %v345 = vadd.f32 %v339, %v342
      %v346 = vld [vmem:[%s266] sm:$0xf]
      %v347 = vld [vmem:[%s266 + $0x4] sm:$0xf]
      %v348 = vld [vmem:[%s266 + $0x8] sm:$0xf]
      %v349 = vld [vmem:[%s266 + $0xc] sm:$0xf]
      %v350 = vpack.c.bf16 %v345, %v344
      %v351 = vld [vmem:[%s269] sm:$0x1]
      %v353 = vperm.slane %v351, 0
      %v359 = vunpack.c.l.b16 %v346
      %v360 = vunpack.c.l.b16 %v347
      %v361 = vunpack.c.l.b16 %v348
      %v362 = vunpack.c.l.b16 %v349
      %v363 = vpack.c.b16 %v360, %v359
      %v364 = vpack.c.b16 %v362, %v361
      %v368 = vsel %vm282, %v350, 0
      %370 = vmatpush.bf16.msra.mxu0 0
      %371 = vmatpush.bf16.msra.mxu0 0
      %372 = vmatpush.bf16.msra.mxu0 0
      %373 = vmatpush.bf16.msra.mxu0 0
      %374 = vmatpush.bf16.msra.mxu0 0
      %375 = vmatpush.bf16.msra.mxu0 0
      %376 = vmatpush.bf16.msra.mxu0 %v364
      %377 = vmatpush.bf16.msra.mxu0 %v363
      %378 = vmatmul.bf16.gmra.mxu0 %v368
      %v379 = vpop.f32.mrf.mxu0
      %v380 = vadd.f32 %v353, %v379
      %v381 = vpop.f32.mrf.mxu0
      %v382 = vadd.f32 %v353, %v381
      %383 = vdwg.mxu0
      %v384 = vpack.c.bf16 %v380, %v380
      %v385 = vpack.c.bf16 %v382, %v382
      %vm386 = vcmask 519168
      %387 = vst.msk [vmem:[%s277] sm:$0xf] %vm386, %v384
      %388 = vst.msk [vmem:[%s277 + $0x4] sm:$0xf] %vm386, %v385
      %s389 = smul.u32 2, %s20
      %p390 = scmp.lt.s32.totalorder %s389, 3
      %s391 = scalar_select %p390, %s389, 3
      %p392 = scmp.lt.s32.totalorder %s21, 0
      %s393 = scalar_select %p392, %s21, 0
      %s394 = sadd.s32 %s393, %s391
      %s395 = smul.addr %s394, 4
      %s396 = scalar_lea.vmem %s5, %s395
      // Predicated region
      $region41: #{longnet_ts_forward.56} parent=39 // pred_check
        %p397 = pneg %p168
      $region42: #{longnet_ts_forward.56} parent=39 // pred_check_branch
        %399 = sbr.rel (%p397) target = $region44
      $region43: #{longnet_ts_forward.56} parent=39 // pred_region
        %s400 = smul.u32 2, %s20
      $region44: #{longnet_ts_forward.56} parent=39 // pred_fallthru
        _
    $region40: #{longnet_ts_forward.56} parent=5 // pred_fallthru
      _
    %p401 = scmp.le.s32.totalorder 2, %s11
    // Predicated region
    $region45: #{longnet_ts_forward.56} parent=5 // pred_check
      %p402 = pneg %p401
    $region46: #{longnet_ts_forward.56} parent=5 // pred_check_branch
      %404 = sbr.rel (%p402) target = $region48
    $region47: #{longnet_ts_forward.56} parent=5 // pred_region
      %s405 = ssub.s32 %s11, 2
      // Predicated region
      $region49: #{longnet_ts_forward.56} parent=47 // pred_check
        %p406 = pneg %p174
      $region50: #{longnet_ts_forward.56} parent=47 // pred_check_branch
        %408 = sbr.rel (%p406) target = $region52
      $region51: #{longnet_ts_forward.56} parent=47 // pred_region
        %s409 = smul.u32 2, %s22
        %p410 = scmp.lt.s32.totalorder %s409, 3
        %s411 = scalar_select %p410, %s409, 3
        %p412 = scmp.lt.s32.totalorder %s23, 0
        %s413 = scalar_select %p412, %s23, 0
        %s414 = sadd.s32 %s413, %s411
        %s415 = smul.addr %s414, 4
        %s416 = scalar_lea.vmem %s5, %s415
      $region52: #{longnet_ts_forward.56} parent=47 // pred_fallthru
        _
    $region48: #{longnet_ts_forward.56} parent=5 // pred_fallthru
      _
  $region6: #{longnet_ts_forward.56} parent=0 // loop_footer
    %s15 = sadd.s32 1, %s11
  $region7: #{longnet_ts_forward.56} parent=0 // loop_footer_branch
    %10 = sbr.rel target = $region3
  $region8: #{longnet_ts_forward.56} parent=0 // loop_exit
    _

// kernel: longnet_ts_forward.43
$region0: #{longnet_ts_forward.43}
  #allocation0 [shape = 'u32[]', space=smem, size = 0x4, offset = 0x4, fixed_abs, tag = 'smem constant byte address 0x4 - core index']
  #allocation1 [shape = 'u32[72,128]{1,0:T(1,128)}', space=vmem, size = 0x9000, scoped, tag = 'internal scratch']
  %s0 = inlined_call_operand.vmem [shape: f32[32,32], index: 0, kind: input, shape index: {}]
  %s1 = inlined_call_operand.vmem [shape: f32[1,32], index: 1, kind: input, shape index: {}]
  %s2 = inlined_call_operand.vmem [shape: f32[1,32], index: 2, kind: input, shape index: {}]
  %s3 = inlined_call_operand.vmem [shape: bf16[32,64], index: 3, kind: input, shape index: {}]
  %s4 = inlined_call_operand.vmem [shape: f32[1,64], index: 4, kind: input, shape index: {}]
  %s5 = inlined_call_operand.vmem [shape: bf16[32,64], index: 5, kind: output, shape index: {}]
  %s6 = sld [smem:[#allocation0]]
  $region53: #{longnet_ts_forward.43} parent=0
    _
  %s8 = ssub.s32 1, %s6
  %s9 = scalar_select 0, %s8, %s6
  loop: start=0, step=1, limit=4
  $region2: #{longnet_ts_forward.43} parent=0 // loop_pre_header
    _
  $region3: #{longnet_ts_forward.43} parent=0 // loop_header
    %s11 = sphi 0, %s15
    %p12 = scmp.ge.s32.totalorder %s11, 4
    %s18 = sphi 0, %s30
    %s19 = sphi 0, %s26
    %s20 = sphi 0, %s18
    %s21 = sphi 0, %s19
    %s22 = sphi 0, %s20
    %s23 = sphi 0, %s21
    %s33 = sphi 0, %s35
    %s36 = sphi 0, %s33
    %s37 = sphi 0, %s36
    %s53 = sphi 0, %s37
    %s57 = sphi 0, %s57
    %s59 = sphi 0, %s57
    %s60 = sphi 0, %s59
    %s74 = sphi 0, %s60
    %s78 = sphi 0, %s78
    %s80 = sphi 0, %s78
    %s81 = sphi 0, %s80
    %s95 = sphi 0, %s81
    %s101 = sphi 0, %s103
    %s104 = sphi 0, %s101
    %s105 = sphi 0, %s104
    %s121 = sphi 0, %s105
    %s127 = sphi 0, %s129
    %s130 = sphi 0, %s127
    %s131 = sphi 0, %s130
    %s147 = sphi 0, %s131
    %s155 = sphi 0, %s157
    %s158 = sphi 0, %s155
    %s159 = sphi 0, %s158
    %s175 = sphi 0, %s159
  $region4: #{longnet_ts_forward.43} parent=0 // loop_header_branch
    %14 = sbr.rel (%p12) target = $region8
  $region5: #{longnet_ts_forward.43} parent=0 // loop_body
    %s16 = ssub.s32 %s11, 1
    %s17 = ssub.s32 %s11, 2
    %s24 = sadd.s32 1, %s19
    %p25 = scmp.ge.s32.totalorder %s24, 1
    %s26 = scalar_select %p25, 0, %s24
    %s27 = sadd.s32 1, %s18
    %s28 = scalar_select %p25, %s27, %s18
    %p29 = scmp.ge.s32.totalorder %s28, 2
    %s30 = scalar_select %p29, 0, %s28
    %s31 = ssub.s32 %s18, %s30
    %p32 = scmp.eq.s32.totalorder %s31, 0
    %s34 = sadd.s32 %s33, 1
    %s35 = scalar_select %p32, %s33, %s34
    %p38 = pneg %p32
    %p39 = scmp.eq.s32.totalorder %s11, 1
    %p40 = por %p38, %p39
    %p41 = scmp.ne.s32.totalorder %s33, %s36
    %p42 = scmp.eq.s32.totalorder %s11, 0
    %p43 = por %p41, %p42
    %p44 = scmp.ne.s32.totalorder %s33, %s36
    %p45 = scmp.eq.s32.totalorder %s16, 1
    %p46 = por %p44, %p45
    %p47 = scmp.ne.s32.totalorder %s36, %s37
    %p48 = scmp.eq.s32.totalorder %s16, 0
    %p49 = por %p47, %p48
    %p50 = scmp.ne.s32.totalorder %s36, %s37
    %p51 = scmp.eq.s32.totalorder %s17, 1
    %p52 = por %p50, %p51
    %p54 = scmp.ne.s32.totalorder %s37, %s53
    %p55 = scmp.eq.s32.totalorder %s17, 0
    %p56 = por %p54, %p55
    %s58 = sadd.s32 %s57, 1
    %p61 = scmp.eq.s32.totalorder %s11, 1
    %p62 = scmp.ne.s32.totalorder %s57, %s59
    %p63 = scmp.eq.s32.totalorder %s11, 0
    %p64 = por %p62, %p63
    %p65 = scmp.ne.s32.totalorder %s57, %s59
    %p66 = scmp.eq.s32.totalorder %s16, 1
    %p67 = por %p65, %p66
    %p68 = scmp.ne.s32.totalorder %s59, %s60
    %p69 = scmp.eq.s32.totalorder %s16, 0
    %p70 = por %p68, %p69
    %p71 = scmp.ne.s32.totalorder %s59, %s60
    %p72 = scmp.eq.s32.totalorder %s17, 1
    %p73 = por %p71, %p72
    %p75 = scmp.ne.s32.totalorder %s60, %s74
    %p76 = scmp.eq.s32.totalorder %s17, 0
    %p77 = por %p75, %p76
    %s79 = sadd.s32 %s78, 1
    %p82 = scmp.eq.s32.totalorder %s11, 1
    %p83 = scmp.ne.s32.totalorder %s78, %s80
    %p84 = scmp.eq.s32.totalorder %s11, 0
    %p85 = por %p83, %p84
    %p86 = scmp.ne.s32.totalorder %s78, %s80
    %p87 = scmp.eq.s32.totalorder %s16, 1
    %p88 = por %p86, %p87
    %p89 = scmp.ne.s32.totalorder %s80, %s81
    %p90 = scmp.eq.s32.totalorder %s16, 0
    %p91 = por %p89, %p90
    %p92 = scmp.ne.s32.totalorder %s80, %s81
    %p93 = scmp.eq.s32.totalorder %s17, 1
    %p94 = por %p92, %p93
    %p96 = scmp.ne.s32.totalorder %s81, %s95
    %p97 = scmp.eq.s32.totalorder %s17, 0
    %p98 = por %p96, %p97
    %s99 = ssub.s32 %s19, %s26
    %p100 = scmp.eq.s32.totalorder %s99, 0
    %s102 = sadd.s32 %s101, 1
    %s103 = scalar_select %p100, %s101, %s102
    %p106 = pneg %p100
    %p107 = scmp.eq.s32.totalorder %s11, 1
    %p108 = por %p106, %p107
    %p109 = scmp.ne.s32.totalorder %s101, %s104
    %p110 = scmp.eq.s32.totalorder %s11, 0
    %p111 = por %p109, %p110
    %p112 = scmp.ne.s32.totalorder %s101, %s104
    %p113 = scmp.eq.s32.totalorder %s16, 1
    %p114 = por %p112, %p113
    %p115 = scmp.ne.s32.totalorder %s104, %s105
    %p116 = scmp.eq.s32.totalorder %s16, 0
    %p117 = por %p115, %p116
    %p118 = scmp.ne.s32.totalorder %s104, %s105
    %p119 = scmp.eq.s32.totalorder %s17, 1
    %p120 = por %p118, %p119
    %p122 = scmp.ne.s32.totalorder %s105, %s121
    %p123 = scmp.eq.s32.totalorder %s17, 0
    %p124 = por %p122, %p123
    %s125 = ssub.s32 %s19, %s26
    %p126 = scmp.eq.s32.totalorder %s125, 0
    %s128 = sadd.s32 %s127, 1
    %s129 = scalar_select %p126, %s127, %s128
    %p132 = pneg %p126
    %p133 = scmp.eq.s32.totalorder %s11, 1
    %p134 = por %p132, %p133
    %p135 = scmp.ne.s32.totalorder %s127, %s130
    %p136 = scmp.eq.s32.totalorder %s11, 0
    %p137 = por %p135, %p136
    %p138 = scmp.ne.s32.totalorder %s127, %s130
    %p139 = scmp.eq.s32.totalorder %s16, 1
    %p140 = por %p138, %p139
    %p141 = scmp.ne.s32.totalorder %s130, %s131
    %p142 = scmp.eq.s32.totalorder %s16, 0
    %p143 = por %p141, %p142
    %p144 = scmp.ne.s32.totalorder %s130, %s131
    %p145 = scmp.eq.s32.totalorder %s17, 1
    %p146 = por %p144, %p145
    %p148 = scmp.ne.s32.totalorder %s131, %s147
    %p149 = scmp.eq.s32.totalorder %s17, 0
    %p150 = por %p148, %p149
    %s151 = ssub.s32 %s18, %s30
    %s152 = ssub.s32 %s19, %s26
    %s153 = sor.u32 %s151, %s152
    %p154 = scmp.eq.s32.totalorder %s153, 0
    %s156 = sadd.s32 %s155, 1
    %s157 = scalar_select %p154, %s155, %s156
    %p160 = pneg %p154
    %p161 = scmp.eq.s32.totalorder %s11, 1
    %p162 = por %p160, %p161
    %p163 = scmp.ne.s32.totalorder %s155, %s158
    %p164 = scmp.eq.s32.totalorder %s11, 0
    %p165 = por %p163, %p164
    %p166 = scmp.ne.s32.totalorder %s155, %s158
    %p167 = scmp.eq.s32.totalorder %s16, 1
    %p168 = por %p166, %p167
    %p169 = scmp.ne.s32.totalorder %s158, %s159
    %p170 = scmp.eq.s32.totalorder %s16, 0
    %p171 = por %p169, %p170
    %p172 = scmp.ne.s32.totalorder %s158, %s159
    %p173 = scmp.eq.s32.totalorder %s17, 1
    %p174 = por %p172, %p173
    %p176 = scmp.ne.s32.totalorder %s159, %s175
    %p177 = scmp.eq.s32.totalorder %s17, 0
    %p178 = por %p176, %p177
    %p179 = scmp.le.s32.totalorder 1, %s11
    %p180 = scmp.lt.s32.totalorder %s11, 3
    %p181 = pnand %p179, %p180
    %p182 = pneg %p181
    // Predicated region
    $region9: #{longnet_ts_forward.43} parent=5 // pred_check
      _
    $region10: #{longnet_ts_forward.43} parent=5 // pred_check_branch
      %184 = sbr.rel (%p181) target = $region12
    $region11: #{longnet_ts_forward.43} parent=5 // pred_region
      %s185 = ssub.s32 %s11, 1
      // Predicated region
      $region13: #{longnet_ts_forward.43} parent=11 // pred_check
        %p186 = pneg %p70
      $region14: #{longnet_ts_forward.43} parent=11 // pred_check_branch
        %188 = sbr.rel (%p186) target = $region16
      $region15: #{longnet_ts_forward.43} parent=11 // pred_region
        _
      $region16: #{longnet_ts_forward.43} parent=11 // pred_fallthru
        _
      // Predicated region
      $region17: #{longnet_ts_forward.43} parent=11 // pred_check
        %p189 = pneg %p91
      $region18: #{longnet_ts_forward.43} parent=11 // pred_check_branch
        %191 = sbr.rel (%p189) target = $region20
      $region19: #{longnet_ts_forward.43} parent=11 // pred_region
        _
      $region20: #{longnet_ts_forward.43} parent=11 // pred_fallthru
        _
      // Predicated region
      $region21: #{longnet_ts_forward.43} parent=11 // pred_check
        %p192 = pneg %p117
      $region22: #{longnet_ts_forward.43} parent=11 // pred_check_branch
        %194 = sbr.rel (%p192) target = $region24
      $region23: #{longnet_ts_forward.43} parent=11 // pred_region
        %p195 = scmp.lt.s32.totalorder %s21, 0
        %s196 = scalar_select %p195, %s21, 0
        %s197 = smul.addr %s196, 4
        %s198 = scalar_lea.vmem %s3, %s197
      $region24: #{longnet_ts_forward.43} parent=11 // pred_fallthru
        _
      // Predicated region
      $region25: #{longnet_ts_forward.43} parent=11 // pred_check
        %p199 = pneg %p143
      $region26: #{longnet_ts_forward.43} parent=11 // pred_check_branch
        %201 = sbr.rel (%p199) target = $region28
      $region27: #{longnet_ts_forward.43} parent=11 // pred_region
        %p202 = scmp.lt.s32.totalorder %s21, 0
        %s203 = scalar_select %p202, %s21, 0
        %s204 = scalar_lea.vmem %s4, %s203
      $region28: #{longnet_ts_forward.43} parent=11 // pred_fallthru
        _
    $region12: #{longnet_ts_forward.43} parent=5 // pred_fallthru
      _
    %p205 = scmp.lt.s32.totalorder %s11, 2
    // Predicated region
    $region29: #{longnet_ts_forward.43} parent=5 // pred_check
      %p206 = pneg %p205
    $region30: #{longnet_ts_forward.43} parent=5 // pred_check_branch
      %208 = sbr.rel (%p206) target = $region32
    $region31: #{longnet_ts_forward.43} parent=5 // pred_region
      // Predicated region
      $region33: #{longnet_ts_forward.43} parent=31 // pred_check
        %p209 = pneg %p43
      $region34: #{longnet_ts_forward.43} parent=31 // pred_check_branch
        %211 = sbr.rel (%p209) target = $region36
      $region35: #{longnet_ts_forward.43} parent=31 // pred_region
        %s212 = smul.u32 2, %s18
        %p213 = scmp.lt.s32.totalorder %s212, 3
        %s214 = scalar_select %p213, %s212, 3
        %s215 = smul.addr %s214, 8
        %s216 = scalar_lea.vmem %s0, %s215
        %s217 = smul.u32 2, %s18
      $region36: #{longnet_ts_forward.43} parent=31 // pred_fallthru
        _
    $region32: #{longnet_ts_forward.43} parent=5 // pred_fallthru
      _
    %p218 = scmp.le.s32.totalorder 1, %s11
    %p219 = scmp.lt.s32.totalorder %s11, 3
    %p220 = pnand %p218, %p219
    %p221 = pneg %p220
    // Predicated region
    $region37: #{longnet_ts_forward.43} parent=5 // pred_check
      _
    $region38: #{longnet_ts_forward.43} parent=5 // pred_check_branch
      %223 = sbr.rel (%p220) target = $region40
    $region39: #{longnet_ts_forward.43} parent=5 // pred_region
      %s224 = ssub.s32 %s11, 1
      %s225 = smul.u32 2, %s20
      %p226 = scmp.lt.s32.totalorder %s225, 3
      %s227 = scalar_select %p226, %s225, 3
      %s228 = smul.addr %s227, 8
      %s229 = scalar_lea.vmem %s0, %s228
      %p230 = pneg %p49
      %p231 = pneg %p46
      %p232 = pneg %p70
      %p233 = pneg %p67
      %p234 = pneg %p91
      %p235 = pneg %p88
      %p236 = scmp.lt.s32.totalorder %s21, 0
      %s237 = scalar_select %p236, %s21, 0
      %s238 = smul.addr %s237, 4
      %s239 = scalar_lea.vmem %s3, %s238
      %p240 = pneg %p117
      %p241 = pneg %p114
      %p242 = scmp.lt.s32.totalorder %s21, 0
      %s243 = scalar_select %p242, %s21, 0
      %s244 = scalar_lea.vmem %s4, %s243
      %p245 = pneg %p143
      %p246 = pneg %p140
      %p247 = pneg %p171
      %p248 = pneg %p168
      %s249 = smul.u32 2, %s20
      %p250 = scmp.lt.s32.totalorder %s249, 3
      %s251 = scalar_select %p250, %s249, 3
      %p252 = scmp.lt.s32.totalorder %s21, 0
      %s253 = scalar_select %p252, %s21, 0
      %s254 = sadd.s32 %s253, %s251
      %s255 = smul.addr %s254, 4
      %s256 = scalar_lea.vmem %s5, %s255
      %s257 = smul.u32 2, %s20
      %p258 = scmp.lt.s32.totalorder %s257, 3
      %s259 = scalar_select %p258, %s257, 3
      %s260 = smul.addr %s259, 8
      %s261 = scalar_lea.vmem %s0, %s260
      %s262 = smul.u32 2, %s20
      %p263 = scmp.lt.s32.totalorder %s21, 0
      %s264 = scalar_select %p263, %s21, 0
      %s265 = smul.addr %s264, 4
      %s266 = scalar_lea.vmem %s3, %s265
      %p267 = scmp.lt.s32.totalorder %s21, 0
      %s268 = scalar_select %p267, %s21, 0
      %s269 = scalar_lea.vmem %s4, %s268
      %s270 = smul.u32 2, %s20
      %p271 = scmp.lt.s32.totalorder %s270, 3
      %s272 = scalar_select %p271, %s270, 3
      %p273 = scmp.lt.s32.totalorder %s21, 0
      %s274 = scalar_select %p273, %s21, 0
      %s275 = sadd.s32 %s274, %s272
      %s276 = smul.addr %s275, 4
      %s277 = scalar_lea.vmem %s5, %s276
      %s278 = smul.u32 2, %s20
      %v280 = vld [vmem:[%s261] sm:$0xff]
      %v281 = vld [vmem:[%s261 + $0x8] sm:$0xff]
      %vm282 = vcmask 261120
      %v283 = vsel %vm282, %v280, 0.0
      %284 = vadd.xlane.f32.xlu0 %v283
      %v285 = vpop.xlane.xlu0 %284
      %v286 = vsel %vm282, %v281, 0.0
      %287 = vadd.xlane.f32.xlu0 %v286
      %v288 = vpop.xlane.xlu0 %287
      %v289 = vrcp.pop 32.0
      %v290 = vmul.f32 32.0, %v289
      %v291 = vsub.f32 1.0, %v290
      %v292 = vmul.f32 %v289, %v291
      %v293 = vadd.f32 %v289, %v292
      %vm294 = vweird.f32 %v289
      %v295 = vsel %vm294, %v289, %v293
      %v296 = vmul.f32 %v285, %v295
      %v297 = vmul.f32 %v288, %v295
      %v298 = vsub.f32 %v280, %v296
      %v299 = vsub.f32 %v281, %v297
      %v300 = vmul.f32 %v298, %v298
      %v301 = vmul.f32 %v299, %v299
      %v302 = vsel %vm282, %v300, 0.0
      %303 = vadd.xlane.f32.xlu0 %v302
      %v304 = vpop.xlane.xlu0 %303
      %v305 = vsel %vm282, %v301, 0.0
      %306 = vadd.xlane.f32.xlu0 %v305
      %v307 = vpop.xlane.xlu0 %306
      %v308 = vmul.f32 %v304, %v295
      %v309 = vmul.f32 %v307, %v295
      %v310 = vadd.f32 %v308, 1e-05
      %v311 = vadd.f32 %v309, 1e-05
      %v312 = vrsqrt.pop %v310
      %v313 = vmul.f32 %v312, %v310
      %v314 = vmul.f32 %v313, %v312
      %v315 = vmul.f32 0.5, %v314
      %v316 = vsub.f32 1.5, %v315
      %v317 = vmul.f32 %v312, %v316
      %vm318 = vweird.f32 %v310
      %vm319 = vweird.f32 %v312
      %vm320 = vmor %vm318, %vm319
      %v321 = vsel %vm320, %v312, %v317
      %v322 = vrsqrt.pop %v311
      %v323 = vmul.f32 %v322, %v311
      %v324 = vmul.f32 %v323, %v322
      %v325 = vmul.f32 0.5, %v324
      %v326 = vsub.f32 1.5, %v325
      %v327 = vmul.f32 %v322, %v326
      %vm328 = vweird.f32 %v311
      %vm329 = vweird.f32 %v322
      %vm330 = vmor %vm328, %vm329
      %v331 = vsel %vm330, %v322, %v327
      %v332 = vmul.f32 %v298, %v321
      %v333 = vmul.f32 %v299, %v331
      %v334 = vld [vmem:[%s1] sm:$0x1]
      %v336 = vperm.slane %v334, 0
      %v338 = vmul.f32 %v332, %v336
      %v339 = vmul.f32 %v333, %v336
      %v340 = vld [vmem:[%s2] sm:$0x1]
      %v342 = vperm.slane %v340, 0
      %v344 = vadd.f32 %v338, %v342
      %v345 = vadd.f32 %v339, %v342
      %v346 = vld [vmem:[%s266] sm:$0xf]
      %v347 = vld [vmem:[%s266 + $0x4] sm:$0xf]
      %v348 = vld [vmem:[%s266 + $0x8] sm:$0xf]
      %v349 = vld [vmem:[%s266 + $0xc] sm:$0xf]
      %v350 = vpack.c.bf16 %v345, %v344
      %v351 = vld [vmem:[%s269] sm:$0x1]
      %v353 = vperm.slane %v351, 0
      %v359 = vunpack.c.l.b16 %v346
      %v360 = vunpack.c.l.b16 %v347
      %v361 = vunpack.c.l.b16 %v348
      %v362 = vunpack.c.l.b16 %v349
      %v363 = vpack.c.b16 %v360, %v359
      %v364 = vpack.c.b16 %v362, %v361
      %v368 = vsel %vm282, %v350, 0
      %370 = vmatpush.bf16.msra.mxu0 0
      %371 = vmatpush.bf16.msra.mxu0 0
      %372 = vmatpush.bf16.msra.mxu0 0
      %373 = vmatpush.bf16.msra.mxu0 0
      %374 = vmatpush.bf16.msra.mxu0 0
      %375 = vmatpush.bf16.msra.mxu0 0
      %376 = vmatpush.bf16.msra.mxu0 %v364
      %377 = vmatpush.bf16.msra.mxu0 %v363
      %378 = vmatmul.bf16.gmra.mxu0 %v368
      %v379 = vpop.f32.mrf.mxu0
      %v380 = vadd.f32 %v353, %v379
      %v381 = vpop.f32.mrf.mxu0
      %v382 = vadd.f32 %v353, %v381
      %383 = vdwg.mxu0
      %v384 = vmax.f32 %v380, 0.0
      %v385 = vmax.f32 %v382, 0.0
      %v386 = vpack.c.bf16 %v384, %v384
      %v387 = vpack.c.bf16 %v385, %v385
      %vm388 = vcmask 519168
      %389 = vst.msk [vmem:[%s277] sm:$0xf] %vm388, %v386
      %390 = vst.msk [vmem:[%s277 + $0x4] sm:$0xf] %vm388, %v387
      %s391 = smul.u32 2, %s20
      %p392 = scmp.lt.s32.totalorder %s391, 3
      %s393 = scalar_select %p392, %s391, 3
      %p394 = scmp.lt.s32.totalorder %s21, 0
      %s395 = scalar_select %p394, %s21, 0
      %s396 = sadd.s32 %s395, %s393
      %s397 = smul.addr %s396, 4
      %s398 = scalar_lea.vmem %s5, %s397
      // Predicated region
      $region41: #{longnet_ts_forward.43} parent=39 // pred_check
        %p399 = pneg %p168
      $region42: #{longnet_ts_forward.43} parent=39 // pred_check_branch
        %401 = sbr.rel (%p399) target = $region44
      $region43: #{longnet_ts_forward.43} parent=39 // pred_region
        %s402 = smul.u32 2, %s20
      $region44: #{longnet_ts_forward.43} parent=39 // pred_fallthru
        _
    $region40: #{longnet_ts_forward.43} parent=5 // pred_fallthru
      _
    %p403 = scmp.le.s32.totalorder 2, %s11
    // Predicated region
    $region45: #{longnet_ts_forward.43} parent=5 // pred_check
      %p404 = pneg %p403
    $region46: #{longnet_ts_forward.43} parent=5 // pred_check_branch
      %406 = sbr.rel (%p404) target = $region48
    $region47: #{longnet_ts_forward.43} parent=5 // pred_region
      %s407 = ssub.s32 %s11, 2
      // Predicated region
      $region49: #{longnet_ts_forward.43} parent=47 // pred_check
        %p408 = pneg %p174
      $region50: #{longnet_ts_forward.43} parent=47 // pred_check_branch
        %410 = sbr.rel (%p408) target = $region52
      $region51: #{longnet_ts_forward.43} parent=47 // pred_region
        %s411 = smul.u32 2, %s22
        %p412 = scmp.lt.s32.totalorder %s411, 3
        %s413 = scalar_select %p412, %s411, 3
        %p414 = scmp.lt.s32.totalorder %s23, 0
        %s415 = scalar_select %p414, %s23, 0
        %s416 = sadd.s32 %s415, %s413
        %s417 = smul.addr %s416, 4
        %s418 = scalar_lea.vmem %s5, %s417
      $region52: #{longnet_ts_forward.43} parent=47 // pred_fallthru
        _
    $region48: #{longnet_ts_forward.43} parent=5 // pred_fallthru
      _
  $region6: #{longnet_ts_forward.43} parent=0 // loop_footer
    %s15 = sadd.s32 1, %s11
  $region7: #{longnet_ts_forward.43} parent=0 // loop_footer_branch
    %10 = sbr.rel target = $region3
  $region8: #{longnet_ts_forward.43} parent=0 // loop_exit
    _

// kernel: longnet_ts_forward.42
$region0: #{longnet_ts_forward.42}
  #allocation0 [shape = 'u32[]', space=smem, size = 0x4, offset = 0x4, fixed_abs, tag = 'smem constant byte address 0x4 - core index']
  #allocation1 [shape = 'u32[72,128]{1,0:T(1,128)}', space=vmem, size = 0x9000, scoped, tag = 'internal scratch']
  %s0 = inlined_call_operand.vmem [shape: bf16[32,32], index: 0, kind: input, shape index: {}]
  %s1 = inlined_call_operand.vmem [shape: f32[1,32], index: 1, kind: input, shape index: {}]
  %s2 = inlined_call_operand.vmem [shape: f32[1,32], index: 2, kind: input, shape index: {}]
  %s3 = inlined_call_operand.vmem [shape: bf16[32,32], index: 3, kind: input, shape index: {}]
  %s4 = inlined_call_operand.vmem [shape: f32[1,32], index: 4, kind: input, shape index: {}]
  %s5 = inlined_call_operand.vmem [shape: f32[32,32], index: 5, kind: input, shape index: {}]
  %s6 = inlined_call_operand.vmem [shape: f32[32,32], index: 6, kind: output, shape index: {}]
  %s7 = sld [smem:[#allocation0]]
  $region57: #{longnet_ts_forward.42} parent=0
    _
  %s9 = ssub.s32 1, %s7
  %s10 = scalar_select 0, %s9, %s7
  loop: start=0, step=1, limit=4
  $region2: #{longnet_ts_forward.42} parent=0 // loop_pre_header
    _
  $region3: #{longnet_ts_forward.42} parent=0 // loop_header
    %s12 = sphi 0, %s16
    %p13 = scmp.ge.s32.totalorder %s12, 4
    %s19 = sphi 0, %s31
    %s20 = sphi 0, %s27
    %s21 = sphi 0, %s19
    %s22 = sphi 0, %s20
    %s23 = sphi 0, %s21
    %s24 = sphi 0, %s22
    %s34 = sphi 0, %s36
    %s37 = sphi 0, %s34
    %s38 = sphi 0, %s37
    %s54 = sphi 0, %s38
    %s58 = sphi 0, %s58
    %s60 = sphi 0, %s58
    %s61 = sphi 0, %s60
    %s75 = sphi 0, %s61
    %s79 = sphi 0, %s79
    %s81 = sphi 0, %s79
    %s82 = sphi 0, %s81
    %s96 = sphi 0, %s82
    %s102 = sphi 0, %s104
    %s105 = sphi 0, %s102
    %s106 = sphi 0, %s105
    %s122 = sphi 0, %s106
    %s128 = sphi 0, %s130
    %s131 = sphi 0, %s128
    %s132 = sphi 0, %s131
    %s148 = sphi 0, %s132
    %s156 = sphi 0, %s158
    %s159 = sphi 0, %s156
    %s160 = sphi 0, %s159
    %s176 = sphi 0, %s160
    %s184 = sphi 0, %s186
    %s187 = sphi 0, %s184
    %s188 = sphi 0, %s187
    %s204 = sphi 0, %s188
  $region4: #{longnet_ts_forward.42} parent=0 // loop_header_branch
    %15 = sbr.rel (%p13) target = $region8
  $region5: #{longnet_ts_forward.42} parent=0 // loop_body
    %s17 = ssub.s32 %s12, 1
    %s18 = ssub.s32 %s12, 2
    %s25 = sadd.s32 1, %s20
    %p26 = scmp.ge.s32.totalorder %s25, 1
    %s27 = scalar_select %p26, 0, %s25
    %s28 = sadd.s32 1, %s19
    %s29 = scalar_select %p26, %s28, %s19
    %p30 = scmp.ge.s32.totalorder %s29, 2
    %s31 = scalar_select %p30, 0, %s29
    %s32 = ssub.s32 %s19, %s31
    %p33 = scmp.eq.s32.totalorder %s32, 0
    %s35 = sadd.s32 %s34, 1
    %s36 = scalar_select %p33, %s34, %s35
    %p39 = pneg %p33
    %p40 = scmp.eq.s32.totalorder %s12, 1
    %p41 = por %p39, %p40
    %p42 = scmp.ne.s32.totalorder %s34, %s37
    %p43 = scmp.eq.s32.totalorder %s12, 0
    %p44 = por %p42, %p43
    %p45 = scmp.ne.s32.totalorder %s34, %s37
    %p46 = scmp.eq.s32.totalorder %s17, 1
    %p47 = por %p45, %p46
    %p48 = scmp.ne.s32.totalorder %s37, %s38
    %p49 = scmp.eq.s32.totalorder %s17, 0
    %p50 = por %p48, %p49
    %p51 = scmp.ne.s32.totalorder %s37, %s38
    %p52 = scmp.eq.s32.totalorder %s18, 1
    %p53 = por %p51, %p52
    %p55 = scmp.ne.s32.totalorder %s38, %s54
    %p56 = scmp.eq.s32.totalorder %s18, 0
    %p57 = por %p55, %p56
    %s59 = sadd.s32 %s58, 1
    %p62 = scmp.eq.s32.totalorder %s12, 1
    %p63 = scmp.ne.s32.totalorder %s58, %s60
    %p64 = scmp.eq.s32.totalorder %s12, 0
    %p65 = por %p63, %p64
    %p66 = scmp.ne.s32.totalorder %s58, %s60
    %p67 = scmp.eq.s32.totalorder %s17, 1
    %p68 = por %p66, %p67
    %p69 = scmp.ne.s32.totalorder %s60, %s61
    %p70 = scmp.eq.s32.totalorder %s17, 0
    %p71 = por %p69, %p70
    %p72 = scmp.ne.s32.totalorder %s60, %s61
    %p73 = scmp.eq.s32.totalorder %s18, 1
    %p74 = por %p72, %p73
    %p76 = scmp.ne.s32.totalorder %s61, %s75
    %p77 = scmp.eq.s32.totalorder %s18, 0
    %p78 = por %p76, %p77
    %s80 = sadd.s32 %s79, 1
    %p83 = scmp.eq.s32.totalorder %s12, 1
    %p84 = scmp.ne.s32.totalorder %s79, %s81
    %p85 = scmp.eq.s32.totalorder %s12, 0
    %p86 = por %p84, %p85
    %p87 = scmp.ne.s32.totalorder %s79, %s81
    %p88 = scmp.eq.s32.totalorder %s17, 1
    %p89 = por %p87, %p88
    %p90 = scmp.ne.s32.totalorder %s81, %s82
    %p91 = scmp.eq.s32.totalorder %s17, 0
    %p92 = por %p90, %p91
    %p93 = scmp.ne.s32.totalorder %s81, %s82
    %p94 = scmp.eq.s32.totalorder %s18, 1
    %p95 = por %p93, %p94
    %p97 = scmp.ne.s32.totalorder %s82, %s96
    %p98 = scmp.eq.s32.totalorder %s18, 0
    %p99 = por %p97, %p98
    %s100 = ssub.s32 %s20, %s27
    %p101 = scmp.eq.s32.totalorder %s100, 0
    %s103 = sadd.s32 %s102, 1
    %s104 = scalar_select %p101, %s102, %s103
    %p107 = pneg %p101
    %p108 = scmp.eq.s32.totalorder %s12, 1
    %p109 = por %p107, %p108
    %p110 = scmp.ne.s32.totalorder %s102, %s105
    %p111 = scmp.eq.s32.totalorder %s12, 0
    %p112 = por %p110, %p111
    %p113 = scmp.ne.s32.totalorder %s102, %s105
    %p114 = scmp.eq.s32.totalorder %s17, 1
    %p115 = por %p113, %p114
    %p116 = scmp.ne.s32.totalorder %s105, %s106
    %p117 = scmp.eq.s32.totalorder %s17, 0
    %p118 = por %p116, %p117
    %p119 = scmp.ne.s32.totalorder %s105, %s106
    %p120 = scmp.eq.s32.totalorder %s18, 1
    %p121 = por %p119, %p120
    %p123 = scmp.ne.s32.totalorder %s106, %s122
    %p124 = scmp.eq.s32.totalorder %s18, 0
    %p125 = por %p123, %p124
    %s126 = ssub.s32 %s20, %s27
    %p127 = scmp.eq.s32.totalorder %s126, 0
    %s129 = sadd.s32 %s128, 1
    %s130 = scalar_select %p127, %s128, %s129
    %p133 = pneg %p127
    %p134 = scmp.eq.s32.totalorder %s12, 1
    %p135 = por %p133, %p134
    %p136 = scmp.ne.s32.totalorder %s128, %s131
    %p137 = scmp.eq.s32.totalorder %s12, 0
    %p138 = por %p136, %p137
    %p139 = scmp.ne.s32.totalorder %s128, %s131
    %p140 = scmp.eq.s32.totalorder %s17, 1
    %p141 = por %p139, %p140
    %p142 = scmp.ne.s32.totalorder %s131, %s132
    %p143 = scmp.eq.s32.totalorder %s17, 0
    %p144 = por %p142, %p143
    %p145 = scmp.ne.s32.totalorder %s131, %s132
    %p146 = scmp.eq.s32.totalorder %s18, 1
    %p147 = por %p145, %p146
    %p149 = scmp.ne.s32.totalorder %s132, %s148
    %p150 = scmp.eq.s32.totalorder %s18, 0
    %p151 = por %p149, %p150
    %s152 = ssub.s32 %s19, %s31
    %s153 = ssub.s32 %s20, %s27
    %s154 = sor.u32 %s152, %s153
    %p155 = scmp.eq.s32.totalorder %s154, 0
    %s157 = sadd.s32 %s156, 1
    %s158 = scalar_select %p155, %s156, %s157
    %p161 = pneg %p155
    %p162 = scmp.eq.s32.totalorder %s12, 1
    %p163 = por %p161, %p162
    %p164 = scmp.ne.s32.totalorder %s156, %s159
    %p165 = scmp.eq.s32.totalorder %s12, 0
    %p166 = por %p164, %p165
    %p167 = scmp.ne.s32.totalorder %s156, %s159
    %p168 = scmp.eq.s32.totalorder %s17, 1
    %p169 = por %p167, %p168
    %p170 = scmp.ne.s32.totalorder %s159, %s160
    %p171 = scmp.eq.s32.totalorder %s17, 0
    %p172 = por %p170, %p171
    %p173 = scmp.ne.s32.totalorder %s159, %s160
    %p174 = scmp.eq.s32.totalorder %s18, 1
    %p175 = por %p173, %p174
    %p177 = scmp.ne.s32.totalorder %s160, %s176
    %p178 = scmp.eq.s32.totalorder %s18, 0
    %p179 = por %p177, %p178
    %s180 = ssub.s32 %s19, %s31
    %s181 = ssub.s32 %s20, %s27
    %s182 = sor.u32 %s180, %s181
    %p183 = scmp.eq.s32.totalorder %s182, 0
    %s185 = sadd.s32 %s184, 1
    %s186 = scalar_select %p183, %s184, %s185
    %p189 = pneg %p183
    %p190 = scmp.eq.s32.totalorder %s12, 1
    %p191 = por %p189, %p190
    %p192 = scmp.ne.s32.totalorder %s184, %s187
    %p193 = scmp.eq.s32.totalorder %s12, 0
    %p194 = por %p192, %p193
    %p195 = scmp.ne.s32.totalorder %s184, %s187
    %p196 = scmp.eq.s32.totalorder %s17, 1
    %p197 = por %p195, %p196
    %p198 = scmp.ne.s32.totalorder %s187, %s188
    %p199 = scmp.eq.s32.totalorder %s17, 0
    %p200 = por %p198, %p199
    %p201 = scmp.ne.s32.totalorder %s187, %s188
    %p202 = scmp.eq.s32.totalorder %s18, 1
    %p203 = por %p201, %p202
    %p205 = scmp.ne.s32.totalorder %s188, %s204
    %p206 = scmp.eq.s32.totalorder %s18, 0
    %p207 = por %p205, %p206
    %p208 = scmp.le.s32.totalorder 1, %s12
    %p209 = scmp.lt.s32.totalorder %s12, 3
    %p210 = pnand %p208, %p209
    %p211 = pneg %p210
    // Predicated region
    $region9: #{longnet_ts_forward.42} parent=5 // pred_check
      _
    $region10: #{longnet_ts_forward.42} parent=5 // pred_check_branch
      %213 = sbr.rel (%p210) target = $region12
    $region11: #{longnet_ts_forward.42} parent=5 // pred_region
      %s214 = ssub.s32 %s12, 1
      // Predicated region
      $region13: #{longnet_ts_forward.42} parent=11 // pred_check
        %p215 = pneg %p71
      $region14: #{longnet_ts_forward.42} parent=11 // pred_check_branch
        %217 = sbr.rel (%p215) target = $region16
      $region15: #{longnet_ts_forward.42} parent=11 // pred_region
        _
      $region16: #{longnet_ts_forward.42} parent=11 // pred_fallthru
        _
      // Predicated region
      $region17: #{longnet_ts_forward.42} parent=11 // pred_check
        %p218 = pneg %p92
      $region18: #{longnet_ts_forward.42} parent=11 // pred_check_branch
        %220 = sbr.rel (%p218) target = $region20
      $region19: #{longnet_ts_forward.42} parent=11 // pred_region
        _
      $region20: #{longnet_ts_forward.42} parent=11 // pred_fallthru
        _
      // Predicated region
      $region21: #{longnet_ts_forward.42} parent=11 // pred_check
        %p221 = pneg %p118
      $region22: #{longnet_ts_forward.42} parent=11 // pred_check_branch
        %223 = sbr.rel (%p221) target = $region24
      $region23: #{longnet_ts_forward.42} parent=11 // pred_region
        %p224 = scmp.lt.s32.totalorder %s22, 0
        %s225 = scalar_select %p224, %s22, 0
        %s226 = smul.addr %s225, 4
        %s227 = scalar_lea.vmem %s3, %s226
      $region24: #{longnet_ts_forward.42} parent=11 // pred_fallthru
        _
      // Predicated region
      $region25: #{longnet_ts_forward.42} parent=11 // pred_check
        %p228 = pneg %p144
      $region26: #{longnet_ts_forward.42} parent=11 // pred_check_branch
        %230 = sbr.rel (%p228) target = $region28
      $region27: #{longnet_ts_forward.42} parent=11 // pred_region
        %p231 = scmp.lt.s32.totalorder %s22, 0
        %s232 = scalar_select %p231, %s22, 0
        %s233 = scalar_lea.vmem %s4, %s232
      $region28: #{longnet_ts_forward.42} parent=11 // pred_fallthru
        _
    $region12: #{longnet_ts_forward.42} parent=5 // pred_fallthru
      _
    %p234 = scmp.lt.s32.totalorder %s12, 2
    // Predicated region
    $region29: #{longnet_ts_forward.42} parent=5 // pred_check
      %p235 = pneg %p234
    $region30: #{longnet_ts_forward.42} parent=5 // pred_check_branch
      %237 = sbr.rel (%p235) target = $region32
    $region31: #{longnet_ts_forward.42} parent=5 // pred_region
      // Predicated region
      $region33: #{longnet_ts_forward.42} parent=31 // pred_check
        %p238 = pneg %p44
      $region34: #{longnet_ts_forward.42} parent=31 // pred_check_branch
        %240 = sbr.rel (%p238) target = $region36
      $region35: #{longnet_ts_forward.42} parent=31 // pred_region
        %s241 = smul.u32 2, %s19
        %p242 = scmp.lt.s32.totalorder %s241, 3
        %s243 = scalar_select %p242, %s241, 3
        %s244 = smul.addr %s243, 4
        %s245 = scalar_lea.vmem %s0, %s244
        %s246 = smul.u32 2, %s19
      $region36: #{longnet_ts_forward.42} parent=31 // pred_fallthru
        _
      // Predicated region
      $region37: #{longnet_ts_forward.42} parent=31 // pred_check
        %p247 = pneg %p166
      $region38: #{longnet_ts_forward.42} parent=31 // pred_check_branch
        %249 = sbr.rel (%p247) target = $region40
      $region39: #{longnet_ts_forward.42} parent=31 // pred_region
        %s250 = smul.u32 2, %s19
        %p251 = scmp.lt.s32.totalorder %s250, 3
        %s252 = scalar_select %p251, %s250, 3
        %p253 = scmp.lt.s32.totalorder %s20, 0
        %s254 = scalar_select %p253, %s20, 0
        %s255 = sadd.s32 %s254, %s252
        %s256 = smul.addr %s255, 8
        %s257 = scalar_lea.vmem %s5, %s256
        %s258 = smul.u32 2, %s19
      $region40: #{longnet_ts_forward.42} parent=31 // pred_fallthru
        _
    $region32: #{longnet_ts_forward.42} parent=5 // pred_fallthru
      _
    %p259 = scmp.le.s32.totalorder 1, %s12
    %p260 = scmp.lt.s32.totalorder %s12, 3
    %p261 = pnand %p259, %p260
    %p262 = pneg %p261
    // Predicated region
    $region41: #{longnet_ts_forward.42} parent=5 // pred_check
      _
    $region42: #{longnet_ts_forward.42} parent=5 // pred_check_branch
      %264 = sbr.rel (%p261) target = $region44
    $region43: #{longnet_ts_forward.42} parent=5 // pred_region
      %s265 = ssub.s32 %s12, 1
      %s266 = smul.u32 2, %s21
      %p267 = scmp.lt.s32.totalorder %s266, 3
      %s268 = scalar_select %p267, %s266, 3
      %s269 = smul.addr %s268, 4
      %s270 = scalar_lea.vmem %s0, %s269
      %p271 = pneg %p50
      %p272 = pneg %p47
      %p273 = pneg %p71
      %p274 = pneg %p68
      %p275 = pneg %p92
      %p276 = pneg %p89
      %p277 = scmp.lt.s32.totalorder %s22, 0
      %s278 = scalar_select %p277, %s22, 0
      %s279 = smul.addr %s278, 4
      %s280 = scalar_lea.vmem %s3, %s279
      %p281 = pneg %p118
      %p282 = pneg %p115
      %p283 = scmp.lt.s32.totalorder %s22, 0
      %s284 = scalar_select %p283, %s22, 0
      %s285 = scalar_lea.vmem %s4, %s284
      %p286 = pneg %p144
      %p287 = pneg %p141
      %s288 = smul.u32 2, %s21
      %p289 = scmp.lt.s32.totalorder %s288, 3
      %s290 = scalar_select %p289, %s288, 3
      %p291 = scmp.lt.s32.totalorder %s22, 0
      %s292 = scalar_select %p291, %s22, 0
      %s293 = sadd.s32 %s292, %s290
      %s294 = smul.addr %s293, 8
      %s295 = scalar_lea.vmem %s5, %s294
      %p296 = pneg %p172
      %p297 = pneg %p169
      %p298 = pneg %p200
      %p299 = pneg %p197
      %s300 = smul.u32 2, %s21
      %p301 = scmp.lt.s32.totalorder %s300, 3
      %s302 = scalar_select %p301, %s300, 3
      %p303 = scmp.lt.s32.totalorder %s22, 0
      %s304 = scalar_select %p303, %s22, 0
      %s305 = sadd.s32 %s304, %s302
      %s306 = smul.addr %s305, 8
      %s307 = scalar_lea.vmem %s6, %s306
      %s308 = smul.u32 2, %s21
      %p309 = scmp.lt.s32.totalorder %s308, 3
      %s310 = scalar_select %p309, %s308, 3
      %s311 = smul.addr %s310, 4
      %s312 = scalar_lea.vmem %s0, %s311
      %s313 = smul.u32 2, %s21
      %p314 = scmp.lt.s32.totalorder %s22, 0
      %s315 = scalar_select %p314, %s22, 0
      %s316 = smul.addr %s315, 4
      %s317 = scalar_lea.vmem %s3, %s316
      %p318 = scmp.lt.s32.totalorder %s22, 0
      %s319 = scalar_select %p318, %s22, 0
      %s320 = scalar_lea.vmem %s4, %s319
      %s321 = smul.u32 2, %s21
      %p322 = scmp.lt.s32.totalorder %s321, 3
      %s323 = scalar_select %p322, %s321, 3
      %p324 = scmp.lt.s32.totalorder %s22, 0
      %s325 = scalar_select %p324, %s22, 0
      %s326 = sadd.s32 %s325, %s323
      %s327 = smul.addr %s326, 8
      %s328 = scalar_lea.vmem %s5, %s327
      %s329 = smul.u32 2, %s21
      %s330 = smul.u32 2, %s21
      %p331 = scmp.lt.s32.totalorder %s330, 3
      %s332 = scalar_select %p331, %s330, 3
      %p333 = scmp.lt.s32.totalorder %s22, 0
      %s334 = scalar_select %p333, %s22, 0
      %s335 = sadd.s32 %s334, %s332
      %s336 = smul.addr %s335, 8
      %s337 = scalar_lea.vmem %s6, %s336
      %s338 = smul.u32 2, %s21
      %v340 = vld [vmem:[%s312] sm:$0xf]
      %v341 = vld [vmem:[%s312 + $0x4] sm:$0xf]
      %v342 = vunpack.c.l.bf16 %v340
      %v343 = vunpack.c.l.bf16 %v341
      %vm344 = vcmask 261120
      %v345 = vsel %vm344, %v342, 0.0
      %346 = vadd.xlane.f32.xlu0 %v345
      %v347 = vpop.xlane.xlu0 %346
      %v348 = vsel %vm344, %v343, 0.0
      %349 = vadd.xlane.f32.xlu0 %v348
      %v350 = vpop.xlane.xlu0 %349
      %v351 = vrcp.pop 32.0
      %v352 = vmul.f32 32.0, %v351
      %v353 = vsub.f32 1.0, %v352
      %v354 = vmul.f32 %v351, %v353
      %v355 = vadd.f32 %v351, %v354
      %vm356 = vweird.f32 %v351
      %v357 = vsel %vm356, %v351, %v355
      %v358 = vmul.f32 %v347, %v357
      %v359 = vmul.f32 %v350, %v357
      %v360 = vsub.f32 %v342, %v358
      %v361 = vsub.f32 %v343, %v359
      %v362 = vmul.f32 %v360, %v360
      %v363 = vmul.f32 %v361, %v361
      %v364 = vsel %vm344, %v362, 0.0
      %365 = vadd.xlane.f32.xlu0 %v364
      %v366 = vpop.xlane.xlu0 %365
      %v367 = vsel %vm344, %v363, 0.0
      %368 = vadd.xlane.f32.xlu0 %v367
      %v369 = vpop.xlane.xlu0 %368
      %v370 = vmul.f32 %v366, %v357
      %v371 = vmul.f32 %v369, %v357
      %v372 = vadd.f32 %v370, 1e-05
      %v373 = vadd.f32 %v371, 1e-05
      %v374 = vrsqrt.pop %v372
      %v375 = vmul.f32 %v374, %v372
      %v376 = vmul.f32 %v375, %v374
      %v377 = vmul.f32 0.5, %v376
      %v378 = vsub.f32 1.5, %v377
      %v379 = vmul.f32 %v374, %v378
      %vm380 = vweird.f32 %v372
      %vm381 = vweird.f32 %v374
      %vm382 = vmor %vm380, %vm381
      %v383 = vsel %vm382, %v374, %v379
      %v384 = vrsqrt.pop %v373
      %v385 = vmul.f32 %v384, %v373
      %v386 = vmul.f32 %v385, %v384
      %v387 = vmul.f32 0.5, %v386
      %v388 = vsub.f32 1.5, %v387
      %v389 = vmul.f32 %v384, %v388
      %vm390 = vweird.f32 %v373
      %vm391 = vweird.f32 %v384
      %vm392 = vmor %vm390, %vm391
      %v393 = vsel %vm392, %v384, %v389
      %v394 = vmul.f32 %v360, %v383
      %v395 = vmul.f32 %v361, %v393
      %v396 = vld [vmem:[%s1] sm:$0x1]
      %v398 = vperm.slane %v396, 0
      %v400 = vmul.f32 %v394, %v398
      %v401 = vmul.f32 %v395, %v398
      %v402 = vld [vmem:[%s2] sm:$0x1]
      %v404 = vperm.slane %v402, 0
      %v406 = vadd.f32 %v400, %v404
      %v407 = vadd.f32 %v401, %v404
      %v408 = vld [vmem:[%s317] sm:$0xf]
      %v409 = vld [vmem:[%s317 + $0x4] sm:$0xf]
      %v410 = vld [vmem:[%s317 + $0x8] sm:$0xf]
      %v411 = vld [vmem:[%s317 + $0xc] sm:$0xf]
      %v412 = vpack.c.bf16 %v407, %v406
      %v413 = vld [vmem:[%s320] sm:$0x1]
      %v415 = vperm.slane %v413, 0
      %v421 = vunpack.c.l.b16 %v408
      %v422 = vunpack.c.l.b16 %v409
      %v423 = vunpack.c.l.b16 %v410
      %v424 = vunpack.c.l.b16 %v411
      %v425 = vpack.c.b16 %v422, %v421
      %v426 = vpack.c.b16 %v424, %v423
      %v430 = vsel %vm344, %v412, 0
      %432 = vmatpush.bf16.msra.mxu0 0
      %433 = vmatpush.bf16.msra.mxu0 0
      %434 = vmatpush.bf16.msra.mxu0 0
      %435 = vmatpush.bf16.msra.mxu0 0
      %436 = vmatpush.bf16.msra.mxu0 0
      %437 = vmatpush.bf16.msra.mxu0 0
      %438 = vmatpush.bf16.msra.mxu0 %v426
      %439 = vmatpush.bf16.msra.mxu0 %v425
      %440 = vmatmul.bf16.gmra.mxu0 %v430
      %v441 = vpop.f32.mrf.mxu0
      %v442 = vadd.f32 %v415, %v441
      %v443 = vpop.f32.mrf.mxu0
      %v444 = vadd.f32 %v415, %v443
      %445 = vdwg.mxu0
      %v446 = vld [vmem:[%s328] sm:$0xff]
      %v447 = vld [vmem:[%s328 + $0x8] sm:$0xff]
      %v448 = vadd.f32 %v442, %v446
      %v449 = vadd.f32 %v444, %v447
      %450 = vst.msk [vmem:[%s337] sm:$0xff] %vm344, %v448
      %451 = vst.msk [vmem:[%s337 + $0x8] sm:$0xff] %vm344, %v449
      %s452 = smul.u32 2, %s21
      %p453 = scmp.lt.s32.totalorder %s452, 3
      %s454 = scalar_select %p453, %s452, 3
      %p455 = scmp.lt.s32.totalorder %s22, 0
      %s456 = scalar_select %p455, %s22, 0
      %s457 = sadd.s32 %s456, %s454
      %s458 = smul.addr %s457, 8
      %s459 = scalar_lea.vmem %s6, %s458
      // Predicated region
      $region45: #{longnet_ts_forward.42} parent=43 // pred_check
        %p460 = pneg %p197
      $region46: #{longnet_ts_forward.42} parent=43 // pred_check_branch
        %462 = sbr.rel (%p460) target = $region48
      $region47: #{longnet_ts_forward.42} parent=43 // pred_region
        %s463 = smul.u32 2, %s21
      $region48: #{longnet_ts_forward.42} parent=43 // pred_fallthru
        _
    $region44: #{longnet_ts_forward.42} parent=5 // pred_fallthru
      _
    %p464 = scmp.le.s32.totalorder 2, %s12
    // Predicated region
    $region49: #{longnet_ts_forward.42} parent=5 // pred_check
      %p465 = pneg %p464
    $region50: #{longnet_ts_forward.42} parent=5 // pred_check_branch
      %467 = sbr.rel (%p465) target = $region52
    $region51: #{longnet_ts_forward.42} parent=5 // pred_region
      %s468 = ssub.s32 %s12, 2
      // Predicated region
      $region53: #{longnet_ts_forward.42} parent=51 // pred_check
        %p469 = pneg %p203
      $region54: #{longnet_ts_forward.42} parent=51 // pred_check_branch
        %471 = sbr.rel (%p469) target = $region56
      $region55: #{longnet_ts_forward.42} parent=51 // pred_region
        %s472 = smul.u32 2, %s23
        %p473 = scmp.lt.s32.totalorder %s472, 3
        %s474 = scalar_select %p473, %s472, 3
        %p475 = scmp.lt.s32.totalorder %s24, 0
        %s476 = scalar_select %p475, %s24, 0
        %s477 = sadd.s32 %s476, %s474
        %s478 = smul.addr %s477, 8
        %s479 = scalar_lea.vmem %s6, %s478
      $region56: #{longnet_ts_forward.42} parent=51 // pred_fallthru
        _
    $region52: #{longnet_ts_forward.42} parent=5 // pred_fallthru
      _
  $region6: #{longnet_ts_forward.42} parent=0 // loop_footer
    %s16 = sadd.s32 1, %s12
  $region7: #{longnet_ts_forward.42} parent=0 // loop_footer_branch
    %11 = sbr.rel target = $region3
  $region8: #{longnet_ts_forward.42} parent=0 // loop_exit
    _

// kernel: longnet_ts_forward.44
$region0: #{longnet_ts_forward.44}
  #allocation0 [shape = 'u32[]', space=smem, size = 0x4, offset = 0x4, fixed_abs, tag = 'smem constant byte address 0x4 - core index']
  #allocation1 [shape = 'u32[72,128]{1,0:T(1,128)}', space=vmem, size = 0x9000, scoped, tag = 'internal scratch']
  %s0 = inlined_call_operand.vmem [shape: bf16[32,64], index: 0, kind: input, shape index: {}]
  %s1 = inlined_call_operand.vmem [shape: f32[1,64], index: 1, kind: input, shape index: {}]
  %s2 = inlined_call_operand.vmem [shape: f32[1,64], index: 2, kind: input, shape index: {}]
  %s3 = inlined_call_operand.vmem [shape: bf16[64,32], index: 3, kind: input, shape index: {}]
  %s4 = inlined_call_operand.vmem [shape: f32[1,32], index: 4, kind: input, shape index: {}]
  %s5 = inlined_call_operand.vmem [shape: f32[32,32], index: 5, kind: input, shape index: {}]
  %s6 = inlined_call_operand.vmem [shape: f32[32,32], index: 6, kind: output, shape index: {}]
  %s7 = sld [smem:[#allocation0]]
  $region57: #{longnet_ts_forward.44} parent=0
    _
  %s9 = ssub.s32 1, %s7
  %s10 = scalar_select 0, %s9, %s7
  loop: start=0, step=1, limit=4
  $region2: #{longnet_ts_forward.44} parent=0 // loop_pre_header
    _
  $region3: #{longnet_ts_forward.44} parent=0 // loop_header
    %s12 = sphi 0, %s16
    %p13 = scmp.ge.s32.totalorder %s12, 4
    %s19 = sphi 0, %s31
    %s20 = sphi 0, %s27
    %s21 = sphi 0, %s19
    %s22 = sphi 0, %s20
    %s23 = sphi 0, %s21
    %s24 = sphi 0, %s22
    %s34 = sphi 0, %s36
    %s37 = sphi 0, %s34
    %s38 = sphi 0, %s37
    %s54 = sphi 0, %s38
    %s58 = sphi 0, %s58
    %s60 = sphi 0, %s58
    %s61 = sphi 0, %s60
    %s75 = sphi 0, %s61
    %s79 = sphi 0, %s79
    %s81 = sphi 0, %s79
    %s82 = sphi 0, %s81
    %s96 = sphi 0, %s82
    %s102 = sphi 0, %s104
    %s105 = sphi 0, %s102
    %s106 = sphi 0, %s105
    %s122 = sphi 0, %s106
    %s128 = sphi 0, %s130
    %s131 = sphi 0, %s128
    %s132 = sphi 0, %s131
    %s148 = sphi 0, %s132
    %s156 = sphi 0, %s158
    %s159 = sphi 0, %s156
    %s160 = sphi 0, %s159
    %s176 = sphi 0, %s160
    %s184 = sphi 0, %s186
    %s187 = sphi 0, %s184
    %s188 = sphi 0, %s187
    %s204 = sphi 0, %s188
  $region4: #{longnet_ts_forward.44} parent=0 // loop_header_branch
    %15 = sbr.rel (%p13) target = $region8
  $region5: #{longnet_ts_forward.44} parent=0 // loop_body
    %s17 = ssub.s32 %s12, 1
    %s18 = ssub.s32 %s12, 2
    %s25 = sadd.s32 1, %s20
    %p26 = scmp.ge.s32.totalorder %s25, 1
    %s27 = scalar_select %p26, 0, %s25
    %s28 = sadd.s32 1, %s19
    %s29 = scalar_select %p26, %s28, %s19
    %p30 = scmp.ge.s32.totalorder %s29, 2
    %s31 = scalar_select %p30, 0, %s29
    %s32 = ssub.s32 %s19, %s31
    %p33 = scmp.eq.s32.totalorder %s32, 0
    %s35 = sadd.s32 %s34, 1
    %s36 = scalar_select %p33, %s34, %s35
    %p39 = pneg %p33
    %p40 = scmp.eq.s32.totalorder %s12, 1
    %p41 = por %p39, %p40
    %p42 = scmp.ne.s32.totalorder %s34, %s37
    %p43 = scmp.eq.s32.totalorder %s12, 0
    %p44 = por %p42, %p43
    %p45 = scmp.ne.s32.totalorder %s34, %s37
    %p46 = scmp.eq.s32.totalorder %s17, 1
    %p47 = por %p45, %p46
    %p48 = scmp.ne.s32.totalorder %s37, %s38
    %p49 = scmp.eq.s32.totalorder %s17, 0
    %p50 = por %p48, %p49
    %p51 = scmp.ne.s32.totalorder %s37, %s38
    %p52 = scmp.eq.s32.totalorder %s18, 1
    %p53 = por %p51, %p52
    %p55 = scmp.ne.s32.totalorder %s38, %s54
    %p56 = scmp.eq.s32.totalorder %s18, 0
    %p57 = por %p55, %p56
    %s59 = sadd.s32 %s58, 1
    %p62 = scmp.eq.s32.totalorder %s12, 1
    %p63 = scmp.ne.s32.totalorder %s58, %s60
    %p64 = scmp.eq.s32.totalorder %s12, 0
    %p65 = por %p63, %p64
    %p66 = scmp.ne.s32.totalorder %s58, %s60
    %p67 = scmp.eq.s32.totalorder %s17, 1
    %p68 = por %p66, %p67
    %p69 = scmp.ne.s32.totalorder %s60, %s61
    %p70 = scmp.eq.s32.totalorder %s17, 0
    %p71 = por %p69, %p70
    %p72 = scmp.ne.s32.totalorder %s60, %s61
    %p73 = scmp.eq.s32.totalorder %s18, 1
    %p74 = por %p72, %p73
    %p76 = scmp.ne.s32.totalorder %s61, %s75
    %p77 = scmp.eq.s32.totalorder %s18, 0
    %p78 = por %p76, %p77
    %s80 = sadd.s32 %s79, 1
    %p83 = scmp.eq.s32.totalorder %s12, 1
    %p84 = scmp.ne.s32.totalorder %s79, %s81
    %p85 = scmp.eq.s32.totalorder %s12, 0
    %p86 = por %p84, %p85
    %p87 = scmp.ne.s32.totalorder %s79, %s81
    %p88 = scmp.eq.s32.totalorder %s17, 1
    %p89 = por %p87, %p88
    %p90 = scmp.ne.s32.totalorder %s81, %s82
    %p91 = scmp.eq.s32.totalorder %s17, 0
    %p92 = por %p90, %p91
    %p93 = scmp.ne.s32.totalorder %s81, %s82
    %p94 = scmp.eq.s32.totalorder %s18, 1
    %p95 = por %p93, %p94
    %p97 = scmp.ne.s32.totalorder %s82, %s96
    %p98 = scmp.eq.s32.totalorder %s18, 0
    %p99 = por %p97, %p98
    %s100 = ssub.s32 %s20, %s27
    %p101 = scmp.eq.s32.totalorder %s100, 0
    %s103 = sadd.s32 %s102, 1
    %s104 = scalar_select %p101, %s102, %s103
    %p107 = pneg %p101
    %p108 = scmp.eq.s32.totalorder %s12, 1
    %p109 = por %p107, %p108
    %p110 = scmp.ne.s32.totalorder %s102, %s105
    %p111 = scmp.eq.s32.totalorder %s12, 0
    %p112 = por %p110, %p111
    %p113 = scmp.ne.s32.totalorder %s102, %s105
    %p114 = scmp.eq.s32.totalorder %s17, 1
    %p115 = por %p113, %p114
    %p116 = scmp.ne.s32.totalorder %s105, %s106
    %p117 = scmp.eq.s32.totalorder %s17, 0
    %p118 = por %p116, %p117
    %p119 = scmp.ne.s32.totalorder %s105, %s106
    %p120 = scmp.eq.s32.totalorder %s18, 1
    %p121 = por %p119, %p120
    %p123 = scmp.ne.s32.totalorder %s106, %s122
    %p124 = scmp.eq.s32.totalorder %s18, 0
    %p125 = por %p123, %p124
    %s126 = ssub.s32 %s20, %s27
    %p127 = scmp.eq.s32.totalorder %s126, 0
    %s129 = sadd.s32 %s128, 1
    %s130 = scalar_select %p127, %s128, %s129
    %p133 = pneg %p127
    %p134 = scmp.eq.s32.totalorder %s12, 1
    %p135 = por %p133, %p134
    %p136 = scmp.ne.s32.totalorder %s128, %s131
    %p137 = scmp.eq.s32.totalorder %s12, 0
    %p138 = por %p136, %p137
    %p139 = scmp.ne.s32.totalorder %s128, %s131
    %p140 = scmp.eq.s32.totalorder %s17, 1
    %p141 = por %p139, %p140
    %p142 = scmp.ne.s32.totalorder %s131, %s132
    %p143 = scmp.eq.s32.totalorder %s17, 0
    %p144 = por %p142, %p143
    %p145 = scmp.ne.s32.totalorder %s131, %s132
    %p146 = scmp.eq.s32.totalorder %s18, 1
    %p147 = por %p145, %p146
    %p149 = scmp.ne.s32.totalorder %s132, %s148
    %p150 = scmp.eq.s32.totalorder %s18, 0
    %p151 = por %p149, %p150
    %s152 = ssub.s32 %s19, %s31
    %s153 = ssub.s32 %s20, %s27
    %s154 = sor.u32 %s152, %s153
    %p155 = scmp.eq.s32.totalorder %s154, 0
    %s157 = sadd.s32 %s156, 1
    %s158 = scalar_select %p155, %s156, %s157
    %p161 = pneg %p155
    %p162 = scmp.eq.s32.totalorder %s12, 1
    %p163 = por %p161, %p162
    %p164 = scmp.ne.s32.totalorder %s156, %s159
    %p165 = scmp.eq.s32.totalorder %s12, 0
    %p166 = por %p164, %p165
    %p167 = scmp.ne.s32.totalorder %s156, %s159
    %p168 = scmp.eq.s32.totalorder %s17, 1
    %p169 = por %p167, %p168
    %p170 = scmp.ne.s32.totalorder %s159, %s160
    %p171 = scmp.eq.s32.totalorder %s17, 0
    %p172 = por %p170, %p171
    %p173 = scmp.ne.s32.totalorder %s159, %s160
    %p174 = scmp.eq.s32.totalorder %s18, 1
    %p175 = por %p173, %p174
    %p177 = scmp.ne.s32.totalorder %s160, %s176
    %p178 = scmp.eq.s32.totalorder %s18, 0
    %p179 = por %p177, %p178
    %s180 = ssub.s32 %s19, %s31
    %s181 = ssub.s32 %s20, %s27
    %s182 = sor.u32 %s180, %s181
    %p183 = scmp.eq.s32.totalorder %s182, 0
    %s185 = sadd.s32 %s184, 1
    %s186 = scalar_select %p183, %s184, %s185
    %p189 = pneg %p183
    %p190 = scmp.eq.s32.totalorder %s12, 1
    %p191 = por %p189, %p190
    %p192 = scmp.ne.s32.totalorder %s184, %s187
    %p193 = scmp.eq.s32.totalorder %s12, 0
    %p194 = por %p192, %p193
    %p195 = scmp.ne.s32.totalorder %s184, %s187
    %p196 = scmp.eq.s32.totalorder %s17, 1
    %p197 = por %p195, %p196
    %p198 = scmp.ne.s32.totalorder %s187, %s188
    %p199 = scmp.eq.s32.totalorder %s17, 0
    %p200 = por %p198, %p199
    %p201 = scmp.ne.s32.totalorder %s187, %s188
    %p202 = scmp.eq.s32.totalorder %s18, 1
    %p203 = por %p201, %p202
    %p205 = scmp.ne.s32.totalorder %s188, %s204
    %p206 = scmp.eq.s32.totalorder %s18, 0
    %p207 = por %p205, %p206
    %p208 = scmp.le.s32.totalorder 1, %s12
    %p209 = scmp.lt.s32.totalorder %s12, 3
    %p210 = pnand %p208, %p209
    %p211 = pneg %p210
    // Predicated region
    $region9: #{longnet_ts_forward.44} parent=5 // pred_check
      _
    $region10: #{longnet_ts_forward.44} parent=5 // pred_check_branch
      %213 = sbr.rel (%p210) target = $region12
    $region11: #{longnet_ts_forward.44} parent=5 // pred_region
      %s214 = ssub.s32 %s12, 1
      // Predicated region
      $region13: #{longnet_ts_forward.44} parent=11 // pred_check
        %p215 = pneg %p71
      $region14: #{longnet_ts_forward.44} parent=11 // pred_check_branch
        %217 = sbr.rel (%p215) target = $region16
      $region15: #{longnet_ts_forward.44} parent=11 // pred_region
        _
      $region16: #{longnet_ts_forward.44} parent=11 // pred_fallthru
        _
      // Predicated region
      $region17: #{longnet_ts_forward.44} parent=11 // pred_check
        %p218 = pneg %p92
      $region18: #{longnet_ts_forward.44} parent=11 // pred_check_branch
        %220 = sbr.rel (%p218) target = $region20
      $region19: #{longnet_ts_forward.44} parent=11 // pred_region
        _
      $region20: #{longnet_ts_forward.44} parent=11 // pred_fallthru
        _
      // Predicated region
      $region21: #{longnet_ts_forward.44} parent=11 // pred_check
        %p221 = pneg %p118
      $region22: #{longnet_ts_forward.44} parent=11 // pred_check_branch
        %223 = sbr.rel (%p221) target = $region24
      $region23: #{longnet_ts_forward.44} parent=11 // pred_region
        %p224 = scmp.lt.s32.totalorder %s22, 0
        %s225 = scalar_select %p224, %s22, 0
        %s226 = smul.addr %s225, 4
        %s227 = scalar_lea.vmem %s3, %s226
      $region24: #{longnet_ts_forward.44} parent=11 // pred_fallthru
        _
      // Predicated region
      $region25: #{longnet_ts_forward.44} parent=11 // pred_check
        %p228 = pneg %p144
      $region26: #{longnet_ts_forward.44} parent=11 // pred_check_branch
        %230 = sbr.rel (%p228) target = $region28
      $region27: #{longnet_ts_forward.44} parent=11 // pred_region
        %p231 = scmp.lt.s32.totalorder %s22, 0
        %s232 = scalar_select %p231, %s22, 0
        %s233 = scalar_lea.vmem %s4, %s232
      $region28: #{longnet_ts_forward.44} parent=11 // pred_fallthru
        _
    $region12: #{longnet_ts_forward.44} parent=5 // pred_fallthru
      _
    %p234 = scmp.lt.s32.totalorder %s12, 2
    // Predicated region
    $region29: #{longnet_ts_forward.44} parent=5 // pred_check
      %p235 = pneg %p234
    $region30: #{longnet_ts_forward.44} parent=5 // pred_check_branch
      %237 = sbr.rel (%p235) target = $region32
    $region31: #{longnet_ts_forward.44} parent=5 // pred_region
      // Predicated region
      $region33: #{longnet_ts_forward.44} parent=31 // pred_check
        %p238 = pneg %p44
      $region34: #{longnet_ts_forward.44} parent=31 // pred_check_branch
        %240 = sbr.rel (%p238) target = $region36
      $region35: #{longnet_ts_forward.44} parent=31 // pred_region
        %s241 = smul.u32 2, %s19
        %p242 = scmp.lt.s32.totalorder %s241, 3
        %s243 = scalar_select %p242, %s241, 3
        %s244 = smul.addr %s243, 4
        %s245 = scalar_lea.vmem %s0, %s244
        %s246 = smul.u32 2, %s19
      $region36: #{longnet_ts_forward.44} parent=31 // pred_fallthru
        _
      // Predicated region
      $region37: #{longnet_ts_forward.44} parent=31 // pred_check
        %p247 = pneg %p166
      $region38: #{longnet_ts_forward.44} parent=31 // pred_check_branch
        %249 = sbr.rel (%p247) target = $region40
      $region39: #{longnet_ts_forward.44} parent=31 // pred_region
        %s250 = smul.u32 2, %s19
        %p251 = scmp.lt.s32.totalorder %s250, 3
        %s252 = scalar_select %p251, %s250, 3
        %p253 = scmp.lt.s32.totalorder %s20, 0
        %s254 = scalar_select %p253, %s20, 0
        %s255 = sadd.s32 %s254, %s252
        %s256 = smul.addr %s255, 8
        %s257 = scalar_lea.vmem %s5, %s256
        %s258 = smul.u32 2, %s19
      $region40: #{longnet_ts_forward.44} parent=31 // pred_fallthru
        _
    $region32: #{longnet_ts_forward.44} parent=5 // pred_fallthru
      _
    %p259 = scmp.le.s32.totalorder 1, %s12
    %p260 = scmp.lt.s32.totalorder %s12, 3
    %p261 = pnand %p259, %p260
    %p262 = pneg %p261
    // Predicated region
    $region41: #{longnet_ts_forward.44} parent=5 // pred_check
      _
    $region42: #{longnet_ts_forward.44} parent=5 // pred_check_branch
      %264 = sbr.rel (%p261) target = $region44
    $region43: #{longnet_ts_forward.44} parent=5 // pred_region
      %s265 = ssub.s32 %s12, 1
      %s266 = smul.u32 2, %s21
      %p267 = scmp.lt.s32.totalorder %s266, 3
      %s268 = scalar_select %p267, %s266, 3
      %s269 = smul.addr %s268, 4
      %s270 = scalar_lea.vmem %s0, %s269
      %p271 = pneg %p50
      %p272 = pneg %p47
      %p273 = pneg %p71
      %p274 = pneg %p68
      %p275 = pneg %p92
      %p276 = pneg %p89
      %p277 = scmp.lt.s32.totalorder %s22, 0
      %s278 = scalar_select %p277, %s22, 0
      %s279 = smul.addr %s278, 4
      %s280 = scalar_lea.vmem %s3, %s279
      %p281 = pneg %p118
      %p282 = pneg %p115
      %p283 = scmp.lt.s32.totalorder %s22, 0
      %s284 = scalar_select %p283, %s22, 0
      %s285 = scalar_lea.vmem %s4, %s284
      %p286 = pneg %p144
      %p287 = pneg %p141
      %s288 = smul.u32 2, %s21
      %p289 = scmp.lt.s32.totalorder %s288, 3
      %s290 = scalar_select %p289, %s288, 3
      %p291 = scmp.lt.s32.totalorder %s22, 0
      %s292 = scalar_select %p291, %s22, 0
      %s293 = sadd.s32 %s292, %s290
      %s294 = smul.addr %s293, 8
      %s295 = scalar_lea.vmem %s5, %s294
      %p296 = pneg %p172
      %p297 = pneg %p169
      %p298 = pneg %p200
      %p299 = pneg %p197
      %s300 = smul.u32 2, %s21
      %p301 = scmp.lt.s32.totalorder %s300, 3
      %s302 = scalar_select %p301, %s300, 3
      %p303 = scmp.lt.s32.totalorder %s22, 0
      %s304 = scalar_select %p303, %s22, 0
      %s305 = sadd.s32 %s304, %s302
      %s306 = smul.addr %s305, 8
      %s307 = scalar_lea.vmem %s6, %s306
      %s308 = smul.u32 2, %s21
      %p309 = scmp.lt.s32.totalorder %s308, 3
      %s310 = scalar_select %p309, %s308, 3
      %s311 = smul.addr %s310, 4
      %s312 = scalar_lea.vmem %s0, %s311
      %s313 = smul.u32 2, %s21
      %p314 = scmp.lt.s32.totalorder %s22, 0
      %s315 = scalar_select %p314, %s22, 0
      %s316 = smul.addr %s315, 4
      %s317 = scalar_lea.vmem %s3, %s316
      %p318 = scmp.lt.s32.totalorder %s22, 0
      %s319 = scalar_select %p318, %s22, 0
      %s320 = scalar_lea.vmem %s4, %s319
      %s321 = smul.u32 2, %s21
      %p322 = scmp.lt.s32.totalorder %s321, 3
      %s323 = scalar_select %p322, %s321, 3
      %p324 = scmp.lt.s32.totalorder %s22, 0
      %s325 = scalar_select %p324, %s22, 0
      %s326 = sadd.s32 %s325, %s323
      %s327 = smul.addr %s326, 8
      %s328 = scalar_lea.vmem %s5, %s327
      %s329 = smul.u32 2, %s21
      %s330 = smul.u32 2, %s21
      %p331 = scmp.lt.s32.totalorder %s330, 3
      %s332 = scalar_select %p331, %s330, 3
      %p333 = scmp.lt.s32.totalorder %s22, 0
      %s334 = scalar_select %p333, %s22, 0
      %s335 = sadd.s32 %s334, %s332
      %s336 = smul.addr %s335, 8
      %s337 = scalar_lea.vmem %s6, %s336
      %s338 = smul.u32 2, %s21
      %v340 = vld [vmem:[%s312] sm:$0xf]
      %v341 = vld [vmem:[%s312 + $0x4] sm:$0xf]
      %v342 = vunpack.c.l.bf16 %v340
      %v343 = vunpack.c.l.bf16 %v341
      %vm344 = vcmask 523264
      %v345 = vsel %vm344, %v342, 0.0
      %346 = vadd.xlane.f32.xlu0 %v345
      %v347 = vpop.xlane.xlu0 %346
      %v348 = vsel %vm344, %v343, 0.0
      %349 = vadd.xlane.f32.xlu0 %v348
      %v350 = vpop.xlane.xlu0 %349
      %v351 = vrcp.pop 64.0
      %v352 = vmul.f32 64.0, %v351
      %v353 = vsub.f32 1.0, %v352
      %v354 = vmul.f32 %v351, %v353
      %v355 = vadd.f32 %v351, %v354
      %vm356 = vweird.f32 %v351
      %v357 = vsel %vm356, %v351, %v355
      %v358 = vmul.f32 %v347, %v357
      %v359 = vmul.f32 %v350, %v357
      %v360 = vsub.f32 %v342, %v358
      %v361 = vsub.f32 %v343, %v359
      %v362 = vmul.f32 %v360, %v360
      %v363 = vmul.f32 %v361, %v361
      %v364 = vsel %vm344, %v362, 0.0
      %365 = vadd.xlane.f32.xlu0 %v364
      %v366 = vpop.xlane.xlu0 %365
      %v367 = vsel %vm344, %v363, 0.0
      %368 = vadd.xlane.f32.xlu0 %v367
      %v369 = vpop.xlane.xlu0 %368
      %v370 = vmul.f32 %v366, %v357
      %v371 = vmul.f32 %v369, %v357
      %v372 = vadd.f32 %v370, 1e-05
      %v373 = vadd.f32 %v371, 1e-05
      %v374 = vrsqrt.pop %v372
      %v375 = vmul.f32 %v374, %v372
      %v376 = vmul.f32 %v375, %v374
      %v377 = vmul.f32 0.5, %v376
      %v378 = vsub.f32 1.5, %v377
      %v379 = vmul.f32 %v374, %v378
      %vm380 = vweird.f32 %v372
      %vm381 = vweird.f32 %v374
      %vm382 = vmor %vm380, %vm381
      %v383 = vsel %vm382, %v374, %v379
      %v384 = vrsqrt.pop %v373
      %v385 = vmul.f32 %v384, %v373
      %v386 = vmul.f32 %v385, %v384
      %v387 = vmul.f32 0.5, %v386
      %v388 = vsub.f32 1.5, %v387
      %v389 = vmul.f32 %v384, %v388
      %vm390 = vweird.f32 %v373
      %vm391 = vweird.f32 %v384
      %vm392 = vmor %vm390, %vm391
      %v393 = vsel %vm392, %v384, %v389
      %v394 = vmul.f32 %v360, %v383
      %v395 = vmul.f32 %v361, %v393
      %v396 = vld [vmem:[%s1] sm:$0x1]
      %v398 = vperm.slane %v396, 0
      %v400 = vmul.f32 %v394, %v398
      %v401 = vmul.f32 %v395, %v398
      %v402 = vld [vmem:[%s2] sm:$0x1]
      %v404 = vperm.slane %v402, 0
      %v406 = vadd.f32 %v400, %v404
      %v407 = vadd.f32 %v401, %v404
      %v408 = vld [vmem:[%s317] sm:$0xf]
      %v409 = vld [vmem:[%s317 + $0x4] sm:$0xf]
      %v410 = vld [vmem:[%s317 + $0x8] sm:$0xf]
      %v411 = vld [vmem:[%s317 + $0xc] sm:$0xf]
      %v412 = vld [vmem:[%s317 + $0x10] sm:$0xf]
      %v413 = vld [vmem:[%s317 + $0x14] sm:$0xf]
      %v414 = vld [vmem:[%s317 + $0x18] sm:$0xf]
      %v415 = vld [vmem:[%s317 + $0x1c] sm:$0xf]
      %v416 = vpack.c.bf16 %v407, %v406
      %v417 = vld [vmem:[%s320] sm:$0x1]
      %v419 = vperm.slane %v417, 0
      %v429 = vunpack.c.l.b16 %v408
      %v430 = vunpack.c.l.b16 %v409
      %v431 = vunpack.c.l.b16 %v410
      %v432 = vunpack.c.l.b16 %v411
      %v433 = vunpack.c.l.b16 %v412
      %v434 = vunpack.c.l.b16 %v413
      %v435 = vunpack.c.l.b16 %v414
      %v436 = vunpack.c.l.b16 %v415
      %v437 = vpack.c.b16 %v430, %v429
      %v438 = vpack.c.b16 %v432, %v431
      %v439 = vpack.c.b16 %v434, %v433
      %v440 = vpack.c.b16 %v436, %v435
      %v446 = vsel %vm344, %v416, 0
      %448 = vmatpush.bf16.msra.mxu0 0
      %449 = vmatpush.bf16.msra.mxu0 0
      %450 = vmatpush.bf16.msra.mxu0 0
      %451 = vmatpush.bf16.msra.mxu0 0
      %452 = vmatpush.bf16.msra.mxu0 %v440
      %453 = vmatpush.bf16.msra.mxu0 %v439
      %454 = vmatpush.bf16.msra.mxu0 %v438
      %455 = vmatpush.bf16.msra.mxu0 %v437
      %456 = vmatmul.bf16.gmra.mxu0 %v446
      %v457 = vpop.f32.mrf.mxu0
      %v458 = vadd.f32 %v419, %v457
      %v459 = vpop.f32.mrf.mxu0
      %v460 = vadd.f32 %v419, %v459
      %461 = vdwg.mxu0
      %v462 = vld [vmem:[%s328] sm:$0xff]
      %v463 = vld [vmem:[%s328 + $0x8] sm:$0xff]
      %v464 = vadd.f32 %v458, %v462
      %v465 = vadd.f32 %v460, %v463
      %vm466 = vcmask 261120
      %467 = vst.msk [vmem:[%s337] sm:$0xff] %vm466, %v464
      %468 = vst.msk [vmem:[%s337 + $0x8] sm:$0xff] %vm466, %v465
      %s469 = smul.u32 2, %s21
      %p470 = scmp.lt.s32.totalorder %s469, 3
      %s471 = scalar_select %p470, %s469, 3
      %p472 = scmp.lt.s32.totalorder %s22, 0
      %s473 = scalar_select %p472, %s22, 0
      %s474 = sadd.s32 %s473, %s471
      %s475 = smul.addr %s474, 8
      %s476 = scalar_lea.vmem %s6, %s475
      // Predicated region
      $region45: #{longnet_ts_forward.44} parent=43 // pred_check
        %p477 = pneg %p197
      $region46: #{longnet_ts_forward.44} parent=43 // pred_check_branch
        %479 = sbr.rel (%p477) target = $region48
      $region47: #{longnet_ts_forward.44} parent=43 // pred_region
        %s480 = smul.u32 2, %s21
      $region48: #{longnet_ts_forward.44} parent=43 // pred_fallthru
        _
    $region44: #{longnet_ts_forward.44} parent=5 // pred_fallthru
      _
    %p481 = scmp.le.s32.totalorder 2, %s12
    // Predicated region
    $region49: #{longnet_ts_forward.44} parent=5 // pred_check
      %p482 = pneg %p481
    $region50: #{longnet_ts_forward.44} parent=5 // pred_check_branch
      %484 = sbr.rel (%p482) target = $region52
    $region51: #{longnet_ts_forward.44} parent=5 // pred_region
      %s485 = ssub.s32 %s12, 2
      // Predicated region
      $region53: #{longnet_ts_forward.44} parent=51 // pred_check
        %p486 = pneg %p203
      $region54: #{longnet_ts_forward.44} parent=51 // pred_check_branch
        %488 = sbr.rel (%p486) target = $region56
      $region55: #{longnet_ts_forward.44} parent=51 // pred_region
        %s489 = smul.u32 2, %s23
        %p490 = scmp.lt.s32.totalorder %s489, 3
        %s491 = scalar_select %p490, %s489, 3
        %p492 = scmp.lt.s32.totalorder %s24, 0
        %s493 = scalar_select %p492, %s24, 0
        %s494 = sadd.s32 %s493, %s491
        %s495 = smul.addr %s494, 8
        %s496 = scalar_lea.vmem %s6, %s495
      $region56: #{longnet_ts_forward.44} parent=51 // pred_fallthru
        _
    $region52: #{longnet_ts_forward.44} parent=5 // pred_fallthru
      _
  $region6: #{longnet_ts_forward.44} parent=0 // loop_footer
    %s16 = sadd.s32 1, %s12
  $region7: #{longnet_ts_forward.44} parent=0 // loop_footer_branch
    %11 = sbr.rel target = $region3
  $region8: #{longnet_ts_forward.44} parent=0 // loop_exit
    _

// kernel: longnet_ts_forward.55
$region0: #{longnet_ts_forward.55}
  #allocation0 [shape = 'u32[]', space=smem, size = 0x4, offset = 0x4, fixed_abs, tag = 'smem constant byte address 0x4 - core index']
  #allocation1 [shape = 'u32[72,128]{1,0:T(1,128)}', space=vmem, size = 0x9000, scoped, tag = 'internal scratch']
  %s0 = inlined_call_operand.vmem [shape: f32[32,32], index: 0, kind: input, shape index: {}]
  %s1 = inlined_call_operand.vmem [shape: f32[1,32], index: 1, kind: input, shape index: {}]
  %s2 = inlined_call_operand.vmem [shape: f32[1,32], index: 2, kind: input, shape index: {}]
  %s3 = inlined_call_operand.vmem [shape: bf16[32,32], index: 3, kind: input, shape index: {}]
  %s4 = inlined_call_operand.vmem [shape: f32[1,32], index: 4, kind: input, shape index: {}]
  %s5 = inlined_call_operand.vmem [shape: bf16[32,32], index: 5, kind: output, shape index: {}]
  %s6 = sld [smem:[#allocation0]]
  $region53: #{longnet_ts_forward.55} parent=0
    _
  %s8 = ssub.s32 1, %s6
  %s9 = scalar_select 0, %s8, %s6
  loop: start=0, step=1, limit=4
  $region2: #{longnet_ts_forward.55} parent=0 // loop_pre_header
    _
  $region3: #{longnet_ts_forward.55} parent=0 // loop_header
    %s11 = sphi 0, %s15
    %p12 = scmp.ge.s32.totalorder %s11, 4
    %s18 = sphi 0, %s30
    %s19 = sphi 0, %s26
    %s20 = sphi 0, %s18
    %s21 = sphi 0, %s19
    %s22 = sphi 0, %s20
    %s23 = sphi 0, %s21
    %s33 = sphi 0, %s35
    %s36 = sphi 0, %s33
    %s37 = sphi 0, %s36
    %s53 = sphi 0, %s37
    %s57 = sphi 0, %s57
    %s59 = sphi 0, %s57
    %s60 = sphi 0, %s59
    %s74 = sphi 0, %s60
    %s78 = sphi 0, %s78
    %s80 = sphi 0, %s78
    %s81 = sphi 0, %s80
    %s95 = sphi 0, %s81
    %s101 = sphi 0, %s103
    %s104 = sphi 0, %s101
    %s105 = sphi 0, %s104
    %s121 = sphi 0, %s105
    %s127 = sphi 0, %s129
    %s130 = sphi 0, %s127
    %s131 = sphi 0, %s130
    %s147 = sphi 0, %s131
    %s155 = sphi 0, %s157
    %s158 = sphi 0, %s155
    %s159 = sphi 0, %s158
    %s175 = sphi 0, %s159
  $region4: #{longnet_ts_forward.55} parent=0 // loop_header_branch
    %14 = sbr.rel (%p12) target = $region8
  $region5: #{longnet_ts_forward.55} parent=0 // loop_body
    %s16 = ssub.s32 %s11, 1
    %s17 = ssub.s32 %s11, 2
    %s24 = sadd.s32 1, %s19
    %p25 = scmp.ge.s32.totalorder %s24, 1
    %s26 = scalar_select %p25, 0, %s24
    %s27 = sadd.s32 1, %s18
    %s28 = scalar_select %p25, %s27, %s18
    %p29 = scmp.ge.s32.totalorder %s28, 2
    %s30 = scalar_select %p29, 0, %s28
    %s31 = ssub.s32 %s18, %s30
    %p32 = scmp.eq.s32.totalorder %s31, 0
    %s34 = sadd.s32 %s33, 1
    %s35 = scalar_select %p32, %s33, %s34
    %p38 = pneg %p32
    %p39 = scmp.eq.s32.totalorder %s11, 1
    %p40 = por %p38, %p39
    %p41 = scmp.ne.s32.totalorder %s33, %s36
    %p42 = scmp.eq.s32.totalorder %s11, 0
    %p43 = por %p41, %p42
    %p44 = scmp.ne.s32.totalorder %s33, %s36
    %p45 = scmp.eq.s32.totalorder %s16, 1
    %p46 = por %p44, %p45
    %p47 = scmp.ne.s32.totalorder %s36, %s37
    %p48 = scmp.eq.s32.totalorder %s16, 0
    %p49 = por %p47, %p48
    %p50 = scmp.ne.s32.totalorder %s36, %s37
    %p51 = scmp.eq.s32.totalorder %s17, 1
    %p52 = por %p50, %p51
    %p54 = scmp.ne.s32.totalorder %s37, %s53
    %p55 = scmp.eq.s32.totalorder %s17, 0
    %p56 = por %p54, %p55
    %s58 = sadd.s32 %s57, 1
    %p61 = scmp.eq.s32.totalorder %s11, 1
    %p62 = scmp.ne.s32.totalorder %s57, %s59
    %p63 = scmp.eq.s32.totalorder %s11, 0
    %p64 = por %p62, %p63
    %p65 = scmp.ne.s32.totalorder %s57, %s59
    %p66 = scmp.eq.s32.totalorder %s16, 1
    %p67 = por %p65, %p66
    %p68 = scmp.ne.s32.totalorder %s59, %s60
    %p69 = scmp.eq.s32.totalorder %s16, 0
    %p70 = por %p68, %p69
    %p71 = scmp.ne.s32.totalorder %s59, %s60
    %p72 = scmp.eq.s32.totalorder %s17, 1
    %p73 = por %p71, %p72
    %p75 = scmp.ne.s32.totalorder %s60, %s74
    %p76 = scmp.eq.s32.totalorder %s17, 0
    %p77 = por %p75, %p76
    %s79 = sadd.s32 %s78, 1
    %p82 = scmp.eq.s32.totalorder %s11, 1
    %p83 = scmp.ne.s32.totalorder %s78, %s80
    %p84 = scmp.eq.s32.totalorder %s11, 0
    %p85 = por %p83, %p84
    %p86 = scmp.ne.s32.totalorder %s78, %s80
    %p87 = scmp.eq.s32.totalorder %s16, 1
    %p88 = por %p86, %p87
    %p89 = scmp.ne.s32.totalorder %s80, %s81
    %p90 = scmp.eq.s32.totalorder %s16, 0
    %p91 = por %p89, %p90
    %p92 = scmp.ne.s32.totalorder %s80, %s81
    %p93 = scmp.eq.s32.totalorder %s17, 1
    %p94 = por %p92, %p93
    %p96 = scmp.ne.s32.totalorder %s81, %s95
    %p97 = scmp.eq.s32.totalorder %s17, 0
    %p98 = por %p96, %p97
    %s99 = ssub.s32 %s19, %s26
    %p100 = scmp.eq.s32.totalorder %s99, 0
    %s102 = sadd.s32 %s101, 1
    %s103 = scalar_select %p100, %s101, %s102
    %p106 = pneg %p100
    %p107 = scmp.eq.s32.totalorder %s11, 1
    %p108 = por %p106, %p107
    %p109 = scmp.ne.s32.totalorder %s101, %s104
    %p110 = scmp.eq.s32.totalorder %s11, 0
    %p111 = por %p109, %p110
    %p112 = scmp.ne.s32.totalorder %s101, %s104
    %p113 = scmp.eq.s32.totalorder %s16, 1
    %p114 = por %p112, %p113
    %p115 = scmp.ne.s32.totalorder %s104, %s105
    %p116 = scmp.eq.s32.totalorder %s16, 0
    %p117 = por %p115, %p116
    %p118 = scmp.ne.s32.totalorder %s104, %s105
    %p119 = scmp.eq.s32.totalorder %s17, 1
    %p120 = por %p118, %p119
    %p122 = scmp.ne.s32.totalorder %s105, %s121
    %p123 = scmp.eq.s32.totalorder %s17, 0
    %p124 = por %p122, %p123
    %s125 = ssub.s32 %s19, %s26
    %p126 = scmp.eq.s32.totalorder %s125, 0
    %s128 = sadd.s32 %s127, 1
    %s129 = scalar_select %p126, %s127, %s128
    %p132 = pneg %p126
    %p133 = scmp.eq.s32.totalorder %s11, 1
    %p134 = por %p132, %p133
    %p135 = scmp.ne.s32.totalorder %s127, %s130
    %p136 = scmp.eq.s32.totalorder %s11, 0
    %p137 = por %p135, %p136
    %p138 = scmp.ne.s32.totalorder %s127, %s130
    %p139 = scmp.eq.s32.totalorder %s16, 1
    %p140 = por %p138, %p139
    %p141 = scmp.ne.s32.totalorder %s130, %s131
    %p142 = scmp.eq.s32.totalorder %s16, 0
    %p143 = por %p141, %p142
    %p144 = scmp.ne.s32.totalorder %s130, %s131
    %p145 = scmp.eq.s32.totalorder %s17, 1
    %p146 = por %p144, %p145
    %p148 = scmp.ne.s32.totalorder %s131, %s147
    %p149 = scmp.eq.s32.totalorder %s17, 0
    %p150 = por %p148, %p149
    %s151 = ssub.s32 %s18, %s30
    %s152 = ssub.s32 %s19, %s26
    %s153 = sor.u32 %s151, %s152
    %p154 = scmp.eq.s32.totalorder %s153, 0
    %s156 = sadd.s32 %s155, 1
    %s157 = scalar_select %p154, %s155, %s156
    %p160 = pneg %p154
    %p161 = scmp.eq.s32.totalorder %s11, 1
    %p162 = por %p160, %p161
    %p163 = scmp.ne.s32.totalorder %s155, %s158
    %p164 = scmp.eq.s32.totalorder %s11, 0
    %p165 = por %p163, %p164
    %p166 = scmp.ne.s32.totalorder %s155, %s158
    %p167 = scmp.eq.s32.totalorder %s16, 1
    %p168 = por %p166, %p167
    %p169 = scmp.ne.s32.totalorder %s158, %s159
    %p170 = scmp.eq.s32.totalorder %s16, 0
    %p171 = por %p169, %p170
    %p172 = scmp.ne.s32.totalorder %s158, %s159
    %p173 = scmp.eq.s32.totalorder %s17, 1
    %p174 = por %p172, %p173
    %p176 = scmp.ne.s32.totalorder %s159, %s175
    %p177 = scmp.eq.s32.totalorder %s17, 0
    %p178 = por %p176, %p177
    %p179 = scmp.le.s32.totalorder 1, %s11
    %p180 = scmp.lt.s32.totalorder %s11, 3
    %p181 = pnand %p179, %p180
    %p182 = pneg %p181
    // Predicated region
    $region9: #{longnet_ts_forward.55} parent=5 // pred_check
      _
    $region10: #{longnet_ts_forward.55} parent=5 // pred_check_branch
      %184 = sbr.rel (%p181) target = $region12
    $region11: #{longnet_ts_forward.55} parent=5 // pred_region
      %s185 = ssub.s32 %s11, 1
      // Predicated region
      $region13: #{longnet_ts_forward.55} parent=11 // pred_check
        %p186 = pneg %p70
      $region14: #{longnet_ts_forward.55} parent=11 // pred_check_branch
        %188 = sbr.rel (%p186) target = $region16
      $region15: #{longnet_ts_forward.55} parent=11 // pred_region
        _
      $region16: #{longnet_ts_forward.55} parent=11 // pred_fallthru
        _
      // Predicated region
      $region17: #{longnet_ts_forward.55} parent=11 // pred_check
        %p189 = pneg %p91
      $region18: #{longnet_ts_forward.55} parent=11 // pred_check_branch
        %191 = sbr.rel (%p189) target = $region20
      $region19: #{longnet_ts_forward.55} parent=11 // pred_region
        _
      $region20: #{longnet_ts_forward.55} parent=11 // pred_fallthru
        _
      // Predicated region
      $region21: #{longnet_ts_forward.55} parent=11 // pred_check
        %p192 = pneg %p117
      $region22: #{longnet_ts_forward.55} parent=11 // pred_check_branch
        %194 = sbr.rel (%p192) target = $region24
      $region23: #{longnet_ts_forward.55} parent=11 // pred_region
        %p195 = scmp.lt.s32.totalorder %s21, 0
        %s196 = scalar_select %p195, %s21, 0
        %s197 = smul.addr %s196, 4
        %s198 = scalar_lea.vmem %s3, %s197
      $region24: #{longnet_ts_forward.55} parent=11 // pred_fallthru
        _
      // Predicated region
      $region25: #{longnet_ts_forward.55} parent=11 // pred_check
        %p199 = pneg %p143
      $region26: #{longnet_ts_forward.55} parent=11 // pred_check_branch
        %201 = sbr.rel (%p199) target = $region28
      $region27: #{longnet_ts_forward.55} parent=11 // pred_region
        %p202 = scmp.lt.s32.totalorder %s21, 0
        %s203 = scalar_select %p202, %s21, 0
        %s204 = scalar_lea.vmem %s4, %s203
      $region28: #{longnet_ts_forward.55} parent=11 // pred_fallthru
        _
    $region12: #{longnet_ts_forward.55} parent=5 // pred_fallthru
      _
    %p205 = scmp.lt.s32.totalorder %s11, 2
    // Predicated region
    $region29: #{longnet_ts_forward.55} parent=5 // pred_check
      %p206 = pneg %p205
    $region30: #{longnet_ts_forward.55} parent=5 // pred_check_branch
      %208 = sbr.rel (%p206) target = $region32
    $region31: #{longnet_ts_forward.55} parent=5 // pred_region
      // Predicated region
      $region33: #{longnet_ts_forward.55} parent=31 // pred_check
        %p209 = pneg %p43
      $region34: #{longnet_ts_forward.55} parent=31 // pred_check_branch
        %211 = sbr.rel (%p209) target = $region36
      $region35: #{longnet_ts_forward.55} parent=31 // pred_region
        %s212 = smul.u32 2, %s18
        %p213 = scmp.lt.s32.totalorder %s212, 3
        %s214 = scalar_select %p213, %s212, 3
        %s215 = smul.addr %s214, 8
        %s216 = scalar_lea.vmem %s0, %s215
        %s217 = smul.u32 2, %s18
      $region36: #{longnet_ts_forward.55} parent=31 // pred_fallthru
        _
    $region32: #{longnet_ts_forward.55} parent=5 // pred_fallthru
      _
    %p218 = scmp.le.s32.totalorder 1, %s11
    %p219 = scmp.lt.s32.totalorder %s11, 3
    %p220 = pnand %p218, %p219
    %p221 = pneg %p220
    // Predicated region
    $region37: #{longnet_ts_forward.55} parent=5 // pred_check
      _
    $region38: #{longnet_ts_forward.55} parent=5 // pred_check_branch
      %223 = sbr.rel (%p220) target = $region40
    $region39: #{longnet_ts_forward.55} parent=5 // pred_region
      %s224 = ssub.s32 %s11, 1
      %s225 = smul.u32 2, %s20
      %p226 = scmp.lt.s32.totalorder %s225, 3
      %s227 = scalar_select %p226, %s225, 3
      %s228 = smul.addr %s227, 8
      %s229 = scalar_lea.vmem %s0, %s228
      %p230 = pneg %p49
      %p231 = pneg %p46
      %p232 = pneg %p70
      %p233 = pneg %p67
      %p234 = pneg %p91
      %p235 = pneg %p88
      %p236 = scmp.lt.s32.totalorder %s21, 0
      %s237 = scalar_select %p236, %s21, 0
      %s238 = smul.addr %s237, 4
      %s239 = scalar_lea.vmem %s3, %s238
      %p240 = pneg %p117
      %p241 = pneg %p114
      %p242 = scmp.lt.s32.totalorder %s21, 0
      %s243 = scalar_select %p242, %s21, 0
      %s244 = scalar_lea.vmem %s4, %s243
      %p245 = pneg %p143
      %p246 = pneg %p140
      %p247 = pneg %p171
      %p248 = pneg %p168
      %s249 = smul.u32 2, %s20
      %p250 = scmp.lt.s32.totalorder %s249, 3
      %s251 = scalar_select %p250, %s249, 3
      %p252 = scmp.lt.s32.totalorder %s21, 0
      %s253 = scalar_select %p252, %s21, 0
      %s254 = sadd.s32 %s253, %s251
      %s255 = smul.addr %s254, 4
      %s256 = scalar_lea.vmem %s5, %s255
      %s257 = smul.u32 2, %s20
      %p258 = scmp.lt.s32.totalorder %s257, 3
      %s259 = scalar_select %p258, %s257, 3
      %s260 = smul.addr %s259, 8
      %s261 = scalar_lea.vmem %s0, %s260
      %s262 = smul.u32 2, %s20
      %p263 = scmp.lt.s32.totalorder %s21, 0
      %s264 = scalar_select %p263, %s21, 0
      %s265 = smul.addr %s264, 4
      %s266 = scalar_lea.vmem %s3, %s265
      %p267 = scmp.lt.s32.totalorder %s21, 0
      %s268 = scalar_select %p267, %s21, 0
      %s269 = scalar_lea.vmem %s4, %s268
      %s270 = smul.u32 2, %s20
      %p271 = scmp.lt.s32.totalorder %s270, 3
      %s272 = scalar_select %p271, %s270, 3
      %p273 = scmp.lt.s32.totalorder %s21, 0
      %s274 = scalar_select %p273, %s21, 0
      %s275 = sadd.s32 %s274, %s272
      %s276 = smul.addr %s275, 4
      %s277 = scalar_lea.vmem %s5, %s276
      %s278 = smul.u32 2, %s20
      %v280 = vld [vmem:[%s261] sm:$0xff]
      %v281 = vld [vmem:[%s261 + $0x8] sm:$0xff]
      %vm282 = vcmask 261120
      %v283 = vsel %vm282, %v280, 0.0
      %284 = vadd.xlane.f32.xlu0 %v283
      %v285 = vpop.xlane.xlu0 %284
      %v286 = vsel %vm282, %v281, 0.0
      %287 = vadd.xlane.f32.xlu0 %v286
      %v288 = vpop.xlane.xlu0 %287
      %v289 = vrcp.pop 32.0
      %v290 = vmul.f32 32.0, %v289
      %v291 = vsub.f32 1.0, %v290
      %v292 = vmul.f32 %v289, %v291
      %v293 = vadd.f32 %v289, %v292
      %vm294 = vweird.f32 %v289
      %v295 = vsel %vm294, %v289, %v293
      %v296 = vmul.f32 %v285, %v295
      %v297 = vmul.f32 %v288, %v295
      %v298 = vsub.f32 %v280, %v296
      %v299 = vsub.f32 %v281, %v297
      %v300 = vmul.f32 %v298, %v298
      %v301 = vmul.f32 %v299, %v299
      %v302 = vsel %vm282, %v300, 0.0
      %303 = vadd.xlane.f32.xlu0 %v302
      %v304 = vpop.xlane.xlu0 %303
      %v305 = vsel %vm282, %v301, 0.0
      %306 = vadd.xlane.f32.xlu0 %v305
      %v307 = vpop.xlane.xlu0 %306
      %v308 = vmul.f32 %v304, %v295
      %v309 = vmul.f32 %v307, %v295
      %v310 = vadd.f32 %v308, 1e-05
      %v311 = vadd.f32 %v309, 1e-05
      %v312 = vrsqrt.pop %v310
      %v313 = vmul.f32 %v312, %v310
      %v314 = vmul.f32 %v313, %v312
      %v315 = vmul.f32 0.5, %v314
      %v316 = vsub.f32 1.5, %v315
      %v317 = vmul.f32 %v312, %v316
      %vm318 = vweird.f32 %v310
      %vm319 = vweird.f32 %v312
      %vm320 = vmor %vm318, %vm319
      %v321 = vsel %vm320, %v312, %v317
      %v322 = vrsqrt.pop %v311
      %v323 = vmul.f32 %v322, %v311
      %v324 = vmul.f32 %v323, %v322
      %v325 = vmul.f32 0.5, %v324
      %v326 = vsub.f32 1.5, %v325
      %v327 = vmul.f32 %v322, %v326
      %vm328 = vweird.f32 %v311
      %vm329 = vweird.f32 %v322
      %vm330 = vmor %vm328, %vm329
      %v331 = vsel %vm330, %v322, %v327
      %v332 = vmul.f32 %v298, %v321
      %v333 = vmul.f32 %v299, %v331
      %v334 = vld [vmem:[%s1] sm:$0x1]
      %v336 = vperm.slane %v334, 0
      %v338 = vmul.f32 %v332, %v336
      %v339 = vmul.f32 %v333, %v336
      %v340 = vld [vmem:[%s2] sm:$0x1]
      %v342 = vperm.slane %v340, 0
      %v344 = vadd.f32 %v338, %v342
      %v345 = vadd.f32 %v339, %v342
      %v346 = vld [vmem:[%s266] sm:$0xf]
      %v347 = vld [vmem:[%s266 + $0x4] sm:$0xf]
      %v348 = vld [vmem:[%s266 + $0x8] sm:$0xf]
      %v349 = vld [vmem:[%s266 + $0xc] sm:$0xf]
      %v350 = vpack.c.bf16 %v345, %v344
      %v351 = vld [vmem:[%s269] sm:$0x1]
      %v353 = vperm.slane %v351, 0
      %v359 = vunpack.c.l.b16 %v346
      %v360 = vunpack.c.l.b16 %v347
      %v361 = vunpack.c.l.b16 %v348
      %v362 = vunpack.c.l.b16 %v349
      %v363 = vpack.c.b16 %v360, %v359
      %v364 = vpack.c.b16 %v362, %v361
      %v368 = vsel %vm282, %v350, 0
      %370 = vmatpush.bf16.msra.mxu0 0
      %371 = vmatpush.bf16.msra.mxu0 0
      %372 = vmatpush.bf16.msra.mxu0 0
      %373 = vmatpush.bf16.msra.mxu0 0
      %374 = vmatpush.bf16.msra.mxu0 0
      %375 = vmatpush.bf16.msra.mxu0 0
      %376 = vmatpush.bf16.msra.mxu0 %v364
      %377 = vmatpush.bf16.msra.mxu0 %v363
      %378 = vmatmul.bf16.gmra.mxu0 %v368
      %v379 = vpop.f32.mrf.mxu0
      %v380 = vadd.f32 %v353, %v379
      %v381 = vpop.f32.mrf.mxu0
      %v382 = vadd.f32 %v353, %v381
      %383 = vdwg.mxu0
      %v384 = vpack.c.bf16 %v380, %v380
      %v385 = vpack.c.bf16 %v382, %v382
      %vm386 = vcmask 257024
      %387 = vst.msk [vmem:[%s277] sm:$0xf] %vm386, %v384
      %388 = vst.msk [vmem:[%s277 + $0x4] sm:$0xf] %vm386, %v385
      %s389 = smul.u32 2, %s20
      %p390 = scmp.lt.s32.totalorder %s389, 3
      %s391 = scalar_select %p390, %s389, 3
      %p392 = scmp.lt.s32.totalorder %s21, 0
      %s393 = scalar_select %p392, %s21, 0
      %s394 = sadd.s32 %s393, %s391
      %s395 = smul.addr %s394, 4
      %s396 = scalar_lea.vmem %s5, %s395
      // Predicated region
      $region41: #{longnet_ts_forward.55} parent=39 // pred_check
        %p397 = pneg %p168
      $region42: #{longnet_ts_forward.55} parent=39 // pred_check_branch
        %399 = sbr.rel (%p397) target = $region44
      $region43: #{longnet_ts_forward.55} parent=39 // pred_region
        %s400 = smul.u32 2, %s20
      $region44: #{longnet_ts_forward.55} parent=39 // pred_fallthru
        _
    $region40: #{longnet_ts_forward.55} parent=5 // pred_fallthru
      _
    %p401 = scmp.le.s32.totalorder 2, %s11
    // Predicated region
    $region45: #{longnet_ts_forward.55} parent=5 // pred_check
      %p402 = pneg %p401
    $region46: #{longnet_ts_forward.55} parent=5 // pred_check_branch
      %404 = sbr.rel (%p402) target = $region48
    $region47: #{longnet_ts_forward.55} parent=5 // pred_region
      %s405 = ssub.s32 %s11, 2
      // Predicated region
      $region49: #{longnet_ts_forward.55} parent=47 // pred_check
        %p406 = pneg %p174
      $region50: #{longnet_ts_forward.55} parent=47 // pred_check_branch
        %408 = sbr.rel (%p406) target = $region52
      $region51: #{longnet_ts_forward.55} parent=47 // pred_region
        %s409 = smul.u32 2, %s22
        %p410 = scmp.lt.s32.totalorder %s409, 3
        %s411 = scalar_select %p410, %s409, 3
        %p412 = scmp.lt.s32.totalorder %s23, 0
        %s413 = scalar_select %p412, %s23, 0
        %s414 = sadd.s32 %s413, %s411
        %s415 = smul.addr %s414, 4
        %s416 = scalar_lea.vmem %s5, %s415
      $region52: #{longnet_ts_forward.55} parent=47 // pred_fallthru
        _
    $region48: #{longnet_ts_forward.55} parent=5 // pred_fallthru
      _
  $region6: #{longnet_ts_forward.55} parent=0 // loop_footer
    %s15 = sadd.s32 1, %s11
  $region7: #{longnet_ts_forward.55} parent=0 // loop_footer_branch
    %10 = sbr.rel target = $region3
  $region8: #{longnet_ts_forward.55} parent=0 // loop_exit
    _

// kernel: longnet_ts_forward.73
$region0: #{longnet_ts_forward.73}
  #allocation0 [shape = 'u32[]', space=smem, size = 0x4, offset = 0x4, fixed_abs, tag = 'smem constant byte address 0x4 - core index']
  #allocation1 [shape = 'u32[72,128]{1,0:T(1,128)}', space=vmem, size = 0x9000, scoped, tag = 'internal scratch']
  %s0 = inlined_call_operand.vmem [shape: f32[32,32], index: 0, kind: input, shape index: {}]
  %s1 = inlined_call_operand.vmem [shape: f32[1,32], index: 1, kind: input, shape index: {}]
  %s2 = inlined_call_operand.vmem [shape: f32[1,32], index: 2, kind: input, shape index: {}]
  %s3 = inlined_call_operand.vmem [shape: bf16[32,4], index: 3, kind: input, shape index: {}]
  %s4 = inlined_call_operand.vmem [shape: f32[1,4], index: 4, kind: input, shape index: {}]
  %s5 = inlined_call_operand.vmem [shape: f32[32,4], index: 5, kind: output, shape index: {}]
  %s6 = sld [smem:[#allocation0]]
  $region53: #{longnet_ts_forward.73} parent=0
    _
  %s8 = ssub.s32 1, %s6
  %s9 = scalar_select 0, %s8, %s6
  loop: start=0, step=1, limit=4
  $region2: #{longnet_ts_forward.73} parent=0 // loop_pre_header
    _
  $region3: #{longnet_ts_forward.73} parent=0 // loop_header
    %s11 = sphi 0, %s15
    %p12 = scmp.ge.s32.totalorder %s11, 4
    %s18 = sphi 0, %s30
    %s19 = sphi 0, %s26
    %s20 = sphi 0, %s18
    %s21 = sphi 0, %s19
    %s22 = sphi 0, %s20
    %s23 = sphi 0, %s21
    %s33 = sphi 0, %s35
    %s36 = sphi 0, %s33
    %s37 = sphi 0, %s36
    %s53 = sphi 0, %s37
    %s57 = sphi 0, %s57
    %s59 = sphi 0, %s57
    %s60 = sphi 0, %s59
    %s74 = sphi 0, %s60
    %s78 = sphi 0, %s78
    %s80 = sphi 0, %s78
    %s81 = sphi 0, %s80
    %s95 = sphi 0, %s81
    %s101 = sphi 0, %s103
    %s104 = sphi 0, %s101
    %s105 = sphi 0, %s104
    %s121 = sphi 0, %s105
    %s127 = sphi 0, %s129
    %s130 = sphi 0, %s127
    %s131 = sphi 0, %s130
    %s147 = sphi 0, %s131
    %s155 = sphi 0, %s157
    %s158 = sphi 0, %s155
    %s159 = sphi 0, %s158
    %s175 = sphi 0, %s159
  $region4: #{longnet_ts_forward.73} parent=0 // loop_header_branch
    %14 = sbr.rel (%p12) target = $region8
  $region5: #{longnet_ts_forward.73} parent=0 // loop_body
    %s16 = ssub.s32 %s11, 1
    %s17 = ssub.s32 %s11, 2
    %s24 = sadd.s32 1, %s19
    %p25 = scmp.ge.s32.totalorder %s24, 1
    %s26 = scalar_select %p25, 0, %s24
    %s27 = sadd.s32 1, %s18
    %s28 = scalar_select %p25, %s27, %s18
    %p29 = scmp.ge.s32.totalorder %s28, 2
    %s30 = scalar_select %p29, 0, %s28
    %s31 = ssub.s32 %s18, %s30
    %p32 = scmp.eq.s32.totalorder %s31, 0
    %s34 = sadd.s32 %s33, 1
    %s35 = scalar_select %p32, %s33, %s34
    %p38 = pneg %p32
    %p39 = scmp.eq.s32.totalorder %s11, 1
    %p40 = por %p38, %p39
    %p41 = scmp.ne.s32.totalorder %s33, %s36
    %p42 = scmp.eq.s32.totalorder %s11, 0
    %p43 = por %p41, %p42
    %p44 = scmp.ne.s32.totalorder %s33, %s36
    %p45 = scmp.eq.s32.totalorder %s16, 1
    %p46 = por %p44, %p45
    %p47 = scmp.ne.s32.totalorder %s36, %s37
    %p48 = scmp.eq.s32.totalorder %s16, 0
    %p49 = por %p47, %p48
    %p50 = scmp.ne.s32.totalorder %s36, %s37
    %p51 = scmp.eq.s32.totalorder %s17, 1
    %p52 = por %p50, %p51
    %p54 = scmp.ne.s32.totalorder %s37, %s53
    %p55 = scmp.eq.s32.totalorder %s17, 0
    %p56 = por %p54, %p55
    %s58 = sadd.s32 %s57, 1
    %p61 = scmp.eq.s32.totalorder %s11, 1
    %p62 = scmp.ne.s32.totalorder %s57, %s59
    %p63 = scmp.eq.s32.totalorder %s11, 0
    %p64 = por %p62, %p63
    %p65 = scmp.ne.s32.totalorder %s57, %s59
    %p66 = scmp.eq.s32.totalorder %s16, 1
    %p67 = por %p65, %p66
    %p68 = scmp.ne.s32.totalorder %s59, %s60
    %p69 = scmp.eq.s32.totalorder %s16, 0
    %p70 = por %p68, %p69
    %p71 = scmp.ne.s32.totalorder %s59, %s60
    %p72 = scmp.eq.s32.totalorder %s17, 1
    %p73 = por %p71, %p72
    %p75 = scmp.ne.s32.totalorder %s60, %s74
    %p76 = scmp.eq.s32.totalorder %s17, 0
    %p77 = por %p75, %p76
    %s79 = sadd.s32 %s78, 1
    %p82 = scmp.eq.s32.totalorder %s11, 1
    %p83 = scmp.ne.s32.totalorder %s78, %s80
    %p84 = scmp.eq.s32.totalorder %s11, 0
    %p85 = por %p83, %p84
    %p86 = scmp.ne.s32.totalorder %s78, %s80
    %p87 = scmp.eq.s32.totalorder %s16, 1
    %p88 = por %p86, %p87
    %p89 = scmp.ne.s32.totalorder %s80, %s81
    %p90 = scmp.eq.s32.totalorder %s16, 0
    %p91 = por %p89, %p90
    %p92 = scmp.ne.s32.totalorder %s80, %s81
    %p93 = scmp.eq.s32.totalorder %s17, 1
    %p94 = por %p92, %p93
    %p96 = scmp.ne.s32.totalorder %s81, %s95
    %p97 = scmp.eq.s32.totalorder %s17, 0
    %p98 = por %p96, %p97
    %s99 = ssub.s32 %s19, %s26
    %p100 = scmp.eq.s32.totalorder %s99, 0
    %s102 = sadd.s32 %s101, 1
    %s103 = scalar_select %p100, %s101, %s102
    %p106 = pneg %p100
    %p107 = scmp.eq.s32.totalorder %s11, 1
    %p108 = por %p106, %p107
    %p109 = scmp.ne.s32.totalorder %s101, %s104
    %p110 = scmp.eq.s32.totalorder %s11, 0
    %p111 = por %p109, %p110
    %p112 = scmp.ne.s32.totalorder %s101, %s104
    %p113 = scmp.eq.s32.totalorder %s16, 1
    %p114 = por %p112, %p113
    %p115 = scmp.ne.s32.totalorder %s104, %s105
    %p116 = scmp.eq.s32.totalorder %s16, 0
    %p117 = por %p115, %p116
    %p118 = scmp.ne.s32.totalorder %s104, %s105
    %p119 = scmp.eq.s32.totalorder %s17, 1
    %p120 = por %p118, %p119
    %p122 = scmp.ne.s32.totalorder %s105, %s121
    %p123 = scmp.eq.s32.totalorder %s17, 0
    %p124 = por %p122, %p123
    %s125 = ssub.s32 %s19, %s26
    %p126 = scmp.eq.s32.totalorder %s125, 0
    %s128 = sadd.s32 %s127, 1
    %s129 = scalar_select %p126, %s127, %s128
    %p132 = pneg %p126
    %p133 = scmp.eq.s32.totalorder %s11, 1
    %p134 = por %p132, %p133
    %p135 = scmp.ne.s32.totalorder %s127, %s130
    %p136 = scmp.eq.s32.totalorder %s11, 0
    %p137 = por %p135, %p136
    %p138 = scmp.ne.s32.totalorder %s127, %s130
    %p139 = scmp.eq.s32.totalorder %s16, 1
    %p140 = por %p138, %p139
    %p141 = scmp.ne.s32.totalorder %s130, %s131
    %p142 = scmp.eq.s32.totalorder %s16, 0
    %p143 = por %p141, %p142
    %p144 = scmp.ne.s32.totalorder %s130, %s131
    %p145 = scmp.eq.s32.totalorder %s17, 1
    %p146 = por %p144, %p145
    %p148 = scmp.ne.s32.totalorder %s131, %s147
    %p149 = scmp.eq.s32.totalorder %s17, 0
    %p150 = por %p148, %p149
    %s151 = ssub.s32 %s18, %s30
    %s152 = ssub.s32 %s19, %s26
    %s153 = sor.u32 %s151, %s152
    %p154 = scmp.eq.s32.totalorder %s153, 0
    %s156 = sadd.s32 %s155, 1
    %s157 = scalar_select %p154, %s155, %s156
    %p160 = pneg %p154
    %p161 = scmp.eq.s32.totalorder %s11, 1
    %p162 = por %p160, %p161
    %p163 = scmp.ne.s32.totalorder %s155, %s158
    %p164 = scmp.eq.s32.totalorder %s11, 0
    %p165 = por %p163, %p164
    %p166 = scmp.ne.s32.totalorder %s155, %s158
    %p167 = scmp.eq.s32.totalorder %s16, 1
    %p168 = por %p166, %p167
    %p169 = scmp.ne.s32.totalorder %s158, %s159
    %p170 = scmp.eq.s32.totalorder %s16, 0
    %p171 = por %p169, %p170
    %p172 = scmp.ne.s32.totalorder %s158, %s159
    %p173 = scmp.eq.s32.totalorder %s17, 1
    %p174 = por %p172, %p173
    %p176 = scmp.ne.s32.totalorder %s159, %s175
    %p177 = scmp.eq.s32.totalorder %s17, 0
    %p178 = por %p176, %p177
    %p179 = scmp.le.s32.totalorder 1, %s11
    %p180 = scmp.lt.s32.totalorder %s11, 3
    %p181 = pnand %p179, %p180
    %p182 = pneg %p181
    // Predicated region
    $region9: #{longnet_ts_forward.73} parent=5 // pred_check
      _
    $region10: #{longnet_ts_forward.73} parent=5 // pred_check_branch
      %184 = sbr.rel (%p181) target = $region12
    $region11: #{longnet_ts_forward.73} parent=5 // pred_region
      %s185 = ssub.s32 %s11, 1
      // Predicated region
      $region13: #{longnet_ts_forward.73} parent=11 // pred_check
        %p186 = pneg %p70
      $region14: #{longnet_ts_forward.73} parent=11 // pred_check_branch
        %188 = sbr.rel (%p186) target = $region16
      $region15: #{longnet_ts_forward.73} parent=11 // pred_region
        _
      $region16: #{longnet_ts_forward.73} parent=11 // pred_fallthru
        _
      // Predicated region
      $region17: #{longnet_ts_forward.73} parent=11 // pred_check
        %p189 = pneg %p91
      $region18: #{longnet_ts_forward.73} parent=11 // pred_check_branch
        %191 = sbr.rel (%p189) target = $region20
      $region19: #{longnet_ts_forward.73} parent=11 // pred_region
        _
      $region20: #{longnet_ts_forward.73} parent=11 // pred_fallthru
        _
      // Predicated region
      $region21: #{longnet_ts_forward.73} parent=11 // pred_check
        %p192 = pneg %p117
      $region22: #{longnet_ts_forward.73} parent=11 // pred_check_branch
        %194 = sbr.rel (%p192) target = $region24
      $region23: #{longnet_ts_forward.73} parent=11 // pred_region
        %p195 = scmp.lt.s32.totalorder %s21, 0
        %s196 = scalar_select %p195, %s21, 0
        %s197 = smul.addr %s196, 4
        %s198 = scalar_lea.vmem %s3, %s197
      $region24: #{longnet_ts_forward.73} parent=11 // pred_fallthru
        _
      // Predicated region
      $region25: #{longnet_ts_forward.73} parent=11 // pred_check
        %p199 = pneg %p143
      $region26: #{longnet_ts_forward.73} parent=11 // pred_check_branch
        %201 = sbr.rel (%p199) target = $region28
      $region27: #{longnet_ts_forward.73} parent=11 // pred_region
        %p202 = scmp.lt.s32.totalorder %s21, 0
        %s203 = scalar_select %p202, %s21, 0
        %s204 = scalar_lea.vmem %s4, %s203
      $region28: #{longnet_ts_forward.73} parent=11 // pred_fallthru
        _
    $region12: #{longnet_ts_forward.73} parent=5 // pred_fallthru
      _
    %p205 = scmp.lt.s32.totalorder %s11, 2
    // Predicated region
    $region29: #{longnet_ts_forward.73} parent=5 // pred_check
      %p206 = pneg %p205
    $region30: #{longnet_ts_forward.73} parent=5 // pred_check_branch
      %208 = sbr.rel (%p206) target = $region32
    $region31: #{longnet_ts_forward.73} parent=5 // pred_region
      // Predicated region
      $region33: #{longnet_ts_forward.73} parent=31 // pred_check
        %p209 = pneg %p43
      $region34: #{longnet_ts_forward.73} parent=31 // pred_check_branch
        %211 = sbr.rel (%p209) target = $region36
      $region35: #{longnet_ts_forward.73} parent=31 // pred_region
        %s212 = smul.u32 2, %s18
        %p213 = scmp.lt.s32.totalorder %s212, 3
        %s214 = scalar_select %p213, %s212, 3
        %s215 = smul.addr %s214, 8
        %s216 = scalar_lea.vmem %s0, %s215
        %s217 = smul.u32 2, %s18
      $region36: #{longnet_ts_forward.73} parent=31 // pred_fallthru
        _
    $region32: #{longnet_ts_forward.73} parent=5 // pred_fallthru
      _
    %p218 = scmp.le.s32.totalorder 1, %s11
    %p219 = scmp.lt.s32.totalorder %s11, 3
    %p220 = pnand %p218, %p219
    %p221 = pneg %p220
    // Predicated region
    $region37: #{longnet_ts_forward.73} parent=5 // pred_check
      _
    $region38: #{longnet_ts_forward.73} parent=5 // pred_check_branch
      %223 = sbr.rel (%p220) target = $region40
    $region39: #{longnet_ts_forward.73} parent=5 // pred_region
      %s224 = ssub.s32 %s11, 1
      %s225 = smul.u32 2, %s20
      %p226 = scmp.lt.s32.totalorder %s225, 3
      %s227 = scalar_select %p226, %s225, 3
      %s228 = smul.addr %s227, 8
      %s229 = scalar_lea.vmem %s0, %s228
      %p230 = pneg %p49
      %p231 = pneg %p46
      %p232 = pneg %p70
      %p233 = pneg %p67
      %p234 = pneg %p91
      %p235 = pneg %p88
      %p236 = scmp.lt.s32.totalorder %s21, 0
      %s237 = scalar_select %p236, %s21, 0
      %s238 = smul.addr %s237, 4
      %s239 = scalar_lea.vmem %s3, %s238
      %p240 = pneg %p117
      %p241 = pneg %p114
      %p242 = scmp.lt.s32.totalorder %s21, 0
      %s243 = scalar_select %p242, %s21, 0
      %s244 = scalar_lea.vmem %s4, %s243
      %p245 = pneg %p143
      %p246 = pneg %p140
      %p247 = pneg %p171
      %p248 = pneg %p168
      %s249 = smul.u32 2, %s20
      %p250 = scmp.lt.s32.totalorder %s249, 3
      %s251 = scalar_select %p250, %s249, 3
      %p252 = scmp.lt.s32.totalorder %s21, 0
      %s253 = scalar_select %p252, %s21, 0
      %s254 = sadd.s32 %s253, %s251
      %s255 = smul.addr %s254, 8
      %s256 = scalar_lea.vmem %s5, %s255
      %s257 = smul.u32 2, %s20
      %p258 = scmp.lt.s32.totalorder %s257, 3
      %s259 = scalar_select %p258, %s257, 3
      %s260 = smul.addr %s259, 8
      %s261 = scalar_lea.vmem %s0, %s260
      %s262 = smul.u32 2, %s20
      %p263 = scmp.lt.s32.totalorder %s21, 0
      %s264 = scalar_select %p263, %s21, 0
      %s265 = smul.addr %s264, 4
      %s266 = scalar_lea.vmem %s3, %s265
      %p267 = scmp.lt.s32.totalorder %s21, 0
      %s268 = scalar_select %p267, %s21, 0
      %s269 = scalar_lea.vmem %s4, %s268
      %s270 = smul.u32 2, %s20
      %p271 = scmp.lt.s32.totalorder %s270, 3
      %s272 = scalar_select %p271, %s270, 3
      %p273 = scmp.lt.s32.totalorder %s21, 0
      %s274 = scalar_select %p273, %s21, 0
      %s275 = sadd.s32 %s274, %s272
      %s276 = smul.addr %s275, 8
      %s277 = scalar_lea.vmem %s5, %s276
      %s278 = smul.u32 2, %s20
      %v280 = vld [vmem:[%s261] sm:$0xff]
      %v281 = vld [vmem:[%s261 + $0x8] sm:$0xff]
      %vm282 = vcmask 261120
      %v283 = vsel %vm282, %v280, 0.0
      %284 = vadd.xlane.f32.xlu0 %v283
      %v285 = vpop.xlane.xlu0 %284
      %v286 = vsel %vm282, %v281, 0.0
      %287 = vadd.xlane.f32.xlu0 %v286
      %v288 = vpop.xlane.xlu0 %287
      %v289 = vrcp.pop 32.0
      %v290 = vmul.f32 32.0, %v289
      %v291 = vsub.f32 1.0, %v290
      %v292 = vmul.f32 %v289, %v291
      %v293 = vadd.f32 %v289, %v292
      %vm294 = vweird.f32 %v289
      %v295 = vsel %vm294, %v289, %v293
      %v296 = vmul.f32 %v285, %v295
      %v297 = vmul.f32 %v288, %v295
      %v298 = vsub.f32 %v280, %v296
      %v299 = vsub.f32 %v281, %v297
      %v300 = vmul.f32 %v298, %v298
      %v301 = vmul.f32 %v299, %v299
      %v302 = vsel %vm282, %v300, 0.0
      %303 = vadd.xlane.f32.xlu0 %v302
      %v304 = vpop.xlane.xlu0 %303
      %v305 = vsel %vm282, %v301, 0.0
      %306 = vadd.xlane.f32.xlu0 %v305
      %v307 = vpop.xlane.xlu0 %306
      %v308 = vmul.f32 %v304, %v295
      %v309 = vmul.f32 %v307, %v295
      %v310 = vadd.f32 %v308, 1e-05
      %v311 = vadd.f32 %v309, 1e-05
      %v312 = vrsqrt.pop %v310
      %v313 = vmul.f32 %v312, %v310
      %v314 = vmul.f32 %v313, %v312
      %v315 = vmul.f32 0.5, %v314
      %v316 = vsub.f32 1.5, %v315
      %v317 = vmul.f32 %v312, %v316
      %vm318 = vweird.f32 %v310
      %vm319 = vweird.f32 %v312
      %vm320 = vmor %vm318, %vm319
      %v321 = vsel %vm320, %v312, %v317
      %v322 = vrsqrt.pop %v311
      %v323 = vmul.f32 %v322, %v311
      %v324 = vmul.f32 %v323, %v322
      %v325 = vmul.f32 0.5, %v324
      %v326 = vsub.f32 1.5, %v325
      %v327 = vmul.f32 %v322, %v326
      %vm328 = vweird.f32 %v311
      %vm329 = vweird.f32 %v322
      %vm330 = vmor %vm328, %vm329
      %v331 = vsel %vm330, %v322, %v327
      %v332 = vmul.f32 %v298, %v321
      %v333 = vmul.f32 %v299, %v331
      %v334 = vld [vmem:[%s1] sm:$0x1]
      %v336 = vperm.slane %v334, 0
      %v338 = vmul.f32 %v332, %v336
      %v339 = vmul.f32 %v333, %v336
      %v340 = vld [vmem:[%s2] sm:$0x1]
      %v342 = vperm.slane %v340, 0
      %v344 = vadd.f32 %v338, %v342
      %v345 = vadd.f32 %v339, %v342
      %v346 = vld [vmem:[%s266] sm:$0xf]
      %v347 = vld [vmem:[%s266 + $0x4] sm:$0xf]
      %v348 = vld [vmem:[%s266 + $0x8] sm:$0xf]
      %v349 = vld [vmem:[%s266 + $0xc] sm:$0xf]
      %v350 = vpack.c.bf16 %v345, %v344
      %v351 = vld [vmem:[%s269] sm:$0x1]
      %v353 = vperm.slane %v351, 0
      %v359 = vunpack.c.l.b16 %v346
      %v360 = vunpack.c.l.b16 %v347
      %v361 = vunpack.c.l.b16 %v348
      %v362 = vunpack.c.l.b16 %v349
      %v363 = vpack.c.b16 %v360, %v359
      %v364 = vpack.c.b16 %v362, %v361
      %v368 = vsel %vm282, %v350, 0
      %370 = vmatpush.bf16.msra.mxu0 0
      %371 = vmatpush.bf16.msra.mxu0 0
      %372 = vmatpush.bf16.msra.mxu0 0
      %373 = vmatpush.bf16.msra.mxu0 0
      %374 = vmatpush.bf16.msra.mxu0 0
      %375 = vmatpush.bf16.msra.mxu0 0
      %376 = vmatpush.bf16.msra.mxu0 %v364
      %377 = vmatpush.bf16.msra.mxu0 %v363
      %378 = vmatmul.bf16.gmra.mxu0 %v368
      %v379 = vpop.f32.mrf.mxu0
      %v380 = vadd.f32 %v353, %v379
      %v381 = vpop.f32.mrf.mxu0
      %v382 = vadd.f32 %v353, %v381
      %383 = vdwg.mxu0
      %vm384 = vcmask 31744
      %385 = vst.msk [vmem:[%s277] sm:$0xff] %vm384, %v380
      %386 = vst.msk [vmem:[%s277 + $0x8] sm:$0xff] %vm384, %v382
      %s387 = smul.u32 2, %s20
      %p388 = scmp.lt.s32.totalorder %s387, 3
      %s389 = scalar_select %p388, %s387, 3
      %p390 = scmp.lt.s32.totalorder %s21, 0
      %s391 = scalar_select %p390, %s21, 0
      %s392 = sadd.s32 %s391, %s389
      %s393 = smul.addr %s392, 8
      %s394 = scalar_lea.vmem %s5, %s393
      // Predicated region
      $region41: #{longnet_ts_forward.73} parent=39 // pred_check
        %p395 = pneg %p168
      $region42: #{longnet_ts_forward.73} parent=39 // pred_check_branch
        %397 = sbr.rel (%p395) target = $region44
      $region43: #{longnet_ts_forward.73} parent=39 // pred_region
        %s398 = smul.u32 2, %s20
      $region44: #{longnet_ts_forward.73} parent=39 // pred_fallthru
        _
    $region40: #{longnet_ts_forward.73} parent=5 // pred_fallthru
      _
    %p399 = scmp.le.s32.totalorder 2, %s11
    // Predicated region
    $region45: #{longnet_ts_forward.73} parent=5 // pred_check
      %p400 = pneg %p399
    $region46: #{longnet_ts_forward.73} parent=5 // pred_check_branch
      %402 = sbr.rel (%p400) target = $region48
    $region47: #{longnet_ts_forward.73} parent=5 // pred_region
      %s403 = ssub.s32 %s11, 2
      // Predicated region
      $region49: #{longnet_ts_forward.73} parent=47 // pred_check
        %p404 = pneg %p174
      $region50: #{longnet_ts_forward.73} parent=47 // pred_check_branch
        %406 = sbr.rel (%p404) target = $region52
      $region51: #{longnet_ts_forward.73} parent=47 // pred_region
        %s407 = smul.u32 2, %s22
        %p408 = scmp.lt.s32.totalorder %s407, 3
        %s409 = scalar_select %p408, %s407, 3
        %p410 = scmp.lt.s32.totalorder %s23, 0
        %s411 = scalar_select %p410, %s23, 0
        %s412 = sadd.s32 %s411, %s409
        %s413 = smul.addr %s412, 8
        %s414 = scalar_lea.vmem %s5, %s413
      $region52: #{longnet_ts_forward.73} parent=47 // pred_fallthru
        _
    $region48: #{longnet_ts_forward.73} parent=5 // pred_fallthru
      _
  $region6: #{longnet_ts_forward.73} parent=0 // loop_footer
    %s15 = sadd.s32 1, %s11
  $region7: #{longnet_ts_forward.73} parent=0 // loop_footer_branch
    %10 = sbr.rel target = $region3
  $region8: #{longnet_ts_forward.73} parent=0 // loop_exit
    _

</llo_original>
